<compile_context>
chip_gen: v5e
topology: v5e:2x2
jax: 0.10.0
libtpu: 0.0.40
codegen_flags: <defaults>
</compile_context>

<pallas_src>
import functools
import math

import jax
import jax.numpy as jnp
from jax.experimental import pallas as pl
from jax.experimental.pallas import tpu as pltpu


# ----------------------------------------------------------------------------
# generation-aware sizing (v5e/v6e: 128 MiB VMEM, v7x: 64 MiB)
# ----------------------------------------------------------------------------
def _vmem_capacity_bytes():
    try:
        info = pltpu.get_tpu_info()
        return int(getattr(info, "vmem_capacity_bytes", 64 * 1024 * 1024))
    except Exception:
        return 64 * 1024 * 1024                  # conservative (v7x-sized) fallback


_VMEM_CAP = _vmem_capacity_bytes()
_SMALL_VMEM = _VMEM_CAP < 96 * 1024 * 1024
_VMEM_LIMIT = (40 if _SMALL_VMEM else 96) * 1024 * 1024
_GROUP_TOKEN_TARGET = 1024 if _SMALL_VMEM else 4096   # tokens per attention tile
_MLP_TOKEN_TARGET = 512 if _SMALL_VMEM else 2048      # tokens per MLP tile
_ROW_TARGET = 256 if _SMALL_VMEM else 512             # rows per small projection tile


# ----------------------------------------------------------------------------
# feature probes (run tiny kernels once at import; graceful fallback on failure)
# ----------------------------------------------------------------------------
def _feature_probe(run):
    try:
        return bool(run())
    except Exception:
        return False


def _probe_fused_permutes():
    """Can Mosaic lower the in-kernel axis permutes / lane splits used by the
    batched-head SDPA and the fused temporal transpose?"""
    S, H, hd = 8, 4, 8
    D = H * hd

    def kern(x_ref, o1_ref, o2_ref):
        x = x_ref[...]                                       # (S, S, D)
        o1_ref[...] = jnp.swapaxes(x, 0, 1)                  # leading-axes permute
        t = x.reshape(S, S, H, hd)                           # lane split
        t = jnp.swapaxes(t, 1, 2).reshape(S * H, S, hd)      # head -> batch
        t = jnp.swapaxes(t.reshape(S, H, S, hd), 1, 2)       # and back
        o2_ref[...] = t.reshape(S, S, D)                     # lane merge

    def run():
        x = jax.random.normal(jax.random.PRNGKey(1), (S, S, D), jnp.float32)
        o1, o2 = pl.pallas_call(
            kern,
            out_shape=(jax.ShapeDtypeStruct((S, S, D), jnp.float32),
                       jax.ShapeDtypeStruct((S, S, D), jnp.float32)))(x)
        jax.block_until_ready((o1, o2))
        return bool(jnp.allclose(o1, jnp.swapaxes(x, 0, 1))) and bool(jnp.allclose(o2, x))

    return _feature_probe(run)


def _probe_single_buffered_weights():
    """Can pipeline_mode=pl.Buffered(1) keep grid-constant weights single-buffered?"""
    buffered = getattr(pl, "Buffered", None)
    if buffered is None:
        return None

    def run():
        def kern(x_ref, o_ref):
            o_ref[...] = x_ref[...] + 1.0
        x = jnp.zeros((8, 128), jnp.float32)
        out = pl.pallas_call(
            kern,
            out_shape=jax.ShapeDtypeStruct((8, 128), jnp.float32),
            grid=(2,),
            in_specs=[pl.BlockSpec((8, 128), lambda i: (0, 0),
                                   pipeline_mode=buffered(1))],
            out_specs=pl.BlockSpec((8, 128), lambda i: (0, 0)))(x)
        jax.block_until_ready(out)
        return bool(jnp.allclose(out, 1.0))

    return buffered(1) if _feature_probe(run) else None


_FUSED_PERMUTES = _probe_fused_permutes()
_WEIGHT_PIPELINE_MODE = _probe_single_buffered_weights()


# ----------------------------------------------------------------------------
# helpers
# ----------------------------------------------------------------------------
def prepare_params(p):
    """Cast matmul weights to bf16 ONCE (call outside the per-step path)."""
    return {k: (v.astype(jnp.bfloat16) if k.rsplit('_', 1)[-1].startswith('w') else v)
            for k, v in p.items()}


def _gelu_tanh(x):
    c = math.sqrt(2.0 / math.pi)
    return 0.5 * x * (1.0 + jnp.tanh(c * (x + 0.044715 * x * x * x)))


def _layernorm(x):
    mu = jnp.mean(x, axis=-1, keepdims=True)
    xc = x - mu
    var = jnp.mean(xc * xc, axis=-1, keepdims=True)
    return xc * jax.lax.rsqrt(var + 1e-6)


def _matmul(x_f32, w_bf16, b_f32):
    """bf16 MXU matmul with f32 accumulation, plus f32 bias."""
    return jnp.dot(x_f32.astype(jnp.bfloat16), w_bf16,
                   preferred_element_type=jnp.float32) + b_f32


def _w_spec(shape):
    """Grid-constant weight/bias spec; single-buffered when supported."""
    zeros = (0,) * len(shape)
    if _WEIGHT_PIPELINE_MODE is not None:
        return pl.BlockSpec(shape, lambda *_: zeros,
                            pipeline_mode=_WEIGHT_PIPELINE_MODE)
    return pl.BlockSpec(shape, lambda *_: zeros)


def _row_block(rows, target, min_steps=8):
    """Row tile on a sublane axis: full extent for tiny inputs, else a multiple
    of 8 bounded by `target` and sized for >= min_steps grid steps."""
    if rows <= 8:
        return rows
    cap = max(8, (min(target, rows) // 8) * 8)
    per = -(-rows // min_steps)
    per = max(8, (-(-per // 8)) * 8)
    return min(cap, per)


def _group_block(extent, tokens_per_group, other_steps=1, min_steps=8):
    """Tile for a group axis NOT on the block's last-two dims (no (8,128)
    constraint): bounded by a VMEM token budget and shrunk so the grid keeps
    >= min_steps total steps when possible."""
    gb = max(1, _GROUP_TOKEN_TARGET // max(tokens_per_group, 1))
    want = -(-min_steps // max(other_steps, 1))
    if want > 1:
        gb = min(gb, max(1, -(-extent // want)))
    return min(gb, extent)


def _sublane_block(extent, tokens_per_item, other_steps=1, min_steps=8):
    """Tile for an axis on the block's second-to-last dim: multiple of 8 or full."""
    if extent <= 8:
        return extent
    b = max(1, _GROUP_TOKEN_TARGET // max(tokens_per_item, 1))
    want = -(-min_steps // max(other_steps, 1))
    if want > 1:
        b = min(b, -(-extent // want))
    if b >= extent:
        return extent
    return max(8, (b // 8) * 8)


# ----------------------------------------------------------------------------
# multi-head SDPA (batched heads when the permute lowering is available)
# ----------------------------------------------------------------------------
def _mhsa(qkv2d, G, S, num_heads, is_causal):
    """qkv2d: (G*S, 3*D) f32 -> (G*S, D) f32 (heads concatenated)."""
    D = qkv2d.shape[-1] // 3
    hd = D // num_heads
    inv_scale = 1.0 / math.sqrt(hd)

    if is_causal:
        r = jax.lax.broadcasted_iota(jnp.int32, (S, S), 0)
        c = jax.lax.broadcasted_iota(jnp.int32, (S, S), 1)
        causal = (r >= c)[None, :, :]

    if _FUSED_PERMUTES:
        # Batched heads: one (G*H)-batched SDPA instead of a python loop.
        def to_heads(t2d):                     # (G*S, D) -> (G*H, S, hd)
            t = t2d.reshape(G, S, num_heads, hd)
            t = jnp.swapaxes(t, 1, 2)
            return t.reshape(G * num_heads, S, hd).astype(jnp.bfloat16)

        q = to_heads(qkv2d[:, :D])
        k = to_heads(qkv2d[:, D:2 * D])
        v = to_heads(qkv2d[:, 2 * D:])
        s = jnp.einsum('bqd,bkd->bqk', q, k,
                       preferred_element_type=jnp.float32) * inv_scale
        if is_causal:
            s = jnp.where(causal, s, -1e30)
        m = jnp.max(s, axis=-1, keepdims=True)
        p = jnp.exp(s - m)                                    # unnormalized probs
        denom = jnp.sum(p, axis=-1, keepdims=True)
        o = jnp.einsum('bqk,bkd->bqd', p.astype(jnp.bfloat16), v,
                       preferred_element_type=jnp.float32)
        o = o * pl.reciprocal(denom, approx=True)             # normalize AFTER PV (EUP)
        o = jnp.swapaxes(o.reshape(G, num_heads, S, hd), 1, 2)
        return o.reshape(G * S, D)

    # Fallback: per-head static lane slices (always lowers), post-PV normalization.
    qkv = qkv2d.reshape(G, S, 3 * D)
    heads = []
    for h in range(num_heads):
        q = qkv[:, :, h * hd:(h + 1) * hd].astype(jnp.bfloat16)
        k = qkv[:, :, D + h * hd:D + (h + 1) * hd].astype(jnp.bfloat16)
        vv = qkv[:, :, 2 * D + h * hd:2 * D + (h + 1) * hd].astype(jnp.bfloat16)
        s = jnp.einsum('bqd,bkd->bqk', q, k,
                       preferred_element_type=jnp.float32) * inv_scale
        if is_causal:
            s = jnp.where(causal, s, -1e30)
        m = jnp.max(s, axis=-1, keepdims=True)
        p = jnp.exp(s - m)
        denom = jnp.sum(p, axis=-1, keepdims=True)
        o = jnp.einsum('bqk,bkd->bqd', p.astype(jnp.bfloat16), vv,
                       preferred_element_type=jnp.float32)
        heads.append(o * pl.reciprocal(denom, approx=True))
    return jnp.concatenate(heads, axis=-1).reshape(G * S, D)


# ----------------------------------------------------------------------------
# fused attention kernels
# ----------------------------------------------------------------------------
def _spatial_attn_kernel(x_ref, shift_ref, scale_ref, gate_ref,
                         wqkv_ref, bqkv_ref, wproj_ref, bproj_ref, o_ref,
                         *, num_heads, is_causal):
    x = x_ref[0]                                   # (gb, N, D) f32
    G, N, D = x.shape
    sh, sc, gt = shift_ref[0], scale_ref[0], gate_ref[0]   # (gb,1,D) or (1,N,D)
    xm = _layernorm(x) * (1.0 + sc) + sh           # fused LN + temporalModulate
    qkv = _matmul(xm.reshape(G * N, D), wqkv_ref[...], bqkv_ref[...])
    attn = _mhsa(qkv, G, N, num_heads, is_causal)
    proj = _matmul(attn, wproj_ref[...], bproj_ref[...])
    o_ref[0] = x + gt * proj.reshape(G, N, D)      # fused gate + residual


def fused_spatial_attention(x, shift, scale, gate, wqkv, bqkv, wproj, bproj, *,
                            num_heads, is_causal=False, cond_per_token=False):
    """x: (B, G, N, D) — independent attention per group over its N tokens.
    Conditioning: (B, G, D) per group, or (B, N, D) per token if cond_per_token."""
    B, G, N, D = x.shape
    gb = _group_block(G, N, other_steps=B)
    grid = (B, pl.cdiv(G, gb))
    kern = functools.partial(_spatial_attn_kernel, num_heads=num_heads,
                             is_causal=is_causal)
    x_spec = pl.BlockSpec((1, gb, N, D), lambda b, g: (b, g, 0, 0))
    if cond_per_token:
        cond = lambda t: t.reshape(B, 1, N, D)
        c_spec = pl.BlockSpec((1, 1, N, D), lambda b, g: (b, 0, 0, 0))
    else:
        cond = lambda t: t.reshape(B, G, 1, D)
        c_spec = pl.BlockSpec((1, gb, 1, D), lambda b, g: (b, g, 0, 0))
    w_specs = [_w_spec(w.shape) for w in (wqkv, bqkv, wproj, bproj)]
    return pl.pallas_call(
        kern,
        out_shape=jax.ShapeDtypeStruct(x.shape, jnp.float32),
        grid=grid,
        in_specs=[x_spec, c_spec, c_spec, c_spec] + w_specs,
        out_specs=x_spec,
        compiler_params=pltpu.CompilerParams(
            dimension_semantics=("parallel", "parallel"),
            vmem_limit_bytes=_VMEM_LIMIT),
    )(x, cond(shift), cond(scale), cond(gate), wqkv, bqkv, wproj, bproj)


def _temporal_attn_kernel(x_ref, shift_ref, scale_ref, gate_ref,
                          wqkv_ref, bqkv_ref, wproj_ref, bproj_ref,
                          o_ref, psum_ref, *, num_heads, is_causal,
                          l_total, l_block):
    x = x_ref[0]                                   # (T, lb, D), ORIGINAL layout
    T, lb, D = x.shape
    xt = jnp.swapaxes(x, 0, 1)                     # (lb, T, D): permute in VMEM, not HBM
    sh, sc, gt = shift_ref[0], scale_ref[0], gate_ref[0]     # (T, D) per frame
    xm = _layernorm(xt) * (1.0 + sc) + sh
    qkv = _matmul(xm.reshape(lb * T, D), wqkv_ref[...], bqkv_ref[...])
    attn = _mhsa(qkv, lb, T, num_heads, is_causal)
    proj = _matmul(attn, wproj_ref[...], bproj_ref[...])
    ot = xt + gt * proj.reshape(lb, T, D)
    o_ref[0] = jnp.swapaxes(ot, 0, 1)              # write back in the original layout
    # fused partial token sums for the cross-modulation mean; mask rows padded
    # past L so out-of-bounds garbage never contaminates the reduction.
    if l_total % l_block:
        l0 = pl.program_id(1) * l_block
        lidx = l0 + jax.lax.broadcasted_iota(jnp.int32, (lb, 1), 0)
        mask = (lidx < l_total).astype(ot.dtype)
        ot = ot * mask[:, :, None]
    psum_ref[...] = jnp.sum(ot, axis=0)[None, None]          # (1, 1, T, D)


def fused_temporal_attention(x, shift, scale, gate, wqkv, bqkv, wproj, bproj, *,
                             num_heads, is_causal):
    """Video temporal attention in the ORIGINAL (B, T, L, D) layout (no HBM
    transposes).  Returns (residual output, per-(b, l-tile) token partial sums)."""
    B, T, L, D = x.shape
    lb = _sublane_block(L, T, other_steps=B)
    n_lt = pl.cdiv(L, lb)
    kern = functools.partial(_temporal_attn_kernel, num_heads=num_heads,
                             is_causal=is_causal, l_total=L, l_block=lb)
    x_spec = pl.BlockSpec((1, T, lb, D), lambda b, l: (b, 0, l, 0))
    c_spec = pl.BlockSpec((1, T, D), lambda b, l: (b, 0, 0))
    w_specs = [_w_spec(w.shape) for w in (wqkv, bqkv, wproj, bproj)]
    return pl.pallas_call(
        kern,
        out_shape=(jax.ShapeDtypeStruct(x.shape, jnp.float32),
                   jax.ShapeDtypeStruct((B, n_lt, T, D), jnp.float32)),
        grid=(B, n_lt),
        in_specs=[x_spec, c_spec, c_spec, c_spec] + w_specs,
        out_specs=(x_spec,
                   pl.BlockSpec((1, 1, T, D), lambda b, l: (b, l, 0, 0))),
        compiler_params=pltpu.CompilerParams(
            dimension_semantics=("parallel", "parallel"),
            vmem_limit_bytes=_VMEM_LIMIT),
    )(x, shift, scale, gate, wqkv, bqkv, wproj, bproj)


def _flat_attn_kernel(x_ref, shift_ref, scale_ref, gate_ref,
                      wqkv_ref, bqkv_ref, wproj_ref, bproj_ref,
                      o_ref, mean_ref, *, num_heads, is_causal):
    x = x_ref[0]                                   # (T, La, D)
    T, N, D = x.shape
    sh = shift_ref[0][:, None, :]                  # (T, 1, D)
    sc = scale_ref[0][:, None, :]
    gt = gate_ref[0][:, None, :]
    xm = _layernorm(x) * (1.0 + sc) + sh
    qkv = _matmul(xm.reshape(T * N, D), wqkv_ref[...], bqkv_ref[...])
    attn = _mhsa(qkv, 1, T * N, num_heads, is_causal)   # attend over all T*La tokens
    proj = _matmul(attn, wproj_ref[...], bproj_ref[...])
    o = x + gt * proj.reshape(T, N, D)
    o_ref[0] = o
    mean_ref[0] = jnp.mean(o, axis=1)              # fused per-frame token mean (T, D)
    # TODO(synk): switch to an online-softmax (flash) formulation with K/V tiling
    # for multi-thousand-token flattened audio sequences.


def fused_flat_attention(x, shift, scale, gate, wqkv, bqkv, wproj, bproj, *,
                         num_heads, is_causal):
    """Audio attention over the flattened (T*La) token sequence, per batch element.
    Returns (residual output, per-frame token means (B, T, D))."""
    B, T, La, D = x.shape
    kern = functools.partial(_flat_attn_kernel, num_heads=num_heads,
                             is_causal=is_causal)
    x_spec = pl.BlockSpec((1, T, La, D), lambda b: (b, 0, 0, 0))
    c_spec = pl.BlockSpec((1, T, D), lambda b: (b, 0, 0))
    w_specs = [_w_spec(w.shape) for w in (wqkv, bqkv, wproj, bproj)]
    return pl.pallas_call(
        kern,
        out_shape=(jax.ShapeDtypeStruct(x.shape, jnp.float32),
                   jax.ShapeDtypeStruct((B, T, D), jnp.float32)),
        grid=(B,),
        in_specs=[x_spec, c_spec, c_spec, c_spec] + w_specs,
        out_specs=(x_spec, pl.BlockSpec((1, T, D), lambda b: (b, 0, 0))),
        compiler_params=pltpu.CompilerParams(
            dimension_semantics=("parallel",),
            vmem_limit_bytes=_VMEM_LIMIT),
    )(x, shift, scale, gate, wqkv, bqkv, wproj, bproj)


# ----------------------------------------------------------------------------
# fused MLP (LN + modulate + MLP + gate + residual), row tiled
# ----------------------------------------------------------------------------
def _fused_mlp_kernel(x_ref, shift_ref, scale_ref, gate_ref,
                      w1_ref, b1_ref, w2_ref, b2_ref, o_ref):
    x = x_ref[...]                                 # (rb, L, D)
    Rb, L, D = x.shape
    sh = shift_ref[...][:, None, :]
    sc = scale_ref[...][:, None, :]
    gt = gate_ref[...][:, None, :]
    xm = _layernorm(x) * (1.0 + sc) + sh
    h = _matmul(xm.reshape(Rb * L, D), w1_ref[...], b1_ref[...])
    y = _matmul(_gelu_tanh(h), w2_ref[...], b2_ref[...])
    o_ref[...] = x + gt * y.reshape(Rb, L, D)


def fused_mlp(x, shift, scale, gate, w1, b1, w2, b2):
    R, L, D = x.shape
    rb = _row_block(R, max(1, _MLP_TOKEN_TARGET // max(L, 1)))
    w_specs = [_w_spec(w.shape) for w in (w1, b1, w2, b2)]
    c_spec = pl.BlockSpec((rb, D), lambda i: (i, 0))
    x_spec = pl.BlockSpec((rb, L, D), lambda i: (i, 0, 0))
    return pl.pallas_call(
        _fused_mlp_kernel,
        out_shape=jax.ShapeDtypeStruct(x.shape, jnp.float32),
        grid=(pl.cdiv(R, rb),),
        in_specs=[x_spec, c_spec, c_spec, c_spec] + w_specs,
        out_specs=x_spec,
        compiler_params=pltpu.CompilerParams(
            dimension_semantics=("parallel",), vmem_limit_bytes=_VMEM_LIMIT),
    )(x, shift, scale, gate, w1, b1, w2, b2)


# ----------------------------------------------------------------------------
# adaLN (SiLU + Linear) and cross-conditioning (fused-mean + proj + ctx + SiLU + scale)
# ----------------------------------------------------------------------------
def _silu_linear_kernel(c_ref, w_ref, b_ref, o_ref):
    c = c_ref[...]
    o_ref[...] = _matmul(c * jax.nn.sigmoid(c), w_ref[...], b_ref[...])


def silu_linear(c, w, b):
    R, D = c.shape
    dout = w.shape[1]
    rb = _row_block(R, _ROW_TARGET)
    return pl.pallas_call(
        _silu_linear_kernel,
        out_shape=jax.ShapeDtypeStruct((R, dout), jnp.float32),
        grid=(pl.cdiv(R, rb),),
        in_specs=[pl.BlockSpec((rb, D), lambda i: (i, 0)),
                  _w_spec(w.shape), _w_spec(b.shape)],
        out_specs=pl.BlockSpec((rb, dout), lambda i: (i, 0)),
        compiler_params=pltpu.CompilerParams(
            dimension_semantics=("parallel",), vmem_limit_bytes=_VMEM_LIMIT),
    )(c, w, b)


def _cross_mod_kernel(mean_ref, c_ref, wavg_ref, bavg_ref, wsc_ref, bsc_ref, o_ref):
    t = _matmul(mean_ref[...], wavg_ref[...], bavg_ref[...]) + c_ref[...]
    t = t * jax.nn.sigmoid(t)                      # SiLU
    o_ref[...] = _matmul(t, wsc_ref[...], bsc_ref[...])


def cross_modulation(x_mean, c, w_avg, b_avg, w_scale, b_scale):
    """x_mean: (R, D) token means already produced by the attention kernels."""
    R, D = x_mean.shape
    dout = w_scale.shape[1]
    rb = _row_block(R, _ROW_TARGET)
    return pl.pallas_call(
        _cross_mod_kernel,
        out_shape=jax.ShapeDtypeStruct((R, dout), jnp.float32),
        grid=(pl.cdiv(R, rb),),
        in_specs=[pl.BlockSpec((rb, D), lambda i: (i, 0)),
                  pl.BlockSpec((rb, D), lambda i: (i, 0)),
                  _w_spec(w_avg.shape), _w_spec(b_avg.shape),
                  _w_spec(w_scale.shape), _w_spec(b_scale.shape)],
        out_specs=pl.BlockSpec((rb, dout), lambda i: (i, 0)),
        compiler_params=pltpu.CompilerParams(
            dimension_semantics=("parallel",), vmem_limit_bytes=_VMEM_LIMIT),
    )(x_mean, c, w_avg, b_avg, w_scale, b_scale)


# ----------------------------------------------------------------------------
# FLAVBlock forward (Pallas-backed); expects prepare_params()-processed weights
# ----------------------------------------------------------------------------
def flav_block(v, a, v_c, a_c, p, num_heads, causal_attn=False):
    B, T, L, D = v.shape
    La = a.shape[2]
    BT = B * T
    vc2 = v_c.reshape(BT, D)
    ac2 = a_c.reshape(BT, D)

    # adaLN modulation (SiLU + Linear), then chunk
    vmod = silu_linear(vc2, p['v_adaLN_w'], p['v_adaLN_b'])          # (BT, 6D)
    amod = silu_linear(ac2, p['a_adaLN_w'], p['a_adaLN_b'])          # (BT, 3D)
    (v_shift_msa, v_scale_msa, v_gate_msa,
     v_shift_tmsa, v_scale_tmsa, v_gate_tmsa) = [
        t.reshape(B, T, D) for t in jnp.split(vmod, 6, axis=-1)]
    a_shift_msa, a_scale_msa, a_gate_msa = [
        t.reshape(B, T, D) for t in jnp.split(amod, 3, axis=-1)]

    # --- video spatial attention: per (b, t) over the L spatial tokens ---
    v = fused_spatial_attention(
        v, v_shift_msa, v_scale_msa, v_gate_msa,
        p['v_sp_wqkv'], p['v_sp_bqkv'], p['v_sp_wproj'], p['v_sp_bproj'],
        num_heads=num_heads, is_causal=False)

    # --- video temporal attention: per (b, l) over the T frames ---
    if _FUSED_PERMUTES:
        # layout permute done in VMEM + fused per-l-tile token sums
        v, v_psum = fused_temporal_attention(
            v, v_shift_tmsa, v_scale_tmsa, v_gate_tmsa,
            p['v_tmp_wqkv'], p['v_tmp_bqkv'], p['v_tmp_wproj'], p['v_tmp_bproj'],
            num_heads=num_heads, is_causal=causal_attn)
        v_mean = (jnp.sum(v_psum, axis=1) / L).reshape(BT, D)
    else:
        # Fallback when the permute lowering is unavailable: keep the two XLA
        # transposes + a separate mean pass (previous, always-working path).
        v_t = jnp.transpose(v, (0, 2, 1, 3))                          # (B, L, T, D)
        v_t = fused_spatial_attention(
            v_t, v_shift_tmsa, v_scale_tmsa, v_gate_tmsa,
            p['v_tmp_wqkv'], p['v_tmp_bqkv'], p['v_tmp_wproj'], p['v_tmp_bproj'],
            num_heads=num_heads, is_causal=causal_attn, cond_per_token=True)
        v = jnp.transpose(v_t, (0, 2, 1, 3))
        v_mean = jnp.mean(v, axis=2).reshape(BT, D)

    # --- audio spatial attention: per b over the flattened T*La tokens ---
    a, a_mean = fused_flat_attention(
        a, a_shift_msa, a_scale_msa, a_gate_msa,
        p['a_sp_wqkv'], p['a_sp_bqkv'], p['a_sp_wproj'], p['a_sp_bproj'],
        num_heads=num_heads, is_causal=causal_attn)
    a_mean = a_mean.reshape(BT, D)

    # --- cross conditioning: fused means + avg_proj + context + SiLU + scale ---
    v_mod3 = cross_modulation(a_mean, vc2, p['a_avg_w'], p['a_avg_b'],
                              p['v_scale_w'], p['v_scale_b'])         # (BT, 3D)
    a_mod3 = cross_modulation(v_mean, ac2, p['v_avg_w'], p['v_avg_b'],
                              p['a_scale_w'], p['a_scale_b'])
    scale_v, shift_v, gate_v = jnp.split(v_mod3, 3, axis=-1)
    scale_a, shift_a, gate_a = jnp.split(a_mod3, 3, axis=-1)

    # --- MLPs (fused LN + modulate + MLP + gate + residual) ---
    v = fused_mlp(v.reshape(BT, L, D), shift_v, scale_v, gate_v,
                  p['v_mlp_w1'], p['v_mlp_b1'], p['v_mlp_w2'], p['v_mlp_b2']
                  ).reshape(B, T, L, D)
    a = fused_mlp(a.reshape(BT, La, D), shift_a, scale_a, gate_a,
                  p['a_mlp_w1'], p['a_mlp_b1'], p['a_mlp_w2'], p['a_mlp_b2']
                  ).reshape(B, T, La, D)
    return v, a


# ----------------------------------------------------------------------------
# pure-JAX reference (mirrors the PyTorch module) for a sanity check
# ----------------------------------------------------------------------------
def ref_forward(v, a, v_c, a_c, p, num_heads, causal_attn=False):
    def silu(x): return x * jax.nn.sigmoid(x)

    def ln(x):
        mu = x.mean(-1, keepdims=True)
        var = ((x - mu) ** 2).mean(-1, keepdims=True)
        return (x - mu) / jnp.sqrt(var + 1e-6)

    def modulate(x, shift, scale):
        return x * (1.0 + scale[:, :, None, :]) + shift[:, :, None, :]

    def attn(x, wqkv, bqkv, wp, bp, causal):
        Bn, N, D = x.shape
        hd = D // num_heads
        qkv = x @ wqkv + bqkv
        qkv = qkv.reshape(Bn, N, 3, num_heads, hd).transpose(2, 0, 3, 1, 4)
        q, k, vv = qkv[0], qkv[1], qkv[2]
        s = jnp.einsum('bhnd,bhmd->bhnm', q, k) / math.sqrt(hd)
        if causal:
            mask = jnp.tril(jnp.ones((N, N), bool))
            s = jnp.where(mask, s, -jnp.inf)
        pr = jax.nn.softmax(s, axis=-1)
        o = jnp.einsum('bhnm,bhmd->bhnd', pr, vv)
        o = o.transpose(0, 2, 1, 3).reshape(Bn, N, D)
        return o @ wp + bp

    B, T, L, D = v.shape
    La = a.shape[2]
    vmod = silu(v_c) @ p['v_adaLN_w'] + p['v_adaLN_b']
    amod = silu(a_c) @ p['a_adaLN_w'] + p['a_adaLN_b']
    vs1, vsc1, vg1, vs2, vsc2, vg2 = jnp.split(vmod, 6, -1)
    as1, asc1, ag1 = jnp.split(amod, 3, -1)

    x = modulate(ln(v), vs1, vsc1).reshape(B * T, L, D)
    x = attn(x, p['v_sp_wqkv'], p['v_sp_bqkv'], p['v_sp_wproj'], p['v_sp_bproj'],
             False).reshape(B, T, L, D)
    v = v + vg1[:, :, None, :] * x

    x = modulate(ln(v), vs2, vsc2).transpose(0, 2, 1, 3).reshape(B * L, T, D)
    x = attn(x, p['v_tmp_wqkv'], p['v_tmp_bqkv'], p['v_tmp_wproj'], p['v_tmp_bproj'],
             causal_attn).reshape(B, L, T, D).transpose(0, 2, 1, 3)
    v = v + vg2[:, :, None, :] * x

    x = modulate(ln(a), as1, asc1).reshape(B, T * La, D)
    x = attn(x, p['a_sp_wqkv'], p['a_sp_bqkv'], p['a_sp_wproj'], p['a_sp_bproj'],
             causal_attn).reshape(B, T, La, D)
    a = a + ag1[:, :, None, :] * x

    a_avg = a.mean(2) @ p['a_avg_w'] + p['a_avg_b']
    v_avg = v.mean(2) @ p['v_avg_w'] + p['v_avg_b']
    v_avg = v_avg + a_c
    a_avg = a_avg + v_c
    scale_v, shift_v, gate_v = jnp.split(silu(a_avg) @ p['v_scale_w'] + p['v_scale_b'], 3, -1)
    scale_a, shift_a, gate_a = jnp.split(silu(v_avg) @ p['a_scale_w'] + p['a_scale_b'], 3, -1)

    x = modulate(ln(v), shift_v, scale_v)
    x = _gelu_tanh(x @ p['v_mlp_w1'] + p['v_mlp_b1']) @ p['v_mlp_w2'] + p['v_mlp_b2']
    v = v + gate_v[:, :, None, :] * x

    x = modulate(ln(a), shift_a, scale_a)
    x = _gelu_tanh(x @ p['a_mlp_w1'] + p['a_mlp_b1']) @ p['a_mlp_w2'] + p['a_mlp_b2']
    a = a + gate_a[:, :, None, :] * x
    return v, a


# ----------------------------------------------------------------------------
# deterministic parameter init (synthetic; shapes follow FLAVBlock.__init__)
# ----------------------------------------------------------------------------
def init_params(key, D, mlp_ratio=4.0):
    H = int(D * mlp_ratio)
    keys = jax.random.split(key, 32)
    idx = [0]

    def w(shape, scale=0.02):
        k = keys[idx[0]]
        idx[0] += 1
        return jax.random.normal(k, shape, jnp.float32) * scale

    p = {}
    p['v_adaLN_w'] = w((D, 6 * D)); p['v_adaLN_b'] = w((1, 6 * D))
    p['a_adaLN_w'] = w((D, 3 * D)); p['a_adaLN_b'] = w((1, 3 * D))
    for name in ('v_sp', 'v_tmp', 'a_sp'):
        p[f'{name}_wqkv'] = w((D, 3 * D)); p[f'{name}_bqkv'] = w((1, 3 * D))
        p[f'{name}_wproj'] = w((D, D));    p[f'{name}_bproj'] = w((1, D))
    p['v_avg_w'] = w((D, D)); p['v_avg_b'] = w((1, D))
    p['a_avg_w'] = w((D, D)); p['a_avg_b'] = w((1, D))
    p['v_scale_w'] = w((D, 3 * D)); p['v_scale_b'] = w((1, 3 * D))
    p['a_scale_w'] = w((D, 3 * D)); p['a_scale_b'] = w((1, 3 * D))
    p['v_mlp_w1'] = w((D, H)); p['v_mlp_b1'] = w((1, H))
    p['v_mlp_w2'] = w((H, D)); p['v_mlp_b2'] = w((1, D))
    p['a_mlp_w1'] = w((D, H)); p['a_mlp_b1'] = w((1, H))
    p['a_mlp_w2'] = w((H, D)); p['a_mlp_b2'] = w((1, D))
    return p


if __name__ == "__main__":
    B, T, Lv, La, D = 2, 4, 8, 4, 32
    num_heads = 4

    key = jax.random.PRNGKey(0)
    kp, kv, ka, kvc, kac = jax.random.split(key, 5)
    params = init_params(kp, D)
    v = jax.random.normal(kv, (B, T, Lv, D), jnp.float32)
    a = jax.random.normal(ka, (B, T, La, D), jnp.float32)
    v_c = jax.random.normal(kvc, (B, T, D), jnp.float32)
    a_c = jax.random.normal(kac, (B, T, D), jnp.float32)

    run_params = prepare_params(params)       # one-time bf16 weight cast
    block = jax.jit(flav_block, static_argnames=("num_heads", "causal_attn"))

    for causal in (False, True):
        v_out, a_out = block(v, a, v_c, a_c, run_params,
                             num_heads=num_heads, causal_attn=causal)
        jax.block_until_ready((v_out, a_out))

        v_ref, a_ref = ref_forward(v, a, v_c, a_c, params, num_heads,
                                   causal_attn=causal)
        assert v_out.shape == v.shape and a_out.shape == a.shape
        assert jnp.allclose(v_out, v_ref, atol=3e-3, rtol=3e-3), (
            f"video mismatch (causal={causal}): "
            f"{float(jnp.max(jnp.abs(v_out - v_ref)))}")
        assert jnp.allclose(a_out, a_ref, atol=3e-3, rtol=3e-3), (
            f"audio mismatch (causal={causal}): "
            f"{float(jnp.max(jnp.abs(a_out - a_ref)))}")

    print("KERNEL_OK")
</pallas_src>

<mosaic_0001>
module attributes {stable_mosaic.version = 11 : i64} {
  func.func @kern(%arg0: memref<8x8x32xf32, #tpu.memory_space<vmem>>, %arg1: memref<8x8x32xf32, #tpu.memory_space<vmem>>, %arg2: memref<8x8x32xf32, #tpu.memory_space<vmem>>) attributes {dimension_semantics = [], scalar_prefetch = 0 : i64, scratch_operands = 0 : i64, tpu.core_type = #tpu.core_type<tc>} {
    %c0 = arith.constant 0 : index
    %c0_0 = arith.constant 0 : index
    %c0_1 = arith.constant 0 : index
    %0 = vector.load %arg0[%c0, %c0_0, %c0_1] : memref<8x8x32xf32, #tpu.memory_space<vmem>>, vector<8x8x32xf32>
    %1 = tpu.transpose %0, [1, 0, 2] : vector<8x8x32xf32> -> vector<8x8x32xf32>
    %c0_2 = arith.constant 0 : index
    %c0_3 = arith.constant 0 : index
    %c0_4 = arith.constant 0 : index
    %2 = vector.load %arg1[%c0_2, %c0_3, %c0_4] : memref<8x8x32xf32, #tpu.memory_space<vmem>>, vector<8x8x32xf32>
    tpu.vector_store %arg1[%c0_2, %c0_3, %c0_4], %1 {strides = array<i32>} : memref<8x8x32xf32, #tpu.memory_space<vmem>>, vector<8x8x32xf32>,
    %3 = vector.shape_cast %0 : vector<8x8x32xf32> to vector<8x8x4x8xf32>
    %4 = tpu.transpose %3, [0, 2, 1, 3] : vector<8x8x4x8xf32> -> vector<8x4x8x8xf32>
    %5 = vector.shape_cast %4 : vector<8x4x8x8xf32> to vector<32x8x8xf32>
    %6 = vector.shape_cast %5 : vector<32x8x8xf32> to vector<8x4x8x8xf32>
    %7 = tpu.transpose %6, [0, 2, 1, 3] : vector<8x4x8x8xf32> -> vector<8x8x4x8xf32>
    %8 = vector.shape_cast %7 : vector<8x8x4x8xf32> to vector<8x8x32xf32>
    %c0_5 = arith.constant 0 : index
    %c0_6 = arith.constant 0 : index
    %c0_7 = arith.constant 0 : index
    %9 = vector.load %arg2[%c0_5, %c0_6, %c0_7] : memref<8x8x32xf32, #tpu.memory_space<vmem>>, vector<8x8x32xf32>
    tpu.vector_store %arg2[%c0_5, %c0_6, %c0_7], %8 {strides = array<i32>} : memref<8x8x32xf32, #tpu.memory_space<vmem>>, vector<8x8x32xf32>,
    return
  }
}

module attributes {stable_mosaic.version = 11 : i64} {
  func.func @kern(%arg0: i32, %arg1: memref<8x128xf32, #tpu.memory_space<vmem>>, %arg2: memref<8x128xf32, #tpu.memory_space<vmem>>) attributes {dimension_semantics = [#tpu.dimension_semantics<arbitrary>], iteration_bounds = array<i64: 2>, scalar_prefetch = 0 : i64, scratch_operands = 0 : i64, tpu.core_type = #tpu.core_type<tc>, window_params = [{pipeline_mode = #tpu.pipeline_mode<synchronous>, transform_indices = @transform_0, window_bounds = array<i64: 8, 128>}, {pipeline_mode = #tpu.pipeline_mode<synchronous>, transform_indices = @transform_1, window_bounds = array<i64: 8, 128>}]} {
    %c0 = arith.constant 0 : index
    %c0_0 = arith.constant 0 : index
    %0 = vector.load %arg1[%c0, %c0_0] : memref<8x128xf32, #tpu.memory_space<vmem>>, vector<8x128xf32>
    %cst = arith.constant 1.000000e+00 : f32
    %1 = vector.broadcast %cst : f32 to vector<8x128xf32>
    %2 = arith.addf %0, %1 : vector<8x128xf32>
    %c0_1 = arith.constant 0 : index
    %c0_2 = arith.constant 0 : index
    %3 = vector.load %arg2[%c0_1, %c0_2] : memref<8x128xf32, #tpu.memory_space<vmem>>, vector<8x128xf32>
    tpu.vector_store %arg2[%c0_1, %c0_2], %2 {strides = array<i32>} : memref<8x128xf32, #tpu.memory_space<vmem>>, vector<8x128xf32>,
    return
  }
  func.func @transform_0(%arg0: i32) -> (i32, i32) {
    %c0_i32 = arith.constant 0 : i32
    %c0_i32_0 = arith.constant 0 : i32
    %c0_i32_1 = arith.constant 0 : i32
    return %c0_i32, %c0_i32_0 : i32, i32
  }
  func.func @transform_1(%arg0: i32) -> (i32, i32) {
    %c0_i32 = arith.constant 0 : i32
    %c0_i32_0 = arith.constant 0 : i32
    %c0_i32_1 = arith.constant 0 : i32
    return %c0_i32, %c0_i32_0 : i32, i32
  }
}

module attributes {stable_mosaic.version = 11 : i64} {
  func.func @_silu_linear_kernel(%arg0: i32, %arg1: memref<8x32xf32, #tpu.memory_space<vmem>>, %arg2: memref<32x96xbf16, #tpu.memory_space<vmem>>, %arg3: memref<1x96xf32, #tpu.memory_space<vmem>>, %arg4: memref<8x96xf32, #tpu.memory_space<vmem>>) attributes {dimension_semantics = [#tpu.dimension_semantics<parallel>], iteration_bounds = array<i64: 1>, scalar_prefetch = 0 : i64, scratch_operands = 0 : i64, tpu.core_type = #tpu.core_type<tc>, window_params = [{transform_indices = @transform_0, window_bounds = array<i64: 8, 32>}, {pipeline_mode = #tpu.pipeline_mode<synchronous>, transform_indices = @transform_1, window_bounds = array<i64: 32, 96>}, {pipeline_mode = #tpu.pipeline_mode<synchronous>, transform_indices = @transform_2, window_bounds = array<i64: 1, 96>}, {transform_indices = @transform_3, window_bounds = array<i64: 8, 96>}]} {
    %c0 = arith.constant 0 : index
    %c0_0 = arith.constant 0 : index
    %0 = vector.load %arg1[%c0, %c0_0] : memref<8x32xf32, #tpu.memory_space<vmem>>, vector<8x32xf32>
    %1 = arith.negf %0 : vector<8x32xf32>
    %2 = math.exp %1 : vector<8x32xf32>
    %cst = arith.constant 1.000000e+00 : f32
    %3 = vector.broadcast %cst : f32 to vector<8x32xf32>
    %4 = arith.addf %3, %2 : vector<8x32xf32>
    %5 = arith.divf %3, %4 : vector<8x32xf32>
    %6 = arith.mulf %0, %5 : vector<8x32xf32>
    %c0_1 = arith.constant 0 : index
    %c0_2 = arith.constant 0 : index
    %7 = vector.load %arg2[%c0_1, %c0_2] : memref<32x96xbf16, #tpu.memory_space<vmem>>, vector<32x96xbf16>
    %c0_3 = arith.constant 0 : index
    %c0_4 = arith.constant 0 : index
    %8 = vector.load %arg3[%c0_3, %c0_4] : memref<1x96xf32, #tpu.memory_space<vmem>>, vector<1x96xf32>
    %9 = arith.truncf %6 : vector<8x32xf32> to vector<8x32xbf16>
    %cst_5 = arith.constant dense<0.000000e+00> : vector<8x96xf32>
    %10 = tpu.matmul %9, %7, %cst_5 {dimension_numbers = #tpu.dot_dimension_numbers<[1], [0], [0], [1], [0, 0, 1, 1], [], []>} : vector<8x32xbf16>, vector<32x96xbf16>, vector<8x96xf32> -> vector<8x96xf32>
    %11 = vector.broadcast %8 : vector<1x96xf32> to vector<8x96xf32>
    %12 = arith.addf %10, %11 : vector<8x96xf32>
    %c0_6 = arith.constant 0 : index
    %c0_7 = arith.constant 0 : index
    %13 = vector.load %arg4[%c0_6, %c0_7] : memref<8x96xf32, #tpu.memory_space<vmem>>, vector<8x96xf32>
    tpu.vector_store %arg4[%c0_6, %c0_7], %12 {strides = array<i32>} : memref<8x96xf32, #tpu.memory_space<vmem>>, vector<8x96xf32>,
    return
  }
  func.func @transform_0(%arg0: i32) -> (i32, i32) {
    %c0_i32 = arith.constant 0 : i32
    %c0_i32_0 = arith.constant 0 : i32
    return %arg0, %c0_i32 : i32, i32
  }
  func.func @transform_1(%arg0: i32) -> (i32, i32) {
    %c0_i32 = arith.constant 0 : i32
    %c0_i32_0 = arith.constant 0 : i32
    %c0_i32_1 = arith.constant 0 : i32
    return %c0_i32, %c0_i32_0 : i32, i32
  }
  func.func @transform_2(%arg0: i32) -> (i32, i32) {
    %c0_i32 = arith.constant 0 : i32
    %c0_i32_0 = arith.constant 0 : i32
    %c0_i32_1 = arith.constant 0 : i32
    return %c0_i32, %c0_i32_0 : i32, i32
  }
  func.func @transform_3(%arg0: i32) -> (i32, i32) {
    %c0_i32 = arith.constant 0 : i32
    %c0_i32_0 = arith.constant 0 : i32
    return %arg0, %c0_i32 : i32, i32
  }
}

module attributes {stable_mosaic.version = 11 : i64} {
  func.func @_flat_attn_kernel(%arg0: i32, %arg1: memref<1x4x4x32xf32, #tpu.memory_space<vmem>>, %arg2: memref<1x4x32xf32, #tpu.memory_space<vmem>>, %arg3: memref<1x4x32xf32, #tpu.memory_space<vmem>>, %arg4: memref<1x4x32xf32, #tpu.memory_space<vmem>>, %arg5: memref<32x96xbf16, #tpu.memory_space<vmem>>, %arg6: memref<1x96xf32, #tpu.memory_space<vmem>>, %arg7: memref<32x32xbf16, #tpu.memory_space<vmem>>, %arg8: memref<1x32xf32, #tpu.memory_space<vmem>>, %arg9: memref<1x4x4x32xf32, #tpu.memory_space<vmem>>, %arg10: memref<1x4x32xf32, #tpu.memory_space<vmem>>) attributes {dimension_semantics = [#tpu.dimension_semantics<parallel>], iteration_bounds = array<i64: 2>, scalar_prefetch = 0 : i64, scratch_operands = 0 : i64, tpu.core_type = #tpu.core_type<tc>, window_params = [{transform_indices = @transform_0, window_bounds = array<i64: 1, 4, 4, 32>}, {transform_indices = @transform_1, window_bounds = array<i64: 1, 4, 32>}, {transform_indices = @transform_2, window_bounds = array<i64: 1, 4, 32>}, {transform_indices = @transform_3, window_bounds = array<i64: 1, 4, 32>}, {pipeline_mode = #tpu.pipeline_mode<synchronous>, transform_indices = @transform_4, window_bounds = array<i64: 32, 96>}, {pipeline_mode = #tpu.pipeline_mode<synchronous>, transform_indices = @transform_5, window_bounds = array<i64: 1, 96>}, {pipeline_mode = #tpu.pipeline_mode<synchronous>, transform_indices = @transform_6, window_bounds = array<i64: 32, 32>}, {pipeline_mode = #tpu.pipeline_mode<synchronous>, transform_indices = @transform_7, window_bounds = array<i64: 1, 32>}, {transform_indices = @transform_8, window_bounds = array<i64: 1, 4, 4, 32>}, {transform_indices = @transform_9, window_bounds = array<i64: 1, 4, 32>}]} {
    %c0 = arith.constant 0 : index
    %c0_0 = arith.constant 0 : index
    %c0_1 = arith.constant 0 : index
    %c0_2 = arith.constant 0 : index
    %0 = vector.load %arg1[%c0, %c0_0, %c0_1, %c0_2] : memref<1x4x4x32xf32, #tpu.memory_space<vmem>>, vector<1x4x4x32xf32>
    %1 = vector.shape_cast %0 : vector<1x4x4x32xf32> to vector<4x4x32xf32>
    %c0_3 = arith.constant 0 : index
    %c0_4 = arith.constant 0 : index
    %c0_5 = arith.constant 0 : index
    %2 = vector.load %arg2[%c0_3, %c0_4, %c0_5] : memref<1x4x32xf32, #tpu.memory_space<vmem>>, vector<1x4x32xf32>
    %3 = vector.shape_cast %2 : vector<1x4x32xf32> to vector<4x32xf32>
    %4 = vector.shape_cast %3 : vector<4x32xf32> to vector<4x1x32xf32>
    %c0_6 = arith.constant 0 : index
    %c0_7 = arith.constant 0 : index
    %c0_8 = arith.constant 0 : index
    %5 = vector.load %arg3[%c0_6, %c0_7, %c0_8] : memref<1x4x32xf32, #tpu.memory_space<vmem>>, vector<1x4x32xf32>
    %6 = vector.shape_cast %5 : vector<1x4x32xf32> to vector<4x32xf32>
    %7 = vector.shape_cast %6 : vector<4x32xf32> to vector<4x1x32xf32>
    %c0_9 = arith.constant 0 : index
    %c0_10 = arith.constant 0 : index
    %c0_11 = arith.constant 0 : index
    %8 = vector.load %arg4[%c0_9, %c0_10, %c0_11] : memref<1x4x32xf32, #tpu.memory_space<vmem>>, vector<1x4x32xf32>
    %9 = vector.shape_cast %8 : vector<1x4x32xf32> to vector<4x32xf32>
    %10 = vector.shape_cast %9 : vector<4x32xf32> to vector<4x1x32xf32>
    %cst = arith.constant dense<0.000000e+00> : vector<4x4xf32>
    %11 = vector.multi_reduction <add>, %1, %cst [2] : vector<4x4x32xf32> to vector<4x4xf32>
    %12 = vector.shape_cast %11 : vector<4x4xf32> to vector<4x4x1xf32>
    %cst_12 = arith.constant 3.200000e+01 : f32
    %13 = vector.broadcast %cst_12 : f32 to vector<4x4x1xf32>
    %14 = arith.divf %12, %13 : vector<4x4x1xf32>
    %15 = vector.broadcast %14 : vector<4x4x1xf32> to vector<4x4x32xf32>
    %16 = arith.subf %1, %15 : vector<4x4x32xf32>
    %17 = arith.mulf %16, %16 : vector<4x4x32xf32>
    %cst_13 = arith.constant dense<0.000000e+00> : vector<4x4xf32>
    %18 = vector.multi_reduction <add>, %17, %cst_13 [2] : vector<4x4x32xf32> to vector<4x4xf32>
    %19 = vector.shape_cast %18 : vector<4x4xf32> to vector<4x4x1xf32>
    %cst_14 = arith.constant 3.200000e+01 : f32
    %20 = vector.broadcast %cst_14 : f32 to vector<4x4x1xf32>
    %21 = arith.divf %19, %20 : vector<4x4x1xf32>
    %cst_15 = arith.constant 9.99999997E-7 : f32
    %22 = vector.broadcast %cst_15 : f32 to vector<4x4x1xf32>
    %23 = arith.addf %21, %22 : vector<4x4x1xf32>
    %24 = math.rsqrt %23 : vector<4x4x1xf32>
    %25 = vector.broadcast %24 : vector<4x4x1xf32> to vector<4x4x32xf32>
    %26 = arith.mulf %16, %25 : vector<4x4x32xf32>
    %cst_16 = arith.constant 1.000000e+00 : f32
    %27 = vector.broadcast %cst_16 : f32 to vector<4x1x32xf32>
    %28 = arith.addf %27, %7 : vector<4x1x32xf32>
    %29 = vector.broadcast %28 : vector<4x1x32xf32> to vector<4x4x32xf32>
    %30 = arith.mulf %26, %29 : vector<4x4x32xf32>
    %31 = vector.broadcast %4 : vector<4x1x32xf32> to vector<4x4x32xf32>
    %32 = arith.addf %30, %31 : vector<4x4x32xf32>
    %33 = vector.shape_cast %32 : vector<4x4x32xf32> to vector<16x32xf32>
    %c0_17 = arith.constant 0 : index
    %c0_18 = arith.constant 0 : index
    %34 = vector.load %arg5[%c0_17, %c0_18] : memref<32x96xbf16, #tpu.memory_space<vmem>>, vector<32x96xbf16>
    %c0_19 = arith.constant 0 : index
    %c0_20 = arith.constant 0 : index
    %35 = vector.load %arg6[%c0_19, %c0_20] : memref<1x96xf32, #tpu.memory_space<vmem>>, vector<1x96xf32>
    %36 = arith.truncf %33 : vector<16x32xf32> to vector<16x32xbf16>
    %cst_21 = arith.constant dense<0.000000e+00> : vector<16x96xf32>
    %37 = tpu.matmul %36, %34, %cst_21 {dimension_numbers = #tpu.dot_dimension_numbers<[1], [0], [0], [1], [0, 0, 1, 1], [], []>} : vector<16x32xbf16>, vector<32x96xbf16>, vector<16x96xf32> -> vector<16x96xf32>
    %38 = vector.broadcast %35 : vector<1x96xf32> to vector<16x96xf32>
    %39 = arith.addf %37, %38 : vector<16x96xf32>
    %40 = vector.shape_cast %39 : vector<16x96xf32> to vector<1x16x96xf32>
    %41 = vector.extract_strided_slice %40 {offsets = [0, 0, 0], sizes = [1, 16, 8], strides = [1, 1, 1]} : vector<1x16x96xf32> to vector<1x16x8xf32>
    %42 = arith.truncf %41 : vector<1x16x8xf32> to vector<1x16x8xbf16>
    %43 = vector.extract_strided_slice %40 {offsets = [0, 0, 32], sizes = [1, 16, 8], strides = [1, 1, 1]} : vector<1x16x96xf32> to vector<1x16x8xf32>
    %44 = arith.truncf %43 : vector<1x16x8xf32> to vector<1x16x8xbf16>
    %45 = vector.extract_strided_slice %40 {offsets = [0, 0, 64], sizes = [1, 16, 8], strides = [1, 1, 1]} : vector<1x16x96xf32> to vector<1x16x8xf32>
    %46 = arith.truncf %45 : vector<1x16x8xf32> to vector<1x16x8xbf16>
    "tpu.trace_start"() <{level = 10 : i32, message = "bqd,bkd->bqk"}> : () -> ()
    %cst_22 = arith.constant dense<0.000000e+00> : vector<1x16x16xf32>
    %47 = tpu.matmul %42, %44, %cst_22 {dimension_numbers = #tpu.dot_dimension_numbers<[2], [2], [1], [1], [0, 0, 0, 1, 1, 1], [0], [0]>} : vector<1x16x8xbf16>, vector<1x16x8xbf16>, vector<1x16x16xf32> -> vector<1x16x16xf32>
    "tpu.trace_stop"() : () -> ()
    %cst_23 = arith.constant 0.353553385 : f32
    %48 = vector.broadcast %cst_23 : f32 to vector<1x16x16xf32>
    %49 = arith.mulf %47, %48 : vector<1x16x16xf32>
    %cst_24 = arith.constant dense<0xFF800000> : vector<1x16xf32>
    %50 = vector.multi_reduction <maximumf>, %49, %cst_24 [2] : vector<1x16x16xf32> to vector<1x16xf32>
    %51 = vector.shape_cast %50 : vector<1x16xf32> to vector<1x16x1xf32>
    %52 = vector.broadcast %51 : vector<1x16x1xf32> to vector<1x16x16xf32>
    %53 = arith.subf %49, %52 : vector<1x16x16xf32>
    %54 = math.exp %53 : vector<1x16x16xf32>
    %cst_25 = arith.constant dense<0.000000e+00> : vector<1x16xf32>
    %55 = vector.multi_reduction <add>, %54, %cst_25 [2] : vector<1x16x16xf32> to vector<1x16xf32>
    %56 = vector.shape_cast %55 : vector<1x16xf32> to vector<1x16x1xf32>
    %57 = arith.truncf %54 : vector<1x16x16xf32> to vector<1x16x16xbf16>
    "tpu.trace_start"() <{level = 10 : i32, message = "bqk,bkd->bqd"}> : () -> ()
    %cst_26 = arith.constant dense<0.000000e+00> : vector<1x16x8xf32>
    %58 = tpu.matmul %57, %46, %cst_26 {dimension_numbers = #tpu.dot_dimension_numbers<[2], [1], [1], [2], [0, 0, 0, 1, 1, 2], [0], [0]>} : vector<1x16x16xbf16>, vector<1x16x8xbf16>, vector<1x16x8xf32> -> vector<1x16x8xf32>
    "tpu.trace_stop"() : () -> ()
    %59 = tpu.reciprocal %56 {approx = true} : vector<1x16x1xf32> -> vector<1x16x1xf32>
    %60 = vector.broadcast %59 : vector<1x16x1xf32> to vector<1x16x8xf32>
    %61 = arith.mulf %58, %60 : vector<1x16x8xf32>
    %62 = vector.extract_strided_slice %40 {offsets = [0, 0, 8], sizes = [1, 16, 8], strides = [1, 1, 1]} : vector<1x16x96xf32> to vector<1x16x8xf32>
    %63 = arith.truncf %62 : vector<1x16x8xf32> to vector<1x16x8xbf16>
    %64 = vector.extract_strided_slice %40 {offsets = [0, 0, 40], sizes = [1, 16, 8], strides = [1, 1, 1]} : vector<1x16x96xf32> to vector<1x16x8xf32>
    %65 = arith.truncf %64 : vector<1x16x8xf32> to vector<1x16x8xbf16>
    %66 = vector.extract_strided_slice %40 {offsets = [0, 0, 72], sizes = [1, 16, 8], strides = [1, 1, 1]} : vector<1x16x96xf32> to vector<1x16x8xf32>
    %67 = arith.truncf %66 : vector<1x16x8xf32> to vector<1x16x8xbf16>
    "tpu.trace_start"() <{level = 10 : i32, message = "bqd,bkd->bqk"}> : () -> ()
    %cst_27 = arith.constant dense<0.000000e+00> : vector<1x16x16xf32>
    %68 = tpu.matmul %63, %65, %cst_27 {dimension_numbers = #tpu.dot_dimension_numbers<[2], [2], [1], [1], [0, 0, 0, 1, 1, 1], [0], [0]>} : vector<1x16x8xbf16>, vector<1x16x8xbf16>, vector<1x16x16xf32> -> vector<1x16x16xf32>
    "tpu.trace_stop"() : () -> ()
    %cst_28 = arith.constant 0.353553385 : f32
    %69 = vector.broadcast %cst_28 : f32 to vector<1x16x16xf32>
    %70 = arith.mulf %68, %69 : vector<1x16x16xf32>
    %cst_29 = arith.constant dense<0xFF800000> : vector<1x16xf32>
    %71 = vector.multi_reduction <maximumf>, %70, %cst_29 [2] : vector<1x16x16xf32> to vector<1x16xf32>
    %72 = vector.shape_cast %71 : vector<1x16xf32> to vector<1x16x1xf32>
    %73 = vector.broadcast %72 : vector<1x16x1xf32> to vector<1x16x16xf32>
    %74 = arith.subf %70, %73 : vector<1x16x16xf32>
    %75 = math.exp %74 : vector<1x16x16xf32>
    %cst_30 = arith.constant dense<0.000000e+00> : vector<1x16xf32>
    %76 = vector.multi_reduction <add>, %75, %cst_30 [2] : vector<1x16x16xf32> to vector<1x16xf32>
    %77 = vector.shape_cast %76 : vector<1x16xf32> to vector<1x16x1xf32>
    %78 = arith.truncf %75 : vector<1x16x16xf32> to vector<1x16x16xbf16>
    "tpu.trace_start"() <{level = 10 : i32, message = "bqk,bkd->bqd"}> : () -> ()
    %cst_31 = arith.constant dense<0.000000e+00> : vector<1x16x8xf32>
    %79 = tpu.matmul %78, %67, %cst_31 {dimension_numbers = #tpu.dot_dimension_numbers<[2], [1], [1], [2], [0, 0, 0, 1, 1, 2], [0], [0]>} : vector<1x16x16xbf16>, vector<1x16x8xbf16>, vector<1x16x8xf32> -> vector<1x16x8xf32>
    "tpu.trace_stop"() : () -> ()
    %80 = tpu.reciprocal %77 {approx = true} : vector<1x16x1xf32> -> vector<1x16x1xf32>
    %81 = vector.broadcast %80 : vector<1x16x1xf32> to vector<1x16x8xf32>
    %82 = arith.mulf %79, %81 : vector<1x16x8xf32>
    %83 = vector.extract_strided_slice %40 {offsets = [0, 0, 16], sizes = [1, 16, 8], strides = [1, 1, 1]} : vector<1x16x96xf32> to vector<1x16x8xf32>
    %84 = arith.truncf %83 : vector<1x16x8xf32> to vector<1x16x8xbf16>
    %85 = vector.extract_strided_slice %40 {offsets = [0, 0, 48], sizes = [1, 16, 8], strides = [1, 1, 1]} : vector<1x16x96xf32> to vector<1x16x8xf32>
    %86 = arith.truncf %85 : vector<1x16x8xf32> to vector<1x16x8xbf16>
    %87 = vector.extract_strided_slice %40 {offsets = [0, 0, 80], sizes = [1, 16, 8], strides = [1, 1, 1]} : vector<1x16x96xf32> to vector<1x16x8xf32>
    %88 = arith.truncf %87 : vector<1x16x8xf32> to vector<1x16x8xbf16>
    "tpu.trace_start"() <{level = 10 : i32, message = "bqd,bkd->bqk"}> : () -> ()
    %cst_32 = arith.constant dense<0.000000e+00> : vector<1x16x16xf32>
    %89 = tpu.matmul %84, %86, %cst_32 {dimension_numbers = #tpu.dot_dimension_numbers<[2], [2], [1], [1], [0, 0, 0, 1, 1, 1], [0], [0]>} : vector<1x16x8xbf16>, vector<1x16x8xbf16>, vector<1x16x16xf32> -> vector<1x16x16xf32>
    "tpu.trace_stop"() : () -> ()
    %cst_33 = arith.constant 0.353553385 : f32
    %90 = vector.broadcast %cst_33 : f32 to vector<1x16x16xf32>
    %91 = arith.mulf %89, %90 : vector<1x16x16xf32>
    %cst_34 = arith.constant dense<0xFF800000> : vector<1x16xf32>
    %92 = vector.multi_reduction <maximumf>, %91, %cst_34 [2] : vector<1x16x16xf32> to vector<1x16xf32>
    %93 = vector.shape_cast %92 : vector<1x16xf32> to vector<1x16x1xf32>
    %94 = vector.broadcast %93 : vector<1x16x1xf32> to vector<1x16x16xf32>
    %95 = arith.subf %91, %94 : vector<1x16x16xf32>
    %96 = math.exp %95 : vector<1x16x16xf32>
    %cst_35 = arith.constant dense<0.000000e+00> : vector<1x16xf32>
    %97 = vector.multi_reduction <add>, %96, %cst_35 [2] : vector<1x16x16xf32> to vector<1x16xf32>
    %98 = vector.shape_cast %97 : vector<1x16xf32> to vector<1x16x1xf32>
    %99 = arith.truncf %96 : vector<1x16x16xf32> to vector<1x16x16xbf16>
    "tpu.trace_start"() <{level = 10 : i32, message = "bqk,bkd->bqd"}> : () -> ()
    %cst_36 = arith.constant dense<0.000000e+00> : vector<1x16x8xf32>
    %100 = tpu.matmul %99, %88, %cst_36 {dimension_numbers = #tpu.dot_dimension_numbers<[2], [1], [1], [2], [0, 0, 0, 1, 1, 2], [0], [0]>} : vector<1x16x16xbf16>, vector<1x16x8xbf16>, vector<1x16x8xf32> -> vector<1x16x8xf32>
    "tpu.trace_stop"() : () -> ()
    %101 = tpu.reciprocal %98 {approx = true} : vector<1x16x1xf32> -> vector<1x16x1xf32>
    %102 = vector.broadcast %101 : vector<1x16x1xf32> to vector<1x16x8xf32>
    %103 = arith.mulf %100, %102 : vector<1x16x8xf32>
    %104 = vector.extract_strided_slice %40 {offsets = [0, 0, 24], sizes = [1, 16, 8], strides = [1, 1, 1]} : vector<1x16x96xf32> to vector<1x16x8xf32>
    %105 = arith.truncf %104 : vector<1x16x8xf32> to vector<1x16x8xbf16>
    %106 = vector.extract_strided_slice %40 {offsets = [0, 0, 56], sizes = [1, 16, 8], strides = [1, 1, 1]} : vector<1x16x96xf32> to vector<1x16x8xf32>
    %107 = arith.truncf %106 : vector<1x16x8xf32> to vector<1x16x8xbf16>
    %108 = vector.extract_strided_slice %40 {offsets = [0, 0, 88], sizes = [1, 16, 8], strides = [1, 1, 1]} : vector<1x16x96xf32> to vector<1x16x8xf32>
    %109 = arith.truncf %108 : vector<1x16x8xf32> to vector<1x16x8xbf16>
    "tpu.trace_start"() <{level = 10 : i32, message = "bqd,bkd->bqk"}> : () -> ()
    %cst_37 = arith.constant dense<0.000000e+00> : vector<1x16x16xf32>
    %110 = tpu.matmul %105, %107, %cst_37 {dimension_numbers = #tpu.dot_dimension_numbers<[2], [2], [1], [1], [0, 0, 0, 1, 1, 1], [0], [0]>} : vector<1x16x8xbf16>, vector<1x16x8xbf16>, vector<1x16x16xf32> -> vector<1x16x16xf32>
    "tpu.trace_stop"() : () -> ()
    %cst_38 = arith.constant 0.353553385 : f32
    %111 = vector.broadcast %cst_38 : f32 to vector<1x16x16xf32>
    %112 = arith.mulf %110, %111 : vector<1x16x16xf32>
    %cst_39 = arith.constant dense<0xFF800000> : vector<1x16xf32>
    %113 = vector.multi_reduction <maximumf>, %112, %cst_39 [2] : vector<1x16x16xf32> to vector<1x16xf32>
    %114 = vector.shape_cast %113 : vector<1x16xf32> to vector<1x16x1xf32>
    %115 = vector.broadcast %114 : vector<1x16x1xf32> to vector<1x16x16xf32>
    %116 = arith.subf %112, %115 : vector<1x16x16xf32>
    %117 = math.exp %116 : vector<1x16x16xf32>
    %cst_40 = arith.constant dense<0.000000e+00> : vector<1x16xf32>
    %118 = vector.multi_reduction <add>, %117, %cst_40 [2] : vector<1x16x16xf32> to vector<1x16xf32>
    %119 = vector.shape_cast %118 : vector<1x16xf32> to vector<1x16x1xf32>
    %120 = arith.truncf %117 : vector<1x16x16xf32> to vector<1x16x16xbf16>
    "tpu.trace_start"() <{level = 10 : i32, message = "bqk,bkd->bqd"}> : () -> ()
    %cst_41 = arith.constant dense<0.000000e+00> : vector<1x16x8xf32>
    %121 = tpu.matmul %120, %109, %cst_41 {dimension_numbers = #tpu.dot_dimension_numbers<[2], [1], [1], [2], [0, 0, 0, 1, 1, 2], [0], [0]>} : vector<1x16x16xbf16>, vector<1x16x8xbf16>, vector<1x16x8xf32> -> vector<1x16x8xf32>
    "tpu.trace_stop"() : () -> ()
    %122 = tpu.reciprocal %119 {approx = true} : vector<1x16x1xf32> -> vector<1x16x1xf32>
    %123 = vector.broadcast %122 : vector<1x16x1xf32> to vector<1x16x8xf32>
    %124 = arith.mulf %121, %123 : vector<1x16x8xf32>
    %125 = tpu.concatenate %61, %82, %103, %124 in 2 : vector<1x16x8xf32>, vector<1x16x8xf32>, vector<1x16x8xf32>, vector<1x16x8xf32> -> vector<1x16x32xf32>
    %126 = vector.shape_cast %125 : vector<1x16x32xf32> to vector<16x32xf32>
    %c0_42 = arith.constant 0 : index
    %c0_43 = arith.constant 0 : index
    %127 = vector.load %arg7[%c0_42, %c0_43] : memref<32x32xbf16, #tpu.memory_space<vmem>>, vector<32x32xbf16>
    %c0_44 = arith.constant 0 : index
    %c0_45 = arith.constant 0 : index
    %128 = vector.load %arg8[%c0_44, %c0_45] : memref<1x32xf32, #tpu.memory_space<vmem>>, vector<1x32xf32>
    %129 = arith.truncf %126 : vector<16x32xf32> to vector<16x32xbf16>
    %cst_46 = arith.constant dense<0.000000e+00> : vector<16x32xf32>
    %130 = tpu.matmul %129, %127, %cst_46 {dimension_numbers = #tpu.dot_dimension_numbers<[1], [0], [0], [1], [0, 0, 1, 1], [], []>} : vector<16x32xbf16>, vector<32x32xbf16>, vector<16x32xf32> -> vector<16x32xf32>
    %131 = vector.broadcast %128 : vector<1x32xf32> to vector<16x32xf32>
    %132 = arith.addf %130, %131 : vector<16x32xf32>
    %133 = vector.shape_cast %132 : vector<16x32xf32> to vector<4x4x32xf32>
    %134 = vector.broadcast %10 : vector<4x1x32xf32> to vector<4x4x32xf32>
    %135 = arith.mulf %134, %133 : vector<4x4x32xf32>
    %136 = arith.addf %1, %135 : vector<4x4x32xf32>
    %c0_47 = arith.constant 0 : index
    %c0_48 = arith.constant 0 : index
    %c0_49 = arith.constant 0 : index
    %c0_50 = arith.constant 0 : index
    %137 = vector.load %arg9[%c0_47, %c0_48, %c0_49, %c0_50] : memref<1x4x4x32xf32, #tpu.memory_space<vmem>>, vector<1x4x4x32xf32>
    %138 = vector.shape_cast %137 : vector<1x4x4x32xf32> to vector<4x4x32xf32>
    %139 = vector.shape_cast %136 : vector<4x4x32xf32> to vector<1x4x4x32xf32>
    tpu.vector_store %arg9[%c0_47, %c0_48, %c0_49, %c0_50], %139 {strides = array<i32>} : memref<1x4x4x32xf32, #tpu.memory_space<vmem>>, vector<1x4x4x32xf32>,
    %cst_51 = arith.constant dense<0.000000e+00> : vector<4x32xf32>
    %140 = vector.multi_reduction <add>, %136, %cst_51 [1] : vector<4x4x32xf32> to vector<4x32xf32>
    %cst_52 = arith.constant 4.000000e+00 : f32
    %141 = vector.broadcast %cst_52 : f32 to vector<4x32xf32>
    %142 = arith.divf %140, %141 : vector<4x32xf32>
    %c0_53 = arith.constant 0 : index
    %c0_54 = arith.constant 0 : index
    %c0_55 = arith.constant 0 : index
    %143 = vector.load %arg10[%c0_53, %c0_54, %c0_55] : memref<1x4x32xf32, #tpu.memory_space<vmem>>, vector<1x4x32xf32>
    %144 = vector.shape_cast %143 : vector<1x4x32xf32> to vector<4x32xf32>
    %145 = vector.shape_cast %142 : vector<4x32xf32> to vector<1x4x32xf32>
    tpu.vector_store %arg10[%c0_53, %c0_54, %c0_55], %145 {strides = array<i32>} : memref<1x4x32xf32, #tpu.memory_space<vmem>>, vector<1x4x32xf32>,
    return
  }
  func.func @transform_0(%arg0: i32) -> (i32, i32, i32, i32) {
    %c0_i32 = arith.constant 0 : i32
    %c0_i32_0 = arith.constant 0 : i32
    %c0_i32_1 = arith.constant 0 : i32
    %c0_i32_2 = arith.constant 0 : i32
    return %arg0, %c0_i32, %c0_i32_0, %c0_i32_1 : i32, i32, i32, i32
  }
  func.func @transform_1(%arg0: i32) -> (i32, i32, i32) {
    %c0_i32 = arith.constant 0 : i32
    %c0_i32_0 = arith.constant 0 : i32
    %c0_i32_1 = arith.constant 0 : i32
    return %arg0, %c0_i32, %c0_i32_0 : i32, i32, i32
  }
  func.func @transform_2(%arg0: i32) -> (i32, i32, i32) {
    %c0_i32 = arith.constant 0 : i32
    %c0_i32_0 = arith.constant 0 : i32
    %c0_i32_1 = arith.constant 0 : i32
    return %arg0, %c0_i32, %c0_i32_0 : i32, i32, i32
  }
  func.func @transform_3(%arg0: i32) -> (i32, i32, i32) {
    %c0_i32 = arith.constant 0 : i32
    %c0_i32_0 = arith.constant 0 : i32
    %c0_i32_1 = arith.constant 0 : i32
    return %arg0, %c0_i32, %c0_i32_0 : i32, i32, i32
  }
  func.func @transform_4(%arg0: i32) -> (i32, i32) {
    %c0_i32 = arith.constant 0 : i32
    %c0_i32_0 = arith.constant 0 : i32
    %c0_i32_1 = arith.constant 0 : i32
    return %c0_i32, %c0_i32_0 : i32, i32
  }
  func.func @transform_5(%arg0: i32) -> (i32, i32) {
    %c0_i32 = arith.constant 0 : i32
    %c0_i32_0 = arith.constant 0 : i32
    %c0_i32_1 = arith.constant 0 : i32
    return %c0_i32, %c0_i32_0 : i32, i32
  }
  func.func @transform_6(%arg0: i32) -> (i32, i32) {
    %c0_i32 = arith.constant 0 : i32
    %c0_i32_0 = arith.constant 0 : i32
    %c0_i32_1 = arith.constant 0 : i32
    return %c0_i32, %c0_i32_0 : i32, i32
  }
  func.func @transform_7(%arg0: i32) -> (i32, i32) {
    %c0_i32 = arith.constant 0 : i32
    %c0_i32_0 = arith.constant 0 : i32
    %c0_i32_1 = arith.constant 0 : i32
    return %c0_i32, %c0_i32_0 : i32, i32
  }
  func.func @transform_8(%arg0: i32) -> (i32, i32, i32, i32) {
    %c0_i32 = arith.constant 0 : i32
    %c0_i32_0 = arith.constant 0 : i32
    %c0_i32_1 = arith.constant 0 : i32
    %c0_i32_2 = arith.constant 0 : i32
    return %arg0, %c0_i32, %c0_i32_0, %c0_i32_1 : i32, i32, i32, i32
  }
  func.func @transform_9(%arg0: i32) -> (i32, i32, i32) {
    %c0_i32 = arith.constant 0 : i32
    %c0_i32_0 = arith.constant 0 : i32
    %c0_i32_1 = arith.constant 0 : i32
    return %arg0, %c0_i32, %c0_i32_0 : i32, i32, i32
  }
}

module attributes {stable_mosaic.version = 11 : i64} {
  func.func @_cross_mod_kernel(%arg0: i32, %arg1: memref<8x32xf32, #tpu.memory_space<vmem>>, %arg2: memref<8x32xf32, #tpu.memory_space<vmem>>, %arg3: memref<32x32xbf16, #tpu.memory_space<vmem>>, %arg4: memref<1x32xf32, #tpu.memory_space<vmem>>, %arg5: memref<32x96xbf16, #tpu.memory_space<vmem>>, %arg6: memref<1x96xf32, #tpu.memory_space<vmem>>, %arg7: memref<8x96xf32, #tpu.memory_space<vmem>>) attributes {dimension_semantics = [#tpu.dimension_semantics<parallel>], iteration_bounds = array<i64: 1>, scalar_prefetch = 0 : i64, scratch_operands = 0 : i64, tpu.core_type = #tpu.core_type<tc>, window_params = [{transform_indices = @transform_0, window_bounds = array<i64: 8, 32>}, {transform_indices = @transform_1, window_bounds = array<i64: 8, 32>}, {pipeline_mode = #tpu.pipeline_mode<synchronous>, transform_indices = @transform_2, window_bounds = array<i64: 32, 32>}, {pipeline_mode = #tpu.pipeline_mode<synchronous>, transform_indices = @transform_3, window_bounds = array<i64: 1, 32>}, {pipeline_mode = #tpu.pipeline_mode<synchronous>, transform_indices = @transform_4, window_bounds = array<i64: 32, 96>}, {pipeline_mode = #tpu.pipeline_mode<synchronous>, transform_indices = @transform_5, window_bounds = array<i64: 1, 96>}, {transform_indices = @transform_6, window_bounds = array<i64: 8, 96>}]} {
    %c0 = arith.constant 0 : index
    %c0_0 = arith.constant 0 : index
    %0 = vector.load %arg1[%c0, %c0_0] : memref<8x32xf32, #tpu.memory_space<vmem>>, vector<8x32xf32>
    %c0_1 = arith.constant 0 : index
    %c0_2 = arith.constant 0 : index
    %1 = vector.load %arg3[%c0_1, %c0_2] : memref<32x32xbf16, #tpu.memory_space<vmem>>, vector<32x32xbf16>
    %c0_3 = arith.constant 0 : index
    %c0_4 = arith.constant 0 : index
    %2 = vector.load %arg4[%c0_3, %c0_4] : memref<1x32xf32, #tpu.memory_space<vmem>>, vector<1x32xf32>
    %3 = arith.truncf %0 : vector<8x32xf32> to vector<8x32xbf16>
    %cst = arith.constant dense<0.000000e+00> : vector<8x32xf32>
    %4 = tpu.matmul %3, %1, %cst {dimension_numbers = #tpu.dot_dimension_numbers<[1], [0], [0], [1], [0, 0, 1, 1], [], []>} : vector<8x32xbf16>, vector<32x32xbf16>, vector<8x32xf32> -> vector<8x32xf32>
    %5 = vector.broadcast %2 : vector<1x32xf32> to vector<8x32xf32>
    %6 = arith.addf %4, %5 : vector<8x32xf32>
    %c0_5 = arith.constant 0 : index
    %c0_6 = arith.constant 0 : index
    %7 = vector.load %arg2[%c0_5, %c0_6] : memref<8x32xf32, #tpu.memory_space<vmem>>, vector<8x32xf32>
    %8 = arith.addf %6, %7 : vector<8x32xf32>
    %9 = arith.negf %8 : vector<8x32xf32>
    %10 = math.exp %9 : vector<8x32xf32>
    %cst_7 = arith.constant 1.000000e+00 : f32
    %11 = vector.broadcast %cst_7 : f32 to vector<8x32xf32>
    %12 = arith.addf %11, %10 : vector<8x32xf32>
    %13 = arith.divf %11, %12 : vector<8x32xf32>
    %14 = arith.mulf %8, %13 : vector<8x32xf32>
    %c0_8 = arith.constant 0 : index
    %c0_9 = arith.constant 0 : index
    %15 = vector.load %arg5[%c0_8, %c0_9] : memref<32x96xbf16, #tpu.memory_space<vmem>>, vector<32x96xbf16>
    %c0_10 = arith.constant 0 : index
    %c0_11 = arith.constant 0 : index
    %16 = vector.load %arg6[%c0_10, %c0_11] : memref<1x96xf32, #tpu.memory_space<vmem>>, vector<1x96xf32>
    %17 = arith.truncf %14 : vector<8x32xf32> to vector<8x32xbf16>
    %cst_12 = arith.constant dense<0.000000e+00> : vector<8x96xf32>
    %18 = tpu.matmul %17, %15, %cst_12 {dimension_numbers = #tpu.dot_dimension_numbers<[1], [0], [0], [1], [0, 0, 1, 1], [], []>} : vector<8x32xbf16>, vector<32x96xbf16>, vector<8x96xf32> -> vector<8x96xf32>
    %19 = vector.broadcast %16 : vector<1x96xf32> to vector<8x96xf32>
    %20 = arith.addf %18, %19 : vector<8x96xf32>
    %c0_13 = arith.constant 0 : index
    %c0_14 = arith.constant 0 : index
    %21 = vector.load %arg7[%c0_13, %c0_14] : memref<8x96xf32, #tpu.memory_space<vmem>>, vector<8x96xf32>
    tpu.vector_store %arg7[%c0_13, %c0_14], %20 {strides = array<i32>} : memref<8x96xf32, #tpu.memory_space<vmem>>, vector<8x96xf32>,
    return
  }
  func.func @transform_0(%arg0: i32) -> (i32, i32) {
    %c0_i32 = arith.constant 0 : i32
    %c0_i32_0 = arith.constant 0 : i32
    return %arg0, %c0_i32 : i32, i32
  }
  func.func @transform_1(%arg0: i32) -> (i32, i32) {
    %c0_i32 = arith.constant 0 : i32
    %c0_i32_0 = arith.constant 0 : i32
    return %arg0, %c0_i32 : i32, i32
  }
  func.func @transform_2(%arg0: i32) -> (i32, i32) {
    %c0_i32 = arith.constant 0 : i32
    %c0_i32_0 = arith.constant 0 : i32
    %c0_i32_1 = arith.constant 0 : i32
    return %c0_i32, %c0_i32_0 : i32, i32
  }
  func.func @transform_3(%arg0: i32) -> (i32, i32) {
    %c0_i32 = arith.constant 0 : i32
    %c0_i32_0 = arith.constant 0 : i32
    %c0_i32_1 = arith.constant 0 : i32
    return %c0_i32, %c0_i32_0 : i32, i32
  }
  func.func @transform_4(%arg0: i32) -> (i32, i32) {
    %c0_i32 = arith.constant 0 : i32
    %c0_i32_0 = arith.constant 0 : i32
    %c0_i32_1 = arith.constant 0 : i32
    return %c0_i32, %c0_i32_0 : i32, i32
  }
  func.func @transform_5(%arg0: i32) -> (i32, i32) {
    %c0_i32 = arith.constant 0 : i32
    %c0_i32_0 = arith.constant 0 : i32
    %c0_i32_1 = arith.constant 0 : i32
    return %c0_i32, %c0_i32_0 : i32, i32
  }
  func.func @transform_6(%arg0: i32) -> (i32, i32) {
    %c0_i32 = arith.constant 0 : i32
    %c0_i32_0 = arith.constant 0 : i32
    return %arg0, %c0_i32 : i32, i32
  }
}

module attributes {stable_mosaic.version = 11 : i64} {
  func.func @_silu_linear_kernel(%arg0: i32, %arg1: memref<8x32xf32, #tpu.memory_space<vmem>>, %arg2: memref<32x192xbf16, #tpu.memory_space<vmem>>, %arg3: memref<1x192xf32, #tpu.memory_space<vmem>>, %arg4: memref<8x192xf32, #tpu.memory_space<vmem>>) attributes {dimension_semantics = [#tpu.dimension_semantics<parallel>], iteration_bounds = array<i64: 1>, scalar_prefetch = 0 : i64, scratch_operands = 0 : i64, tpu.core_type = #tpu.core_type<tc>, window_params = [{transform_indices = @transform_0, window_bounds = array<i64: 8, 32>}, {pipeline_mode = #tpu.pipeline_mode<synchronous>, transform_indices = @transform_1, window_bounds = array<i64: 32, 192>}, {pipeline_mode = #tpu.pipeline_mode<synchronous>, transform_indices = @transform_2, window_bounds = array<i64: 1, 192>}, {transform_indices = @transform_3, window_bounds = array<i64: 8, 192>}]} {
    %c0 = arith.constant 0 : index
    %c0_0 = arith.constant 0 : index
    %0 = vector.load %arg1[%c0, %c0_0] : memref<8x32xf32, #tpu.memory_space<vmem>>, vector<8x32xf32>
    %1 = arith.negf %0 : vector<8x32xf32>
    %2 = math.exp %1 : vector<8x32xf32>
    %cst = arith.constant 1.000000e+00 : f32
    %3 = vector.broadcast %cst : f32 to vector<8x32xf32>
    %4 = arith.addf %3, %2 : vector<8x32xf32>
    %5 = arith.divf %3, %4 : vector<8x32xf32>
    %6 = arith.mulf %0, %5 : vector<8x32xf32>
    %c0_1 = arith.constant 0 : index
    %c0_2 = arith.constant 0 : index
    %7 = vector.load %arg2[%c0_1, %c0_2] : memref<32x192xbf16, #tpu.memory_space<vmem>>, vector<32x192xbf16>
    %c0_3 = arith.constant 0 : index
    %c0_4 = arith.constant 0 : index
    %8 = vector.load %arg3[%c0_3, %c0_4] : memref<1x192xf32, #tpu.memory_space<vmem>>, vector<1x192xf32>
    %9 = arith.truncf %6 : vector<8x32xf32> to vector<8x32xbf16>
    %cst_5 = arith.constant dense<0.000000e+00> : vector<8x192xf32>
    %10 = tpu.matmul %9, %7, %cst_5 {dimension_numbers = #tpu.dot_dimension_numbers<[1], [0], [0], [1], [0, 0, 1, 1], [], []>} : vector<8x32xbf16>, vector<32x192xbf16>, vector<8x192xf32> -> vector<8x192xf32>
    %11 = vector.broadcast %8 : vector<1x192xf32> to vector<8x192xf32>
    %12 = arith.addf %10, %11 : vector<8x192xf32>
    %c0_6 = arith.constant 0 : index
    %c0_7 = arith.constant 0 : index
    %13 = vector.load %arg4[%c0_6, %c0_7] : memref<8x192xf32, #tpu.memory_space<vmem>>, vector<8x192xf32>
    tpu.vector_store %arg4[%c0_6, %c0_7], %12 {strides = array<i32>} : memref<8x192xf32, #tpu.memory_space<vmem>>, vector<8x192xf32>,
    return
  }
  func.func @transform_0(%arg0: i32) -> (i32, i32) {
    %c0_i32 = arith.constant 0 : i32
    %c0_i32_0 = arith.constant 0 : i32
    return %arg0, %c0_i32 : i32, i32
  }
  func.func @transform_1(%arg0: i32) -> (i32, i32) {
    %c0_i32 = arith.constant 0 : i32
    %c0_i32_0 = arith.constant 0 : i32
    %c0_i32_1 = arith.constant 0 : i32
    return %c0_i32, %c0_i32_0 : i32, i32
  }
  func.func @transform_2(%arg0: i32) -> (i32, i32) {
    %c0_i32 = arith.constant 0 : i32
    %c0_i32_0 = arith.constant 0 : i32
    %c0_i32_1 = arith.constant 0 : i32
    return %c0_i32, %c0_i32_0 : i32, i32
  }
  func.func @transform_3(%arg0: i32) -> (i32, i32) {
    %c0_i32 = arith.constant 0 : i32
    %c0_i32_0 = arith.constant 0 : i32
    return %arg0, %c0_i32 : i32, i32
  }
}

module attributes {stable_mosaic.version = 11 : i64} {
  func.func @_spatial_attn_kernel(%arg0: i32, %arg1: i32, %arg2: memref<1x1x8x32xf32, #tpu.memory_space<vmem>>, %arg3: memref<1x1x1x32xf32, #tpu.memory_space<vmem>>, %arg4: memref<1x1x1x32xf32, #tpu.memory_space<vmem>>, %arg5: memref<1x1x1x32xf32, #tpu.memory_space<vmem>>, %arg6: memref<32x96xbf16, #tpu.memory_space<vmem>>, %arg7: memref<1x96xf32, #tpu.memory_space<vmem>>, %arg8: memref<32x32xbf16, #tpu.memory_space<vmem>>, %arg9: memref<1x32xf32, #tpu.memory_space<vmem>>, %arg10: memref<1x1x8x32xf32, #tpu.memory_space<vmem>>) attributes {dimension_semantics = [#tpu.dimension_semantics<parallel>, #tpu.dimension_semantics<parallel>], iteration_bounds = array<i64: 2, 4>, scalar_prefetch = 0 : i64, scratch_operands = 0 : i64, tpu.core_type = #tpu.core_type<tc>, window_params = [{transform_indices = @transform_0, window_bounds = array<i64: 1, 1, 8, 32>}, {transform_indices = @transform_1, window_bounds = array<i64: 1, 1, 1, 32>}, {transform_indices = @transform_2, window_bounds = array<i64: 1, 1, 1, 32>}, {transform_indices = @transform_3, window_bounds = array<i64: 1, 1, 1, 32>}, {pipeline_mode = #tpu.pipeline_mode<synchronous>, transform_indices = @transform_4, window_bounds = array<i64: 32, 96>}, {pipeline_mode = #tpu.pipeline_mode<synchronous>, transform_indices = @transform_5, window_bounds = array<i64: 1, 96>}, {pipeline_mode = #tpu.pipeline_mode<synchronous>, transform_indices = @transform_6, window_bounds = array<i64: 32, 32>}, {pipeline_mode = #tpu.pipeline_mode<synchronous>, transform_indices = @transform_7, window_bounds = array<i64: 1, 32>}, {transform_indices = @transform_8, window_bounds = array<i64: 1, 1, 8, 32>}]} {
    %c0 = arith.constant 0 : index
    %c0_0 = arith.constant 0 : index
    %c0_1 = arith.constant 0 : index
    %c0_2 = arith.constant 0 : index
    %0 = vector.load %arg2[%c0, %c0_0, %c0_1, %c0_2] : memref<1x1x8x32xf32, #tpu.memory_space<vmem>>, vector<1x1x8x32xf32>
    %1 = vector.shape_cast %0 : vector<1x1x8x32xf32> to vector<1x8x32xf32>
    %c0_3 = arith.constant 0 : index
    %c0_4 = arith.constant 0 : index
    %c0_5 = arith.constant 0 : index
    %c0_6 = arith.constant 0 : index
    %2 = vector.load %arg3[%c0_3, %c0_4, %c0_5, %c0_6] : memref<1x1x1x32xf32, #tpu.memory_space<vmem>>, vector<1x1x1x32xf32>
    %3 = vector.shape_cast %2 : vector<1x1x1x32xf32> to vector<1x1x32xf32>
    %c0_7 = arith.constant 0 : index
    %c0_8 = arith.constant 0 : index
    %c0_9 = arith.constant 0 : index
    %c0_10 = arith.constant 0 : index
    %4 = vector.load %arg4[%c0_7, %c0_8, %c0_9, %c0_10] : memref<1x1x1x32xf32, #tpu.memory_space<vmem>>, vector<1x1x1x32xf32>
    %5 = vector.shape_cast %4 : vector<1x1x1x32xf32> to vector<1x1x32xf32>
    %c0_11 = arith.constant 0 : index
    %c0_12 = arith.constant 0 : index
    %c0_13 = arith.constant 0 : index
    %c0_14 = arith.constant 0 : index
    %6 = vector.load %arg5[%c0_11, %c0_12, %c0_13, %c0_14] : memref<1x1x1x32xf32, #tpu.memory_space<vmem>>, vector<1x1x1x32xf32>
    %7 = vector.shape_cast %6 : vector<1x1x1x32xf32> to vector<1x1x32xf32>
    %cst = arith.constant dense<0.000000e+00> : vector<1x8xf32>
    %8 = vector.multi_reduction <add>, %1, %cst [2] : vector<1x8x32xf32> to vector<1x8xf32>
    %9 = vector.shape_cast %8 : vector<1x8xf32> to vector<1x8x1xf32>
    %cst_15 = arith.constant 3.200000e+01 : f32
    %10 = vector.broadcast %cst_15 : f32 to vector<1x8x1xf32>
    %11 = arith.divf %9, %10 : vector<1x8x1xf32>
    %12 = vector.broadcast %11 : vector<1x8x1xf32> to vector<1x8x32xf32>
    %13 = arith.subf %1, %12 : vector<1x8x32xf32>
    %14 = arith.mulf %13, %13 : vector<1x8x32xf32>
    %cst_16 = arith.constant dense<0.000000e+00> : vector<1x8xf32>
    %15 = vector.multi_reduction <add>, %14, %cst_16 [2] : vector<1x8x32xf32> to vector<1x8xf32>
    %16 = vector.shape_cast %15 : vector<1x8xf32> to vector<1x8x1xf32>
    %cst_17 = arith.constant 3.200000e+01 : f32
    %17 = vector.broadcast %cst_17 : f32 to vector<1x8x1xf32>
    %18 = arith.divf %16, %17 : vector<1x8x1xf32>
    %cst_18 = arith.constant 9.99999997E-7 : f32
    %19 = vector.broadcast %cst_18 : f32 to vector<1x8x1xf32>
    %20 = arith.addf %18, %19 : vector<1x8x1xf32>
    %21 = math.rsqrt %20 : vector<1x8x1xf32>
    %22 = vector.broadcast %21 : vector<1x8x1xf32> to vector<1x8x32xf32>
    %23 = arith.mulf %13, %22 : vector<1x8x32xf32>
    %cst_19 = arith.constant 1.000000e+00 : f32
    %24 = vector.broadcast %cst_19 : f32 to vector<1x1x32xf32>
    %25 = arith.addf %24, %5 : vector<1x1x32xf32>
    %26 = vector.broadcast %25 : vector<1x1x32xf32> to vector<1x8x32xf32>
    %27 = arith.mulf %23, %26 : vector<1x8x32xf32>
    %28 = vector.broadcast %3 : vector<1x1x32xf32> to vector<1x8x32xf32>
    %29 = arith.addf %27, %28 : vector<1x8x32xf32>
    %30 = vector.shape_cast %29 : vector<1x8x32xf32> to vector<8x32xf32>
    %c0_20 = arith.constant 0 : index
    %c0_21 = arith.constant 0 : index
    %31 = vector.load %arg6[%c0_20, %c0_21] : memref<32x96xbf16, #tpu.memory_space<vmem>>, vector<32x96xbf16>
    %c0_22 = arith.constant 0 : index
    %c0_23 = arith.constant 0 : index
    %32 = vector.load %arg7[%c0_22, %c0_23] : memref<1x96xf32, #tpu.memory_space<vmem>>, vector<1x96xf32>
    %33 = arith.truncf %30 : vector<8x32xf32> to vector<8x32xbf16>
    %cst_24 = arith.constant dense<0.000000e+00> : vector<8x96xf32>
    %34 = tpu.matmul %33, %31, %cst_24 {dimension_numbers = #tpu.dot_dimension_numbers<[1], [0], [0], [1], [0, 0, 1, 1], [], []>} : vector<8x32xbf16>, vector<32x96xbf16>, vector<8x96xf32> -> vector<8x96xf32>
    %35 = vector.broadcast %32 : vector<1x96xf32> to vector<8x96xf32>
    %36 = arith.addf %34, %35 : vector<8x96xf32>
    %37 = vector.shape_cast %36 : vector<8x96xf32> to vector<1x8x96xf32>
    %38 = vector.extract_strided_slice %37 {offsets = [0, 0, 0], sizes = [1, 8, 8], strides = [1, 1, 1]} : vector<1x8x96xf32> to vector<1x8x8xf32>
    %39 = arith.truncf %38 : vector<1x8x8xf32> to vector<1x8x8xbf16>
    %40 = vector.extract_strided_slice %37 {offsets = [0, 0, 32], sizes = [1, 8, 8], strides = [1, 1, 1]} : vector<1x8x96xf32> to vector<1x8x8xf32>
    %41 = arith.truncf %40 : vector<1x8x8xf32> to vector<1x8x8xbf16>
    %42 = vector.extract_strided_slice %37 {offsets = [0, 0, 64], sizes = [1, 8, 8], strides = [1, 1, 1]} : vector<1x8x96xf32> to vector<1x8x8xf32>
    %43 = arith.truncf %42 : vector<1x8x8xf32> to vector<1x8x8xbf16>
    "tpu.trace_start"() <{level = 10 : i32, message = "bqd,bkd->bqk"}> : () -> ()
    %cst_25 = arith.constant dense<0.000000e+00> : vector<1x8x8xf32>
    %44 = tpu.matmul %39, %41, %cst_25 {dimension_numbers = #tpu.dot_dimension_numbers<[2], [2], [1], [1], [0, 0, 0, 1, 1, 1], [0], [0]>} : vector<1x8x8xbf16>, vector<1x8x8xbf16>, vector<1x8x8xf32> -> vector<1x8x8xf32>
    "tpu.trace_stop"() : () -> ()
    %cst_26 = arith.constant 0.353553385 : f32
    %45 = vector.broadcast %cst_26 : f32 to vector<1x8x8xf32>
    %46 = arith.mulf %44, %45 : vector<1x8x8xf32>
    %cst_27 = arith.constant dense<0xFF800000> : vector<1x8xf32>
    %47 = vector.multi_reduction <maximumf>, %46, %cst_27 [2] : vector<1x8x8xf32> to vector<1x8xf32>
    %48 = vector.shape_cast %47 : vector<1x8xf32> to vector<1x8x1xf32>
    %49 = vector.broadcast %48 : vector<1x8x1xf32> to vector<1x8x8xf32>
    %50 = arith.subf %46, %49 : vector<1x8x8xf32>
    %51 = math.exp %50 : vector<1x8x8xf32>
    %cst_28 = arith.constant dense<0.000000e+00> : vector<1x8xf32>
    %52 = vector.multi_reduction <add>, %51, %cst_28 [2] : vector<1x8x8xf32> to vector<1x8xf32>
    %53 = vector.shape_cast %52 : vector<1x8xf32> to vector<1x8x1xf32>
    %54 = arith.truncf %51 : vector<1x8x8xf32> to vector<1x8x8xbf16>
    "tpu.trace_start"() <{level = 10 : i32, message = "bqk,bkd->bqd"}> : () -> ()
    %cst_29 = arith.constant dense<0.000000e+00> : vector<1x8x8xf32>
    %55 = tpu.matmul %54, %43, %cst_29 {dimension_numbers = #tpu.dot_dimension_numbers<[2], [1], [1], [2], [0, 0, 0, 1, 1, 2], [0], [0]>} : vector<1x8x8xbf16>, vector<1x8x8xbf16>, vector<1x8x8xf32> -> vector<1x8x8xf32>
    "tpu.trace_stop"() : () -> ()
    %56 = tpu.reciprocal %53 {approx = true} : vector<1x8x1xf32> -> vector<1x8x1xf32>
    %57 = vector.broadcast %56 : vector<1x8x1xf32> to vector<1x8x8xf32>
    %58 = arith.mulf %55, %57 : vector<1x8x8xf32>
    %59 = vector.extract_strided_slice %37 {offsets = [0, 0, 8], sizes = [1, 8, 8], strides = [1, 1, 1]} : vector<1x8x96xf32> to vector<1x8x8xf32>
    %60 = arith.truncf %59 : vector<1x8x8xf32> to vector<1x8x8xbf16>
    %61 = vector.extract_strided_slice %37 {offsets = [0, 0, 40], sizes = [1, 8, 8], strides = [1, 1, 1]} : vector<1x8x96xf32> to vector<1x8x8xf32>
    %62 = arith.truncf %61 : vector<1x8x8xf32> to vector<1x8x8xbf16>
    %63 = vector.extract_strided_slice %37 {offsets = [0, 0, 72], sizes = [1, 8, 8], strides = [1, 1, 1]} : vector<1x8x96xf32> to vector<1x8x8xf32>
    %64 = arith.truncf %63 : vector<1x8x8xf32> to vector<1x8x8xbf16>
    "tpu.trace_start"() <{level = 10 : i32, message = "bqd,bkd->bqk"}> : () -> ()
    %cst_30 = arith.constant dense<0.000000e+00> : vector<1x8x8xf32>
    %65 = tpu.matmul %60, %62, %cst_30 {dimension_numbers = #tpu.dot_dimension_numbers<[2], [2], [1], [1], [0, 0, 0, 1, 1, 1], [0], [0]>} : vector<1x8x8xbf16>, vector<1x8x8xbf16>, vector<1x8x8xf32> -> vector<1x8x8xf32>
    "tpu.trace_stop"() : () -> ()
    %cst_31 = arith.constant 0.353553385 : f32
    %66 = vector.broadcast %cst_31 : f32 to vector<1x8x8xf32>
    %67 = arith.mulf %65, %66 : vector<1x8x8xf32>
    %cst_32 = arith.constant dense<0xFF800000> : vector<1x8xf32>
    %68 = vector.multi_reduction <maximumf>, %67, %cst_32 [2] : vector<1x8x8xf32> to vector<1x8xf32>
    %69 = vector.shape_cast %68 : vector<1x8xf32> to vector<1x8x1xf32>
    %70 = vector.broadcast %69 : vector<1x8x1xf32> to vector<1x8x8xf32>
    %71 = arith.subf %67, %70 : vector<1x8x8xf32>
    %72 = math.exp %71 : vector<1x8x8xf32>
    %cst_33 = arith.constant dense<0.000000e+00> : vector<1x8xf32>
    %73 = vector.multi_reduction <add>, %72, %cst_33 [2] : vector<1x8x8xf32> to vector<1x8xf32>
    %74 = vector.shape_cast %73 : vector<1x8xf32> to vector<1x8x1xf32>
    %75 = arith.truncf %72 : vector<1x8x8xf32> to vector<1x8x8xbf16>
    "tpu.trace_start"() <{level = 10 : i32, message = "bqk,bkd->bqd"}> : () -> ()
    %cst_34 = arith.constant dense<0.000000e+00> : vector<1x8x8xf32>
    %76 = tpu.matmul %75, %64, %cst_34 {dimension_numbers = #tpu.dot_dimension_numbers<[2], [1], [1], [2], [0, 0, 0, 1, 1, 2], [0], [0]>} : vector<1x8x8xbf16>, vector<1x8x8xbf16>, vector<1x8x8xf32> -> vector<1x8x8xf32>
    "tpu.trace_stop"() : () -> ()
    %77 = tpu.reciprocal %74 {approx = true} : vector<1x8x1xf32> -> vector<1x8x1xf32>
    %78 = vector.broadcast %77 : vector<1x8x1xf32> to vector<1x8x8xf32>
    %79 = arith.mulf %76, %78 : vector<1x8x8xf32>
    %80 = vector.extract_strided_slice %37 {offsets = [0, 0, 16], sizes = [1, 8, 8], strides = [1, 1, 1]} : vector<1x8x96xf32> to vector<1x8x8xf32>
    %81 = arith.truncf %80 : vector<1x8x8xf32> to vector<1x8x8xbf16>
    %82 = vector.extract_strided_slice %37 {offsets = [0, 0, 48], sizes = [1, 8, 8], strides = [1, 1, 1]} : vector<1x8x96xf32> to vector<1x8x8xf32>
    %83 = arith.truncf %82 : vector<1x8x8xf32> to vector<1x8x8xbf16>
    %84 = vector.extract_strided_slice %37 {offsets = [0, 0, 80], sizes = [1, 8, 8], strides = [1, 1, 1]} : vector<1x8x96xf32> to vector<1x8x8xf32>
    %85 = arith.truncf %84 : vector<1x8x8xf32> to vector<1x8x8xbf16>
    "tpu.trace_start"() <{level = 10 : i32, message = "bqd,bkd->bqk"}> : () -> ()
    %cst_35 = arith.constant dense<0.000000e+00> : vector<1x8x8xf32>
    %86 = tpu.matmul %81, %83, %cst_35 {dimension_numbers = #tpu.dot_dimension_numbers<[2], [2], [1], [1], [0, 0, 0, 1, 1, 1], [0], [0]>} : vector<1x8x8xbf16>, vector<1x8x8xbf16>, vector<1x8x8xf32> -> vector<1x8x8xf32>
    "tpu.trace_stop"() : () -> ()
    %cst_36 = arith.constant 0.353553385 : f32
    %87 = vector.broadcast %cst_36 : f32 to vector<1x8x8xf32>
    %88 = arith.mulf %86, %87 : vector<1x8x8xf32>
    %cst_37 = arith.constant dense<0xFF800000> : vector<1x8xf32>
    %89 = vector.multi_reduction <maximumf>, %88, %cst_37 [2] : vector<1x8x8xf32> to vector<1x8xf32>
    %90 = vector.shape_cast %89 : vector<1x8xf32> to vector<1x8x1xf32>
    %91 = vector.broadcast %90 : vector<1x8x1xf32> to vector<1x8x8xf32>
    %92 = arith.subf %88, %91 : vector<1x8x8xf32>
    %93 = math.exp %92 : vector<1x8x8xf32>
    %cst_38 = arith.constant dense<0.000000e+00> : vector<1x8xf32>
    %94 = vector.multi_reduction <add>, %93, %cst_38 [2] : vector<1x8x8xf32> to vector<1x8xf32>
    %95 = vector.shape_cast %94 : vector<1x8xf32> to vector<1x8x1xf32>
    %96 = arith.truncf %93 : vector<1x8x8xf32> to vector<1x8x8xbf16>
    "tpu.trace_start"() <{level = 10 : i32, message = "bqk,bkd->bqd"}> : () -> ()
    %cst_39 = arith.constant dense<0.000000e+00> : vector<1x8x8xf32>
    %97 = tpu.matmul %96, %85, %cst_39 {dimension_numbers = #tpu.dot_dimension_numbers<[2], [1], [1], [2], [0, 0, 0, 1, 1, 2], [0], [0]>} : vector<1x8x8xbf16>, vector<1x8x8xbf16>, vector<1x8x8xf32> -> vector<1x8x8xf32>
    "tpu.trace_stop"() : () -> ()
    %98 = tpu.reciprocal %95 {approx = true} : vector<1x8x1xf32> -> vector<1x8x1xf32>
    %99 = vector.broadcast %98 : vector<1x8x1xf32> to vector<1x8x8xf32>
    %100 = arith.mulf %97, %99 : vector<1x8x8xf32>
    %101 = vector.extract_strided_slice %37 {offsets = [0, 0, 24], sizes = [1, 8, 8], strides = [1, 1, 1]} : vector<1x8x96xf32> to vector<1x8x8xf32>
    %102 = arith.truncf %101 : vector<1x8x8xf32> to vector<1x8x8xbf16>
    %103 = vector.extract_strided_slice %37 {offsets = [0, 0, 56], sizes = [1, 8, 8], strides = [1, 1, 1]} : vector<1x8x96xf32> to vector<1x8x8xf32>
    %104 = arith.truncf %103 : vector<1x8x8xf32> to vector<1x8x8xbf16>
    %105 = vector.extract_strided_slice %37 {offsets = [0, 0, 88], sizes = [1, 8, 8], strides = [1, 1, 1]} : vector<1x8x96xf32> to vector<1x8x8xf32>
    %106 = arith.truncf %105 : vector<1x8x8xf32> to vector<1x8x8xbf16>
    "tpu.trace_start"() <{level = 10 : i32, message = "bqd,bkd->bqk"}> : () -> ()
    %cst_40 = arith.constant dense<0.000000e+00> : vector<1x8x8xf32>
    %107 = tpu.matmul %102, %104, %cst_40 {dimension_numbers = #tpu.dot_dimension_numbers<[2], [2], [1], [1], [0, 0, 0, 1, 1, 1], [0], [0]>} : vector<1x8x8xbf16>, vector<1x8x8xbf16>, vector<1x8x8xf32> -> vector<1x8x8xf32>
    "tpu.trace_stop"() : () -> ()
    %cst_41 = arith.constant 0.353553385 : f32
    %108 = vector.broadcast %cst_41 : f32 to vector<1x8x8xf32>
    %109 = arith.mulf %107, %108 : vector<1x8x8xf32>
    %cst_42 = arith.constant dense<0xFF800000> : vector<1x8xf32>
    %110 = vector.multi_reduction <maximumf>, %109, %cst_42 [2] : vector<1x8x8xf32> to vector<1x8xf32>
    %111 = vector.shape_cast %110 : vector<1x8xf32> to vector<1x8x1xf32>
    %112 = vector.broadcast %111 : vector<1x8x1xf32> to vector<1x8x8xf32>
    %113 = arith.subf %109, %112 : vector<1x8x8xf32>
    %114 = math.exp %113 : vector<1x8x8xf32>
    %cst_43 = arith.constant dense<0.000000e+00> : vector<1x8xf32>
    %115 = vector.multi_reduction <add>, %114, %cst_43 [2] : vector<1x8x8xf32> to vector<1x8xf32>
    %116 = vector.shape_cast %115 : vector<1x8xf32> to vector<1x8x1xf32>
    %117 = arith.truncf %114 : vector<1x8x8xf32> to vector<1x8x8xbf16>
    "tpu.trace_start"() <{level = 10 : i32, message = "bqk,bkd->bqd"}> : () -> ()
    %cst_44 = arith.constant dense<0.000000e+00> : vector<1x8x8xf32>
    %118 = tpu.matmul %117, %106, %cst_44 {dimension_numbers = #tpu.dot_dimension_numbers<[2], [1], [1], [2], [0, 0, 0, 1, 1, 2], [0], [0]>} : vector<1x8x8xbf16>, vector<1x8x8xbf16>, vector<1x8x8xf32> -> vector<1x8x8xf32>
    "tpu.trace_stop"() : () -> ()
    %119 = tpu.reciprocal %116 {approx = true} : vector<1x8x1xf32> -> vector<1x8x1xf32>
    %120 = vector.broadcast %119 : vector<1x8x1xf32> to vector<1x8x8xf32>
    %121 = arith.mulf %118, %120 : vector<1x8x8xf32>
    %122 = tpu.concatenate %58, %79, %100, %121 in 2 : vector<1x8x8xf32>, vector<1x8x8xf32>, vector<1x8x8xf32>, vector<1x8x8xf32> -> vector<1x8x32xf32>
    %123 = vector.shape_cast %122 : vector<1x8x32xf32> to vector<8x32xf32>
    %c0_45 = arith.constant 0 : index
    %c0_46 = arith.constant 0 : index
    %124 = vector.load %arg8[%c0_45, %c0_46] : memref<32x32xbf16, #tpu.memory_space<vmem>>, vector<32x32xbf16>
    %c0_47 = arith.constant 0 : index
    %c0_48 = arith.constant 0 : index
    %125 = vector.load %arg9[%c0_47, %c0_48] : memref<1x32xf32, #tpu.memory_space<vmem>>, vector<1x32xf32>
    %126 = arith.truncf %123 : vector<8x32xf32> to vector<8x32xbf16>
    %cst_49 = arith.constant dense<0.000000e+00> : vector<8x32xf32>
    %127 = tpu.matmul %126, %124, %cst_49 {dimension_numbers = #tpu.dot_dimension_numbers<[1], [0], [0], [1], [0, 0, 1, 1], [], []>} : vector<8x32xbf16>, vector<32x32xbf16>, vector<8x32xf32> -> vector<8x32xf32>
    %128 = vector.broadcast %125 : vector<1x32xf32> to vector<8x32xf32>
    %129 = arith.addf %127, %128 : vector<8x32xf32>
    %130 = vector.shape_cast %129 : vector<8x32xf32> to vector<1x8x32xf32>
    %131 = vector.broadcast %7 : vector<1x1x32xf32> to vector<1x8x32xf32>
    %132 = arith.mulf %131, %130 : vector<1x8x32xf32>
    %133 = arith.addf %1, %132 : vector<1x8x32xf32>
    %c0_50 = arith.constant 0 : index
    %c0_51 = arith.constant 0 : index
    %c0_52 = arith.constant 0 : index
    %c0_53 = arith.constant 0 : index
    %134 = vector.load %arg10[%c0_50, %c0_51, %c0_52, %c0_53] : memref<1x1x8x32xf32, #tpu.memory_space<vmem>>, vector<1x1x8x32xf32>
    %135 = vector.shape_cast %134 : vector<1x1x8x32xf32> to vector<1x8x32xf32>
    %136 = vector.shape_cast %133 : vector<1x8x32xf32> to vector<1x1x8x32xf32>
    tpu.vector_store %arg10[%c0_50, %c0_51, %c0_52, %c0_53], %136 {strides = array<i32>} : memref<1x1x8x32xf32, #tpu.memory_space<vmem>>, vector<1x1x8x32xf32>,
    return
  }
  func.func @transform_0(%arg0: i32, %arg1: i32) -> (i32, i32, i32, i32) {
    %c0_i32 = arith.constant 0 : i32
    %c0_i32_0 = arith.constant 0 : i32
    %c0_i32_1 = arith.constant 0 : i32
    return %arg0, %arg1, %c0_i32, %c0_i32_0 : i32, i32, i32, i32
  }
  func.func @transform_1(%arg0: i32, %arg1: i32) -> (i32, i32, i32, i32) {
    %c0_i32 = arith.constant 0 : i32
    %c0_i32_0 = arith.constant 0 : i32
    %c0_i32_1 = arith.constant 0 : i32
    return %arg0, %arg1, %c0_i32, %c0_i32_0 : i32, i32, i32, i32
  }
  func.func @transform_2(%arg0: i32, %arg1: i32) -> (i32, i32, i32, i32) {
    %c0_i32 = arith.constant 0 : i32
    %c0_i32_0 = arith.constant 0 : i32
    %c0_i32_1 = arith.constant 0 : i32
    return %arg0, %arg1, %c0_i32, %c0_i32_0 : i32, i32, i32, i32
  }
  func.func @transform_3(%arg0: i32, %arg1: i32) -> (i32, i32, i32, i32) {
    %c0_i32 = arith.constant 0 : i32
    %c0_i32_0 = arith.constant 0 : i32
    %c0_i32_1 = arith.constant 0 : i32
    return %arg0, %arg1, %c0_i32, %c0_i32_0 : i32, i32, i32, i32
  }
  func.func @transform_4(%arg0: i32, %arg1: i32) -> (i32, i32) {
    %c0_i32 = arith.constant 0 : i32
    %c0_i32_0 = arith.constant 0 : i32
    %c0_i32_1 = arith.constant 0 : i32
    return %c0_i32, %c0_i32_0 : i32, i32
  }
  func.func @transform_5(%arg0: i32, %arg1: i32) -> (i32, i32) {
    %c0_i32 = arith.constant 0 : i32
    %c0_i32_0 = arith.constant 0 : i32
    %c0_i32_1 = arith.constant 0 : i32
    return %c0_i32, %c0_i32_0 : i32, i32
  }
  func.func @transform_6(%arg0: i32, %arg1: i32) -> (i32, i32) {
    %c0_i32 = arith.constant 0 : i32
    %c0_i32_0 = arith.constant 0 : i32
    %c0_i32_1 = arith.constant 0 : i32
    return %c0_i32, %c0_i32_0 : i32, i32
  }
  func.func @transform_7(%arg0: i32, %arg1: i32) -> (i32, i32) {
    %c0_i32 = arith.constant 0 : i32
    %c0_i32_0 = arith.constant 0 : i32
    %c0_i32_1 = arith.constant 0 : i32
    return %c0_i32, %c0_i32_0 : i32, i32
  }
  func.func @transform_8(%arg0: i32, %arg1: i32) -> (i32, i32, i32, i32) {
    %c0_i32 = arith.constant 0 : i32
    %c0_i32_0 = arith.constant 0 : i32
    %c0_i32_1 = arith.constant 0 : i32
    return %arg0, %arg1, %c0_i32, %c0_i32_0 : i32, i32, i32, i32
  }
}

module attributes {stable_mosaic.version = 11 : i64} {
  func.func @_spatial_attn_kernel(%arg0: i32, %arg1: i32, %arg2: memref<1x2x4x32xf32, #tpu.memory_space<vmem>>, %arg3: memref<1x1x4x32xf32, #tpu.memory_space<vmem>>, %arg4: memref<1x1x4x32xf32, #tpu.memory_space<vmem>>, %arg5: memref<1x1x4x32xf32, #tpu.memory_space<vmem>>, %arg6: memref<32x96xbf16, #tpu.memory_space<vmem>>, %arg7: memref<1x96xf32, #tpu.memory_space<vmem>>, %arg8: memref<32x32xbf16, #tpu.memory_space<vmem>>, %arg9: memref<1x32xf32, #tpu.memory_space<vmem>>, %arg10: memref<1x2x4x32xf32, #tpu.memory_space<vmem>>) attributes {dimension_semantics = [#tpu.dimension_semantics<parallel>, #tpu.dimension_semantics<parallel>], iteration_bounds = array<i64: 2, 4>, scalar_prefetch = 0 : i64, scratch_operands = 0 : i64, tpu.core_type = #tpu.core_type<tc>, window_params = [{transform_indices = @transform_0, window_bounds = array<i64: 1, 2, 4, 32>}, {transform_indices = @transform_1, window_bounds = array<i64: 1, 1, 4, 32>}, {transform_indices = @transform_2, window_bounds = array<i64: 1, 1, 4, 32>}, {transform_indices = @transform_3, window_bounds = array<i64: 1, 1, 4, 32>}, {pipeline_mode = #tpu.pipeline_mode<synchronous>, transform_indices = @transform_4, window_bounds = array<i64: 32, 96>}, {pipeline_mode = #tpu.pipeline_mode<synchronous>, transform_indices = @transform_5, window_bounds = array<i64: 1, 96>}, {pipeline_mode = #tpu.pipeline_mode<synchronous>, transform_indices = @transform_6, window_bounds = array<i64: 32, 32>}, {pipeline_mode = #tpu.pipeline_mode<synchronous>, transform_indices = @transform_7, window_bounds = array<i64: 1, 32>}, {transform_indices = @transform_8, window_bounds = array<i64: 1, 2, 4, 32>}]} {
    %c0 = arith.constant 0 : index
    %c0_0 = arith.constant 0 : index
    %c0_1 = arith.constant 0 : index
    %c0_2 = arith.constant 0 : index
    %0 = vector.load %arg2[%c0, %c0_0, %c0_1, %c0_2] : memref<1x2x4x32xf32, #tpu.memory_space<vmem>>, vector<1x2x4x32xf32>
    %1 = vector.shape_cast %0 : vector<1x2x4x32xf32> to vector<2x4x32xf32>
    %c0_3 = arith.constant 0 : index
    %c0_4 = arith.constant 0 : index
    %c0_5 = arith.constant 0 : index
    %c0_6 = arith.constant 0 : index
    %2 = vector.load %arg3[%c0_3, %c0_4, %c0_5, %c0_6] : memref<1x1x4x32xf32, #tpu.memory_space<vmem>>, vector<1x1x4x32xf32>
    %3 = vector.shape_cast %2 : vector<1x1x4x32xf32> to vector<1x4x32xf32>
    %c0_7 = arith.constant 0 : index
    %c0_8 = arith.constant 0 : index
    %c0_9 = arith.constant 0 : index
    %c0_10 = arith.constant 0 : index
    %4 = vector.load %arg4[%c0_7, %c0_8, %c0_9, %c0_10] : memref<1x1x4x32xf32, #tpu.memory_space<vmem>>, vector<1x1x4x32xf32>
    %5 = vector.shape_cast %4 : vector<1x1x4x32xf32> to vector<1x4x32xf32>
    %c0_11 = arith.constant 0 : index
    %c0_12 = arith.constant 0 : index
    %c0_13 = arith.constant 0 : index
    %c0_14 = arith.constant 0 : index
    %6 = vector.load %arg5[%c0_11, %c0_12, %c0_13, %c0_14] : memref<1x1x4x32xf32, #tpu.memory_space<vmem>>, vector<1x1x4x32xf32>
    %7 = vector.shape_cast %6 : vector<1x1x4x32xf32> to vector<1x4x32xf32>
    %cst = arith.constant dense<0.000000e+00> : vector<2x4xf32>
    %8 = vector.multi_reduction <add>, %1, %cst [2] : vector<2x4x32xf32> to vector<2x4xf32>
    %9 = vector.shape_cast %8 : vector<2x4xf32> to vector<2x4x1xf32>
    %cst_15 = arith.constant 3.200000e+01 : f32
    %10 = vector.broadcast %cst_15 : f32 to vector<2x4x1xf32>
    %11 = arith.divf %9, %10 : vector<2x4x1xf32>
    %12 = vector.broadcast %11 : vector<2x4x1xf32> to vector<2x4x32xf32>
    %13 = arith.subf %1, %12 : vector<2x4x32xf32>
    %14 = arith.mulf %13, %13 : vector<2x4x32xf32>
    %cst_16 = arith.constant dense<0.000000e+00> : vector<2x4xf32>
    %15 = vector.multi_reduction <add>, %14, %cst_16 [2] : vector<2x4x32xf32> to vector<2x4xf32>
    %16 = vector.shape_cast %15 : vector<2x4xf32> to vector<2x4x1xf32>
    %cst_17 = arith.constant 3.200000e+01 : f32
    %17 = vector.broadcast %cst_17 : f32 to vector<2x4x1xf32>
    %18 = arith.divf %16, %17 : vector<2x4x1xf32>
    %cst_18 = arith.constant 9.99999997E-7 : f32
    %19 = vector.broadcast %cst_18 : f32 to vector<2x4x1xf32>
    %20 = arith.addf %18, %19 : vector<2x4x1xf32>
    %21 = math.rsqrt %20 : vector<2x4x1xf32>
    %22 = vector.broadcast %21 : vector<2x4x1xf32> to vector<2x4x32xf32>
    %23 = arith.mulf %13, %22 : vector<2x4x32xf32>
    %cst_19 = arith.constant 1.000000e+00 : f32
    %24 = vector.broadcast %cst_19 : f32 to vector<1x4x32xf32>
    %25 = arith.addf %24, %5 : vector<1x4x32xf32>
    %26 = vector.broadcast %25 : vector<1x4x32xf32> to vector<2x4x32xf32>
    %27 = arith.mulf %23, %26 : vector<2x4x32xf32>
    %28 = vector.broadcast %3 : vector<1x4x32xf32> to vector<2x4x32xf32>
    %29 = arith.addf %27, %28 : vector<2x4x32xf32>
    %30 = vector.shape_cast %29 : vector<2x4x32xf32> to vector<8x32xf32>
    %c0_20 = arith.constant 0 : index
    %c0_21 = arith.constant 0 : index
    %31 = vector.load %arg6[%c0_20, %c0_21] : memref<32x96xbf16, #tpu.memory_space<vmem>>, vector<32x96xbf16>
    %c0_22 = arith.constant 0 : index
    %c0_23 = arith.constant 0 : index
    %32 = vector.load %arg7[%c0_22, %c0_23] : memref<1x96xf32, #tpu.memory_space<vmem>>, vector<1x96xf32>
    %33 = arith.truncf %30 : vector<8x32xf32> to vector<8x32xbf16>
    %cst_24 = arith.constant dense<0.000000e+00> : vector<8x96xf32>
    %34 = tpu.matmul %33, %31, %cst_24 {dimension_numbers = #tpu.dot_dimension_numbers<[1], [0], [0], [1], [0, 0, 1, 1], [], []>} : vector<8x32xbf16>, vector<32x96xbf16>, vector<8x96xf32> -> vector<8x96xf32>
    %35 = vector.broadcast %32 : vector<1x96xf32> to vector<8x96xf32>
    %36 = arith.addf %34, %35 : vector<8x96xf32>
    %37 = vector.shape_cast %36 : vector<8x96xf32> to vector<2x4x96xf32>
    %38 = vector.extract_strided_slice %37 {offsets = [0, 0, 0], sizes = [2, 4, 8], strides = [1, 1, 1]} : vector<2x4x96xf32> to vector<2x4x8xf32>
    %39 = arith.truncf %38 : vector<2x4x8xf32> to vector<2x4x8xbf16>
    %40 = vector.extract_strided_slice %37 {offsets = [0, 0, 32], sizes = [2, 4, 8], strides = [1, 1, 1]} : vector<2x4x96xf32> to vector<2x4x8xf32>
    %41 = arith.truncf %40 : vector<2x4x8xf32> to vector<2x4x8xbf16>
    %42 = vector.extract_strided_slice %37 {offsets = [0, 0, 64], sizes = [2, 4, 8], strides = [1, 1, 1]} : vector<2x4x96xf32> to vector<2x4x8xf32>
    %43 = arith.truncf %42 : vector<2x4x8xf32> to vector<2x4x8xbf16>
    "tpu.trace_start"() <{level = 10 : i32, message = "bqd,bkd->bqk"}> : () -> ()
    %cst_25 = arith.constant dense<0.000000e+00> : vector<2x4x4xf32>
    %44 = tpu.matmul %39, %41, %cst_25 {dimension_numbers = #tpu.dot_dimension_numbers<[2], [2], [1], [1], [0, 0, 0, 1, 1, 1], [0], [0]>} : vector<2x4x8xbf16>, vector<2x4x8xbf16>, vector<2x4x4xf32> -> vector<2x4x4xf32>
    "tpu.trace_stop"() : () -> ()
    %cst_26 = arith.constant 0.353553385 : f32
    %45 = vector.broadcast %cst_26 : f32 to vector<2x4x4xf32>
    %46 = arith.mulf %44, %45 : vector<2x4x4xf32>
    %cst_27 = arith.constant dense<0xFF800000> : vector<2x4xf32>
    %47 = vector.multi_reduction <maximumf>, %46, %cst_27 [2] : vector<2x4x4xf32> to vector<2x4xf32>
    %48 = vector.shape_cast %47 : vector<2x4xf32> to vector<2x4x1xf32>
    %49 = vector.broadcast %48 : vector<2x4x1xf32> to vector<2x4x4xf32>
    %50 = arith.subf %46, %49 : vector<2x4x4xf32>
    %51 = math.exp %50 : vector<2x4x4xf32>
    %cst_28 = arith.constant dense<0.000000e+00> : vector<2x4xf32>
    %52 = vector.multi_reduction <add>, %51, %cst_28 [2] : vector<2x4x4xf32> to vector<2x4xf32>
    %53 = vector.shape_cast %52 : vector<2x4xf32> to vector<2x4x1xf32>
    %54 = arith.truncf %51 : vector<2x4x4xf32> to vector<2x4x4xbf16>
    "tpu.trace_start"() <{level = 10 : i32, message = "bqk,bkd->bqd"}> : () -> ()
    %cst_29 = arith.constant dense<0.000000e+00> : vector<2x4x8xf32>
    %55 = tpu.matmul %54, %43, %cst_29 {dimension_numbers = #tpu.dot_dimension_numbers<[2], [1], [1], [2], [0, 0, 0, 1, 1, 2], [0], [0]>} : vector<2x4x4xbf16>, vector<2x4x8xbf16>, vector<2x4x8xf32> -> vector<2x4x8xf32>
    "tpu.trace_stop"() : () -> ()
    %56 = tpu.reciprocal %53 {approx = true} : vector<2x4x1xf32> -> vector<2x4x1xf32>
    %57 = vector.broadcast %56 : vector<2x4x1xf32> to vector<2x4x8xf32>
    %58 = arith.mulf %55, %57 : vector<2x4x8xf32>
    %59 = vector.extract_strided_slice %37 {offsets = [0, 0, 8], sizes = [2, 4, 8], strides = [1, 1, 1]} : vector<2x4x96xf32> to vector<2x4x8xf32>
    %60 = arith.truncf %59 : vector<2x4x8xf32> to vector<2x4x8xbf16>
    %61 = vector.extract_strided_slice %37 {offsets = [0, 0, 40], sizes = [2, 4, 8], strides = [1, 1, 1]} : vector<2x4x96xf32> to vector<2x4x8xf32>
    %62 = arith.truncf %61 : vector<2x4x8xf32> to vector<2x4x8xbf16>
    %63 = vector.extract_strided_slice %37 {offsets = [0, 0, 72], sizes = [2, 4, 8], strides = [1, 1, 1]} : vector<2x4x96xf32> to vector<2x4x8xf32>
    %64 = arith.truncf %63 : vector<2x4x8xf32> to vector<2x4x8xbf16>
    "tpu.trace_start"() <{level = 10 : i32, message = "bqd,bkd->bqk"}> : () -> ()
    %cst_30 = arith.constant dense<0.000000e+00> : vector<2x4x4xf32>
    %65 = tpu.matmul %60, %62, %cst_30 {dimension_numbers = #tpu.dot_dimension_numbers<[2], [2], [1], [1], [0, 0, 0, 1, 1, 1], [0], [0]>} : vector<2x4x8xbf16>, vector<2x4x8xbf16>, vector<2x4x4xf32> -> vector<2x4x4xf32>
    "tpu.trace_stop"() : () -> ()
    %cst_31 = arith.constant 0.353553385 : f32
    %66 = vector.broadcast %cst_31 : f32 to vector<2x4x4xf32>
    %67 = arith.mulf %65, %66 : vector<2x4x4xf32>
    %cst_32 = arith.constant dense<0xFF800000> : vector<2x4xf32>
    %68 = vector.multi_reduction <maximumf>, %67, %cst_32 [2] : vector<2x4x4xf32> to vector<2x4xf32>
    %69 = vector.shape_cast %68 : vector<2x4xf32> to vector<2x4x1xf32>
    %70 = vector.broadcast %69 : vector<2x4x1xf32> to vector<2x4x4xf32>
    %71 = arith.subf %67, %70 : vector<2x4x4xf32>
    %72 = math.exp %71 : vector<2x4x4xf32>
    %cst_33 = arith.constant dense<0.000000e+00> : vector<2x4xf32>
    %73 = vector.multi_reduction <add>, %72, %cst_33 [2] : vector<2x4x4xf32> to vector<2x4xf32>
    %74 = vector.shape_cast %73 : vector<2x4xf32> to vector<2x4x1xf32>
    %75 = arith.truncf %72 : vector<2x4x4xf32> to vector<2x4x4xbf16>
    "tpu.trace_start"() <{level = 10 : i32, message = "bqk,bkd->bqd"}> : () -> ()
    %cst_34 = arith.constant dense<0.000000e+00> : vector<2x4x8xf32>
    %76 = tpu.matmul %75, %64, %cst_34 {dimension_numbers = #tpu.dot_dimension_numbers<[2], [1], [1], [2], [0, 0, 0, 1, 1, 2], [0], [0]>} : vector<2x4x4xbf16>, vector<2x4x8xbf16>, vector<2x4x8xf32> -> vector<2x4x8xf32>
    "tpu.trace_stop"() : () -> ()
    %77 = tpu.reciprocal %74 {approx = true} : vector<2x4x1xf32> -> vector<2x4x1xf32>
    %78 = vector.broadcast %77 : vector<2x4x1xf32> to vector<2x4x8xf32>
    %79 = arith.mulf %76, %78 : vector<2x4x8xf32>
    %80 = vector.extract_strided_slice %37 {offsets = [0, 0, 16], sizes = [2, 4, 8], strides = [1, 1, 1]} : vector<2x4x96xf32> to vector<2x4x8xf32>
    %81 = arith.truncf %80 : vector<2x4x8xf32> to vector<2x4x8xbf16>
    %82 = vector.extract_strided_slice %37 {offsets = [0, 0, 48], sizes = [2, 4, 8], strides = [1, 1, 1]} : vector<2x4x96xf32> to vector<2x4x8xf32>
    %83 = arith.truncf %82 : vector<2x4x8xf32> to vector<2x4x8xbf16>
    %84 = vector.extract_strided_slice %37 {offsets = [0, 0, 80], sizes = [2, 4, 8], strides = [1, 1, 1]} : vector<2x4x96xf32> to vector<2x4x8xf32>
    %85 = arith.truncf %84 : vector<2x4x8xf32> to vector<2x4x8xbf16>
    "tpu.trace_start"() <{level = 10 : i32, message = "bqd,bkd->bqk"}> : () -> ()
    %cst_35 = arith.constant dense<0.000000e+00> : vector<2x4x4xf32>
    %86 = tpu.matmul %81, %83, %cst_35 {dimension_numbers = #tpu.dot_dimension_numbers<[2], [2], [1], [1], [0, 0, 0, 1, 1, 1], [0], [0]>} : vector<2x4x8xbf16>, vector<2x4x8xbf16>, vector<2x4x4xf32> -> vector<2x4x4xf32>
    "tpu.trace_stop"() : () -> ()
    %cst_36 = arith.constant 0.353553385 : f32
    %87 = vector.broadcast %cst_36 : f32 to vector<2x4x4xf32>
    %88 = arith.mulf %86, %87 : vector<2x4x4xf32>
    %cst_37 = arith.constant dense<0xFF800000> : vector<2x4xf32>
    %89 = vector.multi_reduction <maximumf>, %88, %cst_37 [2] : vector<2x4x4xf32> to vector<2x4xf32>
    %90 = vector.shape_cast %89 : vector<2x4xf32> to vector<2x4x1xf32>
    %91 = vector.broadcast %90 : vector<2x4x1xf32> to vector<2x4x4xf32>
    %92 = arith.subf %88, %91 : vector<2x4x4xf32>
    %93 = math.exp %92 : vector<2x4x4xf32>
    %cst_38 = arith.constant dense<0.000000e+00> : vector<2x4xf32>
    %94 = vector.multi_reduction <add>, %93, %cst_38 [2] : vector<2x4x4xf32> to vector<2x4xf32>
    %95 = vector.shape_cast %94 : vector<2x4xf32> to vector<2x4x1xf32>
    %96 = arith.truncf %93 : vector<2x4x4xf32> to vector<2x4x4xbf16>
    "tpu.trace_start"() <{level = 10 : i32, message = "bqk,bkd->bqd"}> : () -> ()
    %cst_39 = arith.constant dense<0.000000e+00> : vector<2x4x8xf32>
    %97 = tpu.matmul %96, %85, %cst_39 {dimension_numbers = #tpu.dot_dimension_numbers<[2], [1], [1], [2], [0, 0, 0, 1, 1, 2], [0], [0]>} : vector<2x4x4xbf16>, vector<2x4x8xbf16>, vector<2x4x8xf32> -> vector<2x4x8xf32>
    "tpu.trace_stop"() : () -> ()
    %98 = tpu.reciprocal %95 {approx = true} : vector<2x4x1xf32> -> vector<2x4x1xf32>
    %99 = vector.broadcast %98 : vector<2x4x1xf32> to vector<2x4x8xf32>
    %100 = arith.mulf %97, %99 : vector<2x4x8xf32>
    %101 = vector.extract_strided_slice %37 {offsets = [0, 0, 24], sizes = [2, 4, 8], strides = [1, 1, 1]} : vector<2x4x96xf32> to vector<2x4x8xf32>
    %102 = arith.truncf %101 : vector<2x4x8xf32> to vector<2x4x8xbf16>
    %103 = vector.extract_strided_slice %37 {offsets = [0, 0, 56], sizes = [2, 4, 8], strides = [1, 1, 1]} : vector<2x4x96xf32> to vector<2x4x8xf32>
    %104 = arith.truncf %103 : vector<2x4x8xf32> to vector<2x4x8xbf16>
    %105 = vector.extract_strided_slice %37 {offsets = [0, 0, 88], sizes = [2, 4, 8], strides = [1, 1, 1]} : vector<2x4x96xf32> to vector<2x4x8xf32>
    %106 = arith.truncf %105 : vector<2x4x8xf32> to vector<2x4x8xbf16>
    "tpu.trace_start"() <{level = 10 : i32, message = "bqd,bkd->bqk"}> : () -> ()
    %cst_40 = arith.constant dense<0.000000e+00> : vector<2x4x4xf32>
    %107 = tpu.matmul %102, %104, %cst_40 {dimension_numbers = #tpu.dot_dimension_numbers<[2], [2], [1], [1], [0, 0, 0, 1, 1, 1], [0], [0]>} : vector<2x4x8xbf16>, vector<2x4x8xbf16>, vector<2x4x4xf32> -> vector<2x4x4xf32>
    "tpu.trace_stop"() : () -> ()
    %cst_41 = arith.constant 0.353553385 : f32
    %108 = vector.broadcast %cst_41 : f32 to vector<2x4x4xf32>
    %109 = arith.mulf %107, %108 : vector<2x4x4xf32>
    %cst_42 = arith.constant dense<0xFF800000> : vector<2x4xf32>
    %110 = vector.multi_reduction <maximumf>, %109, %cst_42 [2] : vector<2x4x4xf32> to vector<2x4xf32>
    %111 = vector.shape_cast %110 : vector<2x4xf32> to vector<2x4x1xf32>
    %112 = vector.broadcast %111 : vector<2x4x1xf32> to vector<2x4x4xf32>
    %113 = arith.subf %109, %112 : vector<2x4x4xf32>
    %114 = math.exp %113 : vector<2x4x4xf32>
    %cst_43 = arith.constant dense<0.000000e+00> : vector<2x4xf32>
    %115 = vector.multi_reduction <add>, %114, %cst_43 [2] : vector<2x4x4xf32> to vector<2x4xf32>
    %116 = vector.shape_cast %115 : vector<2x4xf32> to vector<2x4x1xf32>
    %117 = arith.truncf %114 : vector<2x4x4xf32> to vector<2x4x4xbf16>
    "tpu.trace_start"() <{level = 10 : i32, message = "bqk,bkd->bqd"}> : () -> ()
    %cst_44 = arith.constant dense<0.000000e+00> : vector<2x4x8xf32>
    %118 = tpu.matmul %117, %106, %cst_44 {dimension_numbers = #tpu.dot_dimension_numbers<[2], [1], [1], [2], [0, 0, 0, 1, 1, 2], [0], [0]>} : vector<2x4x4xbf16>, vector<2x4x8xbf16>, vector<2x4x8xf32> -> vector<2x4x8xf32>
    "tpu.trace_stop"() : () -> ()
    %119 = tpu.reciprocal %116 {approx = true} : vector<2x4x1xf32> -> vector<2x4x1xf32>
    %120 = vector.broadcast %119 : vector<2x4x1xf32> to vector<2x4x8xf32>
    %121 = arith.mulf %118, %120 : vector<2x4x8xf32>
    %122 = tpu.concatenate %58, %79, %100, %121 in 2 : vector<2x4x8xf32>, vector<2x4x8xf32>, vector<2x4x8xf32>, vector<2x4x8xf32> -> vector<2x4x32xf32>
    %123 = vector.shape_cast %122 : vector<2x4x32xf32> to vector<8x32xf32>
    %c0_45 = arith.constant 0 : index
    %c0_46 = arith.constant 0 : index
    %124 = vector.load %arg8[%c0_45, %c0_46] : memref<32x32xbf16, #tpu.memory_space<vmem>>, vector<32x32xbf16>
    %c0_47 = arith.constant 0 : index
    %c0_48 = arith.constant 0 : index
    %125 = vector.load %arg9[%c0_47, %c0_48] : memref<1x32xf32, #tpu.memory_space<vmem>>, vector<1x32xf32>
    %126 = arith.truncf %123 : vector<8x32xf32> to vector<8x32xbf16>
    %cst_49 = arith.constant dense<0.000000e+00> : vector<8x32xf32>
    %127 = tpu.matmul %126, %124, %cst_49 {dimension_numbers = #tpu.dot_dimension_numbers<[1], [0], [0], [1], [0, 0, 1, 1], [], []>} : vector<8x32xbf16>, vector<32x32xbf16>, vector<8x32xf32> -> vector<8x32xf32>
    %128 = vector.broadcast %125 : vector<1x32xf32> to vector<8x32xf32>
    %129 = arith.addf %127, %128 : vector<8x32xf32>
    %130 = vector.shape_cast %129 : vector<8x32xf32> to vector<2x4x32xf32>
    %131 = vector.broadcast %7 : vector<1x4x32xf32> to vector<2x4x32xf32>
    %132 = arith.mulf %131, %130 : vector<2x4x32xf32>
    %133 = arith.addf %1, %132 : vector<2x4x32xf32>
    %c0_50 = arith.constant 0 : index
    %c0_51 = arith.constant 0 : index
    %c0_52 = arith.constant 0 : index
    %c0_53 = arith.constant 0 : index
    %134 = vector.load %arg10[%c0_50, %c0_51, %c0_52, %c0_53] : memref<1x2x4x32xf32, #tpu.memory_space<vmem>>, vector<1x2x4x32xf32>
    %135 = vector.shape_cast %134 : vector<1x2x4x32xf32> to vector<2x4x32xf32>
    %136 = vector.shape_cast %133 : vector<2x4x32xf32> to vector<1x2x4x32xf32>
    tpu.vector_store %arg10[%c0_50, %c0_51, %c0_52, %c0_53], %136 {strides = array<i32>} : memref<1x2x4x32xf32, #tpu.memory_space<vmem>>, vector<1x2x4x32xf32>,
    return
  }
  func.func @transform_0(%arg0: i32, %arg1: i32) -> (i32, i32, i32, i32) {
    %c0_i32 = arith.constant 0 : i32
    %c0_i32_0 = arith.constant 0 : i32
    %c0_i32_1 = arith.constant 0 : i32
    return %arg0, %arg1, %c0_i32, %c0_i32_0 : i32, i32, i32, i32
  }
  func.func @transform_1(%arg0: i32, %arg1: i32) -> (i32, i32, i32, i32) {
    %c0_i32 = arith.constant 0 : i32
    %c0_i32_0 = arith.constant 0 : i32
    %c0_i32_1 = arith.constant 0 : i32
    %c0_i32_2 = arith.constant 0 : i32
    return %arg0, %c0_i32, %c0_i32_0, %c0_i32_1 : i32, i32, i32, i32
  }
  func.func @transform_2(%arg0: i32, %arg1: i32) -> (i32, i32, i32, i32) {
    %c0_i32 = arith.constant 0 : i32
    %c0_i32_0 = arith.constant 0 : i32
    %c0_i32_1 = arith.constant 0 : i32
    %c0_i32_2 = arith.constant 0 : i32
    return %arg0, %c0_i32, %c0_i32_0, %c0_i32_1 : i32, i32, i32, i32
  }
  func.func @transform_3(%arg0: i32, %arg1: i32) -> (i32, i32, i32, i32) {
    %c0_i32 = arith.constant 0 : i32
    %c0_i32_0 = arith.constant 0 : i32
    %c0_i32_1 = arith.constant 0 : i32
    %c0_i32_2 = arith.constant 0 : i32
    return %arg0, %c0_i32, %c0_i32_0, %c0_i32_1 : i32, i32, i32, i32
  }
  func.func @transform_4(%arg0: i32, %arg1: i32) -> (i32, i32) {
    %c0_i32 = arith.constant 0 : i32
    %c0_i32_0 = arith.constant 0 : i32
    %c0_i32_1 = arith.constant 0 : i32
    return %c0_i32, %c0_i32_0 : i32, i32
  }
  func.func @transform_5(%arg0: i32, %arg1: i32) -> (i32, i32) {
    %c0_i32 = arith.constant 0 : i32
    %c0_i32_0 = arith.constant 0 : i32
    %c0_i32_1 = arith.constant 0 : i32
    return %c0_i32, %c0_i32_0 : i32, i32
  }
  func.func @transform_6(%arg0: i32, %arg1: i32) -> (i32, i32) {
    %c0_i32 = arith.constant 0 : i32
    %c0_i32_0 = arith.constant 0 : i32
    %c0_i32_1 = arith.constant 0 : i32
    return %c0_i32, %c0_i32_0 : i32, i32
  }
  func.func @transform_7(%arg0: i32, %arg1: i32) -> (i32, i32) {
    %c0_i32 = arith.constant 0 : i32
    %c0_i32_0 = arith.constant 0 : i32
    %c0_i32_1 = arith.constant 0 : i32
    return %c0_i32, %c0_i32_0 : i32, i32
  }
  func.func @transform_8(%arg0: i32, %arg1: i32) -> (i32, i32, i32, i32) {
    %c0_i32 = arith.constant 0 : i32
    %c0_i32_0 = arith.constant 0 : i32
    %c0_i32_1 = arith.constant 0 : i32
    return %arg0, %arg1, %c0_i32, %c0_i32_0 : i32, i32, i32, i32
  }
}

module attributes {stable_mosaic.version = 11 : i64} {
  func.func @_cross_mod_kernel(%arg0: i32, %arg1: memref<8x32xf32, #tpu.memory_space<vmem>>, %arg2: memref<8x32xf32, #tpu.memory_space<vmem>>, %arg3: memref<32x32xbf16, #tpu.memory_space<vmem>>, %arg4: memref<1x32xf32, #tpu.memory_space<vmem>>, %arg5: memref<32x96xbf16, #tpu.memory_space<vmem>>, %arg6: memref<1x96xf32, #tpu.memory_space<vmem>>, %arg7: memref<8x96xf32, #tpu.memory_space<vmem>>) attributes {dimension_semantics = [#tpu.dimension_semantics<parallel>], iteration_bounds = array<i64: 1>, scalar_prefetch = 0 : i64, scratch_operands = 0 : i64, tpu.core_type = #tpu.core_type<tc>, window_params = [{transform_indices = @transform_0, window_bounds = array<i64: 8, 32>}, {transform_indices = @transform_1, window_bounds = array<i64: 8, 32>}, {pipeline_mode = #tpu.pipeline_mode<synchronous>, transform_indices = @transform_2, window_bounds = array<i64: 32, 32>}, {pipeline_mode = #tpu.pipeline_mode<synchronous>, transform_indices = @transform_3, window_bounds = array<i64: 1, 32>}, {pipeline_mode = #tpu.pipeline_mode<synchronous>, transform_indices = @transform_4, window_bounds = array<i64: 32, 96>}, {pipeline_mode = #tpu.pipeline_mode<synchronous>, transform_indices = @transform_5, window_bounds = array<i64: 1, 96>}, {transform_indices = @transform_6, window_bounds = array<i64: 8, 96>}]} {
    %c0 = arith.constant 0 : index
    %c0_0 = arith.constant 0 : index
    %0 = vector.load %arg1[%c0, %c0_0] : memref<8x32xf32, #tpu.memory_space<vmem>>, vector<8x32xf32>
    %c0_1 = arith.constant 0 : index
    %c0_2 = arith.constant 0 : index
    %1 = vector.load %arg3[%c0_1, %c0_2] : memref<32x32xbf16, #tpu.memory_space<vmem>>, vector<32x32xbf16>
    %c0_3 = arith.constant 0 : index
    %c0_4 = arith.constant 0 : index
    %2 = vector.load %arg4[%c0_3, %c0_4] : memref<1x32xf32, #tpu.memory_space<vmem>>, vector<1x32xf32>
    %3 = arith.truncf %0 : vector<8x32xf32> to vector<8x32xbf16>
    %cst = arith.constant dense<0.000000e+00> : vector<8x32xf32>
    %4 = tpu.matmul %3, %1, %cst {dimension_numbers = #tpu.dot_dimension_numbers<[1], [0], [0], [1], [0, 0, 1, 1], [], []>} : vector<8x32xbf16>, vector<32x32xbf16>, vector<8x32xf32> -> vector<8x32xf32>
    %5 = vector.broadcast %2 : vector<1x32xf32> to vector<8x32xf32>
    %6 = arith.addf %4, %5 : vector<8x32xf32>
    %c0_5 = arith.constant 0 : index
    %c0_6 = arith.constant 0 : index
    %7 = vector.load %arg2[%c0_5, %c0_6] : memref<8x32xf32, #tpu.memory_space<vmem>>, vector<8x32xf32>
    %8 = arith.addf %6, %7 : vector<8x32xf32>
    %9 = arith.negf %8 : vector<8x32xf32>
    %10 = math.exp %9 : vector<8x32xf32>
    %cst_7 = arith.constant 1.000000e+00 : f32
    %11 = vector.broadcast %cst_7 : f32 to vector<8x32xf32>
    %12 = arith.addf %11, %10 : vector<8x32xf32>
    %13 = arith.divf %11, %12 : vector<8x32xf32>
    %14 = arith.mulf %8, %13 : vector<8x32xf32>
    %c0_8 = arith.constant 0 : index
    %c0_9 = arith.constant 0 : index
    %15 = vector.load %arg5[%c0_8, %c0_9] : memref<32x96xbf16, #tpu.memory_space<vmem>>, vector<32x96xbf16>
    %c0_10 = arith.constant 0 : index
    %c0_11 = arith.constant 0 : index
    %16 = vector.load %arg6[%c0_10, %c0_11] : memref<1x96xf32, #tpu.memory_space<vmem>>, vector<1x96xf32>
    %17 = arith.truncf %14 : vector<8x32xf32> to vector<8x32xbf16>
    %cst_12 = arith.constant dense<0.000000e+00> : vector<8x96xf32>
    %18 = tpu.matmul %17, %15, %cst_12 {dimension_numbers = #tpu.dot_dimension_numbers<[1], [0], [0], [1], [0, 0, 1, 1], [], []>} : vector<8x32xbf16>, vector<32x96xbf16>, vector<8x96xf32> -> vector<8x96xf32>
    %19 = vector.broadcast %16 : vector<1x96xf32> to vector<8x96xf32>
    %20 = arith.addf %18, %19 : vector<8x96xf32>
    %c0_13 = arith.constant 0 : index
    %c0_14 = arith.constant 0 : index
    %21 = vector.load %arg7[%c0_13, %c0_14] : memref<8x96xf32, #tpu.memory_space<vmem>>, vector<8x96xf32>
    tpu.vector_store %arg7[%c0_13, %c0_14], %20 {strides = array<i32>} : memref<8x96xf32, #tpu.memory_space<vmem>>, vector<8x96xf32>,
    return
  }
  func.func @transform_0(%arg0: i32) -> (i32, i32) {
    %c0_i32 = arith.constant 0 : i32
    %c0_i32_0 = arith.constant 0 : i32
    return %arg0, %c0_i32 : i32, i32
  }
  func.func @transform_1(%arg0: i32) -> (i32, i32) {
    %c0_i32 = arith.constant 0 : i32
    %c0_i32_0 = arith.constant 0 : i32
    return %arg0, %c0_i32 : i32, i32
  }
  func.func @transform_2(%arg0: i32) -> (i32, i32) {
    %c0_i32 = arith.constant 0 : i32
    %c0_i32_0 = arith.constant 0 : i32
    %c0_i32_1 = arith.constant 0 : i32
    return %c0_i32, %c0_i32_0 : i32, i32
  }
  func.func @transform_3(%arg0: i32) -> (i32, i32) {
    %c0_i32 = arith.constant 0 : i32
    %c0_i32_0 = arith.constant 0 : i32
    %c0_i32_1 = arith.constant 0 : i32
    return %c0_i32, %c0_i32_0 : i32, i32
  }
  func.func @transform_4(%arg0: i32) -> (i32, i32) {
    %c0_i32 = arith.constant 0 : i32
    %c0_i32_0 = arith.constant 0 : i32
    %c0_i32_1 = arith.constant 0 : i32
    return %c0_i32, %c0_i32_0 : i32, i32
  }
  func.func @transform_5(%arg0: i32) -> (i32, i32) {
    %c0_i32 = arith.constant 0 : i32
    %c0_i32_0 = arith.constant 0 : i32
    %c0_i32_1 = arith.constant 0 : i32
    return %c0_i32, %c0_i32_0 : i32, i32
  }
  func.func @transform_6(%arg0: i32) -> (i32, i32) {
    %c0_i32 = arith.constant 0 : i32
    %c0_i32_0 = arith.constant 0 : i32
    return %arg0, %c0_i32 : i32, i32
  }
}

module attributes {stable_mosaic.version = 11 : i64} {
  func.func @_fused_mlp_kernel(%arg0: i32, %arg1: memref<8x4x32xf32, #tpu.memory_space<vmem>>, %arg2: memref<8x32xf32, #tpu.memory_space<vmem>>, %arg3: memref<8x32xf32, #tpu.memory_space<vmem>>, %arg4: memref<8x32xf32, #tpu.memory_space<vmem>>, %arg5: memref<32x128xbf16, #tpu.memory_space<vmem>>, %arg6: memref<1x128xf32, #tpu.memory_space<vmem>>, %arg7: memref<128x32xbf16, #tpu.memory_space<vmem>>, %arg8: memref<1x32xf32, #tpu.memory_space<vmem>>, %arg9: memref<8x4x32xf32, #tpu.memory_space<vmem>>) attributes {dimension_semantics = [#tpu.dimension_semantics<parallel>], iteration_bounds = array<i64: 1>, scalar_prefetch = 0 : i64, scratch_operands = 0 : i64, tpu.core_type = #tpu.core_type<tc>, window_params = [{transform_indices = @transform_0, window_bounds = array<i64: 8, 4, 32>}, {transform_indices = @transform_1, window_bounds = array<i64: 8, 32>}, {transform_indices = @transform_2, window_bounds = array<i64: 8, 32>}, {transform_indices = @transform_3, window_bounds = array<i64: 8, 32>}, {pipeline_mode = #tpu.pipeline_mode<synchronous>, transform_indices = @transform_4, window_bounds = array<i64: 32, 128>}, {pipeline_mode = #tpu.pipeline_mode<synchronous>, transform_indices = @transform_5, window_bounds = array<i64: 1, 128>}, {pipeline_mode = #tpu.pipeline_mode<synchronous>, transform_indices = @transform_6, window_bounds = array<i64: 128, 32>}, {pipeline_mode = #tpu.pipeline_mode<synchronous>, transform_indices = @transform_7, window_bounds = array<i64: 1, 32>}, {transform_indices = @transform_8, window_bounds = array<i64: 8, 4, 32>}]} {
    %c0 = arith.constant 0 : index
    %c0_0 = arith.constant 0 : index
    %c0_1 = arith.constant 0 : index
    %0 = vector.load %arg1[%c0, %c0_0, %c0_1] : memref<8x4x32xf32, #tpu.memory_space<vmem>>, vector<8x4x32xf32>
    %c0_2 = arith.constant 0 : index
    %c0_3 = arith.constant 0 : index
    %1 = vector.load %arg2[%c0_2, %c0_3] : memref<8x32xf32, #tpu.memory_space<vmem>>, vector<8x32xf32>
    %2 = vector.shape_cast %1 : vector<8x32xf32> to vector<8x1x32xf32>
    %c0_4 = arith.constant 0 : index
    %c0_5 = arith.constant 0 : index
    %3 = vector.load %arg3[%c0_4, %c0_5] : memref<8x32xf32, #tpu.memory_space<vmem>>, vector<8x32xf32>
    %4 = vector.shape_cast %3 : vector<8x32xf32> to vector<8x1x32xf32>
    %c0_6 = arith.constant 0 : index
    %c0_7 = arith.constant 0 : index
    %5 = vector.load %arg4[%c0_6, %c0_7] : memref<8x32xf32, #tpu.memory_space<vmem>>, vector<8x32xf32>
    %6 = vector.shape_cast %5 : vector<8x32xf32> to vector<8x1x32xf32>
    %cst = arith.constant dense<0.000000e+00> : vector<8x4xf32>
    %7 = vector.multi_reduction <add>, %0, %cst [2] : vector<8x4x32xf32> to vector<8x4xf32>
    %8 = vector.shape_cast %7 : vector<8x4xf32> to vector<8x4x1xf32>
    %cst_8 = arith.constant 3.200000e+01 : f32
    %9 = vector.broadcast %cst_8 : f32 to vector<8x4x1xf32>
    %10 = arith.divf %8, %9 : vector<8x4x1xf32>
    %11 = vector.broadcast %10 : vector<8x4x1xf32> to vector<8x4x32xf32>
    %12 = arith.subf %0, %11 : vector<8x4x32xf32>
    %13 = arith.mulf %12, %12 : vector<8x4x32xf32>
    %cst_9 = arith.constant dense<0.000000e+00> : vector<8x4xf32>
    %14 = vector.multi_reduction <add>, %13, %cst_9 [2] : vector<8x4x32xf32> to vector<8x4xf32>
    %15 = vector.shape_cast %14 : vector<8x4xf32> to vector<8x4x1xf32>
    %cst_10 = arith.constant 3.200000e+01 : f32
    %16 = vector.broadcast %cst_10 : f32 to vector<8x4x1xf32>
    %17 = arith.divf %15, %16 : vector<8x4x1xf32>
    %cst_11 = arith.constant 9.99999997E-7 : f32
    %18 = vector.broadcast %cst_11 : f32 to vector<8x4x1xf32>
    %19 = arith.addf %17, %18 : vector<8x4x1xf32>
    %20 = math.rsqrt %19 : vector<8x4x1xf32>
    %21 = vector.broadcast %20 : vector<8x4x1xf32> to vector<8x4x32xf32>
    %22 = arith.mulf %12, %21 : vector<8x4x32xf32>
    %cst_12 = arith.constant 1.000000e+00 : f32
    %23 = vector.broadcast %cst_12 : f32 to vector<8x1x32xf32>
    %24 = arith.addf %23, %4 : vector<8x1x32xf32>
    %25 = vector.broadcast %24 : vector<8x1x32xf32> to vector<8x4x32xf32>
    %26 = arith.mulf %22, %25 : vector<8x4x32xf32>
    %27 = vector.broadcast %2 : vector<8x1x32xf32> to vector<8x4x32xf32>
    %28 = arith.addf %26, %27 : vector<8x4x32xf32>
    %29 = vector.shape_cast %28 : vector<8x4x32xf32> to vector<32x32xf32>
    %c0_13 = arith.constant 0 : index
    %c0_14 = arith.constant 0 : index
    %30 = vector.load %arg5[%c0_13, %c0_14] : memref<32x128xbf16, #tpu.memory_space<vmem>>, vector<32x128xbf16>
    %c0_15 = arith.constant 0 : index
    %c0_16 = arith.constant 0 : index
    %31 = vector.load %arg6[%c0_15, %c0_16] : memref<1x128xf32, #tpu.memory_space<vmem>>, vector<1x128xf32>
    %32 = arith.truncf %29 : vector<32x32xf32> to vector<32x32xbf16>
    %cst_17 = arith.constant dense<0.000000e+00> : vector<32x128xf32>
    %33 = tpu.matmul %32, %30, %cst_17 {dimension_numbers = #tpu.dot_dimension_numbers<[1], [0], [0], [1], [0, 0, 1, 1], [], []>} : vector<32x32xbf16>, vector<32x128xbf16>, vector<32x128xf32> -> vector<32x128xf32>
    %34 = vector.broadcast %31 : vector<1x128xf32> to vector<32x128xf32>
    %35 = arith.addf %33, %34 : vector<32x128xf32>
    %cst_18 = arith.constant 5.000000e-01 : f32
    %36 = vector.broadcast %cst_18 : f32 to vector<32x128xf32>
    %37 = arith.mulf %36, %35 : vector<32x128xf32>
    %cst_19 = arith.constant 4.471500e-02 : f32
    %38 = vector.broadcast %cst_19 : f32 to vector<32x128xf32>
    %39 = arith.mulf %38, %35 : vector<32x128xf32>
    %40 = arith.mulf %39, %35 : vector<32x128xf32>
    %41 = arith.mulf %40, %35 : vector<32x128xf32>
    %42 = arith.addf %35, %41 : vector<32x128xf32>
    %cst_20 = arith.constant 0.797884583 : f32
    %43 = vector.broadcast %cst_20 : f32 to vector<32x128xf32>
    %44 = arith.mulf %43, %42 : vector<32x128xf32>
    %45 = math.tanh %44 : vector<32x128xf32>
    %cst_21 = arith.constant 1.000000e+00 : f32
    %46 = vector.broadcast %cst_21 : f32 to vector<32x128xf32>
    %47 = arith.addf %46, %45 : vector<32x128xf32>
    %48 = arith.mulf %37, %47 : vector<32x128xf32>
    %c0_22 = arith.constant 0 : index
    %c0_23 = arith.constant 0 : index
    %49 = vector.load %arg7[%c0_22, %c0_23] : memref<128x32xbf16, #tpu.memory_space<vmem>>, vector<128x32xbf16>
    %c0_24 = arith.constant 0 : index
    %c0_25 = arith.constant 0 : index
    %50 = vector.load %arg8[%c0_24, %c0_25] : memref<1x32xf32, #tpu.memory_space<vmem>>, vector<1x32xf32>
    %51 = arith.truncf %48 : vector<32x128xf32> to vector<32x128xbf16>
    %cst_26 = arith.constant dense<0.000000e+00> : vector<32x32xf32>
    %52 = tpu.matmul %51, %49, %cst_26 {dimension_numbers = #tpu.dot_dimension_numbers<[1], [0], [0], [1], [0, 0, 1, 1], [], []>} : vector<32x128xbf16>, vector<128x32xbf16>, vector<32x32xf32> -> vector<32x32xf32>
    %53 = vector.broadcast %50 : vector<1x32xf32> to vector<32x32xf32>
    %54 = arith.addf %52, %53 : vector<32x32xf32>
    %55 = vector.shape_cast %54 : vector<32x32xf32> to vector<8x4x32xf32>
    %56 = vector.broadcast %6 : vector<8x1x32xf32> to vector<8x4x32xf32>
    %57 = arith.mulf %56, %55 : vector<8x4x32xf32>
    %58 = arith.addf %0, %57 : vector<8x4x32xf32>
    %c0_27 = arith.constant 0 : index
    %c0_28 = arith.constant 0 : index
    %c0_29 = arith.constant 0 : index
    %59 = vector.load %arg9[%c0_27, %c0_28, %c0_29] : memref<8x4x32xf32, #tpu.memory_space<vmem>>, vector<8x4x32xf32>
    tpu.vector_store %arg9[%c0_27, %c0_28, %c0_29], %58 {strides = array<i32>} : memref<8x4x32xf32, #tpu.memory_space<vmem>>, vector<8x4x32xf32>,
    return
  }
  func.func @transform_0(%arg0: i32) -> (i32, i32, i32) {
    %c0_i32 = arith.constant 0 : i32
    %c0_i32_0 = arith.constant 0 : i32
    %c0_i32_1 = arith.constant 0 : i32
    return %arg0, %c0_i32, %c0_i32_0 : i32, i32, i32
  }
  func.func @transform_1(%arg0: i32) -> (i32, i32) {
    %c0_i32 = arith.constant 0 : i32
    %c0_i32_0 = arith.constant 0 : i32
    return %arg0, %c0_i32 : i32, i32
  }
  func.func @transform_2(%arg0: i32) -> (i32, i32) {
    %c0_i32 = arith.constant 0 : i32
    %c0_i32_0 = arith.constant 0 : i32
    return %arg0, %c0_i32 : i32, i32
  }
  func.func @transform_3(%arg0: i32) -> (i32, i32) {
    %c0_i32 = arith.constant 0 : i32
    %c0_i32_0 = arith.constant 0 : i32
    return %arg0, %c0_i32 : i32, i32
  }
  func.func @transform_4(%arg0: i32) -> (i32, i32) {
    %c0_i32 = arith.constant 0 : i32
    %c0_i32_0 = arith.constant 0 : i32
    %c0_i32_1 = arith.constant 0 : i32
    return %c0_i32, %c0_i32_0 : i32, i32
  }
  func.func @transform_5(%arg0: i32) -> (i32, i32) {
    %c0_i32 = arith.constant 0 : i32
    %c0_i32_0 = arith.constant 0 : i32
    %c0_i32_1 = arith.constant 0 : i32
    return %c0_i32, %c0_i32_0 : i32, i32
  }
  func.func @transform_6(%arg0: i32) -> (i32, i32) {
    %c0_i32 = arith.constant 0 : i32
    %c0_i32_0 = arith.constant 0 : i32
    %c0_i32_1 = arith.constant 0 : i32
    return %c0_i32, %c0_i32_0 : i32, i32
  }
  func.func @transform_7(%arg0: i32) -> (i32, i32) {
    %c0_i32 = arith.constant 0 : i32
    %c0_i32_0 = arith.constant 0 : i32
    %c0_i32_1 = arith.constant 0 : i32
    return %c0_i32, %c0_i32_0 : i32, i32
  }
  func.func @transform_8(%arg0: i32) -> (i32, i32, i32) {
    %c0_i32 = arith.constant 0 : i32
    %c0_i32_0 = arith.constant 0 : i32
    %c0_i32_1 = arith.constant 0 : i32
    return %arg0, %c0_i32, %c0_i32_0 : i32, i32, i32
  }
}

module attributes {stable_mosaic.version = 11 : i64} {
  func.func @_fused_mlp_kernel(%arg0: i32, %arg1: memref<8x8x32xf32, #tpu.memory_space<vmem>>, %arg2: memref<8x32xf32, #tpu.memory_space<vmem>>, %arg3: memref<8x32xf32, #tpu.memory_space<vmem>>, %arg4: memref<8x32xf32, #tpu.memory_space<vmem>>, %arg5: memref<32x128xbf16, #tpu.memory_space<vmem>>, %arg6: memref<1x128xf32, #tpu.memory_space<vmem>>, %arg7: memref<128x32xbf16, #tpu.memory_space<vmem>>, %arg8: memref<1x32xf32, #tpu.memory_space<vmem>>, %arg9: memref<8x8x32xf32, #tpu.memory_space<vmem>>) attributes {dimension_semantics = [#tpu.dimension_semantics<parallel>], iteration_bounds = array<i64: 1>, scalar_prefetch = 0 : i64, scratch_operands = 0 : i64, tpu.core_type = #tpu.core_type<tc>, window_params = [{transform_indices = @transform_0, window_bounds = array<i64: 8, 8, 32>}, {transform_indices = @transform_1, window_bounds = array<i64: 8, 32>}, {transform_indices = @transform_2, window_bounds = array<i64: 8, 32>}, {transform_indices = @transform_3, window_bounds = array<i64: 8, 32>}, {pipeline_mode = #tpu.pipeline_mode<synchronous>, transform_indices = @transform_4, window_bounds = array<i64: 32, 128>}, {pipeline_mode = #tpu.pipeline_mode<synchronous>, transform_indices = @transform_5, window_bounds = array<i64: 1, 128>}, {pipeline_mode = #tpu.pipeline_mode<synchronous>, transform_indices = @transform_6, window_bounds = array<i64: 128, 32>}, {pipeline_mode = #tpu.pipeline_mode<synchronous>, transform_indices = @transform_7, window_bounds = array<i64: 1, 32>}, {transform_indices = @transform_8, window_bounds = array<i64: 8, 8, 32>}]} {
    %c0 = arith.constant 0 : index
    %c0_0 = arith.constant 0 : index
    %c0_1 = arith.constant 0 : index
    %0 = vector.load %arg1[%c0, %c0_0, %c0_1] : memref<8x8x32xf32, #tpu.memory_space<vmem>>, vector<8x8x32xf32>
    %c0_2 = arith.constant 0 : index
    %c0_3 = arith.constant 0 : index
    %1 = vector.load %arg2[%c0_2, %c0_3] : memref<8x32xf32, #tpu.memory_space<vmem>>, vector<8x32xf32>
    %2 = vector.shape_cast %1 : vector<8x32xf32> to vector<8x1x32xf32>
    %c0_4 = arith.constant 0 : index
    %c0_5 = arith.constant 0 : index
    %3 = vector.load %arg3[%c0_4, %c0_5] : memref<8x32xf32, #tpu.memory_space<vmem>>, vector<8x32xf32>
    %4 = vector.shape_cast %3 : vector<8x32xf32> to vector<8x1x32xf32>
    %c0_6 = arith.constant 0 : index
    %c0_7 = arith.constant 0 : index
    %5 = vector.load %arg4[%c0_6, %c0_7] : memref<8x32xf32, #tpu.memory_space<vmem>>, vector<8x32xf32>
    %6 = vector.shape_cast %5 : vector<8x32xf32> to vector<8x1x32xf32>
    %cst = arith.constant dense<0.000000e+00> : vector<8x8xf32>
    %7 = vector.multi_reduction <add>, %0, %cst [2] : vector<8x8x32xf32> to vector<8x8xf32>
    %8 = vector.shape_cast %7 : vector<8x8xf32> to vector<8x8x1xf32>
    %cst_8 = arith.constant 3.200000e+01 : f32
    %9 = vector.broadcast %cst_8 : f32 to vector<8x8x1xf32>
    %10 = arith.divf %8, %9 : vector<8x8x1xf32>
    %11 = vector.broadcast %10 : vector<8x8x1xf32> to vector<8x8x32xf32>
    %12 = arith.subf %0, %11 : vector<8x8x32xf32>
    %13 = arith.mulf %12, %12 : vector<8x8x32xf32>
    %cst_9 = arith.constant dense<0.000000e+00> : vector<8x8xf32>
    %14 = vector.multi_reduction <add>, %13, %cst_9 [2] : vector<8x8x32xf32> to vector<8x8xf32>
    %15 = vector.shape_cast %14 : vector<8x8xf32> to vector<8x8x1xf32>
    %cst_10 = arith.constant 3.200000e+01 : f32
    %16 = vector.broadcast %cst_10 : f32 to vector<8x8x1xf32>
    %17 = arith.divf %15, %16 : vector<8x8x1xf32>
    %cst_11 = arith.constant 9.99999997E-7 : f32
    %18 = vector.broadcast %cst_11 : f32 to vector<8x8x1xf32>
    %19 = arith.addf %17, %18 : vector<8x8x1xf32>
    %20 = math.rsqrt %19 : vector<8x8x1xf32>
    %21 = vector.broadcast %20 : vector<8x8x1xf32> to vector<8x8x32xf32>
    %22 = arith.mulf %12, %21 : vector<8x8x32xf32>
    %cst_12 = arith.constant 1.000000e+00 : f32
    %23 = vector.broadcast %cst_12 : f32 to vector<8x1x32xf32>
    %24 = arith.addf %23, %4 : vector<8x1x32xf32>
    %25 = vector.broadcast %24 : vector<8x1x32xf32> to vector<8x8x32xf32>
    %26 = arith.mulf %22, %25 : vector<8x8x32xf32>
    %27 = vector.broadcast %2 : vector<8x1x32xf32> to vector<8x8x32xf32>
    %28 = arith.addf %26, %27 : vector<8x8x32xf32>
    %29 = vector.shape_cast %28 : vector<8x8x32xf32> to vector<64x32xf32>
    %c0_13 = arith.constant 0 : index
    %c0_14 = arith.constant 0 : index
    %30 = vector.load %arg5[%c0_13, %c0_14] : memref<32x128xbf16, #tpu.memory_space<vmem>>, vector<32x128xbf16>
    %c0_15 = arith.constant 0 : index
    %c0_16 = arith.constant 0 : index
    %31 = vector.load %arg6[%c0_15, %c0_16] : memref<1x128xf32, #tpu.memory_space<vmem>>, vector<1x128xf32>
    %32 = arith.truncf %29 : vector<64x32xf32> to vector<64x32xbf16>
    %cst_17 = arith.constant dense<0.000000e+00> : vector<64x128xf32>
    %33 = tpu.matmul %32, %30, %cst_17 {dimension_numbers = #tpu.dot_dimension_numbers<[1], [0], [0], [1], [0, 0, 1, 1], [], []>} : vector<64x32xbf16>, vector<32x128xbf16>, vector<64x128xf32> -> vector<64x128xf32>
    %34 = vector.broadcast %31 : vector<1x128xf32> to vector<64x128xf32>
    %35 = arith.addf %33, %34 : vector<64x128xf32>
    %cst_18 = arith.constant 5.000000e-01 : f32
    %36 = vector.broadcast %cst_18 : f32 to vector<64x128xf32>
    %37 = arith.mulf %36, %35 : vector<64x128xf32>
    %cst_19 = arith.constant 4.471500e-02 : f32
    %38 = vector.broadcast %cst_19 : f32 to vector<64x128xf32>
    %39 = arith.mulf %38, %35 : vector<64x128xf32>
    %40 = arith.mulf %39, %35 : vector<64x128xf32>
    %41 = arith.mulf %40, %35 : vector<64x128xf32>
    %42 = arith.addf %35, %41 : vector<64x128xf32>
    %cst_20 = arith.constant 0.797884583 : f32
    %43 = vector.broadcast %cst_20 : f32 to vector<64x128xf32>
    %44 = arith.mulf %43, %42 : vector<64x128xf32>
    %45 = math.tanh %44 : vector<64x128xf32>
    %cst_21 = arith.constant 1.000000e+00 : f32
    %46 = vector.broadcast %cst_21 : f32 to vector<64x128xf32>
    %47 = arith.addf %46, %45 : vector<64x128xf32>
    %48 = arith.mulf %37, %47 : vector<64x128xf32>
    %c0_22 = arith.constant 0 : index
    %c0_23 = arith.constant 0 : index
    %49 = vector.load %arg7[%c0_22, %c0_23] : memref<128x32xbf16, #tpu.memory_space<vmem>>, vector<128x32xbf16>
    %c0_24 = arith.constant 0 : index
    %c0_25 = arith.constant 0 : index
    %50 = vector.load %arg8[%c0_24, %c0_25] : memref<1x32xf32, #tpu.memory_space<vmem>>, vector<1x32xf32>
    %51 = arith.truncf %48 : vector<64x128xf32> to vector<64x128xbf16>
    %cst_26 = arith.constant dense<0.000000e+00> : vector<64x32xf32>
    %52 = tpu.matmul %51, %49, %cst_26 {dimension_numbers = #tpu.dot_dimension_numbers<[1], [0], [0], [1], [0, 0, 1, 1], [], []>} : vector<64x128xbf16>, vector<128x32xbf16>, vector<64x32xf32> -> vector<64x32xf32>
    %53 = vector.broadcast %50 : vector<1x32xf32> to vector<64x32xf32>
    %54 = arith.addf %52, %53 : vector<64x32xf32>
    %55 = vector.shape_cast %54 : vector<64x32xf32> to vector<8x8x32xf32>
    %56 = vector.broadcast %6 : vector<8x1x32xf32> to vector<8x8x32xf32>
    %57 = arith.mulf %56, %55 : vector<8x8x32xf32>
    %58 = arith.addf %0, %57 : vector<8x8x32xf32>
    %c0_27 = arith.constant 0 : index
    %c0_28 = arith.constant 0 : index
    %c0_29 = arith.constant 0 : index
    %59 = vector.load %arg9[%c0_27, %c0_28, %c0_29] : memref<8x8x32xf32, #tpu.memory_space<vmem>>, vector<8x8x32xf32>
    tpu.vector_store %arg9[%c0_27, %c0_28, %c0_29], %58 {strides = array<i32>} : memref<8x8x32xf32, #tpu.memory_space<vmem>>, vector<8x8x32xf32>,
    return
  }
  func.func @transform_0(%arg0: i32) -> (i32, i32, i32) {
    %c0_i32 = arith.constant 0 : i32
    %c0_i32_0 = arith.constant 0 : i32
    %c0_i32_1 = arith.constant 0 : i32
    return %arg0, %c0_i32, %c0_i32_0 : i32, i32, i32
  }
  func.func @transform_1(%arg0: i32) -> (i32, i32) {
    %c0_i32 = arith.constant 0 : i32
    %c0_i32_0 = arith.constant 0 : i32
    return %arg0, %c0_i32 : i32, i32
  }
  func.func @transform_2(%arg0: i32) -> (i32, i32) {
    %c0_i32 = arith.constant 0 : i32
    %c0_i32_0 = arith.constant 0 : i32
    return %arg0, %c0_i32 : i32, i32
  }
  func.func @transform_3(%arg0: i32) -> (i32, i32) {
    %c0_i32 = arith.constant 0 : i32
    %c0_i32_0 = arith.constant 0 : i32
    return %arg0, %c0_i32 : i32, i32
  }
  func.func @transform_4(%arg0: i32) -> (i32, i32) {
    %c0_i32 = arith.constant 0 : i32
    %c0_i32_0 = arith.constant 0 : i32
    %c0_i32_1 = arith.constant 0 : i32
    return %c0_i32, %c0_i32_0 : i32, i32
  }
  func.func @transform_5(%arg0: i32) -> (i32, i32) {
    %c0_i32 = arith.constant 0 : i32
    %c0_i32_0 = arith.constant 0 : i32
    %c0_i32_1 = arith.constant 0 : i32
    return %c0_i32, %c0_i32_0 : i32, i32
  }
  func.func @transform_6(%arg0: i32) -> (i32, i32) {
    %c0_i32 = arith.constant 0 : i32
    %c0_i32_0 = arith.constant 0 : i32
    %c0_i32_1 = arith.constant 0 : i32
    return %c0_i32, %c0_i32_0 : i32, i32
  }
  func.func @transform_7(%arg0: i32) -> (i32, i32) {
    %c0_i32 = arith.constant 0 : i32
    %c0_i32_0 = arith.constant 0 : i32
    %c0_i32_1 = arith.constant 0 : i32
    return %c0_i32, %c0_i32_0 : i32, i32
  }
  func.func @transform_8(%arg0: i32) -> (i32, i32, i32) {
    %c0_i32 = arith.constant 0 : i32
    %c0_i32_0 = arith.constant 0 : i32
    %c0_i32_1 = arith.constant 0 : i32
    return %arg0, %c0_i32, %c0_i32_0 : i32, i32, i32
  }
}

</mosaic_0001>

<llo_original>
// kernel: tpu_custom_call.1
$region0: #{tpu_custom_call.1}
  #allocation0 [shape = 'u32[]', space=smem, size = 0x4, offset = 0x4, fixed_abs, tag = 'smem constant byte address 0x4 - core index']
  #allocation1 [shape = 'u32[72,128]{1,0:T(1,128)}', space=vmem, size = 0x9000, scoped, tag = 'internal scratch']
  %s0 = inlined_call_operand.hbm [shape: f32[8,8,32], index: 0, kind: input, shape index: {}]
  %s1 = inlined_call_operand.hbm [shape: f32[8,8,32], index: 1, kind: output, shape index: {0}]
  %s2 = inlined_call_operand.hbm [shape: f32[8,8,32], index: 2, kind: output, shape index: {1}]
  %3 = xla_tuple %s1, %s2
  %s4 = sld [smem:[#allocation0]]
  $region26: #{tpu_custom_call.1} parent=0
    _
  %s6 = ssub.s32 1, %s4
  %s7 = scalar_select 0, %s6, %s4
  $region1: #{tpu_custom_call.1} parent=0
    #allocation2 [shape = 'u8[32768]{0}', space=vmem, size = 0x8000, scoped, tag = 'input window, operand 0, single buffered']
    #allocation3 [shape = 's32[1]{0}', space=sflag, size = 0x4, scoped, tag = 'scoped memory for tpu_custom_call.1']
    #allocation4 [shape = 's32[1]{0}', space=sflag, size = 0x4, scoped, tag = 'scoped memory for tpu_custom_call.1']
    #allocation5 [shape = 'u8[32768]{0}', space=vmem, size = 0x8000, scoped, tag = 'output window, operand 0, single buffered']
    #allocation6 [shape = 'u8[32768]{0}', space=vmem, size = 0x8000, scoped, tag = 'output window, operand 1, single buffered']
    #allocation7 [shape = 's32[1]{0}', space=sflag, size = 0x4, scoped, tag = 'scoped memory for tpu_custom_call.1']
    %8 = vsyncpa [#allocation3], 0
    %9 = vsyncpa [#allocation4], 0
    %10 = vsyncpa [#allocation7], 0
    // Predicated region
    $region2: #{tpu_custom_call.1} parent=1 // pred_check
      _
    $region3: #{tpu_custom_call.1} parent=1 // pred_check_branch
      %12 = sbr.rel (0) target = $region5
    $region4: #{tpu_custom_call.1} parent=1 // pred_region
      %14 = vsyncadd [#allocation3], 0
      %s15 = sshll.u32 %s0, 4
      %s16 = int_to_ptr.hbm [resolvable:$true] %s15
      %s17 = sshll.u32 [#allocation2], 4
      %s18 = int_to_ptr.vmem [resolvable:$true] %s17
      %23 = dma.hbm_to_vmem [thread:$0]  %s16, 1024, %s18, [#allocation3], 128, 128, 8
    $region5: #{tpu_custom_call.1} parent=1 // pred_fallthru
      _
    // Predicated region
    $region6: #{tpu_custom_call.1} parent=1 // pred_check
      _
    $region7: #{tpu_custom_call.1} parent=1 // pred_check_branch
      %25 = sbr.rel (0) target = $region9
    $region8: #{tpu_custom_call.1} parent=1 // pred_region
      %27 = dma.done [#allocation3], 1024
    $region9: #{tpu_custom_call.1} parent=1 // pred_fallthru
      _
    %v28 = vld [vmem:[#allocation2] sm:$0xff]
    %v29 = vld [vmem:[#allocation2 + $0x8] sm:$0xff]
    %v30 = vld [vmem:[#allocation2 + $0x10] sm:$0xff]
    %v31 = vld [vmem:[#allocation2 + $0x18] sm:$0xff]
    %v32 = vld [vmem:[#allocation2 + $0x20] sm:$0xff]
    %v33 = vld [vmem:[#allocation2 + $0x28] sm:$0xff]
    %v34 = vld [vmem:[#allocation2 + $0x30] sm:$0xff]
    %v35 = vld [vmem:[#allocation2 + $0x38] sm:$0xff]
    %v36 = vrot.slane %v30, 4
    %vm37 = vcmask 1047556
    %v38 = vsel %vm37, %v36, %v28
    %v39 = vrot.slane %v28, 4
    %v40 = vsel %vm37, %v30, %v39
    %v42 = vunpack.c.l.s4 1983009808
    %v43 = vunpack.c.0.s8 %v42
    %v44 = vperm.slane %v38, %v43
    %v46 = vunpack.c.l.s4 1983009808
    %v47 = vunpack.c.0.s8 %v46
    %v48 = vperm.slane %v40, %v47
    %v49 = vrot.slane %v31, 4
    %v50 = vsel %vm37, %v49, %v29
    %v51 = vrot.slane %v29, 4
    %v52 = vsel %vm37, %v31, %v51
    %v54 = vunpack.c.l.s4 1983009808
    %v55 = vunpack.c.0.s8 %v54
    %v56 = vperm.slane %v50, %v55
    %v58 = vunpack.c.l.s4 1983009808
    %v59 = vunpack.c.0.s8 %v58
    %v60 = vperm.slane %v52, %v59
    %v61 = vrot.slane %v34, 4
    %v62 = vsel %vm37, %v61, %v32
    %v63 = vrot.slane %v32, 4
    %v64 = vsel %vm37, %v34, %v63
    %v66 = vunpack.c.l.s4 1983009808
    %v67 = vunpack.c.0.s8 %v66
    %v68 = vperm.slane %v62, %v67
    %v70 = vunpack.c.l.s4 1983009808
    %v71 = vunpack.c.0.s8 %v70
    %v72 = vperm.slane %v64, %v71
    %v73 = vrot.slane %v35, 4
    %v74 = vsel %vm37, %v73, %v33
    %v75 = vrot.slane %v33, 4
    %v76 = vsel %vm37, %v35, %v75
    %v78 = vunpack.c.l.s4 1983009808
    %v79 = vunpack.c.0.s8 %v78
    %v80 = vperm.slane %v74, %v79
    %v82 = vunpack.c.l.s4 1983009808
    %v83 = vunpack.c.0.s8 %v82
    %v84 = vperm.slane %v76, %v83
    %v85 = vrot.slane %v56, 4
    %v86 = vsel %vm37, %v85, %v44
    %v87 = vrot.slane %v44, 4
    %v88 = vsel %vm37, %v56, %v87
    %v90 = vunpack.c.l.s4 1934713408
    %v91 = vunpack.c.0.s8 %v90
    %v92 = vperm.slane %v86, %v91
    %v94 = vunpack.c.l.s4 1934713408
    %v95 = vunpack.c.0.s8 %v94
    %v96 = vperm.slane %v88, %v95
    %v97 = vrot.slane %v60, 4
    %v98 = vsel %vm37, %v97, %v48
    %v99 = vrot.slane %v48, 4
    %v100 = vsel %vm37, %v60, %v99
    %v102 = vunpack.c.l.s4 1934713408
    %v103 = vunpack.c.0.s8 %v102
    %v104 = vperm.slane %v98, %v103
    %v106 = vunpack.c.l.s4 1934713408
    %v107 = vunpack.c.0.s8 %v106
    %v108 = vperm.slane %v100, %v107
    %v109 = vrot.slane %v80, 4
    %v110 = vsel %vm37, %v109, %v68
    %v111 = vrot.slane %v68, 4
    %v112 = vsel %vm37, %v80, %v111
    %v114 = vunpack.c.l.s4 1934713408
    %v115 = vunpack.c.0.s8 %v114
    %v116 = vperm.slane %v110, %v115
    %v118 = vunpack.c.l.s4 1934713408
    %v119 = vunpack.c.0.s8 %v118
    %v120 = vperm.slane %v112, %v119
    %v121 = vrot.slane %v84, 4
    %v122 = vsel %vm37, %v121, %v72
    %v123 = vrot.slane %v72, 4
    %v124 = vsel %vm37, %v84, %v123
    %v126 = vunpack.c.l.s4 1934713408
    %v127 = vunpack.c.0.s8 %v126
    %v128 = vperm.slane %v122, %v127
    %v130 = vunpack.c.l.s4 1934713408
    %v131 = vunpack.c.0.s8 %v130
    %v132 = vperm.slane %v124, %v131
    %v133 = vrot.slane %v116, 4
    %v134 = vsel %vm37, %v133, %v92
    %v135 = vrot.slane %v92, 4
    %v136 = vsel %vm37, %v116, %v135
    %v137 = vrot.slane %v120, 4
    %v138 = vsel %vm37, %v137, %v96
    %v139 = vrot.slane %v96, 4
    %v140 = vsel %vm37, %v120, %v139
    %v141 = vrot.slane %v128, 4
    %v142 = vsel %vm37, %v141, %v104
    %v143 = vrot.slane %v104, 4
    %v144 = vsel %vm37, %v128, %v143
    %v145 = vrot.slane %v132, 4
    %v146 = vsel %vm37, %v145, %v108
    %v147 = vrot.slane %v108, 4
    %v148 = vsel %vm37, %v132, %v147
    %vm149 = vcmask 261120
    %150 = vst.msk [vmem:[#allocation5] sm:$0xff] %vm149, %v134
    %151 = vst.msk [vmem:[#allocation5 + $0x8] sm:$0xff] %vm149, %v136
    %152 = vst.msk [vmem:[#allocation5 + $0x10] sm:$0xff] %vm149, %v138
    %153 = vst.msk [vmem:[#allocation5 + $0x18] sm:$0xff] %vm149, %v140
    %154 = vst.msk [vmem:[#allocation5 + $0x20] sm:$0xff] %vm149, %v142
    %155 = vst.msk [vmem:[#allocation5 + $0x28] sm:$0xff] %vm149, %v144
    %156 = vst.msk [vmem:[#allocation5 + $0x30] sm:$0xff] %vm149, %v146
    %157 = vst.msk [vmem:[#allocation5 + $0x38] sm:$0xff] %vm149, %v148
    %166 = vrot.lane.b32.xlu0 %v28, 120
    %v167 = vpop.permute.xlu0 %166
    %168 = vrot.lane.b32.xlu0 %v29, 120
    %v169 = vpop.permute.xlu0 %168
    %170 = vrot.lane.b32.xlu0 %v30, 120
    %v171 = vpop.permute.xlu0 %170
    %172 = vrot.lane.b32.xlu0 %v31, 120
    %v173 = vpop.permute.xlu0 %172
    %174 = vrot.lane.b32.xlu0 %v32, 120
    %v175 = vpop.permute.xlu0 %174
    %176 = vrot.lane.b32.xlu0 %v33, 120
    %v177 = vpop.permute.xlu0 %176
    %178 = vrot.lane.b32.xlu0 %v34, 120
    %v179 = vpop.permute.xlu0 %178
    %180 = vrot.lane.b32.xlu0 %v35, 120
    %v181 = vpop.permute.xlu0 %180
    %190 = vrot.lane.b32.xlu0 %v28, 112
    %v191 = vpop.permute.xlu0 %190
    %192 = vrot.lane.b32.xlu0 %v29, 112
    %v193 = vpop.permute.xlu0 %192
    %194 = vrot.lane.b32.xlu0 %v30, 112
    %v195 = vpop.permute.xlu0 %194
    %196 = vrot.lane.b32.xlu0 %v31, 112
    %v197 = vpop.permute.xlu0 %196
    %198 = vrot.lane.b32.xlu0 %v32, 112
    %v199 = vpop.permute.xlu0 %198
    %200 = vrot.lane.b32.xlu0 %v33, 112
    %v201 = vpop.permute.xlu0 %200
    %202 = vrot.lane.b32.xlu0 %v34, 112
    %v203 = vpop.permute.xlu0 %202
    %204 = vrot.lane.b32.xlu0 %v35, 112
    %v205 = vpop.permute.xlu0 %204
    %214 = vrot.lane.b32.xlu0 %v28, 104
    %v215 = vpop.permute.xlu0 %214
    %216 = vrot.lane.b32.xlu0 %v29, 104
    %v217 = vpop.permute.xlu0 %216
    %218 = vrot.lane.b32.xlu0 %v30, 104
    %v219 = vpop.permute.xlu0 %218
    %220 = vrot.lane.b32.xlu0 %v31, 104
    %v221 = vpop.permute.xlu0 %220
    %222 = vrot.lane.b32.xlu0 %v32, 104
    %v223 = vpop.permute.xlu0 %222
    %224 = vrot.lane.b32.xlu0 %v33, 104
    %v225 = vpop.permute.xlu0 %224
    %226 = vrot.lane.b32.xlu0 %v34, 104
    %v227 = vpop.permute.xlu0 %226
    %228 = vrot.lane.b32.xlu0 %v35, 104
    %v229 = vpop.permute.xlu0 %228
    %v238 = vrot.slane %v191, 4
    %v239 = vsel %vm37, %v238, %v28
    %v240 = vsel %vm37, %v191, %v39
    %v242 = vunpack.c.l.s4 1983009808
    %v243 = vunpack.c.0.s8 %v242
    %v244 = vperm.slane %v239, %v243
    %v246 = vunpack.c.l.s4 1983009808
    %v247 = vunpack.c.0.s8 %v246
    %v248 = vperm.slane %v240, %v247
    %v249 = vrot.slane %v215, 4
    %v250 = vsel %vm37, %v249, %v167
    %v251 = vrot.slane %v167, 4
    %v252 = vsel %vm37, %v215, %v251
    %v254 = vunpack.c.l.s4 1983009808
    %v255 = vunpack.c.0.s8 %v254
    %v256 = vperm.slane %v250, %v255
    %v258 = vunpack.c.l.s4 1983009808
    %v259 = vunpack.c.0.s8 %v258
    %v260 = vperm.slane %v252, %v259
    %v261 = vrot.slane %v256, 4
    %v262 = vsel %vm37, %v261, %v244
    %v263 = vrot.slane %v244, 4
    %v264 = vsel %vm37, %v256, %v263
    %v266 = vunpack.c.l.s4 1934713408
    %v267 = vunpack.c.0.s8 %v266
    %v268 = vperm.slane %v262, %v267
    %v270 = vunpack.c.l.s4 1934713408
    %v271 = vunpack.c.0.s8 %v270
    %v272 = vperm.slane %v264, %v271
    %v273 = vrot.slane %v260, 4
    %v274 = vsel %vm37, %v273, %v248
    %v275 = vrot.slane %v248, 4
    %v276 = vsel %vm37, %v260, %v275
    %v278 = vunpack.c.l.s4 1934713408
    %v279 = vunpack.c.0.s8 %v278
    %v280 = vperm.slane %v274, %v279
    %v282 = vunpack.c.l.s4 1934713408
    %v283 = vunpack.c.0.s8 %v282
    %v284 = vperm.slane %v276, %v283
    %v285 = vrot.slane %v268, 4
    %v286 = vsel %vm37, 0.0, %v285
    %v287 = vrot.slane %v272, 4
    %v288 = vsel %vm37, 0.0, %v287
    %v289 = vrot.slane %v280, 4
    %v290 = vsel %vm37, 0.0, %v289
    %v291 = vrot.slane %v284, 4
    %v292 = vsel %vm37, 0.0, %v291
    %v293 = vrot.slane %v193, 4
    %v294 = vsel %vm37, %v293, %v29
    %v295 = vsel %vm37, %v193, %v51
    %v297 = vunpack.c.l.s4 1983009808
    %v298 = vunpack.c.0.s8 %v297
    %v299 = vperm.slane %v294, %v298
    %v301 = vunpack.c.l.s4 1983009808
    %v302 = vunpack.c.0.s8 %v301
    %v303 = vperm.slane %v295, %v302
    %v304 = vrot.slane %v217, 4
    %v305 = vsel %vm37, %v304, %v169
    %v306 = vrot.slane %v169, 4
    %v307 = vsel %vm37, %v217, %v306
    %v309 = vunpack.c.l.s4 1983009808
    %v310 = vunpack.c.0.s8 %v309
    %v311 = vperm.slane %v305, %v310
    %v313 = vunpack.c.l.s4 1983009808
    %v314 = vunpack.c.0.s8 %v313
    %v315 = vperm.slane %v307, %v314
    %v316 = vrot.slane %v311, 4
    %v317 = vsel %vm37, %v316, %v299
    %v318 = vrot.slane %v299, 4
    %v319 = vsel %vm37, %v311, %v318
    %v321 = vunpack.c.l.s4 1934713408
    %v322 = vunpack.c.0.s8 %v321
    %v323 = vperm.slane %v317, %v322
    %v325 = vunpack.c.l.s4 1934713408
    %v326 = vunpack.c.0.s8 %v325
    %v327 = vperm.slane %v319, %v326
    %v328 = vrot.slane %v315, 4
    %v329 = vsel %vm37, %v328, %v303
    %v330 = vrot.slane %v303, 4
    %v331 = vsel %vm37, %v315, %v330
    %v333 = vunpack.c.l.s4 1934713408
    %v334 = vunpack.c.0.s8 %v333
    %v335 = vperm.slane %v329, %v334
    %v337 = vunpack.c.l.s4 1934713408
    %v338 = vunpack.c.0.s8 %v337
    %v339 = vperm.slane %v331, %v338
    %v340 = vrot.slane %v323, 4
    %v341 = vsel %vm37, 0.0, %v340
    %v342 = vrot.slane %v327, 4
    %v343 = vsel %vm37, 0.0, %v342
    %v344 = vrot.slane %v335, 4
    %v345 = vsel %vm37, 0.0, %v344
    %v346 = vrot.slane %v339, 4
    %v347 = vsel %vm37, 0.0, %v346
    %v348 = vrot.slane %v195, 4
    %v349 = vsel %vm37, %v348, %v30
    %v350 = vsel %vm37, %v195, %v36
    %v352 = vunpack.c.l.s4 1983009808
    %v353 = vunpack.c.0.s8 %v352
    %v354 = vperm.slane %v349, %v353
    %v356 = vunpack.c.l.s4 1983009808
    %v357 = vunpack.c.0.s8 %v356
    %v358 = vperm.slane %v350, %v357
    %v359 = vrot.slane %v219, 4
    %v360 = vsel %vm37, %v359, %v171
    %v361 = vrot.slane %v171, 4
    %v362 = vsel %vm37, %v219, %v361
    %v364 = vunpack.c.l.s4 1983009808
    %v365 = vunpack.c.0.s8 %v364
    %v366 = vperm.slane %v360, %v365
    %v368 = vunpack.c.l.s4 1983009808
    %v369 = vunpack.c.0.s8 %v368
    %v370 = vperm.slane %v362, %v369
    %v371 = vrot.slane %v366, 4
    %v372 = vsel %vm37, %v371, %v354
    %v373 = vrot.slane %v354, 4
    %v374 = vsel %vm37, %v366, %v373
    %v376 = vunpack.c.l.s4 1934713408
    %v377 = vunpack.c.0.s8 %v376
    %v378 = vperm.slane %v372, %v377
    %v380 = vunpack.c.l.s4 1934713408
    %v381 = vunpack.c.0.s8 %v380
    %v382 = vperm.slane %v374, %v381
    %v383 = vrot.slane %v370, 4
    %v384 = vsel %vm37, %v383, %v358
    %v385 = vrot.slane %v358, 4
    %v386 = vsel %vm37, %v370, %v385
    %v388 = vunpack.c.l.s4 1934713408
    %v389 = vunpack.c.0.s8 %v388
    %v390 = vperm.slane %v384, %v389
    %v392 = vunpack.c.l.s4 1934713408
    %v393 = vunpack.c.0.s8 %v392
    %v394 = vperm.slane %v386, %v393
    %v395 = vrot.slane %v378, 4
    %v396 = vsel %vm37, 0.0, %v395
    %v397 = vrot.slane %v382, 4
    %v398 = vsel %vm37, 0.0, %v397
    %v399 = vrot.slane %v390, 4
    %v400 = vsel %vm37, 0.0, %v399
    %v401 = vrot.slane %v394, 4
    %v402 = vsel %vm37, 0.0, %v401
    %v403 = vrot.slane %v197, 4
    %v404 = vsel %vm37, %v403, %v31
    %v405 = vsel %vm37, %v197, %v49
    %v407 = vunpack.c.l.s4 1983009808
    %v408 = vunpack.c.0.s8 %v407
    %v409 = vperm.slane %v404, %v408
    %v411 = vunpack.c.l.s4 1983009808
    %v412 = vunpack.c.0.s8 %v411
    %v413 = vperm.slane %v405, %v412
    %v414 = vrot.slane %v221, 4
    %v415 = vsel %vm37, %v414, %v173
    %v416 = vrot.slane %v173, 4
    %v417 = vsel %vm37, %v221, %v416
    %v419 = vunpack.c.l.s4 1983009808
    %v420 = vunpack.c.0.s8 %v419
    %v421 = vperm.slane %v415, %v420
    %v423 = vunpack.c.l.s4 1983009808
    %v424 = vunpack.c.0.s8 %v423
    %v425 = vperm.slane %v417, %v424
    %v426 = vrot.slane %v421, 4
    %v427 = vsel %vm37, %v426, %v409
    %v428 = vrot.slane %v409, 4
    %v429 = vsel %vm37, %v421, %v428
    %v431 = vunpack.c.l.s4 1934713408
    %v432 = vunpack.c.0.s8 %v431
    %v433 = vperm.slane %v427, %v432
    %v435 = vunpack.c.l.s4 1934713408
    %v436 = vunpack.c.0.s8 %v435
    %v437 = vperm.slane %v429, %v436
    %v438 = vrot.slane %v425, 4
    %v439 = vsel %vm37, %v438, %v413
    %v440 = vrot.slane %v413, 4
    %v441 = vsel %vm37, %v425, %v440
    %v443 = vunpack.c.l.s4 1934713408
    %v444 = vunpack.c.0.s8 %v443
    %v445 = vperm.slane %v439, %v444
    %v447 = vunpack.c.l.s4 1934713408
    %v448 = vunpack.c.0.s8 %v447
    %v449 = vperm.slane %v441, %v448
    %v450 = vrot.slane %v433, 4
    %v451 = vsel %vm37, 0.0, %v450
    %v452 = vrot.slane %v437, 4
    %v453 = vsel %vm37, 0.0, %v452
    %v454 = vrot.slane %v445, 4
    %v455 = vsel %vm37, 0.0, %v454
    %v456 = vrot.slane %v449, 4
    %v457 = vsel %vm37, 0.0, %v456
    %v458 = vrot.slane %v199, 4
    %v459 = vsel %vm37, %v458, %v32
    %v460 = vsel %vm37, %v199, %v63
    %v462 = vunpack.c.l.s4 1983009808
    %v463 = vunpack.c.0.s8 %v462
    %v464 = vperm.slane %v459, %v463
    %v466 = vunpack.c.l.s4 1983009808
    %v467 = vunpack.c.0.s8 %v466
    %v468 = vperm.slane %v460, %v467
    %v469 = vrot.slane %v223, 4
    %v470 = vsel %vm37, %v469, %v175
    %v471 = vrot.slane %v175, 4
    %v472 = vsel %vm37, %v223, %v471
    %v474 = vunpack.c.l.s4 1983009808
    %v475 = vunpack.c.0.s8 %v474
    %v476 = vperm.slane %v470, %v475
    %v478 = vunpack.c.l.s4 1983009808
    %v479 = vunpack.c.0.s8 %v478
    %v480 = vperm.slane %v472, %v479
    %v481 = vrot.slane %v476, 4
    %v482 = vsel %vm37, %v481, %v464
    %v483 = vrot.slane %v464, 4
    %v484 = vsel %vm37, %v476, %v483
    %v486 = vunpack.c.l.s4 1934713408
    %v487 = vunpack.c.0.s8 %v486
    %v488 = vperm.slane %v482, %v487
    %v490 = vunpack.c.l.s4 1934713408
    %v491 = vunpack.c.0.s8 %v490
    %v492 = vperm.slane %v484, %v491
    %v493 = vrot.slane %v480, 4
    %v494 = vsel %vm37, %v493, %v468
    %v495 = vrot.slane %v468, 4
    %v496 = vsel %vm37, %v480, %v495
    %v498 = vunpack.c.l.s4 1934713408
    %v499 = vunpack.c.0.s8 %v498
    %v500 = vperm.slane %v494, %v499
    %v502 = vunpack.c.l.s4 1934713408
    %v503 = vunpack.c.0.s8 %v502
    %v504 = vperm.slane %v496, %v503
    %v505 = vrot.slane %v488, 4
    %v506 = vsel %vm37, 0.0, %v505
    %v507 = vrot.slane %v492, 4
    %v508 = vsel %vm37, 0.0, %v507
    %v509 = vrot.slane %v500, 4
    %v510 = vsel %vm37, 0.0, %v509
    %v511 = vrot.slane %v504, 4
    %v512 = vsel %vm37, 0.0, %v511
    %v513 = vrot.slane %v201, 4
    %v514 = vsel %vm37, %v513, %v33
    %v515 = vsel %vm37, %v201, %v75
    %v517 = vunpack.c.l.s4 1983009808
    %v518 = vunpack.c.0.s8 %v517
    %v519 = vperm.slane %v514, %v518
    %v521 = vunpack.c.l.s4 1983009808
    %v522 = vunpack.c.0.s8 %v521
    %v523 = vperm.slane %v515, %v522
    %v524 = vrot.slane %v225, 4
    %v525 = vsel %vm37, %v524, %v177
    %v526 = vrot.slane %v177, 4
    %v527 = vsel %vm37, %v225, %v526
    %v529 = vunpack.c.l.s4 1983009808
    %v530 = vunpack.c.0.s8 %v529
    %v531 = vperm.slane %v525, %v530
    %v533 = vunpack.c.l.s4 1983009808
    %v534 = vunpack.c.0.s8 %v533
    %v535 = vperm.slane %v527, %v534
    %v536 = vrot.slane %v531, 4
    %v537 = vsel %vm37, %v536, %v519
    %v538 = vrot.slane %v519, 4
    %v539 = vsel %vm37, %v531, %v538
    %v541 = vunpack.c.l.s4 1934713408
    %v542 = vunpack.c.0.s8 %v541
    %v543 = vperm.slane %v537, %v542
    %v545 = vunpack.c.l.s4 1934713408
    %v546 = vunpack.c.0.s8 %v545
    %v547 = vperm.slane %v539, %v546
    %v548 = vrot.slane %v535, 4
    %v549 = vsel %vm37, %v548, %v523
    %v550 = vrot.slane %v523, 4
    %v551 = vsel %vm37, %v535, %v550
    %v553 = vunpack.c.l.s4 1934713408
    %v554 = vunpack.c.0.s8 %v553
    %v555 = vperm.slane %v549, %v554
    %v557 = vunpack.c.l.s4 1934713408
    %v558 = vunpack.c.0.s8 %v557
    %v559 = vperm.slane %v551, %v558
    %v560 = vrot.slane %v543, 4
    %v561 = vsel %vm37, 0.0, %v560
    %v562 = vrot.slane %v547, 4
    %v563 = vsel %vm37, 0.0, %v562
    %v564 = vrot.slane %v555, 4
    %v565 = vsel %vm37, 0.0, %v564
    %v566 = vrot.slane %v559, 4
    %v567 = vsel %vm37, 0.0, %v566
    %v568 = vrot.slane %v203, 4
    %v569 = vsel %vm37, %v568, %v34
    %v570 = vsel %vm37, %v203, %v61
    %v572 = vunpack.c.l.s4 1983009808
    %v573 = vunpack.c.0.s8 %v572
    %v574 = vperm.slane %v569, %v573
    %v576 = vunpack.c.l.s4 1983009808
    %v577 = vunpack.c.0.s8 %v576
    %v578 = vperm.slane %v570, %v577
    %v579 = vrot.slane %v227, 4
    %v580 = vsel %vm37, %v579, %v179
    %v581 = vrot.slane %v179, 4
    %v582 = vsel %vm37, %v227, %v581
    %v584 = vunpack.c.l.s4 1983009808
    %v585 = vunpack.c.0.s8 %v584
    %v586 = vperm.slane %v580, %v585
    %v588 = vunpack.c.l.s4 1983009808
    %v589 = vunpack.c.0.s8 %v588
    %v590 = vperm.slane %v582, %v589
    %v591 = vrot.slane %v586, 4
    %v592 = vsel %vm37, %v591, %v574
    %v593 = vrot.slane %v574, 4
    %v594 = vsel %vm37, %v586, %v593
    %v596 = vunpack.c.l.s4 1934713408
    %v597 = vunpack.c.0.s8 %v596
    %v598 = vperm.slane %v592, %v597
    %v600 = vunpack.c.l.s4 1934713408
    %v601 = vunpack.c.0.s8 %v600
    %v602 = vperm.slane %v594, %v601
    %v603 = vrot.slane %v590, 4
    %v604 = vsel %vm37, %v603, %v578
    %v605 = vrot.slane %v578, 4
    %v606 = vsel %vm37, %v590, %v605
    %v608 = vunpack.c.l.s4 1934713408
    %v609 = vunpack.c.0.s8 %v608
    %v610 = vperm.slane %v604, %v609
    %v612 = vunpack.c.l.s4 1934713408
    %v613 = vunpack.c.0.s8 %v612
    %v614 = vperm.slane %v606, %v613
    %v615 = vrot.slane %v598, 4
    %v616 = vsel %vm37, 0.0, %v615
    %v617 = vrot.slane %v602, 4
    %v618 = vsel %vm37, 0.0, %v617
    %v619 = vrot.slane %v610, 4
    %v620 = vsel %vm37, 0.0, %v619
    %v621 = vrot.slane %v614, 4
    %v622 = vsel %vm37, 0.0, %v621
    %v623 = vrot.slane %v205, 4
    %v624 = vsel %vm37, %v623, %v35
    %v625 = vsel %vm37, %v205, %v73
    %v627 = vunpack.c.l.s4 1983009808
    %v628 = vunpack.c.0.s8 %v627
    %v629 = vperm.slane %v624, %v628
    %v631 = vunpack.c.l.s4 1983009808
    %v632 = vunpack.c.0.s8 %v631
    %v633 = vperm.slane %v625, %v632
    %v634 = vrot.slane %v229, 4
    %v635 = vsel %vm37, %v634, %v181
    %v636 = vrot.slane %v181, 4
    %v637 = vsel %vm37, %v229, %v636
    %v639 = vunpack.c.l.s4 1983009808
    %v640 = vunpack.c.0.s8 %v639
    %v641 = vperm.slane %v635, %v640
    %v643 = vunpack.c.l.s4 1983009808
    %v644 = vunpack.c.0.s8 %v643
    %v645 = vperm.slane %v637, %v644
    %v646 = vrot.slane %v641, 4
    %v647 = vsel %vm37, %v646, %v629
    %v648 = vrot.slane %v629, 4
    %v649 = vsel %vm37, %v641, %v648
    %v651 = vunpack.c.l.s4 1934713408
    %v652 = vunpack.c.0.s8 %v651
    %v653 = vperm.slane %v647, %v652
    %v655 = vunpack.c.l.s4 1934713408
    %v656 = vunpack.c.0.s8 %v655
    %v657 = vperm.slane %v649, %v656
    %v658 = vrot.slane %v645, 4
    %v659 = vsel %vm37, %v658, %v633
    %v660 = vrot.slane %v633, 4
    %v661 = vsel %vm37, %v645, %v660
    %v663 = vunpack.c.l.s4 1934713408
    %v664 = vunpack.c.0.s8 %v663
    %v665 = vperm.slane %v659, %v664
    %v667 = vunpack.c.l.s4 1934713408
    %v668 = vunpack.c.0.s8 %v667
    %v669 = vperm.slane %v661, %v668
    %v670 = vrot.slane %v653, 4
    %v671 = vsel %vm37, 0.0, %v670
    %v672 = vrot.slane %v657, 4
    %v673 = vsel %vm37, 0.0, %v672
    %v674 = vrot.slane %v665, 4
    %v675 = vsel %vm37, 0.0, %v674
    %v676 = vrot.slane %v669, 4
    %v677 = vsel %vm37, 0.0, %v676
    %v678 = vsel %vm37, %v287, %v268
    %v680 = vunpack.c.l.s4 1983009808
    %v681 = vunpack.c.0.s8 %v680
    %v682 = vperm.slane %v678, %v681
    %v683 = vrot.slane %v288, 4
    %v684 = vsel %vm37, %v683, %v286
    %v686 = vunpack.c.l.s4 1983009808
    %v687 = vunpack.c.0.s8 %v686
    %v688 = vperm.slane %v684, %v687
    %v689 = vsel %vm37, %v291, %v280
    %v691 = vunpack.c.l.s4 1983009808
    %v692 = vunpack.c.0.s8 %v691
    %v693 = vperm.slane %v689, %v692
    %v694 = vrot.slane %v292, 4
    %v695 = vsel %vm37, %v694, %v290
    %v697 = vunpack.c.l.s4 1983009808
    %v698 = vunpack.c.0.s8 %v697
    %v699 = vperm.slane %v695, %v698
    %v700 = vrot.slane %v688, 4
    %v701 = vsel %vm37, %v700, %v682
    %v702 = vrot.slane %v682, 4
    %v703 = vsel %vm37, %v688, %v702
    %v705 = vunpack.c.l.s4 1934713408
    %v706 = vunpack.c.0.s8 %v705
    %v707 = vperm.slane %v701, %v706
    %v709 = vunpack.c.l.s4 1934713408
    %v710 = vunpack.c.0.s8 %v709
    %v711 = vperm.slane %v703, %v710
    %v712 = vrot.slane %v699, 4
    %v713 = vsel %vm37, %v712, %v693
    %v714 = vrot.slane %v693, 4
    %v715 = vsel %vm37, %v699, %v714
    %v717 = vunpack.c.l.s4 1934713408
    %v718 = vunpack.c.0.s8 %v717
    %v719 = vperm.slane %v713, %v718
    %v721 = vunpack.c.l.s4 1934713408
    %v722 = vunpack.c.0.s8 %v721
    %v723 = vperm.slane %v715, %v722
    %v724 = vrot.slane %v719, 4
    %v725 = vsel %vm37, %v724, %v707
    %v726 = vrot.slane %v707, 4
    %v727 = vsel %vm37, %v719, %v726
    %v728 = vrot.slane %v723, 4
    %v729 = vsel %vm37, %v728, %v711
    %v730 = vrot.slane %v711, 4
    %v731 = vsel %vm37, %v723, %v730
    %v732 = vsel %vm37, %v342, %v323
    %v734 = vunpack.c.l.s4 1983009808
    %v735 = vunpack.c.0.s8 %v734
    %v736 = vperm.slane %v732, %v735
    %v737 = vrot.slane %v343, 4
    %v738 = vsel %vm37, %v737, %v341
    %v740 = vunpack.c.l.s4 1983009808
    %v741 = vunpack.c.0.s8 %v740
    %v742 = vperm.slane %v738, %v741
    %v743 = vsel %vm37, %v346, %v335
    %v745 = vunpack.c.l.s4 1983009808
    %v746 = vunpack.c.0.s8 %v745
    %v747 = vperm.slane %v743, %v746
    %v748 = vrot.slane %v347, 4
    %v749 = vsel %vm37, %v748, %v345
    %v751 = vunpack.c.l.s4 1983009808
    %v752 = vunpack.c.0.s8 %v751
    %v753 = vperm.slane %v749, %v752
    %v754 = vrot.slane %v742, 4
    %v755 = vsel %vm37, %v754, %v736
    %v756 = vrot.slane %v736, 4
    %v757 = vsel %vm37, %v742, %v756
    %v759 = vunpack.c.l.s4 1934713408
    %v760 = vunpack.c.0.s8 %v759
    %v761 = vperm.slane %v755, %v760
    %v763 = vunpack.c.l.s4 1934713408
    %v764 = vunpack.c.0.s8 %v763
    %v765 = vperm.slane %v757, %v764
    %v766 = vrot.slane %v753, 4
    %v767 = vsel %vm37, %v766, %v747
    %v768 = vrot.slane %v747, 4
    %v769 = vsel %vm37, %v753, %v768
    %v771 = vunpack.c.l.s4 1934713408
    %v772 = vunpack.c.0.s8 %v771
    %v773 = vperm.slane %v767, %v772
    %v775 = vunpack.c.l.s4 1934713408
    %v776 = vunpack.c.0.s8 %v775
    %v777 = vperm.slane %v769, %v776
    %v778 = vrot.slane %v773, 4
    %v779 = vsel %vm37, %v778, %v761
    %v780 = vrot.slane %v761, 4
    %v781 = vsel %vm37, %v773, %v780
    %v782 = vrot.slane %v777, 4
    %v783 = vsel %vm37, %v782, %v765
    %v784 = vrot.slane %v765, 4
    %v785 = vsel %vm37, %v777, %v784
    %v786 = vsel %vm37, %v397, %v378
    %v788 = vunpack.c.l.s4 1983009808
    %v789 = vunpack.c.0.s8 %v788
    %v790 = vperm.slane %v786, %v789
    %v791 = vrot.slane %v398, 4
    %v792 = vsel %vm37, %v791, %v396
    %v794 = vunpack.c.l.s4 1983009808
    %v795 = vunpack.c.0.s8 %v794
    %v796 = vperm.slane %v792, %v795
    %v797 = vsel %vm37, %v401, %v390
    %v799 = vunpack.c.l.s4 1983009808
    %v800 = vunpack.c.0.s8 %v799
    %v801 = vperm.slane %v797, %v800
    %v802 = vrot.slane %v402, 4
    %v803 = vsel %vm37, %v802, %v400
    %v805 = vunpack.c.l.s4 1983009808
    %v806 = vunpack.c.0.s8 %v805
    %v807 = vperm.slane %v803, %v806
    %v808 = vrot.slane %v796, 4
    %v809 = vsel %vm37, %v808, %v790
    %v810 = vrot.slane %v790, 4
    %v811 = vsel %vm37, %v796, %v810
    %v813 = vunpack.c.l.s4 1934713408
    %v814 = vunpack.c.0.s8 %v813
    %v815 = vperm.slane %v809, %v814
    %v817 = vunpack.c.l.s4 1934713408
    %v818 = vunpack.c.0.s8 %v817
    %v819 = vperm.slane %v811, %v818
    %v820 = vrot.slane %v807, 4
    %v821 = vsel %vm37, %v820, %v801
    %v822 = vrot.slane %v801, 4
    %v823 = vsel %vm37, %v807, %v822
    %v825 = vunpack.c.l.s4 1934713408
    %v826 = vunpack.c.0.s8 %v825
    %v827 = vperm.slane %v821, %v826
    %v829 = vunpack.c.l.s4 1934713408
    %v830 = vunpack.c.0.s8 %v829
    %v831 = vperm.slane %v823, %v830
    %v832 = vrot.slane %v827, 4
    %v833 = vsel %vm37, %v832, %v815
    %v834 = vrot.slane %v815, 4
    %v835 = vsel %vm37, %v827, %v834
    %v836 = vrot.slane %v831, 4
    %v837 = vsel %vm37, %v836, %v819
    %v838 = vrot.slane %v819, 4
    %v839 = vsel %vm37, %v831, %v838
    %v840 = vsel %vm37, %v452, %v433
    %v842 = vunpack.c.l.s4 1983009808
    %v843 = vunpack.c.0.s8 %v842
    %v844 = vperm.slane %v840, %v843
    %v845 = vrot.slane %v453, 4
    %v846 = vsel %vm37, %v845, %v451
    %v848 = vunpack.c.l.s4 1983009808
    %v849 = vunpack.c.0.s8 %v848
    %v850 = vperm.slane %v846, %v849
    %v851 = vsel %vm37, %v456, %v445
    %v853 = vunpack.c.l.s4 1983009808
    %v854 = vunpack.c.0.s8 %v853
    %v855 = vperm.slane %v851, %v854
    %v856 = vrot.slane %v457, 4
    %v857 = vsel %vm37, %v856, %v455
    %v859 = vunpack.c.l.s4 1983009808
    %v860 = vunpack.c.0.s8 %v859
    %v861 = vperm.slane %v857, %v860
    %v862 = vrot.slane %v850, 4
    %v863 = vsel %vm37, %v862, %v844
    %v864 = vrot.slane %v844, 4
    %v865 = vsel %vm37, %v850, %v864
    %v867 = vunpack.c.l.s4 1934713408
    %v868 = vunpack.c.0.s8 %v867
    %v869 = vperm.slane %v863, %v868
    %v871 = vunpack.c.l.s4 1934713408
    %v872 = vunpack.c.0.s8 %v871
    %v873 = vperm.slane %v865, %v872
    %v874 = vrot.slane %v861, 4
    %v875 = vsel %vm37, %v874, %v855
    %v876 = vrot.slane %v855, 4
    %v877 = vsel %vm37, %v861, %v876
    %v879 = vunpack.c.l.s4 1934713408
    %v880 = vunpack.c.0.s8 %v879
    %v881 = vperm.slane %v875, %v880
    %v883 = vunpack.c.l.s4 1934713408
    %v884 = vunpack.c.0.s8 %v883
    %v885 = vperm.slane %v877, %v884
    %v886 = vrot.slane %v881, 4
    %v887 = vsel %vm37, %v886, %v869
    %v888 = vrot.slane %v869, 4
    %v889 = vsel %vm37, %v881, %v888
    %v890 = vrot.slane %v885, 4
    %v891 = vsel %vm37, %v890, %v873
    %v892 = vrot.slane %v873, 4
    %v893 = vsel %vm37, %v885, %v892
    %v894 = vsel %vm37, %v507, %v488
    %v896 = vunpack.c.l.s4 1983009808
    %v897 = vunpack.c.0.s8 %v896
    %v898 = vperm.slane %v894, %v897
    %v899 = vrot.slane %v508, 4
    %v900 = vsel %vm37, %v899, %v506
    %v902 = vunpack.c.l.s4 1983009808
    %v903 = vunpack.c.0.s8 %v902
    %v904 = vperm.slane %v900, %v903
    %v905 = vsel %vm37, %v511, %v500
    %v907 = vunpack.c.l.s4 1983009808
    %v908 = vunpack.c.0.s8 %v907
    %v909 = vperm.slane %v905, %v908
    %v910 = vrot.slane %v512, 4
    %v911 = vsel %vm37, %v910, %v510
    %v913 = vunpack.c.l.s4 1983009808
    %v914 = vunpack.c.0.s8 %v913
    %v915 = vperm.slane %v911, %v914
    %v916 = vrot.slane %v904, 4
    %v917 = vsel %vm37, %v916, %v898
    %v918 = vrot.slane %v898, 4
    %v919 = vsel %vm37, %v904, %v918
    %v921 = vunpack.c.l.s4 1934713408
    %v922 = vunpack.c.0.s8 %v921
    %v923 = vperm.slane %v917, %v922
    %v925 = vunpack.c.l.s4 1934713408
    %v926 = vunpack.c.0.s8 %v925
    %v927 = vperm.slane %v919, %v926
    %v928 = vrot.slane %v915, 4
    %v929 = vsel %vm37, %v928, %v909
    %v930 = vrot.slane %v909, 4
    %v931 = vsel %vm37, %v915, %v930
    %v933 = vunpack.c.l.s4 1934713408
    %v934 = vunpack.c.0.s8 %v933
    %v935 = vperm.slane %v929, %v934
    %v937 = vunpack.c.l.s4 1934713408
    %v938 = vunpack.c.0.s8 %v937
    %v939 = vperm.slane %v931, %v938
    %v940 = vrot.slane %v935, 4
    %v941 = vsel %vm37, %v940, %v923
    %v942 = vrot.slane %v923, 4
    %v943 = vsel %vm37, %v935, %v942
    %v944 = vrot.slane %v939, 4
    %v945 = vsel %vm37, %v944, %v927
    %v946 = vrot.slane %v927, 4
    %v947 = vsel %vm37, %v939, %v946
    %v948 = vsel %vm37, %v562, %v543
    %v950 = vunpack.c.l.s4 1983009808
    %v951 = vunpack.c.0.s8 %v950
    %v952 = vperm.slane %v948, %v951
    %v953 = vrot.slane %v563, 4
    %v954 = vsel %vm37, %v953, %v561
    %v956 = vunpack.c.l.s4 1983009808
    %v957 = vunpack.c.0.s8 %v956
    %v958 = vperm.slane %v954, %v957
    %v959 = vsel %vm37, %v566, %v555
    %v961 = vunpack.c.l.s4 1983009808
    %v962 = vunpack.c.0.s8 %v961
    %v963 = vperm.slane %v959, %v962
    %v964 = vrot.slane %v567, 4
    %v965 = vsel %vm37, %v964, %v565
    %v967 = vunpack.c.l.s4 1983009808
    %v968 = vunpack.c.0.s8 %v967
    %v969 = vperm.slane %v965, %v968
    %v970 = vrot.slane %v958, 4
    %v971 = vsel %vm37, %v970, %v952
    %v972 = vrot.slane %v952, 4
    %v973 = vsel %vm37, %v958, %v972
    %v975 = vunpack.c.l.s4 1934713408
    %v976 = vunpack.c.0.s8 %v975
    %v977 = vperm.slane %v971, %v976
    %v979 = vunpack.c.l.s4 1934713408
    %v980 = vunpack.c.0.s8 %v979
    %v981 = vperm.slane %v973, %v980
    %v982 = vrot.slane %v969, 4
    %v983 = vsel %vm37, %v982, %v963
    %v984 = vrot.slane %v963, 4
    %v985 = vsel %vm37, %v969, %v984
    %v987 = vunpack.c.l.s4 1934713408
    %v988 = vunpack.c.0.s8 %v987
    %v989 = vperm.slane %v983, %v988
    %v991 = vunpack.c.l.s4 1934713408
    %v992 = vunpack.c.0.s8 %v991
    %v993 = vperm.slane %v985, %v992
    %v994 = vrot.slane %v989, 4
    %v995 = vsel %vm37, %v994, %v977
    %v996 = vrot.slane %v977, 4
    %v997 = vsel %vm37, %v989, %v996
    %v998 = vrot.slane %v993, 4
    %v999 = vsel %vm37, %v998, %v981
    %v1000 = vrot.slane %v981, 4
    %v1001 = vsel %vm37, %v993, %v1000
    %v1002 = vsel %vm37, %v617, %v598
    %v1004 = vunpack.c.l.s4 1983009808
    %v1005 = vunpack.c.0.s8 %v1004
    %v1006 = vperm.slane %v1002, %v1005
    %v1007 = vrot.slane %v618, 4
    %v1008 = vsel %vm37, %v1007, %v616
    %v1010 = vunpack.c.l.s4 1983009808
    %v1011 = vunpack.c.0.s8 %v1010
    %v1012 = vperm.slane %v1008, %v1011
    %v1013 = vsel %vm37, %v621, %v610
    %v1015 = vunpack.c.l.s4 1983009808
    %v1016 = vunpack.c.0.s8 %v1015
    %v1017 = vperm.slane %v1013, %v1016
    %v1018 = vrot.slane %v622, 4
    %v1019 = vsel %vm37, %v1018, %v620
    %v1021 = vunpack.c.l.s4 1983009808
    %v1022 = vunpack.c.0.s8 %v1021
    %v1023 = vperm.slane %v1019, %v1022
    %v1024 = vrot.slane %v1012, 4
    %v1025 = vsel %vm37, %v1024, %v1006
    %v1026 = vrot.slane %v1006, 4
    %v1027 = vsel %vm37, %v1012, %v1026
    %v1029 = vunpack.c.l.s4 1934713408
    %v1030 = vunpack.c.0.s8 %v1029
    %v1031 = vperm.slane %v1025, %v1030
    %v1033 = vunpack.c.l.s4 1934713408
    %v1034 = vunpack.c.0.s8 %v1033
    %v1035 = vperm.slane %v1027, %v1034
    %v1036 = vrot.slane %v1023, 4
    %v1037 = vsel %vm37, %v1036, %v1017
    %v1038 = vrot.slane %v1017, 4
    %v1039 = vsel %vm37, %v1023, %v1038
    %v1041 = vunpack.c.l.s4 1934713408
    %v1042 = vunpack.c.0.s8 %v1041
    %v1043 = vperm.slane %v1037, %v1042
    %v1045 = vunpack.c.l.s4 1934713408
    %v1046 = vunpack.c.0.s8 %v1045
    %v1047 = vperm.slane %v1039, %v1046
    %v1048 = vrot.slane %v1043, 4
    %v1049 = vsel %vm37, %v1048, %v1031
    %v1050 = vrot.slane %v1031, 4
    %v1051 = vsel %vm37, %v1043, %v1050
    %v1052 = vrot.slane %v1047, 4
    %v1053 = vsel %vm37, %v1052, %v1035
    %v1054 = vrot.slane %v1035, 4
    %v1055 = vsel %vm37, %v1047, %v1054
    %v1056 = vsel %vm37, %v672, %v653
    %v1058 = vunpack.c.l.s4 1983009808
    %v1059 = vunpack.c.0.s8 %v1058
    %v1060 = vperm.slane %v1056, %v1059
    %v1061 = vrot.slane %v673, 4
    %v1062 = vsel %vm37, %v1061, %v671
    %v1064 = vunpack.c.l.s4 1983009808
    %v1065 = vunpack.c.0.s8 %v1064
    %v1066 = vperm.slane %v1062, %v1065
    %v1067 = vsel %vm37, %v676, %v665
    %v1069 = vunpack.c.l.s4 1983009808
    %v1070 = vunpack.c.0.s8 %v1069
    %v1071 = vperm.slane %v1067, %v1070
    %v1072 = vrot.slane %v677, 4
    %v1073 = vsel %vm37, %v1072, %v675
    %v1075 = vunpack.c.l.s4 1983009808
    %v1076 = vunpack.c.0.s8 %v1075
    %v1077 = vperm.slane %v1073, %v1076
    %v1078 = vrot.slane %v1066, 4
    %v1079 = vsel %vm37, %v1078, %v1060
    %v1080 = vrot.slane %v1060, 4
    %v1081 = vsel %vm37, %v1066, %v1080
    %v1083 = vunpack.c.l.s4 1934713408
    %v1084 = vunpack.c.0.s8 %v1083
    %v1085 = vperm.slane %v1079, %v1084
    %v1087 = vunpack.c.l.s4 1934713408
    %v1088 = vunpack.c.0.s8 %v1087
    %v1089 = vperm.slane %v1081, %v1088
    %v1090 = vrot.slane %v1077, 4
    %v1091 = vsel %vm37, %v1090, %v1071
    %v1092 = vrot.slane %v1071, 4
    %v1093 = vsel %vm37, %v1077, %v1092
    %v1095 = vunpack.c.l.s4 1934713408
    %v1096 = vunpack.c.0.s8 %v1095
    %v1097 = vperm.slane %v1091, %v1096
    %v1099 = vunpack.c.l.s4 1934713408
    %v1100 = vunpack.c.0.s8 %v1099
    %v1101 = vperm.slane %v1093, %v1100
    %v1102 = vrot.slane %v1097, 4
    %v1103 = vsel %vm37, %v1102, %v1085
    %v1104 = vrot.slane %v1085, 4
    %v1105 = vsel %vm37, %v1097, %v1104
    %v1106 = vrot.slane %v1101, 4
    %v1107 = vsel %vm37, %v1106, %v1089
    %v1108 = vrot.slane %v1089, 4
    %v1109 = vsel %vm37, %v1101, %v1108
    %v1110 = vrot.slane %v729, 4
    %v1111 = vsel %vm37, %v1110, %v725
    %v1112 = vrot.slane %v725, 4
    %v1113 = vsel %vm37, %v729, %v1112
    %v1115 = vunpack.c.l.s4 1983009808
    %v1116 = vunpack.c.0.s8 %v1115
    %v1117 = vperm.slane %v1111, %v1116
    %v1119 = vunpack.c.l.s4 1983009808
    %v1120 = vunpack.c.0.s8 %v1119
    %v1121 = vperm.slane %v1113, %v1120
    %v1122 = vrot.slane %v731, 4
    %v1123 = vsel %vm37, %v1122, %v727
    %v1124 = vrot.slane %v727, 4
    %v1125 = vsel %vm37, %v731, %v1124
    %v1127 = vunpack.c.l.s4 1983009808
    %v1128 = vunpack.c.0.s8 %v1127
    %v1129 = vperm.slane %v1123, %v1128
    %v1131 = vunpack.c.l.s4 1983009808
    %v1132 = vunpack.c.0.s8 %v1131
    %v1133 = vperm.slane %v1125, %v1132
    %v1134 = vrot.slane %v1129, 4
    %v1135 = vsel %vm37, %v1134, %v1117
    %v1136 = vrot.slane %v1117, 4
    %v1137 = vsel %vm37, %v1129, %v1136
    %v1139 = vunpack.c.l.s4 1934713408
    %v1140 = vunpack.c.0.s8 %v1139
    %v1141 = vperm.slane %v1135, %v1140
    %v1143 = vunpack.c.l.s4 1934713408
    %v1144 = vunpack.c.0.s8 %v1143
    %v1145 = vperm.slane %v1137, %v1144
    %v1146 = vrot.slane %v1133, 4
    %v1147 = vsel %vm37, %v1146, %v1121
    %v1148 = vrot.slane %v1121, 4
    %v1149 = vsel %vm37, %v1133, %v1148
    %v1151 = vunpack.c.l.s4 1934713408
    %v1152 = vunpack.c.0.s8 %v1151
    %v1153 = vperm.slane %v1147, %v1152
    %v1155 = vunpack.c.l.s4 1934713408
    %v1156 = vunpack.c.0.s8 %v1155
    %v1157 = vperm.slane %v1149, %v1156
    %v1158 = vrot.slane %v1141, 4
    %v1159 = vsel %vm37, 0.0, %v1158
    %v1160 = vrot.slane %v1145, 4
    %v1161 = vsel %vm37, 0.0, %v1160
    %v1162 = vrot.slane %v1153, 4
    %v1163 = vsel %vm37, 0.0, %v1162
    %v1164 = vrot.slane %v1157, 4
    %v1165 = vsel %vm37, 0.0, %v1164
    %v1166 = vrot.slane %v783, 4
    %v1167 = vsel %vm37, %v1166, %v779
    %v1168 = vrot.slane %v779, 4
    %v1169 = vsel %vm37, %v783, %v1168
    %v1171 = vunpack.c.l.s4 1983009808
    %v1172 = vunpack.c.0.s8 %v1171
    %v1173 = vperm.slane %v1167, %v1172
    %v1175 = vunpack.c.l.s4 1983009808
    %v1176 = vunpack.c.0.s8 %v1175
    %v1177 = vperm.slane %v1169, %v1176
    %v1178 = vrot.slane %v785, 4
    %v1179 = vsel %vm37, %v1178, %v781
    %v1180 = vrot.slane %v781, 4
    %v1181 = vsel %vm37, %v785, %v1180
    %v1183 = vunpack.c.l.s4 1983009808
    %v1184 = vunpack.c.0.s8 %v1183
    %v1185 = vperm.slane %v1179, %v1184
    %v1187 = vunpack.c.l.s4 1983009808
    %v1188 = vunpack.c.0.s8 %v1187
    %v1189 = vperm.slane %v1181, %v1188
    %v1190 = vrot.slane %v1185, 4
    %v1191 = vsel %vm37, %v1190, %v1173
    %v1192 = vrot.slane %v1173, 4
    %v1193 = vsel %vm37, %v1185, %v1192
    %v1195 = vunpack.c.l.s4 1934713408
    %v1196 = vunpack.c.0.s8 %v1195
    %v1197 = vperm.slane %v1191, %v1196
    %v1199 = vunpack.c.l.s4 1934713408
    %v1200 = vunpack.c.0.s8 %v1199
    %v1201 = vperm.slane %v1193, %v1200
    %v1202 = vrot.slane %v1189, 4
    %v1203 = vsel %vm37, %v1202, %v1177
    %v1204 = vrot.slane %v1177, 4
    %v1205 = vsel %vm37, %v1189, %v1204
    %v1207 = vunpack.c.l.s4 1934713408
    %v1208 = vunpack.c.0.s8 %v1207
    %v1209 = vperm.slane %v1203, %v1208
    %v1211 = vunpack.c.l.s4 1934713408
    %v1212 = vunpack.c.0.s8 %v1211
    %v1213 = vperm.slane %v1205, %v1212
    %v1214 = vrot.slane %v1197, 4
    %v1215 = vsel %vm37, 0.0, %v1214
    %v1216 = vrot.slane %v1201, 4
    %v1217 = vsel %vm37, 0.0, %v1216
    %v1218 = vrot.slane %v1209, 4
    %v1219 = vsel %vm37, 0.0, %v1218
    %v1220 = vrot.slane %v1213, 4
    %v1221 = vsel %vm37, 0.0, %v1220
    %v1222 = vrot.slane %v837, 4
    %v1223 = vsel %vm37, %v1222, %v833
    %v1224 = vrot.slane %v833, 4
    %v1225 = vsel %vm37, %v837, %v1224
    %v1227 = vunpack.c.l.s4 1983009808
    %v1228 = vunpack.c.0.s8 %v1227
    %v1229 = vperm.slane %v1223, %v1228
    %v1231 = vunpack.c.l.s4 1983009808
    %v1232 = vunpack.c.0.s8 %v1231
    %v1233 = vperm.slane %v1225, %v1232
    %v1234 = vrot.slane %v839, 4
    %v1235 = vsel %vm37, %v1234, %v835
    %v1236 = vrot.slane %v835, 4
    %v1237 = vsel %vm37, %v839, %v1236
    %v1239 = vunpack.c.l.s4 1983009808
    %v1240 = vunpack.c.0.s8 %v1239
    %v1241 = vperm.slane %v1235, %v1240
    %v1243 = vunpack.c.l.s4 1983009808
    %v1244 = vunpack.c.0.s8 %v1243
    %v1245 = vperm.slane %v1237, %v1244
    %v1246 = vrot.slane %v1241, 4
    %v1247 = vsel %vm37, %v1246, %v1229
    %v1248 = vrot.slane %v1229, 4
    %v1249 = vsel %vm37, %v1241, %v1248
    %v1251 = vunpack.c.l.s4 1934713408
    %v1252 = vunpack.c.0.s8 %v1251
    %v1253 = vperm.slane %v1247, %v1252
    %v1255 = vunpack.c.l.s4 1934713408
    %v1256 = vunpack.c.0.s8 %v1255
    %v1257 = vperm.slane %v1249, %v1256
    %v1258 = vrot.slane %v1245, 4
    %v1259 = vsel %vm37, %v1258, %v1233
    %v1260 = vrot.slane %v1233, 4
    %v1261 = vsel %vm37, %v1245, %v1260
    %v1263 = vunpack.c.l.s4 1934713408
    %v1264 = vunpack.c.0.s8 %v1263
    %v1265 = vperm.slane %v1259, %v1264
    %v1267 = vunpack.c.l.s4 1934713408
    %v1268 = vunpack.c.0.s8 %v1267
    %v1269 = vperm.slane %v1261, %v1268
    %v1270 = vrot.slane %v1253, 4
    %v1271 = vsel %vm37, 0.0, %v1270
    %v1272 = vrot.slane %v1257, 4
    %v1273 = vsel %vm37, 0.0, %v1272
    %v1274 = vrot.slane %v1265, 4
    %v1275 = vsel %vm37, 0.0, %v1274
    %v1276 = vrot.slane %v1269, 4
    %v1277 = vsel %vm37, 0.0, %v1276
    %v1278 = vrot.slane %v891, 4
    %v1279 = vsel %vm37, %v1278, %v887
    %v1280 = vrot.slane %v887, 4
    %v1281 = vsel %vm37, %v891, %v1280
    %v1283 = vunpack.c.l.s4 1983009808
    %v1284 = vunpack.c.0.s8 %v1283
    %v1285 = vperm.slane %v1279, %v1284
    %v1287 = vunpack.c.l.s4 1983009808
    %v1288 = vunpack.c.0.s8 %v1287
    %v1289 = vperm.slane %v1281, %v1288
    %v1290 = vrot.slane %v893, 4
    %v1291 = vsel %vm37, %v1290, %v889
    %v1292 = vrot.slane %v889, 4
    %v1293 = vsel %vm37, %v893, %v1292
    %v1295 = vunpack.c.l.s4 1983009808
    %v1296 = vunpack.c.0.s8 %v1295
    %v1297 = vperm.slane %v1291, %v1296
    %v1299 = vunpack.c.l.s4 1983009808
    %v1300 = vunpack.c.0.s8 %v1299
    %v1301 = vperm.slane %v1293, %v1300
    %v1302 = vrot.slane %v1297, 4
    %v1303 = vsel %vm37, %v1302, %v1285
    %v1304 = vrot.slane %v1285, 4
    %v1305 = vsel %vm37, %v1297, %v1304
    %v1307 = vunpack.c.l.s4 1934713408
    %v1308 = vunpack.c.0.s8 %v1307
    %v1309 = vperm.slane %v1303, %v1308
    %v1311 = vunpack.c.l.s4 1934713408
    %v1312 = vunpack.c.0.s8 %v1311
    %v1313 = vperm.slane %v1305, %v1312
    %v1314 = vrot.slane %v1301, 4
    %v1315 = vsel %vm37, %v1314, %v1289
    %v1316 = vrot.slane %v1289, 4
    %v1317 = vsel %vm37, %v1301, %v1316
    %v1319 = vunpack.c.l.s4 1934713408
    %v1320 = vunpack.c.0.s8 %v1319
    %v1321 = vperm.slane %v1315, %v1320
    %v1323 = vunpack.c.l.s4 1934713408
    %v1324 = vunpack.c.0.s8 %v1323
    %v1325 = vperm.slane %v1317, %v1324
    %v1326 = vrot.slane %v1309, 4
    %v1327 = vsel %vm37, 0.0, %v1326
    %v1328 = vrot.slane %v1313, 4
    %v1329 = vsel %vm37, 0.0, %v1328
    %v1330 = vrot.slane %v1321, 4
    %v1331 = vsel %vm37, 0.0, %v1330
    %v1332 = vrot.slane %v1325, 4
    %v1333 = vsel %vm37, 0.0, %v1332
    %v1334 = vrot.slane %v945, 4
    %v1335 = vsel %vm37, %v1334, %v941
    %v1336 = vrot.slane %v941, 4
    %v1337 = vsel %vm37, %v945, %v1336
    %v1339 = vunpack.c.l.s4 1983009808
    %v1340 = vunpack.c.0.s8 %v1339
    %v1341 = vperm.slane %v1335, %v1340
    %v1343 = vunpack.c.l.s4 1983009808
    %v1344 = vunpack.c.0.s8 %v1343
    %v1345 = vperm.slane %v1337, %v1344
    %v1346 = vrot.slane %v947, 4
    %v1347 = vsel %vm37, %v1346, %v943
    %v1348 = vrot.slane %v943, 4
    %v1349 = vsel %vm37, %v947, %v1348
    %v1351 = vunpack.c.l.s4 1983009808
    %v1352 = vunpack.c.0.s8 %v1351
    %v1353 = vperm.slane %v1347, %v1352
    %v1355 = vunpack.c.l.s4 1983009808
    %v1356 = vunpack.c.0.s8 %v1355
    %v1357 = vperm.slane %v1349, %v1356
    %v1358 = vrot.slane %v1353, 4
    %v1359 = vsel %vm37, %v1358, %v1341
    %v1360 = vrot.slane %v1341, 4
    %v1361 = vsel %vm37, %v1353, %v1360
    %v1363 = vunpack.c.l.s4 1934713408
    %v1364 = vunpack.c.0.s8 %v1363
    %v1365 = vperm.slane %v1359, %v1364
    %v1367 = vunpack.c.l.s4 1934713408
    %v1368 = vunpack.c.0.s8 %v1367
    %v1369 = vperm.slane %v1361, %v1368
    %v1370 = vrot.slane %v1357, 4
    %v1371 = vsel %vm37, %v1370, %v1345
    %v1372 = vrot.slane %v1345, 4
    %v1373 = vsel %vm37, %v1357, %v1372
    %v1375 = vunpack.c.l.s4 1934713408
    %v1376 = vunpack.c.0.s8 %v1375
    %v1377 = vperm.slane %v1371, %v1376
    %v1379 = vunpack.c.l.s4 1934713408
    %v1380 = vunpack.c.0.s8 %v1379
    %v1381 = vperm.slane %v1373, %v1380
    %v1382 = vrot.slane %v1365, 4
    %v1383 = vsel %vm37, 0.0, %v1382
    %v1384 = vrot.slane %v1369, 4
    %v1385 = vsel %vm37, 0.0, %v1384
    %v1386 = vrot.slane %v1377, 4
    %v1387 = vsel %vm37, 0.0, %v1386
    %v1388 = vrot.slane %v1381, 4
    %v1389 = vsel %vm37, 0.0, %v1388
    %v1390 = vrot.slane %v999, 4
    %v1391 = vsel %vm37, %v1390, %v995
    %v1392 = vrot.slane %v995, 4
    %v1393 = vsel %vm37, %v999, %v1392
    %v1395 = vunpack.c.l.s4 1983009808
    %v1396 = vunpack.c.0.s8 %v1395
    %v1397 = vperm.slane %v1391, %v1396
    %v1399 = vunpack.c.l.s4 1983009808
    %v1400 = vunpack.c.0.s8 %v1399
    %v1401 = vperm.slane %v1393, %v1400
    %v1402 = vrot.slane %v1001, 4
    %v1403 = vsel %vm37, %v1402, %v997
    %v1404 = vrot.slane %v997, 4
    %v1405 = vsel %vm37, %v1001, %v1404
    %v1407 = vunpack.c.l.s4 1983009808
    %v1408 = vunpack.c.0.s8 %v1407
    %v1409 = vperm.slane %v1403, %v1408
    %v1411 = vunpack.c.l.s4 1983009808
    %v1412 = vunpack.c.0.s8 %v1411
    %v1413 = vperm.slane %v1405, %v1412
    %v1414 = vrot.slane %v1409, 4
    %v1415 = vsel %vm37, %v1414, %v1397
    %v1416 = vrot.slane %v1397, 4
    %v1417 = vsel %vm37, %v1409, %v1416
    %v1419 = vunpack.c.l.s4 1934713408
    %v1420 = vunpack.c.0.s8 %v1419
    %v1421 = vperm.slane %v1415, %v1420
    %v1423 = vunpack.c.l.s4 1934713408
    %v1424 = vunpack.c.0.s8 %v1423
    %v1425 = vperm.slane %v1417, %v1424
    %v1426 = vrot.slane %v1413, 4
    %v1427 = vsel %vm37, %v1426, %v1401
    %v1428 = vrot.slane %v1401, 4
    %v1429 = vsel %vm37, %v1413, %v1428
    %v1431 = vunpack.c.l.s4 1934713408
    %v1432 = vunpack.c.0.s8 %v1431
    %v1433 = vperm.slane %v1427, %v1432
    %v1435 = vunpack.c.l.s4 1934713408
    %v1436 = vunpack.c.0.s8 %v1435
    %v1437 = vperm.slane %v1429, %v1436
    %v1438 = vrot.slane %v1421, 4
    %v1439 = vsel %vm37, 0.0, %v1438
    %v1440 = vrot.slane %v1425, 4
    %v1441 = vsel %vm37, 0.0, %v1440
    %v1442 = vrot.slane %v1433, 4
    %v1443 = vsel %vm37, 0.0, %v1442
    %v1444 = vrot.slane %v1437, 4
    %v1445 = vsel %vm37, 0.0, %v1444
    %v1446 = vrot.slane %v1053, 4
    %v1447 = vsel %vm37, %v1446, %v1049
    %v1448 = vrot.slane %v1049, 4
    %v1449 = vsel %vm37, %v1053, %v1448
    %v1451 = vunpack.c.l.s4 1983009808
    %v1452 = vunpack.c.0.s8 %v1451
    %v1453 = vperm.slane %v1447, %v1452
    %v1455 = vunpack.c.l.s4 1983009808
    %v1456 = vunpack.c.0.s8 %v1455
    %v1457 = vperm.slane %v1449, %v1456
    %v1458 = vrot.slane %v1055, 4
    %v1459 = vsel %vm37, %v1458, %v1051
    %v1460 = vrot.slane %v1051, 4
    %v1461 = vsel %vm37, %v1055, %v1460
    %v1463 = vunpack.c.l.s4 1983009808
    %v1464 = vunpack.c.0.s8 %v1463
    %v1465 = vperm.slane %v1459, %v1464
    %v1467 = vunpack.c.l.s4 1983009808
    %v1468 = vunpack.c.0.s8 %v1467
    %v1469 = vperm.slane %v1461, %v1468
    %v1470 = vrot.slane %v1465, 4
    %v1471 = vsel %vm37, %v1470, %v1453
    %v1472 = vrot.slane %v1453, 4
    %v1473 = vsel %vm37, %v1465, %v1472
    %v1475 = vunpack.c.l.s4 1934713408
    %v1476 = vunpack.c.0.s8 %v1475
    %v1477 = vperm.slane %v1471, %v1476
    %v1479 = vunpack.c.l.s4 1934713408
    %v1480 = vunpack.c.0.s8 %v1479
    %v1481 = vperm.slane %v1473, %v1480
    %v1482 = vrot.slane %v1469, 4
    %v1483 = vsel %vm37, %v1482, %v1457
    %v1484 = vrot.slane %v1457, 4
    %v1485 = vsel %vm37, %v1469, %v1484
    %v1487 = vunpack.c.l.s4 1934713408
    %v1488 = vunpack.c.0.s8 %v1487
    %v1489 = vperm.slane %v1483, %v1488
    %v1491 = vunpack.c.l.s4 1934713408
    %v1492 = vunpack.c.0.s8 %v1491
    %v1493 = vperm.slane %v1485, %v1492
    %v1494 = vrot.slane %v1477, 4
    %v1495 = vsel %vm37, 0.0, %v1494
    %v1496 = vrot.slane %v1481, 4
    %v1497 = vsel %vm37, 0.0, %v1496
    %v1498 = vrot.slane %v1489, 4
    %v1499 = vsel %vm37, 0.0, %v1498
    %v1500 = vrot.slane %v1493, 4
    %v1501 = vsel %vm37, 0.0, %v1500
    %v1502 = vrot.slane %v1107, 4
    %v1503 = vsel %vm37, %v1502, %v1103
    %v1504 = vrot.slane %v1103, 4
    %v1505 = vsel %vm37, %v1107, %v1504
    %v1507 = vunpack.c.l.s4 1983009808
    %v1508 = vunpack.c.0.s8 %v1507
    %v1509 = vperm.slane %v1503, %v1508
    %v1511 = vunpack.c.l.s4 1983009808
    %v1512 = vunpack.c.0.s8 %v1511
    %v1513 = vperm.slane %v1505, %v1512
    %v1514 = vrot.slane %v1109, 4
    %v1515 = vsel %vm37, %v1514, %v1105
    %v1516 = vrot.slane %v1105, 4
    %v1517 = vsel %vm37, %v1109, %v1516
    %v1519 = vunpack.c.l.s4 1983009808
    %v1520 = vunpack.c.0.s8 %v1519
    %v1521 = vperm.slane %v1515, %v1520
    %v1523 = vunpack.c.l.s4 1983009808
    %v1524 = vunpack.c.0.s8 %v1523
    %v1525 = vperm.slane %v1517, %v1524
    %v1526 = vrot.slane %v1521, 4
    %v1527 = vsel %vm37, %v1526, %v1509
    %v1528 = vrot.slane %v1509, 4
    %v1529 = vsel %vm37, %v1521, %v1528
    %v1531 = vunpack.c.l.s4 1934713408
    %v1532 = vunpack.c.0.s8 %v1531
    %v1533 = vperm.slane %v1527, %v1532
    %v1535 = vunpack.c.l.s4 1934713408
    %v1536 = vunpack.c.0.s8 %v1535
    %v1537 = vperm.slane %v1529, %v1536
    %v1538 = vrot.slane %v1525, 4
    %v1539 = vsel %vm37, %v1538, %v1513
    %v1540 = vrot.slane %v1513, 4
    %v1541 = vsel %vm37, %v1525, %v1540
    %v1543 = vunpack.c.l.s4 1934713408
    %v1544 = vunpack.c.0.s8 %v1543
    %v1545 = vperm.slane %v1539, %v1544
    %v1547 = vunpack.c.l.s4 1934713408
    %v1548 = vunpack.c.0.s8 %v1547
    %v1549 = vperm.slane %v1541, %v1548
    %v1550 = vrot.slane %v1533, 4
    %v1551 = vsel %vm37, 0.0, %v1550
    %v1552 = vrot.slane %v1537, 4
    %v1553 = vsel %vm37, 0.0, %v1552
    %v1554 = vrot.slane %v1545, 4
    %v1555 = vsel %vm37, 0.0, %v1554
    %v1556 = vrot.slane %v1549, 4
    %v1557 = vsel %vm37, 0.0, %v1556
    %v1558 = vsel %vm37, %v1160, %v1141
    %v1560 = vunpack.c.l.s4 1983009808
    %v1561 = vunpack.c.0.s8 %v1560
    %v1562 = vperm.slane %v1558, %v1561
    %v1563 = vrot.slane %v1161, 4
    %v1564 = vsel %vm37, %v1563, %v1159
    %v1566 = vunpack.c.l.s4 1983009808
    %v1567 = vunpack.c.0.s8 %v1566
    %v1568 = vperm.slane %v1564, %v1567
    %v1569 = vsel %vm37, %v1164, %v1153
    %v1571 = vunpack.c.l.s4 1983009808
    %v1572 = vunpack.c.0.s8 %v1571
    %v1573 = vperm.slane %v1569, %v1572
    %v1574 = vrot.slane %v1165, 4
    %v1575 = vsel %vm37, %v1574, %v1163
    %v1577 = vunpack.c.l.s4 1983009808
    %v1578 = vunpack.c.0.s8 %v1577
    %v1579 = vperm.slane %v1575, %v1578
    %v1580 = vrot.slane %v1568, 4
    %v1581 = vsel %vm37, %v1580, %v1562
    %v1582 = vrot.slane %v1562, 4
    %v1583 = vsel %vm37, %v1568, %v1582
    %v1585 = vunpack.c.l.s4 1934713408
    %v1586 = vunpack.c.0.s8 %v1585
    %v1587 = vperm.slane %v1581, %v1586
    %v1589 = vunpack.c.l.s4 1934713408
    %v1590 = vunpack.c.0.s8 %v1589
    %v1591 = vperm.slane %v1583, %v1590
    %v1592 = vrot.slane %v1579, 4
    %v1593 = vsel %vm37, %v1592, %v1573
    %v1594 = vrot.slane %v1573, 4
    %v1595 = vsel %vm37, %v1579, %v1594
    %v1597 = vunpack.c.l.s4 1934713408
    %v1598 = vunpack.c.0.s8 %v1597
    %v1599 = vperm.slane %v1593, %v1598
    %v1601 = vunpack.c.l.s4 1934713408
    %v1602 = vunpack.c.0.s8 %v1601
    %v1603 = vperm.slane %v1595, %v1602
    %v1604 = vrot.slane %v1599, 4
    %v1605 = vsel %vm37, %v1604, %v1587
    %v1606 = vrot.slane %v1587, 4
    %v1607 = vsel %vm37, %v1599, %v1606
    %v1608 = vrot.slane %v1603, 4
    %v1609 = vsel %vm37, %v1608, %v1591
    %v1610 = vrot.slane %v1591, 4
    %v1611 = vsel %vm37, %v1603, %v1610
    %v1612 = vsel %vm37, %v1216, %v1197
    %v1614 = vunpack.c.l.s4 1983009808
    %v1615 = vunpack.c.0.s8 %v1614
    %v1616 = vperm.slane %v1612, %v1615
    %v1617 = vrot.slane %v1217, 4
    %v1618 = vsel %vm37, %v1617, %v1215
    %v1620 = vunpack.c.l.s4 1983009808
    %v1621 = vunpack.c.0.s8 %v1620
    %v1622 = vperm.slane %v1618, %v1621
    %v1623 = vsel %vm37, %v1220, %v1209
    %v1625 = vunpack.c.l.s4 1983009808
    %v1626 = vunpack.c.0.s8 %v1625
    %v1627 = vperm.slane %v1623, %v1626
    %v1628 = vrot.slane %v1221, 4
    %v1629 = vsel %vm37, %v1628, %v1219
    %v1631 = vunpack.c.l.s4 1983009808
    %v1632 = vunpack.c.0.s8 %v1631
    %v1633 = vperm.slane %v1629, %v1632
    %v1634 = vrot.slane %v1622, 4
    %v1635 = vsel %vm37, %v1634, %v1616
    %v1636 = vrot.slane %v1616, 4
    %v1637 = vsel %vm37, %v1622, %v1636
    %v1639 = vunpack.c.l.s4 1934713408
    %v1640 = vunpack.c.0.s8 %v1639
    %v1641 = vperm.slane %v1635, %v1640
    %v1643 = vunpack.c.l.s4 1934713408
    %v1644 = vunpack.c.0.s8 %v1643
    %v1645 = vperm.slane %v1637, %v1644
    %v1646 = vrot.slane %v1633, 4
    %v1647 = vsel %vm37, %v1646, %v1627
    %v1648 = vrot.slane %v1627, 4
    %v1649 = vsel %vm37, %v1633, %v1648
    %v1651 = vunpack.c.l.s4 1934713408
    %v1652 = vunpack.c.0.s8 %v1651
    %v1653 = vperm.slane %v1647, %v1652
    %v1655 = vunpack.c.l.s4 1934713408
    %v1656 = vunpack.c.0.s8 %v1655
    %v1657 = vperm.slane %v1649, %v1656
    %v1658 = vrot.slane %v1653, 4
    %v1659 = vsel %vm37, %v1658, %v1641
    %v1660 = vrot.slane %v1641, 4
    %v1661 = vsel %vm37, %v1653, %v1660
    %v1662 = vrot.slane %v1657, 4
    %v1663 = vsel %vm37, %v1662, %v1645
    %v1664 = vrot.slane %v1645, 4
    %v1665 = vsel %vm37, %v1657, %v1664
    %v1666 = vsel %vm37, %v1272, %v1253
    %v1668 = vunpack.c.l.s4 1983009808
    %v1669 = vunpack.c.0.s8 %v1668
    %v1670 = vperm.slane %v1666, %v1669
    %v1671 = vrot.slane %v1273, 4
    %v1672 = vsel %vm37, %v1671, %v1271
    %v1674 = vunpack.c.l.s4 1983009808
    %v1675 = vunpack.c.0.s8 %v1674
    %v1676 = vperm.slane %v1672, %v1675
    %v1677 = vsel %vm37, %v1276, %v1265
    %v1679 = vunpack.c.l.s4 1983009808
    %v1680 = vunpack.c.0.s8 %v1679
    %v1681 = vperm.slane %v1677, %v1680
    %v1682 = vrot.slane %v1277, 4
    %v1683 = vsel %vm37, %v1682, %v1275
    %v1685 = vunpack.c.l.s4 1983009808
    %v1686 = vunpack.c.0.s8 %v1685
    %v1687 = vperm.slane %v1683, %v1686
    %v1688 = vrot.slane %v1676, 4
    %v1689 = vsel %vm37, %v1688, %v1670
    %v1690 = vrot.slane %v1670, 4
    %v1691 = vsel %vm37, %v1676, %v1690
    %v1693 = vunpack.c.l.s4 1934713408
    %v1694 = vunpack.c.0.s8 %v1693
    %v1695 = vperm.slane %v1689, %v1694
    %v1697 = vunpack.c.l.s4 1934713408
    %v1698 = vunpack.c.0.s8 %v1697
    %v1699 = vperm.slane %v1691, %v1698
    %v1700 = vrot.slane %v1687, 4
    %v1701 = vsel %vm37, %v1700, %v1681
    %v1702 = vrot.slane %v1681, 4
    %v1703 = vsel %vm37, %v1687, %v1702
    %v1705 = vunpack.c.l.s4 1934713408
    %v1706 = vunpack.c.0.s8 %v1705
    %v1707 = vperm.slane %v1701, %v1706
    %v1709 = vunpack.c.l.s4 1934713408
    %v1710 = vunpack.c.0.s8 %v1709
    %v1711 = vperm.slane %v1703, %v1710
    %v1712 = vrot.slane %v1707, 4
    %v1713 = vsel %vm37, %v1712, %v1695
    %v1714 = vrot.slane %v1695, 4
    %v1715 = vsel %vm37, %v1707, %v1714
    %v1716 = vrot.slane %v1711, 4
    %v1717 = vsel %vm37, %v1716, %v1699
    %v1718 = vrot.slane %v1699, 4
    %v1719 = vsel %vm37, %v1711, %v1718
    %v1720 = vsel %vm37, %v1328, %v1309
    %v1722 = vunpack.c.l.s4 1983009808
    %v1723 = vunpack.c.0.s8 %v1722
    %v1724 = vperm.slane %v1720, %v1723
    %v1725 = vrot.slane %v1329, 4
    %v1726 = vsel %vm37, %v1725, %v1327
    %v1728 = vunpack.c.l.s4 1983009808
    %v1729 = vunpack.c.0.s8 %v1728
    %v1730 = vperm.slane %v1726, %v1729
    %v1731 = vsel %vm37, %v1332, %v1321
    %v1733 = vunpack.c.l.s4 1983009808
    %v1734 = vunpack.c.0.s8 %v1733
    %v1735 = vperm.slane %v1731, %v1734
    %v1736 = vrot.slane %v1333, 4
    %v1737 = vsel %vm37, %v1736, %v1331
    %v1739 = vunpack.c.l.s4 1983009808
    %v1740 = vunpack.c.0.s8 %v1739
    %v1741 = vperm.slane %v1737, %v1740
    %v1742 = vrot.slane %v1730, 4
    %v1743 = vsel %vm37, %v1742, %v1724
    %v1744 = vrot.slane %v1724, 4
    %v1745 = vsel %vm37, %v1730, %v1744
    %v1747 = vunpack.c.l.s4 1934713408
    %v1748 = vunpack.c.0.s8 %v1747
    %v1749 = vperm.slane %v1743, %v1748
    %v1751 = vunpack.c.l.s4 1934713408
    %v1752 = vunpack.c.0.s8 %v1751
    %v1753 = vperm.slane %v1745, %v1752
    %v1754 = vrot.slane %v1741, 4
    %v1755 = vsel %vm37, %v1754, %v1735
    %v1756 = vrot.slane %v1735, 4
    %v1757 = vsel %vm37, %v1741, %v1756
    %v1759 = vunpack.c.l.s4 1934713408
    %v1760 = vunpack.c.0.s8 %v1759
    %v1761 = vperm.slane %v1755, %v1760
    %v1763 = vunpack.c.l.s4 1934713408
    %v1764 = vunpack.c.0.s8 %v1763
    %v1765 = vperm.slane %v1757, %v1764
    %v1766 = vrot.slane %v1761, 4
    %v1767 = vsel %vm37, %v1766, %v1749
    %v1768 = vrot.slane %v1749, 4
    %v1769 = vsel %vm37, %v1761, %v1768
    %v1770 = vrot.slane %v1765, 4
    %v1771 = vsel %vm37, %v1770, %v1753
    %v1772 = vrot.slane %v1753, 4
    %v1773 = vsel %vm37, %v1765, %v1772
    %v1774 = vsel %vm37, %v1384, %v1365
    %v1776 = vunpack.c.l.s4 1983009808
    %v1777 = vunpack.c.0.s8 %v1776
    %v1778 = vperm.slane %v1774, %v1777
    %v1779 = vrot.slane %v1385, 4
    %v1780 = vsel %vm37, %v1779, %v1383
    %v1782 = vunpack.c.l.s4 1983009808
    %v1783 = vunpack.c.0.s8 %v1782
    %v1784 = vperm.slane %v1780, %v1783
    %v1785 = vsel %vm37, %v1388, %v1377
    %v1787 = vunpack.c.l.s4 1983009808
    %v1788 = vunpack.c.0.s8 %v1787
    %v1789 = vperm.slane %v1785, %v1788
    %v1790 = vrot.slane %v1389, 4
    %v1791 = vsel %vm37, %v1790, %v1387
    %v1793 = vunpack.c.l.s4 1983009808
    %v1794 = vunpack.c.0.s8 %v1793
    %v1795 = vperm.slane %v1791, %v1794
    %v1796 = vrot.slane %v1784, 4
    %v1797 = vsel %vm37, %v1796, %v1778
    %v1798 = vrot.slane %v1778, 4
    %v1799 = vsel %vm37, %v1784, %v1798
    %v1801 = vunpack.c.l.s4 1934713408
    %v1802 = vunpack.c.0.s8 %v1801
    %v1803 = vperm.slane %v1797, %v1802
    %v1805 = vunpack.c.l.s4 1934713408
    %v1806 = vunpack.c.0.s8 %v1805
    %v1807 = vperm.slane %v1799, %v1806
    %v1808 = vrot.slane %v1795, 4
    %v1809 = vsel %vm37, %v1808, %v1789
    %v1810 = vrot.slane %v1789, 4
    %v1811 = vsel %vm37, %v1795, %v1810
    %v1813 = vunpack.c.l.s4 1934713408
    %v1814 = vunpack.c.0.s8 %v1813
    %v1815 = vperm.slane %v1809, %v1814
    %v1817 = vunpack.c.l.s4 1934713408
    %v1818 = vunpack.c.0.s8 %v1817
    %v1819 = vperm.slane %v1811, %v1818
    %v1820 = vrot.slane %v1815, 4
    %v1821 = vsel %vm37, %v1820, %v1803
    %v1822 = vrot.slane %v1803, 4
    %v1823 = vsel %vm37, %v1815, %v1822
    %v1824 = vrot.slane %v1819, 4
    %v1825 = vsel %vm37, %v1824, %v1807
    %v1826 = vrot.slane %v1807, 4
    %v1827 = vsel %vm37, %v1819, %v1826
    %v1828 = vsel %vm37, %v1440, %v1421
    %v1830 = vunpack.c.l.s4 1983009808
    %v1831 = vunpack.c.0.s8 %v1830
    %v1832 = vperm.slane %v1828, %v1831
    %v1833 = vrot.slane %v1441, 4
    %v1834 = vsel %vm37, %v1833, %v1439
    %v1836 = vunpack.c.l.s4 1983009808
    %v1837 = vunpack.c.0.s8 %v1836
    %v1838 = vperm.slane %v1834, %v1837
    %v1839 = vsel %vm37, %v1444, %v1433
    %v1841 = vunpack.c.l.s4 1983009808
    %v1842 = vunpack.c.0.s8 %v1841
    %v1843 = vperm.slane %v1839, %v1842
    %v1844 = vrot.slane %v1445, 4
    %v1845 = vsel %vm37, %v1844, %v1443
    %v1847 = vunpack.c.l.s4 1983009808
    %v1848 = vunpack.c.0.s8 %v1847
    %v1849 = vperm.slane %v1845, %v1848
    %v1850 = vrot.slane %v1838, 4
    %v1851 = vsel %vm37, %v1850, %v1832
    %v1852 = vrot.slane %v1832, 4
    %v1853 = vsel %vm37, %v1838, %v1852
    %v1855 = vunpack.c.l.s4 1934713408
    %v1856 = vunpack.c.0.s8 %v1855
    %v1857 = vperm.slane %v1851, %v1856
    %v1859 = vunpack.c.l.s4 1934713408
    %v1860 = vunpack.c.0.s8 %v1859
    %v1861 = vperm.slane %v1853, %v1860
    %v1862 = vrot.slane %v1849, 4
    %v1863 = vsel %vm37, %v1862, %v1843
    %v1864 = vrot.slane %v1843, 4
    %v1865 = vsel %vm37, %v1849, %v1864
    %v1867 = vunpack.c.l.s4 1934713408
    %v1868 = vunpack.c.0.s8 %v1867
    %v1869 = vperm.slane %v1863, %v1868
    %v1871 = vunpack.c.l.s4 1934713408
    %v1872 = vunpack.c.0.s8 %v1871
    %v1873 = vperm.slane %v1865, %v1872
    %v1874 = vrot.slane %v1869, 4
    %v1875 = vsel %vm37, %v1874, %v1857
    %v1876 = vrot.slane %v1857, 4
    %v1877 = vsel %vm37, %v1869, %v1876
    %v1878 = vrot.slane %v1873, 4
    %v1879 = vsel %vm37, %v1878, %v1861
    %v1880 = vrot.slane %v1861, 4
    %v1881 = vsel %vm37, %v1873, %v1880
    %v1882 = vsel %vm37, %v1496, %v1477
    %v1884 = vunpack.c.l.s4 1983009808
    %v1885 = vunpack.c.0.s8 %v1884
    %v1886 = vperm.slane %v1882, %v1885
    %v1887 = vrot.slane %v1497, 4
    %v1888 = vsel %vm37, %v1887, %v1495
    %v1890 = vunpack.c.l.s4 1983009808
    %v1891 = vunpack.c.0.s8 %v1890
    %v1892 = vperm.slane %v1888, %v1891
    %v1893 = vsel %vm37, %v1500, %v1489
    %v1895 = vunpack.c.l.s4 1983009808
    %v1896 = vunpack.c.0.s8 %v1895
    %v1897 = vperm.slane %v1893, %v1896
    %v1898 = vrot.slane %v1501, 4
    %v1899 = vsel %vm37, %v1898, %v1499
    %v1901 = vunpack.c.l.s4 1983009808
    %v1902 = vunpack.c.0.s8 %v1901
    %v1903 = vperm.slane %v1899, %v1902
    %v1904 = vrot.slane %v1892, 4
    %v1905 = vsel %vm37, %v1904, %v1886
    %v1906 = vrot.slane %v1886, 4
    %v1907 = vsel %vm37, %v1892, %v1906
    %v1909 = vunpack.c.l.s4 1934713408
    %v1910 = vunpack.c.0.s8 %v1909
    %v1911 = vperm.slane %v1905, %v1910
    %v1913 = vunpack.c.l.s4 1934713408
    %v1914 = vunpack.c.0.s8 %v1913
    %v1915 = vperm.slane %v1907, %v1914
    %v1916 = vrot.slane %v1903, 4
    %v1917 = vsel %vm37, %v1916, %v1897
    %v1918 = vrot.slane %v1897, 4
    %v1919 = vsel %vm37, %v1903, %v1918
    %v1921 = vunpack.c.l.s4 1934713408
    %v1922 = vunpack.c.0.s8 %v1921
    %v1923 = vperm.slane %v1917, %v1922
    %v1925 = vunpack.c.l.s4 1934713408
    %v1926 = vunpack.c.0.s8 %v1925
    %v1927 = vperm.slane %v1919, %v1926
    %v1928 = vrot.slane %v1923, 4
    %v1929 = vsel %vm37, %v1928, %v1911
    %v1930 = vrot.slane %v1911, 4
    %v1931 = vsel %vm37, %v1923, %v1930
    %v1932 = vrot.slane %v1927, 4
    %v1933 = vsel %vm37, %v1932, %v1915
    %v1934 = vrot.slane %v1915, 4
    %v1935 = vsel %vm37, %v1927, %v1934
    %v1936 = vsel %vm37, %v1552, %v1533
    %v1938 = vunpack.c.l.s4 1983009808
    %v1939 = vunpack.c.0.s8 %v1938
    %v1940 = vperm.slane %v1936, %v1939
    %v1941 = vrot.slane %v1553, 4
    %v1942 = vsel %vm37, %v1941, %v1551
    %v1944 = vunpack.c.l.s4 1983009808
    %v1945 = vunpack.c.0.s8 %v1944
    %v1946 = vperm.slane %v1942, %v1945
    %v1947 = vsel %vm37, %v1556, %v1545
    %v1949 = vunpack.c.l.s4 1983009808
    %v1950 = vunpack.c.0.s8 %v1949
    %v1951 = vperm.slane %v1947, %v1950
    %v1952 = vrot.slane %v1557, 4
    %v1953 = vsel %vm37, %v1952, %v1555
    %v1955 = vunpack.c.l.s4 1983009808
    %v1956 = vunpack.c.0.s8 %v1955
    %v1957 = vperm.slane %v1953, %v1956
    %v1958 = vrot.slane %v1946, 4
    %v1959 = vsel %vm37, %v1958, %v1940
    %v1960 = vrot.slane %v1940, 4
    %v1961 = vsel %vm37, %v1946, %v1960
    %v1963 = vunpack.c.l.s4 1934713408
    %v1964 = vunpack.c.0.s8 %v1963
    %v1965 = vperm.slane %v1959, %v1964
    %v1967 = vunpack.c.l.s4 1934713408
    %v1968 = vunpack.c.0.s8 %v1967
    %v1969 = vperm.slane %v1961, %v1968
    %v1970 = vrot.slane %v1957, 4
    %v1971 = vsel %vm37, %v1970, %v1951
    %v1972 = vrot.slane %v1951, 4
    %v1973 = vsel %vm37, %v1957, %v1972
    %v1975 = vunpack.c.l.s4 1934713408
    %v1976 = vunpack.c.0.s8 %v1975
    %v1977 = vperm.slane %v1971, %v1976
    %v1979 = vunpack.c.l.s4 1934713408
    %v1980 = vunpack.c.0.s8 %v1979
    %v1981 = vperm.slane %v1973, %v1980
    %v1982 = vrot.slane %v1977, 4
    %v1983 = vsel %vm37, %v1982, %v1965
    %v1984 = vrot.slane %v1965, 4
    %v1985 = vsel %vm37, %v1977, %v1984
    %v1986 = vrot.slane %v1981, 4
    %v1987 = vsel %vm37, %v1986, %v1969
    %v1988 = vrot.slane %v1969, 4
    %v1989 = vsel %vm37, %v1981, %v1988
    %1998 = vrot.lane.b32.xlu0 %v1607, 8
    %v1999 = vpop.permute.xlu0 %1998
    %2000 = vrot.lane.b32.xlu0 %v1661, 8
    %v2001 = vpop.permute.xlu0 %2000
    %2002 = vrot.lane.b32.xlu0 %v1715, 8
    %v2003 = vpop.permute.xlu0 %2002
    %2004 = vrot.lane.b32.xlu0 %v1769, 8
    %v2005 = vpop.permute.xlu0 %2004
    %2006 = vrot.lane.b32.xlu0 %v1823, 8
    %v2007 = vpop.permute.xlu0 %2006
    %2008 = vrot.lane.b32.xlu0 %v1877, 8
    %v2009 = vpop.permute.xlu0 %2008
    %2010 = vrot.lane.b32.xlu0 %v1931, 8
    %v2011 = vpop.permute.xlu0 %2010
    %2012 = vrot.lane.b32.xlu0 %v1985, 8
    %v2013 = vpop.permute.xlu0 %2012
    %2030 = vrot.lane.b32.xlu0 %v1609, 16
    %v2031 = vpop.permute.xlu0 %2030
    %2032 = vrot.lane.b32.xlu0 %v1663, 16
    %v2033 = vpop.permute.xlu0 %2032
    %2034 = vrot.lane.b32.xlu0 %v1717, 16
    %v2035 = vpop.permute.xlu0 %2034
    %2036 = vrot.lane.b32.xlu0 %v1771, 16
    %v2037 = vpop.permute.xlu0 %2036
    %2038 = vrot.lane.b32.xlu0 %v1825, 16
    %v2039 = vpop.permute.xlu0 %2038
    %2040 = vrot.lane.b32.xlu0 %v1879, 16
    %v2041 = vpop.permute.xlu0 %2040
    %2042 = vrot.lane.b32.xlu0 %v1933, 16
    %v2043 = vpop.permute.xlu0 %2042
    %2044 = vrot.lane.b32.xlu0 %v1987, 16
    %v2045 = vpop.permute.xlu0 %2044
    %2062 = vrot.lane.b32.xlu0 %v1611, 24
    %v2063 = vpop.permute.xlu0 %2062
    %2064 = vrot.lane.b32.xlu0 %v1665, 24
    %v2065 = vpop.permute.xlu0 %2064
    %2066 = vrot.lane.b32.xlu0 %v1719, 24
    %v2067 = vpop.permute.xlu0 %2066
    %2068 = vrot.lane.b32.xlu0 %v1773, 24
    %v2069 = vpop.permute.xlu0 %2068
    %2070 = vrot.lane.b32.xlu0 %v1827, 24
    %v2071 = vpop.permute.xlu0 %2070
    %2072 = vrot.lane.b32.xlu0 %v1881, 24
    %v2073 = vpop.permute.xlu0 %2072
    %2074 = vrot.lane.b32.xlu0 %v1935, 24
    %v2075 = vpop.permute.xlu0 %2074
    %2076 = vrot.lane.b32.xlu0 %v1989, 24
    %v2077 = vpop.permute.xlu0 %2076
    %vm2086 = vcmask 64512
    %v2087 = vsel %vm2086, %v1605, %v1999
    %v2088 = vsel %vm2086, %v1659, %v2001
    %v2089 = vsel %vm2086, %v1713, %v2003
    %v2090 = vsel %vm2086, %v1767, %v2005
    %v2091 = vsel %vm2086, %v1821, %v2007
    %v2092 = vsel %vm2086, %v1875, %v2009
    %v2093 = vsel %vm2086, %v1929, %v2011
    %v2094 = vsel %vm2086, %v1983, %v2013
    %vm2095 = vcmask 130048
    %v2096 = vsel %vm2095, %v2087, %v2031
    %v2097 = vsel %vm2095, %v2088, %v2033
    %v2098 = vsel %vm2095, %v2089, %v2035
    %v2099 = vsel %vm2095, %v2090, %v2037
    %v2100 = vsel %vm2095, %v2091, %v2039
    %v2101 = vsel %vm2095, %v2092, %v2041
    %v2102 = vsel %vm2095, %v2093, %v2043
    %v2103 = vsel %vm2095, %v2094, %v2045
    %vm2104 = vcmask 195584
    %v2105 = vsel %vm2104, %v2096, %v2063
    %v2106 = vsel %vm2104, %v2097, %v2065
    %v2107 = vsel %vm2104, %v2098, %v2067
    %v2108 = vsel %vm2104, %v2099, %v2069
    %v2109 = vsel %vm2104, %v2100, %v2071
    %v2110 = vsel %vm2104, %v2101, %v2073
    %v2111 = vsel %vm2104, %v2102, %v2075
    %v2112 = vsel %vm2104, %v2103, %v2077
    %2113 = vst.msk [vmem:[#allocation6] sm:$0xff] %vm149, %v2105
    %2114 = vst.msk [vmem:[#allocation6 + $0x8] sm:$0xff] %vm149, %v2106
    %2115 = vst.msk [vmem:[#allocation6 + $0x10] sm:$0xff] %vm149, %v2107
    %2116 = vst.msk [vmem:[#allocation6 + $0x18] sm:$0xff] %vm149, %v2108
    %2117 = vst.msk [vmem:[#allocation6 + $0x20] sm:$0xff] %vm149, %v2109
    %2118 = vst.msk [vmem:[#allocation6 + $0x28] sm:$0xff] %vm149, %v2110
    %2119 = vst.msk [vmem:[#allocation6 + $0x30] sm:$0xff] %vm149, %v2111
    %2120 = vst.msk [vmem:[#allocation6 + $0x38] sm:$0xff] %vm149, %v2112
    // Predicated region
    $region10: #{tpu_custom_call.1} parent=1 // pred_check
      _
    $region11: #{tpu_custom_call.1} parent=1 // pred_check_branch
      %2122 = sbr.rel (0) target = $region13
    $region12: #{tpu_custom_call.1} parent=1 // pred_region
      %2124 = vsyncadd [#allocation4], 0
      %s2125 = sshll.u32 [#allocation5], 4
      %s2126 = int_to_ptr.vmem [resolvable:$true] %s2125
      %s2127 = sshll.u32 %s1, 4
      %s2128 = int_to_ptr.hbm [resolvable:$true] %s2127
      %2133 = dma.vmem_to_hbm [thread:$0]  %s2126, 1024, %s2128, [#allocation4], 128, 128, 8
    $region13: #{tpu_custom_call.1} parent=1 // pred_fallthru
      _
    // Predicated region
    $region14: #{tpu_custom_call.1} parent=1 // pred_check
      _
    $region15: #{tpu_custom_call.1} parent=1 // pred_check_branch
      %2135 = sbr.rel (0) target = $region17
    $region16: #{tpu_custom_call.1} parent=1 // pred_region
      %2137 = vsyncadd [#allocation7], 0
      %s2138 = sshll.u32 [#allocation6], 4
      %s2139 = int_to_ptr.vmem [resolvable:$true] %s2138
      %s2140 = sshll.u32 %s2, 4
      %s2141 = int_to_ptr.hbm [resolvable:$true] %s2140
      %2146 = dma.vmem_to_hbm [thread:$0]  %s2139, 1024, %s2141, [#allocation7], 128, 128, 8
    $region17: #{tpu_custom_call.1} parent=1 // pred_fallthru
      _
    // Predicated region
    $region18: #{tpu_custom_call.1} parent=1 // pred_check
      _
    $region19: #{tpu_custom_call.1} parent=1 // pred_check_branch
      %2148 = sbr.rel (0) target = $region21
    $region20: #{tpu_custom_call.1} parent=1 // pred_region
      %2150 = dma.done [#allocation4], 1024
    $region21: #{tpu_custom_call.1} parent=1 // pred_fallthru
      _
    // Predicated region
    $region22: #{tpu_custom_call.1} parent=1 // pred_check
      _
    $region23: #{tpu_custom_call.1} parent=1 // pred_check_branch
      %2152 = sbr.rel (0) target = $region25
    $region24: #{tpu_custom_call.1} parent=1 // pred_region
      %2154 = dma.done [#allocation7], 1024
    $region25: #{tpu_custom_call.1} parent=1 // pred_fallthru
      _
    %2155 = vsyncpa [#allocation3], 1
    %2156 = vsyncpa [#allocation4], 1
    %2157 = vsyncpa [#allocation7], 1

// kernel: tpu_custom_call.1
$region0: #{tpu_custom_call.1}
  #allocation0 [shape = 'u32[]', space=smem, size = 0x4, offset = 0x4, fixed_abs, tag = 'smem constant byte address 0x4 - core index']
  #allocation1 [shape = 'u32[72,128]{1,0:T(1,128)}', space=vmem, size = 0x9000, scoped, tag = 'internal scratch']
  %s0 = inlined_call_operand.hbm [shape: f32[8,128], index: 0, kind: input, shape index: {}]
  %s1 = inlined_call_operand.hbm [shape: f32[8,128], index: 1, kind: output, shape index: {}]
  %s2 = sld [smem:[#allocation0]]
  $region41: #{tpu_custom_call.1} parent=0
    _
  %s4 = ssub.s32 1, %s2
  %s5 = scalar_select 0, %s4, %s2
  $region1: #{tpu_custom_call.1} parent=0
    #allocation2 [shape = 'u8[4096]{0}', space=vmem, size = 0x1000, scoped, tag = 'input window, operand 0, single buffered']
    #allocation3 [shape = 's32[2]{0}', space=sflag, size = 0x8, scoped, tag = 'scoped memory for tpu_custom_call.1']
    #allocation4 [shape = 's32[2]{0}', space=sflag, size = 0x8, scoped, tag = 'scoped memory for tpu_custom_call.1']
    #allocation5 [shape = 'u8[4096]{0}', space=vmem, size = 0x1000, scoped, tag = 'output window, operand 0, single buffered']
    %6 = vsyncpa [#allocation3], 0
    %7 = vsyncpa [#allocation4], 0
    loop: start=0, step=1, limit=4
    $region2: #{tpu_custom_call.1} parent=1 // loop_pre_header
      _
    $region3: #{tpu_custom_call.1} parent=1 // loop_header
      %s9 = sphi 0, %s13
      %p10 = scmp.ge.s32.totalorder %s9, 4
      %s17 = sphi 0, %s17
      %s19 = sphi 0, %s17
      %s20 = sphi 0, %s19
      %s34 = sphi 0, %s20
      %s38 = sphi 0, %s38
      %s40 = sphi 0, %s38
      %s41 = sphi 0, %s40
      %s55 = sphi 0, %s41
    $region4: #{tpu_custom_call.1} parent=1 // loop_header_branch
      %12 = sbr.rel (%p10) target = $region8
    $region5: #{tpu_custom_call.1} parent=1 // loop_body
      %s14 = ssub.s32 %s9, 1
      %s15 = ssub.s32 %s9, 2
      %s16 = sadd.s32 %s9, 1
      %s18 = sadd.s32 %s17, 1
      %p21 = scmp.eq.s32.totalorder %s9, 1
      %p22 = scmp.ne.s32.totalorder %s17, %s19
      %p23 = scmp.eq.s32.totalorder %s9, 0
      %p24 = por %p22, %p23
      %p25 = scmp.ne.s32.totalorder %s17, %s19
      %p26 = scmp.eq.s32.totalorder %s14, 1
      %p27 = por %p25, %p26
      %p28 = scmp.ne.s32.totalorder %s19, %s20
      %p29 = scmp.eq.s32.totalorder %s14, 0
      %p30 = por %p28, %p29
      %p31 = scmp.ne.s32.totalorder %s19, %s20
      %p32 = scmp.eq.s32.totalorder %s15, 1
      %p33 = por %p31, %p32
      %p35 = scmp.ne.s32.totalorder %s20, %s34
      %p36 = scmp.eq.s32.totalorder %s15, 0
      %p37 = por %p35, %p36
      %s39 = sadd.s32 %s38, 1
      %p42 = scmp.eq.s32.totalorder %s9, 1
      %p43 = scmp.ne.s32.totalorder %s38, %s40
      %p44 = scmp.eq.s32.totalorder %s9, 0
      %p45 = por %p43, %p44
      %p46 = scmp.ne.s32.totalorder %s38, %s40
      %p47 = scmp.eq.s32.totalorder %s14, 1
      %p48 = por %p46, %p47
      %p49 = scmp.ne.s32.totalorder %s40, %s41
      %p50 = scmp.eq.s32.totalorder %s14, 0
      %p51 = por %p49, %p50
      %p52 = scmp.ne.s32.totalorder %s40, %s41
      %p53 = scmp.eq.s32.totalorder %s15, 1
      %p54 = por %p52, %p53
      %p56 = scmp.ne.s32.totalorder %s41, %s55
      %p57 = scmp.eq.s32.totalorder %s15, 0
      %p58 = por %p56, %p57
      %p59 = scmp.le.s32.totalorder 1, %s9
      %p60 = scmp.lt.s32.totalorder %s9, 3
      %p61 = pnand %p59, %p60
      %p62 = pneg %p61
      // Predicated region
      $region9: #{tpu_custom_call.1} parent=5 // pred_check
        _
      $region10: #{tpu_custom_call.1} parent=5 // pred_check_branch
        %64 = sbr.rel (%p61) target = $region12
      $region11: #{tpu_custom_call.1} parent=5 // pred_region
        %s65 = ssub.s32 %s9, 1
        // Predicated region
        $region13: #{tpu_custom_call.1} parent=11 // pred_check
          %p66 = pneg %p30
        $region14: #{tpu_custom_call.1} parent=11 // pred_check_branch
          %68 = sbr.rel (%p66) target = $region16
        $region15: #{tpu_custom_call.1} parent=11 // pred_region
          %70 = vsyncadd [#allocation3], 0
          %s72 = sshll.u32 %s0, 4
          %s73 = int_to_ptr.hbm [resolvable:$true] %s72
          %s74 = sshll.u32 [#allocation2], 4
          %s75 = int_to_ptr.vmem [resolvable:$true] %s74
          %77 = dma.hbm_to_vmem [thread:$0]  %s73, 128, %s75, [#allocation3]
        $region16: #{tpu_custom_call.1} parent=11 // pred_fallthru
          _
      $region12: #{tpu_custom_call.1} parent=5 // pred_fallthru
        _
      %p78 = scmp.lt.s32.totalorder %s9, 2
      // Predicated region
      $region17: #{tpu_custom_call.1} parent=5 // pred_check
        %p79 = pneg %p78
      $region18: #{tpu_custom_call.1} parent=5 // pred_check_branch
        %81 = sbr.rel (%p79) target = $region20
      $region19: #{tpu_custom_call.1} parent=5 // pred_region
        _
      $region20: #{tpu_custom_call.1} parent=5 // pred_fallthru
        _
      %p82 = scmp.le.s32.totalorder 1, %s9
      %p83 = scmp.lt.s32.totalorder %s9, 3
      %p84 = pnand %p82, %p83
      %p85 = pneg %p84
      // Predicated region
      $region21: #{tpu_custom_call.1} parent=5 // pred_check
        _
      $region22: #{tpu_custom_call.1} parent=5 // pred_check_branch
        %87 = sbr.rel (%p84) target = $region24
      $region23: #{tpu_custom_call.1} parent=5 // pred_region
        %s88 = ssub.s32 %s9, 1
        // Predicated region
        $region25: #{tpu_custom_call.1} parent=23 // pred_check
          %p89 = pneg %p30
        $region26: #{tpu_custom_call.1} parent=23 // pred_check_branch
          %91 = sbr.rel (%p89) target = $region28
        $region27: #{tpu_custom_call.1} parent=23 // pred_region
          %93 = dma.done [#allocation3], 128
        $region28: #{tpu_custom_call.1} parent=23 // pred_fallthru
          _
        %p94 = pneg %p30
        %p95 = pneg %p27
        %p96 = pneg %p51
        %p97 = pneg %p48
        %v98 = vld [vmem:[#allocation2] sm:$0xff]
        %v99 = vadd.f32 %v98, 1.0
        %100 = vst [vmem:[#allocation5] sm:$0xff] %v99
        // Predicated region
        $region29: #{tpu_custom_call.1} parent=23 // pred_check
          %p101 = pneg %p48
        $region30: #{tpu_custom_call.1} parent=23 // pred_check_branch
          %103 = sbr.rel (%p101) target = $region32
        $region31: #{tpu_custom_call.1} parent=23 // pred_region
          %105 = vsyncadd [#allocation4], 0
          %s107 = sshll.u32 [#allocation5], 4
          %s108 = int_to_ptr.vmem [resolvable:$true] %s107
          %s109 = sshll.u32 %s1, 4
          %s110 = int_to_ptr.hbm [resolvable:$true] %s109
          %112 = dma.vmem_to_hbm [thread:$0]  %s108, 128, %s110, [#allocation4]
        $region32: #{tpu_custom_call.1} parent=23 // pred_fallthru
          _
        // Predicated region
        $region33: #{tpu_custom_call.1} parent=23 // pred_check
          %p113 = pneg %p48
        $region34: #{tpu_custom_call.1} parent=23 // pred_check_branch
          %115 = sbr.rel (%p113) target = $region36
        $region35: #{tpu_custom_call.1} parent=23 // pred_region
          %117 = dma.done [#allocation4], 128
        $region36: #{tpu_custom_call.1} parent=23 // pred_fallthru
          _
      $region24: #{tpu_custom_call.1} parent=5 // pred_fallthru
        _
      %p118 = scmp.le.s32.totalorder 2, %s9
      // Predicated region
      $region37: #{tpu_custom_call.1} parent=5 // pred_check
        %p119 = pneg %p118
      $region38: #{tpu_custom_call.1} parent=5 // pred_check_branch
        %121 = sbr.rel (%p119) target = $region40
      $region39: #{tpu_custom_call.1} parent=5 // pred_region
        %s122 = ssub.s32 %s9, 2
      $region40: #{tpu_custom_call.1} parent=5 // pred_fallthru
        _
    $region6: #{tpu_custom_call.1} parent=1 // loop_footer
      %s13 = sadd.s32 1, %s9
    $region7: #{tpu_custom_call.1} parent=1 // loop_footer_branch
      %8 = sbr.rel target = $region3
    $region8: #{tpu_custom_call.1} parent=1 // loop_exit
      _
    %123 = vsyncpa [#allocation3], 1
    %s124 = scalar_lea.sflag [#allocation3], 1
    %125 = vsyncpa %s124, 1
    %126 = vsyncpa [#allocation4], 1
    %s127 = scalar_lea.sflag [#allocation4], 1
    %128 = vsyncpa %s127, 1

// kernel: flav_block.10
$region0: #{flav_block.10}
  #allocation0 [shape = 'u32[]', space=smem, size = 0x4, offset = 0x4, fixed_abs, tag = 'smem constant byte address 0x4 - core index']
  #allocation1 [shape = 'u32[72,128]{1,0:T(1,128)}', space=vmem, size = 0x9000, scoped, tag = 'internal scratch']
  %s0 = inlined_call_operand.hbm [shape: f32[8,32], index: 0, kind: input, shape index: {}]
  %s1 = inlined_call_operand.hbm [shape: bf16[32,96], index: 1, kind: input, shape index: {}]
  %s2 = inlined_call_operand.hbm [shape: f32[1,96], index: 2, kind: input, shape index: {}]
  %s3 = inlined_call_operand.vmem [shape: f32[8,96], index: 3, kind: output, shape index: {}]
  %s4 = sld [smem:[#allocation0]]
  $region34: #{flav_block.10} parent=0
    _
  %s6 = ssub.s32 1, %s4
  %s7 = scalar_select 0, %s6, %s4
  $region1: #{flav_block.10} parent=0
    #allocation2 [shape = 'u8[4096]{0}', space=vmem, size = 0x1000, scoped, tag = 'input window, operand 0, single buffered']
    #allocation3 [shape = 's32[1]{0}', space=sflag, size = 0x4, scoped, tag = 'scoped memory for flav_block.10']
    #allocation4 [shape = 'u8[8192]{0}', space=vmem, size = 0x2000, scoped, tag = 'input window, operand 1, single buffered']
    #allocation5 [shape = 's32[1]{0}', space=sflag, size = 0x4, scoped, tag = 'scoped memory for flav_block.10']
    #allocation6 [shape = 'u8[512]{0}', space=vmem, size = 0x400, scoped, tag = 'input window, operand 2, single buffered']
    %8 = vsyncpa [#allocation3], 0
    %9 = vsyncpa [#allocation5], 0
    // Predicated region
    $region2: #{flav_block.10} parent=1 // pred_check
      _
    $region3: #{flav_block.10} parent=1 // pred_check_branch
      %11 = sbr.rel (0) target = $region5
    $region4: #{flav_block.10} parent=1 // pred_region
      %13 = vsyncadd [#allocation3], 0
      %s15 = sshll.u32 %s0, 4
      %s16 = int_to_ptr.hbm [resolvable:$true] %s15
      %s17 = sshll.u32 [#allocation2], 4
      %s18 = int_to_ptr.vmem [resolvable:$true] %s17
      %20 = dma.hbm_to_vmem [thread:$0]  %s16, 128, %s18, [#allocation3]
    $region5: #{flav_block.10} parent=1 // pred_fallthru
      _
    // Predicated region
    $region6: #{flav_block.10} parent=1 // pred_check
      _
    $region7: #{flav_block.10} parent=1 // pred_check_branch
      %22 = sbr.rel (0) target = $region9
    $region8: #{flav_block.10} parent=1 // pred_region
      %24 = vsyncadd [#allocation5], 0
      %s25 = sshll.u32 %s1, 4
      %s26 = int_to_ptr.hbm [resolvable:$true] %s25
      %s27 = sshll.u32 [#allocation4], 4
      %s28 = int_to_ptr.vmem [resolvable:$true] %s27
      %33 = dma.hbm_to_vmem [thread:$0]  %s26, 256, %s28, [#allocation5], 64, 64, 4
    $region9: #{flav_block.10} parent=1 // pred_fallthru
      _
    // Predicated region
    $region10: #{flav_block.10} parent=1 // pred_check
      _
    $region11: #{flav_block.10} parent=1 // pred_check_branch
      %35 = sbr.rel (0) target = $region13
    $region12: #{flav_block.10} parent=1 // pred_region
      %37 = vsyncadd [#allocation5], 0
      %s39 = sshll.u32 %s2, 4
      %s40 = int_to_ptr.hbm [resolvable:$true] %s39
      %s41 = sshll.u32 [#allocation6], 4
      %s42 = int_to_ptr.vmem [resolvable:$true] %s41
      %44 = dma.hbm_to_vmem [thread:$0]  %s40, 16, %s42, [#allocation5]
    $region13: #{flav_block.10} parent=1 // pred_fallthru
      _
    // Predicated region
    $region14: #{flav_block.10} parent=1 // pred_check
      _
    $region15: #{flav_block.10} parent=1 // pred_check_branch
      %46 = sbr.rel (0) target = $region17
    $region16: #{flav_block.10} parent=1 // pred_region
      %48 = dma.done [#allocation3], 128
    $region17: #{flav_block.10} parent=1 // pred_fallthru
      _
    // Predicated region
    $region18: #{flav_block.10} parent=1 // pred_check
      _
    $region19: #{flav_block.10} parent=1 // pred_check_branch
      %50 = sbr.rel (0) target = $region21
    $region20: #{flav_block.10} parent=1 // pred_region
      %52 = dma.done [#allocation5], 256
    $region21: #{flav_block.10} parent=1 // pred_fallthru
      _
    // Predicated region
    $region22: #{flav_block.10} parent=1 // pred_check
      _
    $region23: #{flav_block.10} parent=1 // pred_check_branch
      %54 = sbr.rel (0) target = $region25
    $region24: #{flav_block.10} parent=1 // pred_region
      %56 = dma.done [#allocation5], 16
    $region25: #{flav_block.10} parent=1 // pred_fallthru
      _
    %v58 = vld [vmem:[#allocation2] sm:$0xff]
    %v59 = vxor.u32 %v58, 2147483648
    %v60 = vmul.f32 %v59, 1.442695
    %v61 = vpow.pop %v60
    %v62 = vadd.f32 %v61, 1.0
    %v63 = vrcp.pop %v62
    %v64 = vmul.f32 %v62, %v63
    %v65 = vsub.f32 1.0, %v64
    %v66 = vmul.f32 %v63, %v65
    %v67 = vadd.f32 %v63, %v66
    %vm68 = vweird.f32 %v62
    %vm69 = vweird.f32 %v63
    %vm70 = vmor %vm68, %vm69
    %v71 = vsel %vm70, %v63, %v67
    %v72 = vand.u32 2147483647, %v62
    %vm73 = vcmp.eq.f32.partialorder %v72, 8.507059e+37
    %v74 = vand.u32 %v62, 2147483648
    %v75 = vor.u32 1.1754944e-38, %v74
    %v76 = vsel %vm73, %v75, %v71
    %v77 = vmul.f32 1.0, %v76
    %v78 = vmul.f32 %v58, %v77
    %v79 = vld [vmem:[#allocation4] sm:$0xf]
    %v80 = vld [vmem:[#allocation4 + $0x4] sm:$0xf]
    %v81 = vld [vmem:[#allocation4 + $0x8] sm:$0xf]
    %v82 = vld [vmem:[#allocation4 + $0xc] sm:$0xf]
    %v83 = vld [vmem:[#allocation6] sm:$0x1]
    %v84 = vpack.c.bf16 %v78, %v78
    %v86 = vperm.slane %v83, 0
    %v92 = vunpack.c.l.b16 %v79
    %v93 = vunpack.c.l.b16 %v80
    %v94 = vunpack.c.l.b16 %v81
    %v95 = vunpack.c.l.b16 %v82
    %v96 = vpack.c.b16 %v93, %v92
    %v97 = vpack.c.b16 %v95, %v94
    %vm100 = vcmask 261120
    %v102 = vsel %vm100, %v84, 0
    %104 = vmatpush.bf16.msra.mxu0 0
    %105 = vmatpush.bf16.msra.mxu0 0
    %106 = vmatpush.bf16.msra.mxu0 0
    %107 = vmatpush.bf16.msra.mxu0 0
    %108 = vmatpush.bf16.msra.mxu0 0
    %109 = vmatpush.bf16.msra.mxu0 0
    %110 = vmatpush.bf16.msra.mxu0 %v97
    %111 = vmatpush.bf16.msra.mxu0 %v96
    %112 = vmatmul.bf16.gmra.mxu0 %v102
    %v113 = vpop.f32.mrf.mxu0
    %v114 = vadd.f32 %v86, %v113
    %v115 = vpop.f32.mrf.mxu0
    %116 = vdwg.mxu0
    %vm117 = vcmask 785408
    %118 = vst.msk [vmem:[%s3] sm:$0xff] %vm117, %v114
    // Predicated region
    $region26: #{flav_block.10} parent=1 // pred_check
      _
    $region27: #{flav_block.10} parent=1 // pred_check_branch
      %120 = sbr.rel (0) target = $region29
    $region28: #{flav_block.10} parent=1 // pred_region
      _
    $region29: #{flav_block.10} parent=1 // pred_fallthru
      _
    // Predicated region
    $region30: #{flav_block.10} parent=1 // pred_check
      _
    $region31: #{flav_block.10} parent=1 // pred_check_branch
      %122 = sbr.rel (0) target = $region33
    $region32: #{flav_block.10} parent=1 // pred_region
      _
    $region33: #{flav_block.10} parent=1 // pred_fallthru
      _
    %123 = vsyncpa [#allocation3], 1
    %124 = vsyncpa [#allocation5], 1

// kernel: flav_block.14
$region0: #{flav_block.14}
  #allocation0 [shape = 'u32[]', space=smem, size = 0x4, offset = 0x4, fixed_abs, tag = 'smem constant byte address 0x4 - core index']
  #allocation1 [shape = 'u32[72,128]{1,0:T(1,128)}', space=vmem, size = 0x9000, scoped, tag = 'internal scratch']
  %s0 = inlined_call_operand.vmem [shape: f32[8,32], index: 0, kind: input, shape index: {}]
  %s1 = inlined_call_operand.hbm [shape: f32[8,32], index: 1, kind: input, shape index: {}]
  %s2 = inlined_call_operand.hbm [shape: bf16[32,32], index: 2, kind: input, shape index: {}]
  %s3 = inlined_call_operand.vmem [shape: f32[1,32], index: 3, kind: input, shape index: {}]
  %s4 = inlined_call_operand.vmem [shape: bf16[32,96], index: 4, kind: input, shape index: {}]
  %s5 = inlined_call_operand.vmem [shape: f32[1,96], index: 5, kind: input, shape index: {}]
  %s6 = inlined_call_operand.vmem [shape: f32[8,96], index: 6, kind: output, shape index: {}]
  %s7 = sld [smem:[#allocation0]]
  $region42: #{flav_block.14} parent=0
    _
  %s9 = ssub.s32 1, %s7
  %s10 = scalar_select 0, %s9, %s7
  $region1: #{flav_block.14} parent=0
    #allocation2 [shape = 'u8[4096]{0}', space=vmem, size = 0x1000, scoped, tag = 'input window, operand 1, single buffered']
    #allocation3 [shape = 's32[1]{0}', space=sflag, size = 0x4, scoped, tag = 'scoped memory for flav_block.14']
    #allocation4 [shape = 'u8[8192]{0}', space=vmem, size = 0x2000, scoped, tag = 'input window, operand 2, single buffered']
    #allocation5 [shape = 's32[1]{0}', space=sflag, size = 0x4, scoped, tag = 'scoped memory for flav_block.14']
    %11 = vsyncpa [#allocation3], 0
    %12 = vsyncpa [#allocation5], 0
    // Predicated region
    $region2: #{flav_block.14} parent=1 // pred_check
      _
    $region3: #{flav_block.14} parent=1 // pred_check_branch
      %14 = sbr.rel (0) target = $region5
    $region4: #{flav_block.14} parent=1 // pred_region
      _
    $region5: #{flav_block.14} parent=1 // pred_fallthru
      _
    // Predicated region
    $region6: #{flav_block.14} parent=1 // pred_check
      _
    $region7: #{flav_block.14} parent=1 // pred_check_branch
      %16 = sbr.rel (0) target = $region9
    $region8: #{flav_block.14} parent=1 // pred_region
      %18 = vsyncadd [#allocation3], 0
      %s20 = sshll.u32 %s1, 4
      %s21 = int_to_ptr.hbm [resolvable:$true] %s20
      %s22 = sshll.u32 [#allocation2], 4
      %s23 = int_to_ptr.vmem [resolvable:$true] %s22
      %25 = dma.hbm_to_vmem [thread:$0]  %s21, 128, %s23, [#allocation3]
    $region9: #{flav_block.14} parent=1 // pred_fallthru
      _
    // Predicated region
    $region10: #{flav_block.14} parent=1 // pred_check
      _
    $region11: #{flav_block.14} parent=1 // pred_check_branch
      %27 = sbr.rel (0) target = $region13
    $region12: #{flav_block.14} parent=1 // pred_region
      %29 = vsyncadd [#allocation5], 0
      %s30 = sshll.u32 %s2, 4
      %s31 = int_to_ptr.hbm [resolvable:$true] %s30
      %s32 = sshll.u32 [#allocation4], 4
      %s33 = int_to_ptr.vmem [resolvable:$true] %s32
      %38 = dma.hbm_to_vmem [thread:$0]  %s31, 256, %s33, [#allocation5], 64, 64, 4
    $region13: #{flav_block.14} parent=1 // pred_fallthru
      _
    // Predicated region
    $region14: #{flav_block.14} parent=1 // pred_check
      _
    $region15: #{flav_block.14} parent=1 // pred_check_branch
      %40 = sbr.rel (0) target = $region17
    $region16: #{flav_block.14} parent=1 // pred_region
      _
    $region17: #{flav_block.14} parent=1 // pred_fallthru
      _
    // Predicated region
    $region18: #{flav_block.14} parent=1 // pred_check
      _
    $region19: #{flav_block.14} parent=1 // pred_check_branch
      %42 = sbr.rel (0) target = $region21
    $region20: #{flav_block.14} parent=1 // pred_region
      _
    $region21: #{flav_block.14} parent=1 // pred_fallthru
      _
    // Predicated region
    $region22: #{flav_block.14} parent=1 // pred_check
      _
    $region23: #{flav_block.14} parent=1 // pred_check_branch
      %44 = sbr.rel (0) target = $region25
    $region24: #{flav_block.14} parent=1 // pred_region
      _
    $region25: #{flav_block.14} parent=1 // pred_fallthru
      _
    // Predicated region
    $region26: #{flav_block.14} parent=1 // pred_check
      _
    $region27: #{flav_block.14} parent=1 // pred_check_branch
      %46 = sbr.rel (0) target = $region29
    $region28: #{flav_block.14} parent=1 // pred_region
      %48 = dma.done [#allocation3], 128
    $region29: #{flav_block.14} parent=1 // pred_fallthru
      _
    // Predicated region
    $region30: #{flav_block.14} parent=1 // pred_check
      _
    $region31: #{flav_block.14} parent=1 // pred_check_branch
      %50 = sbr.rel (0) target = $region33
    $region32: #{flav_block.14} parent=1 // pred_region
      %52 = dma.done [#allocation5], 256
    $region33: #{flav_block.14} parent=1 // pred_fallthru
      _
    %v54 = vld [vmem:[%s0] sm:$0xff]
    %v55 = vld [vmem:[#allocation4] sm:$0xf]
    %v56 = vld [vmem:[#allocation4 + $0x4] sm:$0xf]
    %v57 = vld [vmem:[#allocation4 + $0x8] sm:$0xf]
    %v58 = vld [vmem:[#allocation4 + $0xc] sm:$0xf]
    %v59 = vld [vmem:[%s3] sm:$0x1]
    %v60 = vpack.c.bf16 %v54, %v54
    %v62 = vperm.slane %v59, 0
    %v68 = vunpack.c.l.b16 %v55
    %v69 = vunpack.c.l.b16 %v56
    %v70 = vunpack.c.l.b16 %v57
    %v71 = vunpack.c.l.b16 %v58
    %v72 = vpack.c.b16 %v69, %v68
    %v73 = vpack.c.b16 %v71, %v70
    %vm76 = vcmask 261120
    %v78 = vsel %vm76, %v60, 0
    %80 = vmatpush.bf16.msra.mxu0 0
    %81 = vmatpush.bf16.msra.mxu0 0
    %82 = vmatpush.bf16.msra.mxu0 0
    %83 = vmatpush.bf16.msra.mxu0 0
    %84 = vmatpush.bf16.msra.mxu0 0
    %85 = vmatpush.bf16.msra.mxu0 0
    %86 = vmatpush.bf16.msra.mxu0 %v73
    %87 = vmatpush.bf16.msra.mxu0 %v72
    %88 = vmatmul.bf16.gmra.mxu0 %v78
    %v89 = vpop.f32.mrf.mxu0
    %v90 = vadd.f32 %v62, %v89
    %v91 = vpop.f32.mrf.mxu0
    %92 = vdwg.mxu0
    %v93 = vld [vmem:[#allocation2] sm:$0xff]
    %v94 = vadd.f32 %v90, %v93
    %v95 = vxor.u32 %v94, 2147483648
    %v96 = vmul.f32 %v95, 1.442695
    %v97 = vpow.pop %v96
    %v98 = vadd.f32 %v97, 1.0
    %v99 = vrcp.pop %v98
    %v100 = vmul.f32 %v98, %v99
    %v101 = vsub.f32 1.0, %v100
    %v102 = vmul.f32 %v99, %v101
    %v103 = vadd.f32 %v99, %v102
    %vm104 = vweird.f32 %v98
    %vm105 = vweird.f32 %v99
    %vm106 = vmor %vm104, %vm105
    %v107 = vsel %vm106, %v99, %v103
    %v108 = vand.u32 2147483647, %v98
    %vm109 = vcmp.eq.f32.partialorder %v108, 8.507059e+37
    %v110 = vand.u32 %v98, 2147483648
    %v111 = vor.u32 1.1754944e-38, %v110
    %v112 = vsel %vm109, %v111, %v107
    %v113 = vmul.f32 1.0, %v112
    %v114 = vmul.f32 %v94, %v113
    %v115 = vld [vmem:[%s4] sm:$0xf]
    %v116 = vld [vmem:[%s4 + $0x4] sm:$0xf]
    %v117 = vld [vmem:[%s4 + $0x8] sm:$0xf]
    %v118 = vld [vmem:[%s4 + $0xc] sm:$0xf]
    %v119 = vld [vmem:[%s5] sm:$0x1]
    %v120 = vpack.c.bf16 %v114, %v114
    %v122 = vperm.slane %v119, 0
    %v128 = vunpack.c.l.b16 %v115
    %v129 = vunpack.c.l.b16 %v116
    %v130 = vunpack.c.l.b16 %v117
    %v131 = vunpack.c.l.b16 %v118
    %v132 = vpack.c.b16 %v129, %v128
    %v133 = vpack.c.b16 %v131, %v130
    %v137 = vsel %vm76, %v120, 0
    %139 = vmatpush.bf16.msra.mxu0 0
    %140 = vmatpush.bf16.msra.mxu0 0
    %141 = vmatpush.bf16.msra.mxu0 0
    %142 = vmatpush.bf16.msra.mxu0 0
    %143 = vmatpush.bf16.msra.mxu0 0
    %144 = vmatpush.bf16.msra.mxu0 0
    %145 = vmatpush.bf16.msra.mxu0 %v133
    %146 = vmatpush.bf16.msra.mxu0 %v132
    %147 = vmatmul.bf16.gmra.mxu0 %v137
    %v148 = vpop.f32.mrf.mxu0
    %v149 = vadd.f32 %v122, %v148
    %v150 = vpop.f32.mrf.mxu0
    %151 = vdwg.mxu0
    %vm152 = vcmask 785408
    %153 = vst.msk [vmem:[%s6] sm:$0xff] %vm152, %v149
    // Predicated region
    $region34: #{flav_block.14} parent=1 // pred_check
      _
    $region35: #{flav_block.14} parent=1 // pred_check_branch
      %155 = sbr.rel (0) target = $region37
    $region36: #{flav_block.14} parent=1 // pred_region
      _
    $region37: #{flav_block.14} parent=1 // pred_fallthru
      _
    // Predicated region
    $region38: #{flav_block.14} parent=1 // pred_check
      _
    $region39: #{flav_block.14} parent=1 // pred_check_branch
      %157 = sbr.rel (0) target = $region41
    $region40: #{flav_block.14} parent=1 // pred_region
      _
    $region41: #{flav_block.14} parent=1 // pred_fallthru
      _
    %158 = vsyncpa [#allocation3], 1
    %159 = vsyncpa [#allocation5], 1

// kernel: flav_block.9
$region0: #{flav_block.9}
  #allocation0 [shape = 'u32[]', space=smem, size = 0x4, offset = 0x4, fixed_abs, tag = 'smem constant byte address 0x4 - core index']
  #allocation1 [shape = 'u32[72,128]{1,0:T(1,128)}', space=vmem, size = 0x9000, scoped, tag = 'internal scratch']
  %s0 = inlined_call_operand.hbm [shape: f32[8,32], index: 0, kind: input, shape index: {}]
  %s1 = inlined_call_operand.hbm [shape: bf16[32,192], index: 1, kind: input, shape index: {}]
  %s2 = inlined_call_operand.hbm [shape: f32[1,192], index: 2, kind: input, shape index: {}]
  %s3 = inlined_call_operand.vmem [shape: f32[8,192], index: 3, kind: output, shape index: {}]
  %s4 = sld [smem:[#allocation0]]
  $region34: #{flav_block.9} parent=0
    _
  %s6 = ssub.s32 1, %s4
  %s7 = scalar_select 0, %s6, %s4
  $region1: #{flav_block.9} parent=0
    #allocation2 [shape = 'u8[4096]{0}', space=vmem, size = 0x1000, scoped, tag = 'input window, operand 0, single buffered']
    #allocation3 [shape = 's32[1]{0}', space=sflag, size = 0x4, scoped, tag = 'scoped memory for flav_block.9']
    #allocation4 [shape = 'u8[16384]{0}', space=vmem, size = 0x4000, scoped, tag = 'input window, operand 1, single buffered']
    #allocation5 [shape = 's32[1]{0}', space=sflag, size = 0x4, scoped, tag = 'scoped memory for flav_block.9']
    #allocation6 [shape = 'u8[1024]{0}', space=vmem, size = 0x400, scoped, tag = 'input window, operand 2, single buffered']
    %8 = vsyncpa [#allocation3], 0
    %9 = vsyncpa [#allocation5], 0
    // Predicated region
    $region2: #{flav_block.9} parent=1 // pred_check
      _
    $region3: #{flav_block.9} parent=1 // pred_check_branch
      %11 = sbr.rel (0) target = $region5
    $region4: #{flav_block.9} parent=1 // pred_region
      %13 = vsyncadd [#allocation3], 0
      %s15 = sshll.u32 %s0, 4
      %s16 = int_to_ptr.hbm [resolvable:$true] %s15
      %s17 = sshll.u32 [#allocation2], 4
      %s18 = int_to_ptr.vmem [resolvable:$true] %s17
      %20 = dma.hbm_to_vmem [thread:$0]  %s16, 128, %s18, [#allocation3]
    $region5: #{flav_block.9} parent=1 // pred_fallthru
      _
    // Predicated region
    $region6: #{flav_block.9} parent=1 // pred_check
      _
    $region7: #{flav_block.9} parent=1 // pred_check_branch
      %22 = sbr.rel (0) target = $region9
    $region8: #{flav_block.9} parent=1 // pred_region
      %24 = vsyncadd [#allocation5], 0
      %s25 = sshll.u32 %s1, 4
      %s26 = int_to_ptr.hbm [resolvable:$true] %s25
      %s27 = sshll.u32 [#allocation4], 4
      %s28 = int_to_ptr.vmem [resolvable:$true] %s27
      %33 = dma.hbm_to_vmem [thread:$0]  %s26, 512, %s28, [#allocation5], 128, 128, 8
    $region9: #{flav_block.9} parent=1 // pred_fallthru
      _
    // Predicated region
    $region10: #{flav_block.9} parent=1 // pred_check
      _
    $region11: #{flav_block.9} parent=1 // pred_check_branch
      %35 = sbr.rel (0) target = $region13
    $region12: #{flav_block.9} parent=1 // pred_region
      %37 = vsyncadd [#allocation5], 0
      %s39 = sshll.u32 %s2, 4
      %s40 = int_to_ptr.hbm [resolvable:$true] %s39
      %s41 = sshll.u32 [#allocation6], 4
      %s42 = int_to_ptr.vmem [resolvable:$true] %s41
      %44 = dma.hbm_to_vmem [thread:$0]  %s40, 32, %s42, [#allocation5]
    $region13: #{flav_block.9} parent=1 // pred_fallthru
      _
    // Predicated region
    $region14: #{flav_block.9} parent=1 // pred_check
      _
    $region15: #{flav_block.9} parent=1 // pred_check_branch
      %46 = sbr.rel (0) target = $region17
    $region16: #{flav_block.9} parent=1 // pred_region
      %48 = dma.done [#allocation3], 128
    $region17: #{flav_block.9} parent=1 // pred_fallthru
      _
    // Predicated region
    $region18: #{flav_block.9} parent=1 // pred_check
      _
    $region19: #{flav_block.9} parent=1 // pred_check_branch
      %50 = sbr.rel (0) target = $region21
    $region20: #{flav_block.9} parent=1 // pred_region
      %52 = dma.done [#allocation5], 512
    $region21: #{flav_block.9} parent=1 // pred_fallthru
      _
    // Predicated region
    $region22: #{flav_block.9} parent=1 // pred_check
      _
    $region23: #{flav_block.9} parent=1 // pred_check_branch
      %54 = sbr.rel (0) target = $region25
    $region24: #{flav_block.9} parent=1 // pred_region
      %56 = dma.done [#allocation5], 32
    $region25: #{flav_block.9} parent=1 // pred_fallthru
      _
    %v58 = vld [vmem:[#allocation2] sm:$0xff]
    %v59 = vxor.u32 %v58, 2147483648
    %v60 = vmul.f32 %v59, 1.442695
    %v61 = vpow.pop %v60
    %v62 = vadd.f32 %v61, 1.0
    %v63 = vrcp.pop %v62
    %v64 = vmul.f32 %v62, %v63
    %v65 = vsub.f32 1.0, %v64
    %v66 = vmul.f32 %v63, %v65
    %v67 = vadd.f32 %v63, %v66
    %vm68 = vweird.f32 %v62
    %vm69 = vweird.f32 %v63
    %vm70 = vmor %vm68, %vm69
    %v71 = vsel %vm70, %v63, %v67
    %v72 = vand.u32 2147483647, %v62
    %vm73 = vcmp.eq.f32.partialorder %v72, 8.507059e+37
    %v74 = vand.u32 %v62, 2147483648
    %v75 = vor.u32 1.1754944e-38, %v74
    %v76 = vsel %vm73, %v75, %v71
    %v77 = vmul.f32 1.0, %v76
    %v78 = vmul.f32 %v58, %v77
    %v79 = vld [vmem:[#allocation4] sm:$0xff]
    %v80 = vld [vmem:[#allocation4 + $0x8] sm:$0xff]
    %v81 = vld [vmem:[#allocation4 + $0x10] sm:$0xff]
    %v82 = vld [vmem:[#allocation4 + $0x18] sm:$0xff]
    %v83 = vld [vmem:[#allocation6] sm:$0x3]
    %v84 = vpack.c.bf16 %v78, %v78
    %v86 = vperm.slane %v83, 0
    %v87 = vperm.slane %v83, 1
    %v94 = vunpack.c.l.b16 %v79
    %v95 = vunpack.c.h.b16 %v79
    %v96 = vunpack.c.l.b16 %v80
    %v97 = vunpack.c.h.b16 %v80
    %v98 = vunpack.c.l.b16 %v81
    %v99 = vunpack.c.h.b16 %v81
    %v100 = vunpack.c.l.b16 %v82
    %v101 = vunpack.c.h.b16 %v82
    %v102 = vpack.c.b16 %v96, %v94
    %v103 = vpack.c.b16 %v97, %v95
    %v104 = vpack.c.b16 %v100, %v98
    %v105 = vpack.c.b16 %v101, %v99
    %vm110 = vcmask 261120
    %v112 = vsel %vm110, %v84, 0
    %114 = vmatpush.bf16.msra.mxu0 0
    %115 = vmatpush.bf16.msra.mxu0 0
    %116 = vmatpush.bf16.msra.mxu0 0
    %117 = vmatpush.bf16.msra.mxu0 0
    %118 = vmatpush.bf16.msra.mxu0 0
    %119 = vmatpush.bf16.msra.mxu0 0
    %120 = vmatpush.bf16.msra.mxu0 %v104
    %121 = vmatpush.bf16.msra.mxu0 %v102
    %122 = vmatmul.bf16.gmra.mxu0 %v112
    %v123 = vpop.f32.mrf.mxu0
    %v124 = vadd.f32 %v86, %v123
    %v125 = vpop.f32.mrf.mxu0
    %126 = vdwg.mxu0
    %127 = vmatpush.bf16.msra.mxu0 0
    %128 = vmatpush.bf16.msra.mxu0 0
    %129 = vmatpush.bf16.msra.mxu0 0
    %130 = vmatpush.bf16.msra.mxu0 0
    %131 = vmatpush.bf16.msra.mxu0 0
    %132 = vmatpush.bf16.msra.mxu0 0
    %133 = vmatpush.bf16.msra.mxu0 %v105
    %134 = vmatpush.bf16.msra.mxu0 %v103
    %135 = vmatmul.bf16.gmra.mxu0 %v112
    %v136 = vpop.f32.mrf.mxu0
    %v137 = vadd.f32 %v87, %v136
    %v138 = vpop.f32.mrf.mxu0
    %139 = vdwg.mxu0
    %140 = vst [vmem:[%s3] sm:$0xff] %v124
    %vm141 = vcmask 523264
    %142 = vst.msk [vmem:[%s3 + $0x8] sm:$0xff] %vm141, %v137
    // Predicated region
    $region26: #{flav_block.9} parent=1 // pred_check
      _
    $region27: #{flav_block.9} parent=1 // pred_check_branch
      %144 = sbr.rel (0) target = $region29
    $region28: #{flav_block.9} parent=1 // pred_region
      _
    $region29: #{flav_block.9} parent=1 // pred_fallthru
      _
    // Predicated region
    $region30: #{flav_block.9} parent=1 // pred_check
      _
    $region31: #{flav_block.9} parent=1 // pred_check_branch
      %146 = sbr.rel (0) target = $region33
    $region32: #{flav_block.9} parent=1 // pred_region
      _
    $region33: #{flav_block.9} parent=1 // pred_fallthru
      _
    %147 = vsyncpa [#allocation3], 1
    %148 = vsyncpa [#allocation5], 1

// kernel: flav_block.13
$region0: #{flav_block.13}
  #allocation0 [shape = 'u32[]', space=smem, size = 0x4, offset = 0x4, fixed_abs, tag = 'smem constant byte address 0x4 - core index']
  #allocation1 [shape = 'u32[72,128]{1,0:T(1,128)}', space=vmem, size = 0x9000, scoped, tag = 'internal scratch']
  %s0 = inlined_call_operand.vmem [shape: f32[2,4,4,32], index: 0, kind: input, shape index: {}]
  %s1 = inlined_call_operand.vmem [shape: f32[2,4,32], index: 1, kind: input, shape index: {}]
  %s2 = inlined_call_operand.vmem [shape: f32[2,4,32], index: 2, kind: input, shape index: {}]
  %s3 = inlined_call_operand.vmem [shape: f32[2,4,32], index: 3, kind: input, shape index: {}]
  %s4 = inlined_call_operand.vmem [shape: bf16[32,96], index: 4, kind: input, shape index: {}]
  %s5 = inlined_call_operand.hbm [shape: f32[1,96], index: 5, kind: input, shape index: {}]
  %s6 = inlined_call_operand.vmem [shape: bf16[32,32], index: 6, kind: input, shape index: {}]
  %s7 = inlined_call_operand.hbm [shape: f32[1,32], index: 7, kind: input, shape index: {}]
  %s8 = inlined_call_operand.vmem [shape: f32[2,4,4,32], index: 8, kind: output, shape index: {0}]
  %s9 = inlined_call_operand.vmem [shape: f32[2,4,32], index: 9, kind: output, shape index: {1}]
  %10 = xla_tuple %s8, %s9
  %s11 = sld [smem:[#allocation0]]
  $region81: #{flav_block.13} parent=0
    _
  %s13 = ssub.s32 1, %s11
  %s14 = scalar_select 0, %s13, %s11
  $region1: #{flav_block.13} parent=0
    #allocation2 [shape = 'u8[512]{0}', space=vmem, size = 0x400, scoped, tag = 'input window, operand 5, single buffered']
    #allocation3 [shape = 's32[2]{0}', space=sflag, size = 0x8, scoped, tag = 'scoped memory for flav_block.13']
    #allocation4 [shape = 'u8[512]{0}', space=vmem, size = 0x400, scoped, tag = 'input window, operand 7, single buffered']
    #allocation5 [shape = 's32[1]{0}', space=sflag, size = 0x4, scoped, tag = 'scoped memory for flav_block.13']
    %15 = vsyncpa [#allocation3], 0
    %16 = vsyncpa [#allocation5], 0
    loop: start=0, step=1, limit=4
    $region2: #{flav_block.13} parent=1 // loop_pre_header
      _
    $region3: #{flav_block.13} parent=1 // loop_header
      %s18 = sphi 0, %s22
      %p19 = scmp.ge.s32.totalorder %s18, 4
      %s28 = sphi 0, %s30
      %s31 = sphi 0, %s28
      %s32 = sphi 0, %s31
      %s48 = sphi 0, %s32
      %s54 = sphi 0, %s56
      %s57 = sphi 0, %s54
      %s58 = sphi 0, %s57
      %s74 = sphi 0, %s58
      %s80 = sphi 0, %s82
      %s83 = sphi 0, %s80
      %s84 = sphi 0, %s83
      %s100 = sphi 0, %s84
      %s106 = sphi 0, %s108
      %s109 = sphi 0, %s106
      %s110 = sphi 0, %s109
      %s126 = sphi 0, %s110
      %s130 = sphi 0, %s130
      %s132 = sphi 0, %s130
      %s133 = sphi 0, %s132
      %s147 = sphi 0, %s133
      %s151 = sphi 0, %s151
      %s153 = sphi 0, %s151
      %s154 = sphi 0, %s153
      %s168 = sphi 0, %s154
      %s172 = sphi 0, %s172
      %s174 = sphi 0, %s172
      %s175 = sphi 0, %s174
      %s189 = sphi 0, %s175
      %s193 = sphi 0, %s193
      %s195 = sphi 0, %s193
      %s196 = sphi 0, %s195
      %s210 = sphi 0, %s196
      %s216 = sphi 0, %s218
      %s219 = sphi 0, %s216
      %s220 = sphi 0, %s219
      %s236 = sphi 0, %s220
      %s242 = sphi 0, %s244
      %s245 = sphi 0, %s242
      %s246 = sphi 0, %s245
      %s262 = sphi 0, %s246
    $region4: #{flav_block.13} parent=1 // loop_header_branch
      %21 = sbr.rel (%p19) target = $region8
    $region5: #{flav_block.13} parent=1 // loop_body
      %s23 = ssub.s32 %s18, 1
      %s24 = ssub.s32 %s18, 2
      %s25 = sadd.s32 %s18, 1
      %s26 = ssub.s32 %s18, %s25
      %p27 = scmp.eq.s32.totalorder %s26, 0
      %s29 = sadd.s32 %s28, 1
      %s30 = scalar_select %p27, %s28, %s29
      %p33 = pneg %p27
      %p34 = scmp.eq.s32.totalorder %s18, 1
      %p35 = por %p33, %p34
      %p36 = scmp.ne.s32.totalorder %s28, %s31
      %p37 = scmp.eq.s32.totalorder %s18, 0
      %p38 = por %p36, %p37
      %p39 = scmp.ne.s32.totalorder %s28, %s31
      %p40 = scmp.eq.s32.totalorder %s23, 1
      %p41 = por %p39, %p40
      %p42 = scmp.ne.s32.totalorder %s31, %s32
      %p43 = scmp.eq.s32.totalorder %s23, 0
      %p44 = por %p42, %p43
      %p45 = scmp.ne.s32.totalorder %s31, %s32
      %p46 = scmp.eq.s32.totalorder %s24, 1
      %p47 = por %p45, %p46
      %p49 = scmp.ne.s32.totalorder %s32, %s48
      %p50 = scmp.eq.s32.totalorder %s24, 0
      %p51 = por %p49, %p50
      %s52 = ssub.s32 %s18, %s25
      %p53 = scmp.eq.s32.totalorder %s52, 0
      %s55 = sadd.s32 %s54, 1
      %s56 = scalar_select %p53, %s54, %s55
      %p59 = pneg %p53
      %p60 = scmp.eq.s32.totalorder %s18, 1
      %p61 = por %p59, %p60
      %p62 = scmp.ne.s32.totalorder %s54, %s57
      %p63 = scmp.eq.s32.totalorder %s18, 0
      %p64 = por %p62, %p63
      %p65 = scmp.ne.s32.totalorder %s54, %s57
      %p66 = scmp.eq.s32.totalorder %s23, 1
      %p67 = por %p65, %p66
      %p68 = scmp.ne.s32.totalorder %s57, %s58
      %p69 = scmp.eq.s32.totalorder %s23, 0
      %p70 = por %p68, %p69
      %p71 = scmp.ne.s32.totalorder %s57, %s58
      %p72 = scmp.eq.s32.totalorder %s24, 1
      %p73 = por %p71, %p72
      %p75 = scmp.ne.s32.totalorder %s58, %s74
      %p76 = scmp.eq.s32.totalorder %s24, 0
      %p77 = por %p75, %p76
      %s78 = ssub.s32 %s18, %s25
      %p79 = scmp.eq.s32.totalorder %s78, 0
      %s81 = sadd.s32 %s80, 1
      %s82 = scalar_select %p79, %s80, %s81
      %p85 = pneg %p79
      %p86 = scmp.eq.s32.totalorder %s18, 1
      %p87 = por %p85, %p86
      %p88 = scmp.ne.s32.totalorder %s80, %s83
      %p89 = scmp.eq.s32.totalorder %s18, 0
      %p90 = por %p88, %p89
      %p91 = scmp.ne.s32.totalorder %s80, %s83
      %p92 = scmp.eq.s32.totalorder %s23, 1
      %p93 = por %p91, %p92
      %p94 = scmp.ne.s32.totalorder %s83, %s84
      %p95 = scmp.eq.s32.totalorder %s23, 0
      %p96 = por %p94, %p95
      %p97 = scmp.ne.s32.totalorder %s83, %s84
      %p98 = scmp.eq.s32.totalorder %s24, 1
      %p99 = por %p97, %p98
      %p101 = scmp.ne.s32.totalorder %s84, %s100
      %p102 = scmp.eq.s32.totalorder %s24, 0
      %p103 = por %p101, %p102
      %s104 = ssub.s32 %s18, %s25
      %p105 = scmp.eq.s32.totalorder %s104, 0
      %s107 = sadd.s32 %s106, 1
      %s108 = scalar_select %p105, %s106, %s107
      %p111 = pneg %p105
      %p112 = scmp.eq.s32.totalorder %s18, 1
      %p113 = por %p111, %p112
      %p114 = scmp.ne.s32.totalorder %s106, %s109
      %p115 = scmp.eq.s32.totalorder %s18, 0
      %p116 = por %p114, %p115
      %p117 = scmp.ne.s32.totalorder %s106, %s109
      %p118 = scmp.eq.s32.totalorder %s23, 1
      %p119 = por %p117, %p118
      %p120 = scmp.ne.s32.totalorder %s109, %s110
      %p121 = scmp.eq.s32.totalorder %s23, 0
      %p122 = por %p120, %p121
      %p123 = scmp.ne.s32.totalorder %s109, %s110
      %p124 = scmp.eq.s32.totalorder %s24, 1
      %p125 = por %p123, %p124
      %p127 = scmp.ne.s32.totalorder %s110, %s126
      %p128 = scmp.eq.s32.totalorder %s24, 0
      %p129 = por %p127, %p128
      %s131 = sadd.s32 %s130, 1
      %p134 = scmp.eq.s32.totalorder %s18, 1
      %p135 = scmp.ne.s32.totalorder %s130, %s132
      %p136 = scmp.eq.s32.totalorder %s18, 0
      %p137 = por %p135, %p136
      %p138 = scmp.ne.s32.totalorder %s130, %s132
      %p139 = scmp.eq.s32.totalorder %s23, 1
      %p140 = por %p138, %p139
      %p141 = scmp.ne.s32.totalorder %s132, %s133
      %p142 = scmp.eq.s32.totalorder %s23, 0
      %p143 = por %p141, %p142
      %p144 = scmp.ne.s32.totalorder %s132, %s133
      %p145 = scmp.eq.s32.totalorder %s24, 1
      %p146 = por %p144, %p145
      %p148 = scmp.ne.s32.totalorder %s133, %s147
      %p149 = scmp.eq.s32.totalorder %s24, 0
      %p150 = por %p148, %p149
      %s152 = sadd.s32 %s151, 1
      %p155 = scmp.eq.s32.totalorder %s18, 1
      %p156 = scmp.ne.s32.totalorder %s151, %s153
      %p157 = scmp.eq.s32.totalorder %s18, 0
      %p158 = por %p156, %p157
      %p159 = scmp.ne.s32.totalorder %s151, %s153
      %p160 = scmp.eq.s32.totalorder %s23, 1
      %p161 = por %p159, %p160
      %p162 = scmp.ne.s32.totalorder %s153, %s154
      %p163 = scmp.eq.s32.totalorder %s23, 0
      %p164 = por %p162, %p163
      %p165 = scmp.ne.s32.totalorder %s153, %s154
      %p166 = scmp.eq.s32.totalorder %s24, 1
      %p167 = por %p165, %p166
      %p169 = scmp.ne.s32.totalorder %s154, %s168
      %p170 = scmp.eq.s32.totalorder %s24, 0
      %p171 = por %p169, %p170
      %s173 = sadd.s32 %s172, 1
      %p176 = scmp.eq.s32.totalorder %s18, 1
      %p177 = scmp.ne.s32.totalorder %s172, %s174
      %p178 = scmp.eq.s32.totalorder %s18, 0
      %p179 = por %p177, %p178
      %p180 = scmp.ne.s32.totalorder %s172, %s174
      %p181 = scmp.eq.s32.totalorder %s23, 1
      %p182 = por %p180, %p181
      %p183 = scmp.ne.s32.totalorder %s174, %s175
      %p184 = scmp.eq.s32.totalorder %s23, 0
      %p185 = por %p183, %p184
      %p186 = scmp.ne.s32.totalorder %s174, %s175
      %p187 = scmp.eq.s32.totalorder %s24, 1
      %p188 = por %p186, %p187
      %p190 = scmp.ne.s32.totalorder %s175, %s189
      %p191 = scmp.eq.s32.totalorder %s24, 0
      %p192 = por %p190, %p191
      %s194 = sadd.s32 %s193, 1
      %p197 = scmp.eq.s32.totalorder %s18, 1
      %p198 = scmp.ne.s32.totalorder %s193, %s195
      %p199 = scmp.eq.s32.totalorder %s18, 0
      %p200 = por %p198, %p199
      %p201 = scmp.ne.s32.totalorder %s193, %s195
      %p202 = scmp.eq.s32.totalorder %s23, 1
      %p203 = por %p201, %p202
      %p204 = scmp.ne.s32.totalorder %s195, %s196
      %p205 = scmp.eq.s32.totalorder %s23, 0
      %p206 = por %p204, %p205
      %p207 = scmp.ne.s32.totalorder %s195, %s196
      %p208 = scmp.eq.s32.totalorder %s24, 1
      %p209 = por %p207, %p208
      %p211 = scmp.ne.s32.totalorder %s196, %s210
      %p212 = scmp.eq.s32.totalorder %s24, 0
      %p213 = por %p211, %p212
      %s214 = ssub.s32 %s18, %s25
      %p215 = scmp.eq.s32.totalorder %s214, 0
      %s217 = sadd.s32 %s216, 1
      %s218 = scalar_select %p215, %s216, %s217
      %p221 = pneg %p215
      %p222 = scmp.eq.s32.totalorder %s18, 1
      %p223 = por %p221, %p222
      %p224 = scmp.ne.s32.totalorder %s216, %s219
      %p225 = scmp.eq.s32.totalorder %s18, 0
      %p226 = por %p224, %p225
      %p227 = scmp.ne.s32.totalorder %s216, %s219
      %p228 = scmp.eq.s32.totalorder %s23, 1
      %p229 = por %p227, %p228
      %p230 = scmp.ne.s32.totalorder %s219, %s220
      %p231 = scmp.eq.s32.totalorder %s23, 0
      %p232 = por %p230, %p231
      %p233 = scmp.ne.s32.totalorder %s219, %s220
      %p234 = scmp.eq.s32.totalorder %s24, 1
      %p235 = por %p233, %p234
      %p237 = scmp.ne.s32.totalorder %s220, %s236
      %p238 = scmp.eq.s32.totalorder %s24, 0
      %p239 = por %p237, %p238
      %s240 = ssub.s32 %s18, %s25
      %p241 = scmp.eq.s32.totalorder %s240, 0
      %s243 = sadd.s32 %s242, 1
      %s244 = scalar_select %p241, %s242, %s243
      %p247 = pneg %p241
      %p248 = scmp.eq.s32.totalorder %s18, 1
      %p249 = por %p247, %p248
      %p250 = scmp.ne.s32.totalorder %s242, %s245
      %p251 = scmp.eq.s32.totalorder %s18, 0
      %p252 = por %p250, %p251
      %p253 = scmp.ne.s32.totalorder %s242, %s245
      %p254 = scmp.eq.s32.totalorder %s23, 1
      %p255 = por %p253, %p254
      %p256 = scmp.ne.s32.totalorder %s245, %s246
      %p257 = scmp.eq.s32.totalorder %s23, 0
      %p258 = por %p256, %p257
      %p259 = scmp.ne.s32.totalorder %s245, %s246
      %p260 = scmp.eq.s32.totalorder %s24, 1
      %p261 = por %p259, %p260
      %p263 = scmp.ne.s32.totalorder %s246, %s262
      %p264 = scmp.eq.s32.totalorder %s24, 0
      %p265 = por %p263, %p264
      %p266 = scmp.le.s32.totalorder 1, %s18
      %p267 = scmp.lt.s32.totalorder %s18, 3
      %p268 = pnand %p266, %p267
      %p269 = pneg %p268
      // Predicated region
      $region9: #{flav_block.13} parent=5 // pred_check
        _
      $region10: #{flav_block.13} parent=5 // pred_check_branch
        %271 = sbr.rel (%p268) target = $region12
      $region11: #{flav_block.13} parent=5 // pred_region
        %s272 = ssub.s32 %s18, 1
        // Predicated region
        $region13: #{flav_block.13} parent=11 // pred_check
          %p273 = pneg %p143
        $region14: #{flav_block.13} parent=11 // pred_check_branch
          %275 = sbr.rel (%p273) target = $region16
        $region15: #{flav_block.13} parent=11 // pred_region
          _
        $region16: #{flav_block.13} parent=11 // pred_fallthru
          _
        // Predicated region
        $region17: #{flav_block.13} parent=11 // pred_check
          %p276 = pneg %p164
        $region18: #{flav_block.13} parent=11 // pred_check_branch
          %278 = sbr.rel (%p276) target = $region20
        $region19: #{flav_block.13} parent=11 // pred_region
          %280 = vsyncadd [#allocation3], 0
          %s282 = sshll.u32 %s5, 4
          %s283 = int_to_ptr.hbm [resolvable:$true] %s282
          %s284 = sshll.u32 [#allocation2], 4
          %s285 = int_to_ptr.vmem [resolvable:$true] %s284
          %287 = dma.hbm_to_vmem [thread:$0]  %s283, 16, %s285, [#allocation3]
        $region20: #{flav_block.13} parent=11 // pred_fallthru
          _
        // Predicated region
        $region21: #{flav_block.13} parent=11 // pred_check
          %p288 = pneg %p185
        $region22: #{flav_block.13} parent=11 // pred_check_branch
          %290 = sbr.rel (%p288) target = $region24
        $region23: #{flav_block.13} parent=11 // pred_region
          _
        $region24: #{flav_block.13} parent=11 // pred_fallthru
          _
        // Predicated region
        $region25: #{flav_block.13} parent=11 // pred_check
          %p291 = pneg %p206
        $region26: #{flav_block.13} parent=11 // pred_check_branch
          %293 = sbr.rel (%p291) target = $region28
        $region27: #{flav_block.13} parent=11 // pred_region
          %295 = vsyncadd [#allocation5], 0
          %s297 = sshll.u32 %s7, 4
          %s298 = int_to_ptr.hbm [resolvable:$true] %s297
          %s299 = sshll.u32 [#allocation4], 4
          %s300 = int_to_ptr.vmem [resolvable:$true] %s299
          %302 = dma.hbm_to_vmem [thread:$0]  %s298, 16, %s300, [#allocation5]
        $region28: #{flav_block.13} parent=11 // pred_fallthru
          _
      $region12: #{flav_block.13} parent=5 // pred_fallthru
        _
      %p303 = scmp.lt.s32.totalorder %s18, 2
      // Predicated region
      $region29: #{flav_block.13} parent=5 // pred_check
        %p304 = pneg %p303
      $region30: #{flav_block.13} parent=5 // pred_check_branch
        %306 = sbr.rel (%p304) target = $region32
      $region31: #{flav_block.13} parent=5 // pred_region
        // Predicated region
        $region33: #{flav_block.13} parent=31 // pred_check
          %p307 = pneg %p38
        $region34: #{flav_block.13} parent=31 // pred_check_branch
          %309 = sbr.rel (%p307) target = $region36
        $region35: #{flav_block.13} parent=31 // pred_region
          %p310 = scmp.lt.s32.totalorder %s18, 1
          %s311 = scalar_select %p310, %s18, 1
          %s312 = smul.addr %s311, 4
          %s313 = smul.addr %s312, 4
          %s314 = scalar_lea.vmem %s0, %s313
        $region36: #{flav_block.13} parent=31 // pred_fallthru
          _
        // Predicated region
        $region37: #{flav_block.13} parent=31 // pred_check
          %p315 = pneg %p64
        $region38: #{flav_block.13} parent=31 // pred_check_branch
          %317 = sbr.rel (%p315) target = $region40
        $region39: #{flav_block.13} parent=31 // pred_region
          %p318 = scmp.lt.s32.totalorder %s18, 1
          %s319 = scalar_select %p318, %s18, 1
          %s320 = smul.addr %s319, 4
          %s321 = scalar_lea.vmem %s1, %s320
        $region40: #{flav_block.13} parent=31 // pred_fallthru
          _
        // Predicated region
        $region41: #{flav_block.13} parent=31 // pred_check
          %p322 = pneg %p90
        $region42: #{flav_block.13} parent=31 // pred_check_branch
          %324 = sbr.rel (%p322) target = $region44
        $region43: #{flav_block.13} parent=31 // pred_region
          %p325 = scmp.lt.s32.totalorder %s18, 1
          %s326 = scalar_select %p325, %s18, 1
          %s327 = smul.addr %s326, 4
          %s328 = scalar_lea.vmem %s2, %s327
        $region44: #{flav_block.13} parent=31 // pred_fallthru
          _
        // Predicated region
        $region45: #{flav_block.13} parent=31 // pred_check
          %p329 = pneg %p116
        $region46: #{flav_block.13} parent=31 // pred_check_branch
          %331 = sbr.rel (%p329) target = $region48
        $region47: #{flav_block.13} parent=31 // pred_region
          %p332 = scmp.lt.s32.totalorder %s18, 1
          %s333 = scalar_select %p332, %s18, 1
          %s334 = smul.addr %s333, 4
          %s335 = scalar_lea.vmem %s3, %s334
        $region48: #{flav_block.13} parent=31 // pred_fallthru
          _
      $region32: #{flav_block.13} parent=5 // pred_fallthru
        _
      %p336 = scmp.le.s32.totalorder 1, %s18
      %p337 = scmp.lt.s32.totalorder %s18, 3
      %p338 = pnand %p336, %p337
      %p339 = pneg %p338
      // Predicated region
      $region49: #{flav_block.13} parent=5 // pred_check
        _
      $region50: #{flav_block.13} parent=5 // pred_check_branch
        %341 = sbr.rel (%p338) target = $region52
      $region51: #{flav_block.13} parent=5 // pred_region
        %s342 = ssub.s32 %s18, 1
        // Predicated region
        $region53: #{flav_block.13} parent=51 // pred_check
          %p343 = pneg %p164
        $region54: #{flav_block.13} parent=51 // pred_check_branch
          %345 = sbr.rel (%p343) target = $region56
        $region55: #{flav_block.13} parent=51 // pred_region
          %347 = dma.done [#allocation3], 16
        $region56: #{flav_block.13} parent=51 // pred_fallthru
          _
        // Predicated region
        $region57: #{flav_block.13} parent=51 // pred_check
          %p348 = pneg %p206
        $region58: #{flav_block.13} parent=51 // pred_check_branch
          %350 = sbr.rel (%p348) target = $region60
        $region59: #{flav_block.13} parent=51 // pred_region
          %352 = dma.done [#allocation5], 16
        $region60: #{flav_block.13} parent=51 // pred_fallthru
          _
        %p353 = scmp.lt.s32.totalorder %s23, 1
        %s354 = scalar_select %p353, %s23, 1
        %s355 = smul.addr %s354, 4
        %s356 = smul.addr %s355, 4
        %s357 = scalar_lea.vmem %s0, %s356
        %p358 = pneg %p44
        %p359 = pneg %p41
        %p360 = scmp.lt.s32.totalorder %s23, 1
        %s361 = scalar_select %p360, %s23, 1
        %s362 = smul.addr %s361, 4
        %s363 = scalar_lea.vmem %s1, %s362
        %p364 = pneg %p70
        %p365 = pneg %p67
        %p366 = scmp.lt.s32.totalorder %s23, 1
        %s367 = scalar_select %p366, %s23, 1
        %s368 = smul.addr %s367, 4
        %s369 = scalar_lea.vmem %s2, %s368
        %p370 = pneg %p96
        %p371 = pneg %p93
        %p372 = scmp.lt.s32.totalorder %s23, 1
        %s373 = scalar_select %p372, %s23, 1
        %s374 = smul.addr %s373, 4
        %s375 = scalar_lea.vmem %s3, %s374
        %p376 = pneg %p122
        %p377 = pneg %p119
        %p378 = pneg %p143
        %p379 = pneg %p140
        %p380 = pneg %p164
        %p381 = pneg %p161
        %p382 = pneg %p185
        %p383 = pneg %p182
        %p384 = pneg %p206
        %p385 = pneg %p203
        %p386 = pneg %p232
        %p387 = pneg %p229
        %p388 = scmp.lt.s32.totalorder %s23, 1
        %s389 = scalar_select %p388, %s23, 1
        %s390 = smul.addr %s389, 4
        %s391 = smul.addr %s390, 4
        %s392 = scalar_lea.vmem %s8, %s391
        %p393 = pneg %p258
        %p394 = pneg %p255
        %p395 = scmp.lt.s32.totalorder %s23, 1
        %s396 = scalar_select %p395, %s23, 1
        %s397 = smul.addr %s396, 4
        %s398 = scalar_lea.vmem %s9, %s397
        %p399 = scmp.lt.s32.totalorder %s23, 1
        %s400 = scalar_select %p399, %s23, 1
        %s401 = smul.addr %s400, 4
        %s402 = smul.addr %s401, 4
        %s403 = scalar_lea.vmem %s0, %s402
        %p404 = scmp.lt.s32.totalorder %s23, 1
        %s405 = scalar_select %p404, %s23, 1
        %s406 = smul.addr %s405, 4
        %s407 = scalar_lea.vmem %s1, %s406
        %p408 = scmp.lt.s32.totalorder %s23, 1
        %s409 = scalar_select %p408, %s23, 1
        %s410 = smul.addr %s409, 4
        %s411 = scalar_lea.vmem %s2, %s410
        %p412 = scmp.lt.s32.totalorder %s23, 1
        %s413 = scalar_select %p412, %s23, 1
        %s414 = smul.addr %s413, 4
        %s415 = scalar_lea.vmem %s3, %s414
        %p416 = scmp.lt.s32.totalorder %s23, 1
        %s417 = scalar_select %p416, %s23, 1
        %s418 = smul.addr %s417, 4
        %s419 = smul.addr %s418, 4
        %s420 = scalar_lea.vmem %s8, %s419
        %p421 = scmp.lt.s32.totalorder %s23, 1
        %s422 = scalar_select %p421, %s23, 1
        %s423 = smul.addr %s422, 4
        %s424 = scalar_lea.vmem %s9, %s423
        %v426 = vld [vmem:[%s403] sm:$0xf]
        %v427 = vld [vmem:[%s403 + $0x4] sm:$0xf]
        %v428 = vld [vmem:[%s403 + $0x8] sm:$0xf]
        %v429 = vld [vmem:[%s403 + $0xc] sm:$0xf]
        %v430 = vld [vmem:[%s407] sm:$0xf]
        %v432 = vrot.slane %v430, 1
        %v433 = vrot.slane %v430, 2
        %v434 = vrot.slane %v430, 3
        %v435 = vld [vmem:[%s411] sm:$0xf]
        %v437 = vrot.slane %v435, 1
        %v438 = vrot.slane %v435, 2
        %v439 = vrot.slane %v435, 3
        %v443 = vld [vmem:[%s415] sm:$0xf]
        %v445 = vrot.slane %v443, 1
        %v446 = vrot.slane %v443, 2
        %v447 = vrot.slane %v443, 3
        %vm448 = vcmask 257024
        %v449 = vsel %vm448, %v426, 0.0
        %450 = vadd.xlane.f32.xlu0 %v449
        %v451 = vpop.xlane.xlu0 %450
        %v452 = vsel %vm448, %v427, 0.0
        %453 = vadd.xlane.f32.xlu0 %v452
        %v454 = vpop.xlane.xlu0 %453
        %v455 = vsel %vm448, %v428, 0.0
        %456 = vadd.xlane.f32.xlu0 %v455
        %v457 = vpop.xlane.xlu0 %456
        %v458 = vsel %vm448, %v429, 0.0
        %459 = vadd.xlane.f32.xlu0 %v458
        %v460 = vpop.xlane.xlu0 %459
        %v461 = vrcp.pop 32.0
        %v462 = vmul.f32 32.0, %v461
        %v463 = vsub.f32 1.0, %v462
        %v464 = vmul.f32 %v461, %v463
        %v465 = vadd.f32 %v461, %v464
        %vm466 = vweird.f32 %v461
        %v467 = vsel %vm466, %v461, %v465
        %v468 = vmul.f32 %v451, %v467
        %v469 = vmul.f32 %v454, %v467
        %v470 = vmul.f32 %v457, %v467
        %v471 = vmul.f32 %v460, %v467
        %v472 = vsub.f32 %v426, %v468
        %v473 = vsub.f32 %v427, %v469
        %v474 = vsub.f32 %v428, %v470
        %v475 = vsub.f32 %v429, %v471
        %v476 = vmul.f32 %v472, %v472
        %v477 = vmul.f32 %v473, %v473
        %v478 = vmul.f32 %v474, %v474
        %v479 = vmul.f32 %v475, %v475
        %v480 = vsel %vm448, %v476, 0.0
        %481 = vadd.xlane.f32.xlu0 %v480
        %v482 = vpop.xlane.xlu0 %481
        %v483 = vsel %vm448, %v477, 0.0
        %484 = vadd.xlane.f32.xlu0 %v483
        %v485 = vpop.xlane.xlu0 %484
        %v486 = vsel %vm448, %v478, 0.0
        %487 = vadd.xlane.f32.xlu0 %v486
        %v488 = vpop.xlane.xlu0 %487
        %v489 = vsel %vm448, %v479, 0.0
        %490 = vadd.xlane.f32.xlu0 %v489
        %v491 = vpop.xlane.xlu0 %490
        %v492 = vmul.f32 %v482, %v467
        %v493 = vmul.f32 %v485, %v467
        %v494 = vmul.f32 %v488, %v467
        %v495 = vmul.f32 %v491, %v467
        %v496 = vadd.f32 %v492, 1e-06
        %v497 = vadd.f32 %v493, 1e-06
        %v498 = vadd.f32 %v494, 1e-06
        %v499 = vadd.f32 %v495, 1e-06
        %v500 = vrsqrt.pop %v496
        %v501 = vmul.f32 %v500, %v496
        %v502 = vmul.f32 %v501, %v500
        %v503 = vmul.f32 0.5, %v502
        %v504 = vsub.f32 1.5, %v503
        %v505 = vmul.f32 %v500, %v504
        %vm506 = vweird.f32 %v496
        %vm507 = vweird.f32 %v500
        %vm508 = vmor %vm506, %vm507
        %v509 = vsel %vm508, %v500, %v505
        %v510 = vrsqrt.pop %v497
        %v511 = vmul.f32 %v510, %v497
        %v512 = vmul.f32 %v511, %v510
        %v513 = vmul.f32 0.5, %v512
        %v514 = vsub.f32 1.5, %v513
        %v515 = vmul.f32 %v510, %v514
        %vm516 = vweird.f32 %v497
        %vm517 = vweird.f32 %v510
        %vm518 = vmor %vm516, %vm517
        %v519 = vsel %vm518, %v510, %v515
        %v520 = vrsqrt.pop %v498
        %v521 = vmul.f32 %v520, %v498
        %v522 = vmul.f32 %v521, %v520
        %v523 = vmul.f32 0.5, %v522
        %v524 = vsub.f32 1.5, %v523
        %v525 = vmul.f32 %v520, %v524
        %vm526 = vweird.f32 %v498
        %vm527 = vweird.f32 %v520
        %vm528 = vmor %vm526, %vm527
        %v529 = vsel %vm528, %v520, %v525
        %v530 = vrsqrt.pop %v499
        %v531 = vmul.f32 %v530, %v499
        %v532 = vmul.f32 %v531, %v530
        %v533 = vmul.f32 0.5, %v532
        %v534 = vsub.f32 1.5, %v533
        %v535 = vmul.f32 %v530, %v534
        %vm536 = vweird.f32 %v499
        %vm537 = vweird.f32 %v530
        %vm538 = vmor %vm536, %vm537
        %v539 = vsel %vm538, %v530, %v535
        %v540 = vmul.f32 %v472, %v509
        %v541 = vmul.f32 %v473, %v519
        %v542 = vmul.f32 %v474, %v529
        %v543 = vmul.f32 %v475, %v539
        %v544 = vadd.f32 %v435, 1.0
        %v545 = vadd.f32 %v437, 1.0
        %v546 = vadd.f32 %v438, 1.0
        %v547 = vadd.f32 %v439, 1.0
        %v552 = vperm.slane %v544, 0
        %v553 = vperm.slane %v545, 0
        %v554 = vperm.slane %v546, 0
        %v555 = vperm.slane %v547, 0
        %v560 = vmul.f32 %v540, %v552
        %v561 = vmul.f32 %v541, %v553
        %v562 = vmul.f32 %v542, %v554
        %v563 = vmul.f32 %v543, %v555
        %v564 = vperm.slane %v430, 0
        %v565 = vperm.slane %v432, 0
        %v566 = vperm.slane %v433, 0
        %v567 = vperm.slane %v434, 0
        %v572 = vadd.f32 %v560, %v564
        %v573 = vadd.f32 %v561, %v565
        %v574 = vadd.f32 %v562, %v566
        %v575 = vadd.f32 %v563, %v567
        %v576 = vld [vmem:[%s4] sm:$0xf]
        %v577 = vld [vmem:[%s4 + $0x4] sm:$0xf]
        %v578 = vld [vmem:[%s4 + $0x8] sm:$0xf]
        %v579 = vld [vmem:[%s4 + $0xc] sm:$0xf]
        %v580 = vld [vmem:[#allocation2] sm:$0x1]
        %585 = vst [vmem:[#allocation1] ss:$2 sm:$0xff] %v572
        %s586 = scalar_lea.vmem [#allocation1], 1
        %587 = vst [vmem:[%s586] ss:$2 sm:$0xff] %v573
        %s588 = scalar_lea.vmem [#allocation1], 16
        %589 = vst [vmem:[%s588] ss:$2 sm:$0xff] %v574
        %s590 = scalar_lea.vmem [#allocation1], 17
        %591 = vst [vmem:[%s590] ss:$2 sm:$0xff] %v575
        %v592 = vld.sshfl [vmem:[#allocation1] sm:$0xff pattern:$0x75316420]
        %v593 = vld.sshfl [vmem:[#allocation1 + $0x10] sm:$0xff pattern:$0x75316420]
        %v596 = vpack.c.bf16 %v593, %v592
        %v598 = vperm.slane %v580, 0
        %v604 = vunpack.c.l.b16 %v576
        %v605 = vunpack.c.l.b16 %v577
        %v606 = vunpack.c.l.b16 %v578
        %v607 = vunpack.c.l.b16 %v579
        %v608 = vpack.c.b16 %v605, %v604
        %v609 = vpack.c.b16 %v607, %v606
        %vm612 = vcmask 261120
        %v614 = vsel %vm612, %v596, 0
        %616 = vmatpush.bf16.msra.mxu0 0
        %617 = vmatpush.bf16.msra.mxu0 0
        %618 = vmatpush.bf16.msra.mxu0 0
        %619 = vmatpush.bf16.msra.mxu0 0
        %620 = vmatpush.bf16.msra.mxu0 0
        %621 = vmatpush.bf16.msra.mxu0 0
        %622 = vmatpush.bf16.msra.mxu0 %v609
        %623 = vmatpush.bf16.msra.mxu0 %v608
        %624 = vmatmul.bf16.gmra.mxu0 %v614
        %v625 = vpop.f32.mrf.mxu0
        %v626 = vadd.f32 %v598, %v625
        %v627 = vpop.f32.mrf.mxu0
        %v628 = vadd.f32 %v598, %v627
        %629 = vdwg.mxu0
        %v630 = vpack.c.bf16 %v626, %v626
        %v631 = vpack.c.bf16 %v628, %v628
        %v634 = vunpack.c.l.b16 %v630
        %v635 = vunpack.c.l.b16 %v631
        %v636 = vpack.c.b16 %v635, %v634
        %637 = vrot.lane.b32.xlu0 %v636, 96
        %v638 = vpop.permute.xlu0 %637
        %vm639 = vcmask 64512
        %v641 = vsel %vm639, %v636, 0
        %v644 = vsel %vm639, %v638, 0
        %646 = vmatpush.bf16.xpose.msra.mxu0 0
        %647 = vmatpush.bf16.xpose.msra.mxu0 0
        %648 = vmatpush.bf16.xpose.msra.mxu0 0
        %649 = vmatpush.bf16.xpose.msra.mxu0 0
        %650 = vmatpush.bf16.xpose.msra.mxu0 0
        %651 = vmatpush.bf16.xpose.msra.mxu0 0
        %652 = vmatpush.bf16.xpose.msra.mxu0 0
        %653 = vmatpush.bf16.xpose.msra.mxu0 %v644
        %654 = vmatmul.bf16.gmra.mxu0 %v641
        %v655 = vpop.f32.mrf.mxu0
        %v656 = vadd.f32 0.0, %v655
        %v657 = vpop.f32.mrf.mxu0
        %v658 = vadd.f32 0.0, %v657
        %659 = vdwg.mxu0
        %v660 = vmul.f32 %v656, 0.35355338
        %v661 = vmul.f32 %v658, 0.35355338
        %vm662 = vcmask 130048
        %v663 = vsel %vm662, %v660, -inf
        %664 = vmax.xlane.f32.xlu0 %v663
        %v665 = vpop.xlane.xlu0 %664
        %v666 = vsel %vm662, %v661, -inf
        %667 = vmax.xlane.f32.xlu0 %v666
        %v668 = vpop.xlane.xlu0 %667
        %v669 = vsub.f32 %v660, %v665
        %v670 = vsub.f32 %v661, %v668
        %v671 = vmul.f32 %v669, 1.442695
        %v672 = vpow.pop %v671
        %v673 = vmul.f32 %v670, 1.442695
        %v674 = vpow.pop %v673
        %v675 = vsel %vm662, %v672, 0.0
        %676 = vadd.xlane.f32.xlu0 %v675
        %v677 = vpop.xlane.xlu0 %676
        %v678 = vsel %vm662, %v674, 0.0
        %679 = vadd.xlane.f32.xlu0 %v678
        %v680 = vpop.xlane.xlu0 %679
        %v681 = vpack.c.bf16 %v672, %v672
        %v682 = vpack.c.bf16 %v674, %v674
        %v685 = vunpack.c.l.b16 %v681
        %v686 = vunpack.c.l.b16 %v682
        %v687 = vpack.c.b16 %v686, %v685
        %688 = vrot.lane.b32.xlu0 %v636, 64
        %v689 = vpop.permute.xlu0 %688
        %v692 = vsel %vm662, %v687, 0
        %694 = vmatpush.bf16.msra.mxu0 0
        %695 = vmatpush.bf16.msra.mxu0 0
        %696 = vmatpush.bf16.msra.mxu0 0
        %697 = vmatpush.bf16.msra.mxu0 0
        %698 = vmatpush.bf16.msra.mxu0 0
        %699 = vmatpush.bf16.msra.mxu0 0
        %700 = vmatpush.bf16.msra.mxu0 0
        %701 = vmatpush.bf16.msra.mxu0 %v689
        %702 = vmatmul.bf16.gmra.mxu0 %v692
        %v703 = vpop.f32.mrf.mxu0
        %v704 = vadd.f32 0.0, %v703
        %v705 = vpop.f32.mrf.mxu0
        %v706 = vadd.f32 0.0, %v705
        %707 = vdwg.mxu0
        %v708 = vrcp.pop %v677
        %v709 = vrcp.pop %v680
        %v710 = vmul.f32 %v704, %v708
        %v711 = vmul.f32 %v706, %v709
        %712 = vrot.lane.b32.xlu0 %v636, 120
        %v713 = vpop.permute.xlu0 %712
        %714 = vrot.lane.b32.xlu0 %v636, 88
        %v715 = vpop.permute.xlu0 %714
        %v717 = vsel %vm639, %v713, 0
        %v720 = vsel %vm639, %v715, 0
        %722 = vmatpush.bf16.xpose.msra.mxu0 0
        %723 = vmatpush.bf16.xpose.msra.mxu0 0
        %724 = vmatpush.bf16.xpose.msra.mxu0 0
        %725 = vmatpush.bf16.xpose.msra.mxu0 0
        %726 = vmatpush.bf16.xpose.msra.mxu0 0
        %727 = vmatpush.bf16.xpose.msra.mxu0 0
        %728 = vmatpush.bf16.xpose.msra.mxu0 0
        %729 = vmatpush.bf16.xpose.msra.mxu0 %v720
        %730 = vmatmul.bf16.gmra.mxu0 %v717
        %v731 = vpop.f32.mrf.mxu0
        %v732 = vadd.f32 0.0, %v731
        %v733 = vpop.f32.mrf.mxu0
        %v734 = vadd.f32 0.0, %v733
        %735 = vdwg.mxu0
        %v736 = vmul.f32 %v732, 0.35355338
        %v737 = vmul.f32 %v734, 0.35355338
        %v738 = vsel %vm662, %v736, -inf
        %739 = vmax.xlane.f32.xlu0 %v738
        %v740 = vpop.xlane.xlu0 %739
        %v741 = vsel %vm662, %v737, -inf
        %742 = vmax.xlane.f32.xlu0 %v741
        %v743 = vpop.xlane.xlu0 %742
        %v744 = vsub.f32 %v736, %v740
        %v745 = vsub.f32 %v737, %v743
        %v746 = vmul.f32 %v744, 1.442695
        %v747 = vpow.pop %v746
        %v748 = vmul.f32 %v745, 1.442695
        %v749 = vpow.pop %v748
        %v750 = vsel %vm662, %v747, 0.0
        %751 = vadd.xlane.f32.xlu0 %v750
        %v752 = vpop.xlane.xlu0 %751
        %v753 = vsel %vm662, %v749, 0.0
        %754 = vadd.xlane.f32.xlu0 %v753
        %v755 = vpop.xlane.xlu0 %754
        %v756 = vpack.c.bf16 %v747, %v747
        %v757 = vpack.c.bf16 %v749, %v749
        %v760 = vunpack.c.l.b16 %v756
        %v761 = vunpack.c.l.b16 %v757
        %v762 = vpack.c.b16 %v761, %v760
        %763 = vrot.lane.b32.xlu0 %v636, 56
        %v764 = vpop.permute.xlu0 %763
        %v767 = vsel %vm662, %v762, 0
        %769 = vmatpush.bf16.msra.mxu0 0
        %770 = vmatpush.bf16.msra.mxu0 0
        %771 = vmatpush.bf16.msra.mxu0 0
        %772 = vmatpush.bf16.msra.mxu0 0
        %773 = vmatpush.bf16.msra.mxu0 0
        %774 = vmatpush.bf16.msra.mxu0 0
        %775 = vmatpush.bf16.msra.mxu0 0
        %776 = vmatpush.bf16.msra.mxu0 %v764
        %777 = vmatmul.bf16.gmra.mxu0 %v767
        %v778 = vpop.f32.mrf.mxu0
        %v779 = vadd.f32 0.0, %v778
        %v780 = vpop.f32.mrf.mxu0
        %v781 = vadd.f32 0.0, %v780
        %782 = vdwg.mxu0
        %v783 = vrcp.pop %v752
        %v784 = vrcp.pop %v755
        %v785 = vmul.f32 %v779, %v783
        %v786 = vmul.f32 %v781, %v784
        %787 = vrot.lane.b32.xlu0 %v636, 112
        %v788 = vpop.permute.xlu0 %787
        %789 = vrot.lane.b32.xlu0 %v636, 80
        %v790 = vpop.permute.xlu0 %789
        %v792 = vsel %vm639, %v788, 0
        %v795 = vsel %vm639, %v790, 0
        %797 = vmatpush.bf16.xpose.msra.mxu0 0
        %798 = vmatpush.bf16.xpose.msra.mxu0 0
        %799 = vmatpush.bf16.xpose.msra.mxu0 0
        %800 = vmatpush.bf16.xpose.msra.mxu0 0
        %801 = vmatpush.bf16.xpose.msra.mxu0 0
        %802 = vmatpush.bf16.xpose.msra.mxu0 0
        %803 = vmatpush.bf16.xpose.msra.mxu0 0
        %804 = vmatpush.bf16.xpose.msra.mxu0 %v795
        %805 = vmatmul.bf16.gmra.mxu0 %v792
        %v806 = vpop.f32.mrf.mxu0
        %v807 = vadd.f32 0.0, %v806
        %v808 = vpop.f32.mrf.mxu0
        %v809 = vadd.f32 0.0, %v808
        %810 = vdwg.mxu0
        %v811 = vmul.f32 %v807, 0.35355338
        %v812 = vmul.f32 %v809, 0.35355338
        %v813 = vsel %vm662, %v811, -inf
        %814 = vmax.xlane.f32.xlu0 %v813
        %v815 = vpop.xlane.xlu0 %814
        %v816 = vsel %vm662, %v812, -inf
        %817 = vmax.xlane.f32.xlu0 %v816
        %v818 = vpop.xlane.xlu0 %817
        %v819 = vsub.f32 %v811, %v815
        %v820 = vsub.f32 %v812, %v818
        %v821 = vmul.f32 %v819, 1.442695
        %v822 = vpow.pop %v821
        %v823 = vmul.f32 %v820, 1.442695
        %v824 = vpow.pop %v823
        %v825 = vsel %vm662, %v822, 0.0
        %826 = vadd.xlane.f32.xlu0 %v825
        %v827 = vpop.xlane.xlu0 %826
        %v828 = vsel %vm662, %v824, 0.0
        %829 = vadd.xlane.f32.xlu0 %v828
        %v830 = vpop.xlane.xlu0 %829
        %v831 = vpack.c.bf16 %v822, %v822
        %v832 = vpack.c.bf16 %v824, %v824
        %v835 = vunpack.c.l.b16 %v831
        %v836 = vunpack.c.l.b16 %v832
        %v837 = vpack.c.b16 %v836, %v835
        %838 = vrot.lane.b32.xlu0 %v636, 48
        %v839 = vpop.permute.xlu0 %838
        %v842 = vsel %vm662, %v837, 0
        %844 = vmatpush.bf16.msra.mxu0 0
        %845 = vmatpush.bf16.msra.mxu0 0
        %846 = vmatpush.bf16.msra.mxu0 0
        %847 = vmatpush.bf16.msra.mxu0 0
        %848 = vmatpush.bf16.msra.mxu0 0
        %849 = vmatpush.bf16.msra.mxu0 0
        %850 = vmatpush.bf16.msra.mxu0 0
        %851 = vmatpush.bf16.msra.mxu0 %v839
        %852 = vmatmul.bf16.gmra.mxu0 %v842
        %v853 = vpop.f32.mrf.mxu0
        %v854 = vadd.f32 0.0, %v853
        %v855 = vpop.f32.mrf.mxu0
        %v856 = vadd.f32 0.0, %v855
        %857 = vdwg.mxu0
        %v858 = vrcp.pop %v827
        %v859 = vrcp.pop %v830
        %v860 = vmul.f32 %v854, %v858
        %v861 = vmul.f32 %v856, %v859
        %862 = vrot.lane.b32.xlu0 %v636, 104
        %v863 = vpop.permute.xlu0 %862
        %864 = vrot.lane.b32.xlu0 %v636, 72
        %v865 = vpop.permute.xlu0 %864
        %v867 = vsel %vm639, %v863, 0
        %v870 = vsel %vm639, %v865, 0
        %872 = vmatpush.bf16.xpose.msra.mxu0 0
        %873 = vmatpush.bf16.xpose.msra.mxu0 0
        %874 = vmatpush.bf16.xpose.msra.mxu0 0
        %875 = vmatpush.bf16.xpose.msra.mxu0 0
        %876 = vmatpush.bf16.xpose.msra.mxu0 0
        %877 = vmatpush.bf16.xpose.msra.mxu0 0
        %878 = vmatpush.bf16.xpose.msra.mxu0 0
        %879 = vmatpush.bf16.xpose.msra.mxu0 %v870
        %880 = vmatmul.bf16.gmra.mxu0 %v867
        %v881 = vpop.f32.mrf.mxu0
        %v882 = vadd.f32 0.0, %v881
        %v883 = vpop.f32.mrf.mxu0
        %v884 = vadd.f32 0.0, %v883
        %885 = vdwg.mxu0
        %v886 = vmul.f32 %v882, 0.35355338
        %v887 = vmul.f32 %v884, 0.35355338
        %v888 = vsel %vm662, %v886, -inf
        %889 = vmax.xlane.f32.xlu0 %v888
        %v890 = vpop.xlane.xlu0 %889
        %v891 = vsel %vm662, %v887, -inf
        %892 = vmax.xlane.f32.xlu0 %v891
        %v893 = vpop.xlane.xlu0 %892
        %v894 = vsub.f32 %v886, %v890
        %v895 = vsub.f32 %v887, %v893
        %v896 = vmul.f32 %v894, 1.442695
        %v897 = vpow.pop %v896
        %v898 = vmul.f32 %v895, 1.442695
        %v899 = vpow.pop %v898
        %v900 = vsel %vm662, %v897, 0.0
        %901 = vadd.xlane.f32.xlu0 %v900
        %v902 = vpop.xlane.xlu0 %901
        %v903 = vsel %vm662, %v899, 0.0
        %904 = vadd.xlane.f32.xlu0 %v903
        %v905 = vpop.xlane.xlu0 %904
        %v906 = vpack.c.bf16 %v897, %v897
        %v907 = vpack.c.bf16 %v899, %v899
        %v910 = vunpack.c.l.b16 %v906
        %v911 = vunpack.c.l.b16 %v907
        %v912 = vpack.c.b16 %v911, %v910
        %913 = vrot.lane.b32.xlu0 %v636, 40
        %v914 = vpop.permute.xlu0 %913
        %v917 = vsel %vm662, %v912, 0
        %919 = vmatpush.bf16.msra.mxu0 0
        %920 = vmatpush.bf16.msra.mxu0 0
        %921 = vmatpush.bf16.msra.mxu0 0
        %922 = vmatpush.bf16.msra.mxu0 0
        %923 = vmatpush.bf16.msra.mxu0 0
        %924 = vmatpush.bf16.msra.mxu0 0
        %925 = vmatpush.bf16.msra.mxu0 0
        %926 = vmatpush.bf16.msra.mxu0 %v914
        %927 = vmatmul.bf16.gmra.mxu0 %v917
        %v928 = vpop.f32.mrf.mxu0
        %v929 = vadd.f32 0.0, %v928
        %v930 = vpop.f32.mrf.mxu0
        %v931 = vadd.f32 0.0, %v930
        %932 = vdwg.mxu0
        %v933 = vrcp.pop %v902
        %v934 = vrcp.pop %v905
        %v935 = vmul.f32 %v929, %v933
        %v936 = vmul.f32 %v931, %v934
        %939 = vrot.lane.b32.xlu0 %v785, 8
        %v940 = vpop.permute.xlu0 %939
        %941 = vrot.lane.b32.xlu0 %v786, 8
        %v942 = vpop.permute.xlu0 %941
        %947 = vrot.lane.b32.xlu0 %v860, 16
        %v948 = vpop.permute.xlu0 %947
        %949 = vrot.lane.b32.xlu0 %v861, 16
        %v950 = vpop.permute.xlu0 %949
        %955 = vrot.lane.b32.xlu0 %v935, 24
        %v956 = vpop.permute.xlu0 %955
        %957 = vrot.lane.b32.xlu0 %v936, 24
        %v958 = vpop.permute.xlu0 %957
        %v961 = vsel %vm639, %v710, %v940
        %v962 = vsel %vm639, %v711, %v942
        %v963 = vsel %vm662, %v961, %v948
        %v964 = vsel %vm662, %v962, %v950
        %vm965 = vcmask 195584
        %v966 = vsel %vm965, %v963, %v956
        %v967 = vsel %vm965, %v964, %v958
        %v968 = vld [vmem:[%s6] sm:$0xf]
        %v969 = vld [vmem:[%s6 + $0x4] sm:$0xf]
        %v970 = vld [vmem:[%s6 + $0x8] sm:$0xf]
        %v971 = vld [vmem:[%s6 + $0xc] sm:$0xf]
        %v972 = vld [vmem:[#allocation4] sm:$0x1]
        %v973 = vpack.c.bf16 %v967, %v966
        %v975 = vperm.slane %v972, 0
        %v981 = vunpack.c.l.b16 %v968
        %v982 = vunpack.c.l.b16 %v969
        %v983 = vunpack.c.l.b16 %v970
        %v984 = vunpack.c.l.b16 %v971
        %v985 = vpack.c.b16 %v982, %v981
        %v986 = vpack.c.b16 %v984, %v983
        %v990 = vsel %vm612, %v973, 0
        %992 = vmatpush.bf16.msra.mxu0 0
        %993 = vmatpush.bf16.msra.mxu0 0
        %994 = vmatpush.bf16.msra.mxu0 0
        %995 = vmatpush.bf16.msra.mxu0 0
        %996 = vmatpush.bf16.msra.mxu0 0
        %997 = vmatpush.bf16.msra.mxu0 0
        %998 = vmatpush.bf16.msra.mxu0 %v986
        %999 = vmatpush.bf16.msra.mxu0 %v985
        %1000 = vmatmul.bf16.gmra.mxu0 %v990
        %v1001 = vpop.f32.mrf.mxu0
        %v1002 = vadd.f32 %v975, %v1001
        %v1003 = vpop.f32.mrf.mxu0
        %v1004 = vadd.f32 %v975, %v1003
        %1005 = vdwg.mxu0
        %v1008 = vrot.slane %v1002, 4
        %v1009 = vrot.slane %v1004, 4
        %v1012 = vperm.slane %v443, 0
        %v1013 = vperm.slane %v445, 0
        %v1014 = vperm.slane %v446, 0
        %v1015 = vperm.slane %v447, 0
        %v1020 = vmul.f32 %v1012, %v1002
        %v1021 = vmul.f32 %v1013, %v1008
        %v1022 = vmul.f32 %v1014, %v1004
        %v1023 = vmul.f32 %v1015, %v1009
        %v1024 = vadd.f32 %v426, %v1020
        %v1025 = vadd.f32 %v427, %v1021
        %v1026 = vadd.f32 %v428, %v1022
        %v1027 = vadd.f32 %v429, %v1023
        %1028 = vst.msk [vmem:[%s420] sm:$0xf] %vm448, %v1024
        %1029 = vst.msk [vmem:[%s420 + $0x4] sm:$0xf] %vm448, %v1025
        %1030 = vst.msk [vmem:[%s420 + $0x8] sm:$0xf] %vm448, %v1026
        %1031 = vst.msk [vmem:[%s420 + $0xc] sm:$0xf] %vm448, %v1027
        %v1032 = vsel %vm448, %v1024, 0.0
        %v1033 = vrot.slane %v1032, 4
        %v1034 = vadd.f32 %v1032, %v1033
        %v1035 = vrot.slane %v1034, 2
        %v1036 = vadd.f32 %v1034, %v1035
        %v1037 = vrot.slane %v1036, 1
        %v1038 = vadd.f32 %v1036, %v1037
        %v1039 = vsel %vm448, %v1025, 0.0
        %v1040 = vrot.slane %v1039, 4
        %v1041 = vadd.f32 %v1039, %v1040
        %v1042 = vrot.slane %v1041, 2
        %v1043 = vadd.f32 %v1041, %v1042
        %v1044 = vrot.slane %v1043, 1
        %v1045 = vadd.f32 %v1043, %v1044
        %v1046 = vsel %vm448, %v1026, 0.0
        %v1047 = vrot.slane %v1046, 4
        %v1048 = vadd.f32 %v1046, %v1047
        %v1049 = vrot.slane %v1048, 2
        %v1050 = vadd.f32 %v1048, %v1049
        %v1051 = vrot.slane %v1050, 1
        %v1052 = vadd.f32 %v1050, %v1051
        %v1053 = vsel %vm448, %v1027, 0.0
        %v1054 = vrot.slane %v1053, 4
        %v1055 = vadd.f32 %v1053, %v1054
        %v1056 = vrot.slane %v1055, 2
        %v1057 = vadd.f32 %v1055, %v1056
        %v1058 = vrot.slane %v1057, 1
        %v1059 = vadd.f32 %v1057, %v1058
        %v1060 = vrcp.pop 4.0
        %v1061 = vmul.f32 4.0, %v1060
        %v1062 = vsub.f32 1.0, %v1061
        %v1063 = vmul.f32 %v1060, %v1062
        %v1064 = vadd.f32 %v1060, %v1063
        %vm1065 = vweird.f32 %v1060
        %v1066 = vsel %vm1065, %v1060, %v1064
        %v1067 = vmul.f32 %v1038, %v1066
        %v1068 = vmul.f32 %v1045, %v1066
        %v1069 = vmul.f32 %v1052, %v1066
        %v1070 = vmul.f32 %v1059, %v1066
        %vm1075 = vcmask 1041409
        %v1076 = vsel %vm1075, %v1068, %v1067
        %vm1077 = vcmask 1042434
        %v1078 = vsel %vm1077, %v1069, %v1076
        %vm1079 = vcmask 1043459
        %v1080 = vsel %vm1079, %v1070, %v1078
        %1082 = vst.msk [vmem:[%s424] sm:$0xf] %vm448, %v1080
        %p1083 = scmp.lt.s32.totalorder %s23, 1
        %s1084 = scalar_select %p1083, %s23, 1
        %s1085 = smul.addr %s1084, 4
        %s1086 = smul.addr %s1085, 4
        %s1087 = scalar_lea.vmem %s8, %s1086
        %p1088 = scmp.lt.s32.totalorder %s23, 1
        %s1089 = scalar_select %p1088, %s23, 1
        %s1090 = smul.addr %s1089, 4
        %s1091 = scalar_lea.vmem %s9, %s1090
        // Predicated region
        $region61: #{flav_block.13} parent=51 // pred_check
          %p1092 = pneg %p229
        $region62: #{flav_block.13} parent=51 // pred_check_branch
          %1094 = sbr.rel (%p1092) target = $region64
        $region63: #{flav_block.13} parent=51 // pred_region
          _
        $region64: #{flav_block.13} parent=51 // pred_fallthru
          _
        // Predicated region
        $region65: #{flav_block.13} parent=51 // pred_check
          %p1095 = pneg %p255
        $region66: #{flav_block.13} parent=51 // pred_check_branch
          %1097 = sbr.rel (%p1095) target = $region68
        $region67: #{flav_block.13} parent=51 // pred_region
          _
        $region68: #{flav_block.13} parent=51 // pred_fallthru
          _
      $region52: #{flav_block.13} parent=5 // pred_fallthru
        _
      %p1098 = scmp.le.s32.totalorder 2, %s18
      // Predicated region
      $region69: #{flav_block.13} parent=5 // pred_check
        %p1099 = pneg %p1098
      $region70: #{flav_block.13} parent=5 // pred_check_branch
        %1101 = sbr.rel (%p1099) target = $region72
      $region71: #{flav_block.13} parent=5 // pred_region
        %s1102 = ssub.s32 %s18, 2
        // Predicated region
        $region73: #{flav_block.13} parent=71 // pred_check
          %p1103 = pneg %p235
        $region74: #{flav_block.13} parent=71 // pred_check_branch
          %1105 = sbr.rel (%p1103) target = $region76
        $region75: #{flav_block.13} parent=71 // pred_region
          %p1106 = scmp.lt.s32.totalorder %s24, 1
          %s1107 = scalar_select %p1106, %s24, 1
          %s1108 = smul.addr %s1107, 4
          %s1109 = smul.addr %s1108, 4
          %s1110 = scalar_lea.vmem %s8, %s1109
        $region76: #{flav_block.13} parent=71 // pred_fallthru
          _
        // Predicated region
        $region77: #{flav_block.13} parent=71 // pred_check
          %p1111 = pneg %p261
        $region78: #{flav_block.13} parent=71 // pred_check_branch
          %1113 = sbr.rel (%p1111) target = $region80
        $region79: #{flav_block.13} parent=71 // pred_region
          %p1114 = scmp.lt.s32.totalorder %s24, 1
          %s1115 = scalar_select %p1114, %s24, 1
          %s1116 = smul.addr %s1115, 4
          %s1117 = scalar_lea.vmem %s9, %s1116
        $region80: #{flav_block.13} parent=71 // pred_fallthru
          _
      $region72: #{flav_block.13} parent=5 // pred_fallthru
        _
    $region6: #{flav_block.13} parent=1 // loop_footer
      %s22 = sadd.s32 1, %s18
    $region7: #{flav_block.13} parent=1 // loop_footer_branch
      %17 = sbr.rel target = $region3
    $region8: #{flav_block.13} parent=1 // loop_exit
      _
    %1118 = vsyncpa [#allocation3], 1
    %s1119 = scalar_lea.sflag [#allocation3], 1
    %1120 = vsyncpa %s1119, 1
    %1121 = vsyncpa [#allocation5], 1

// kernel: flav_block.11
$region0: #{flav_block.11}
  #allocation0 [shape = 'u32[]', space=smem, size = 0x4, offset = 0x4, fixed_abs, tag = 'smem constant byte address 0x4 - core index']
  #allocation1 [shape = 'u32[72,128]{1,0:T(1,128)}', space=vmem, size = 0x9000, scoped, tag = 'internal scratch']
  %s0 = inlined_call_operand.vmem [shape: f32[2,4,8,32], index: 0, kind: input, shape index: {}]
  %s1 = inlined_call_operand.vmem [shape: f32[2,4,1,32], index: 1, kind: input, shape index: {}]
  %s2 = inlined_call_operand.vmem [shape: f32[2,4,1,32], index: 2, kind: input, shape index: {}]
  %s3 = inlined_call_operand.vmem [shape: f32[2,4,1,32], index: 3, kind: input, shape index: {}]
  %s4 = inlined_call_operand.vmem [shape: bf16[32,96], index: 4, kind: input, shape index: {}]
  %s5 = inlined_call_operand.vmem [shape: f32[1,96], index: 5, kind: input, shape index: {}]
  %s6 = inlined_call_operand.vmem [shape: bf16[32,32], index: 6, kind: input, shape index: {}]
  %s7 = inlined_call_operand.vmem [shape: f32[1,32], index: 7, kind: input, shape index: {}]
  %s8 = inlined_call_operand.vmem [shape: f32[2,4,8,32], index: 8, kind: output, shape index: {}]
  %s9 = sld [smem:[#allocation0]]
  $region65: #{flav_block.11} parent=0
    _
  %s11 = ssub.s32 1, %s9
  %s12 = scalar_select 0, %s11, %s9
  loop: start=0, step=1, limit=10
  $region2: #{flav_block.11} parent=0 // loop_pre_header
    _
  $region3: #{flav_block.11} parent=0 // loop_header
    %s14 = sphi 0, %s18
    %p15 = scmp.ge.s32.totalorder %s14, 10
    %s21 = sphi 0, %s33
    %s22 = sphi 0, %s29
    %s23 = sphi 0, %s21
    %s24 = sphi 0, %s22
    %s25 = sphi 0, %s23
    %s26 = sphi 0, %s24
    %s38 = sphi 0, %s40
    %s41 = sphi 0, %s38
    %s42 = sphi 0, %s41
    %s58 = sphi 0, %s42
    %s66 = sphi 0, %s68
    %s69 = sphi 0, %s66
    %s70 = sphi 0, %s69
    %s86 = sphi 0, %s70
    %s94 = sphi 0, %s96
    %s97 = sphi 0, %s94
    %s98 = sphi 0, %s97
    %s114 = sphi 0, %s98
    %s122 = sphi 0, %s124
    %s125 = sphi 0, %s122
    %s126 = sphi 0, %s125
    %s142 = sphi 0, %s126
    %s146 = sphi 0, %s146
    %s148 = sphi 0, %s146
    %s149 = sphi 0, %s148
    %s163 = sphi 0, %s149
    %s167 = sphi 0, %s167
    %s169 = sphi 0, %s167
    %s170 = sphi 0, %s169
    %s184 = sphi 0, %s170
    %s188 = sphi 0, %s188
    %s190 = sphi 0, %s188
    %s191 = sphi 0, %s190
    %s205 = sphi 0, %s191
    %s209 = sphi 0, %s209
    %s211 = sphi 0, %s209
    %s212 = sphi 0, %s211
    %s226 = sphi 0, %s212
    %s234 = sphi 0, %s236
    %s237 = sphi 0, %s234
    %s238 = sphi 0, %s237
    %s254 = sphi 0, %s238
  $region4: #{flav_block.11} parent=0 // loop_header_branch
    %17 = sbr.rel (%p15) target = $region8
  $region5: #{flav_block.11} parent=0 // loop_body
    %s19 = ssub.s32 %s14, 1
    %s20 = ssub.s32 %s14, 2
    %s27 = sadd.s32 1, %s22
    %p28 = scmp.ge.s32.totalorder %s27, 4
    %s29 = scalar_select %p28, 0, %s27
    %s30 = sadd.s32 1, %s21
    %s31 = scalar_select %p28, %s30, %s21
    %p32 = scmp.ge.s32.totalorder %s31, 2
    %s33 = scalar_select %p32, 0, %s31
    %s34 = ssub.s32 %s21, %s33
    %s35 = ssub.s32 %s22, %s29
    %s36 = sor.u32 %s34, %s35
    %p37 = scmp.eq.s32.totalorder %s36, 0
    %s39 = sadd.s32 %s38, 1
    %s40 = scalar_select %p37, %s38, %s39
    %p43 = pneg %p37
    %p44 = scmp.eq.s32.totalorder %s14, 7
    %p45 = por %p43, %p44
    %p46 = scmp.ne.s32.totalorder %s38, %s41
    %p47 = scmp.eq.s32.totalorder %s14, 0
    %p48 = por %p46, %p47
    %p49 = scmp.ne.s32.totalorder %s38, %s41
    %p50 = scmp.eq.s32.totalorder %s19, 7
    %p51 = por %p49, %p50
    %p52 = scmp.ne.s32.totalorder %s41, %s42
    %p53 = scmp.eq.s32.totalorder %s19, 0
    %p54 = por %p52, %p53
    %p55 = scmp.ne.s32.totalorder %s41, %s42
    %p56 = scmp.eq.s32.totalorder %s20, 7
    %p57 = por %p55, %p56
    %p59 = scmp.ne.s32.totalorder %s42, %s58
    %p60 = scmp.eq.s32.totalorder %s20, 0
    %p61 = por %p59, %p60
    %s62 = ssub.s32 %s21, %s33
    %s63 = ssub.s32 %s22, %s29
    %s64 = sor.u32 %s62, %s63
    %p65 = scmp.eq.s32.totalorder %s64, 0
    %s67 = sadd.s32 %s66, 1
    %s68 = scalar_select %p65, %s66, %s67
    %p71 = pneg %p65
    %p72 = scmp.eq.s32.totalorder %s14, 7
    %p73 = por %p71, %p72
    %p74 = scmp.ne.s32.totalorder %s66, %s69
    %p75 = scmp.eq.s32.totalorder %s14, 0
    %p76 = por %p74, %p75
    %p77 = scmp.ne.s32.totalorder %s66, %s69
    %p78 = scmp.eq.s32.totalorder %s19, 7
    %p79 = por %p77, %p78
    %p80 = scmp.ne.s32.totalorder %s69, %s70
    %p81 = scmp.eq.s32.totalorder %s19, 0
    %p82 = por %p80, %p81
    %p83 = scmp.ne.s32.totalorder %s69, %s70
    %p84 = scmp.eq.s32.totalorder %s20, 7
    %p85 = por %p83, %p84
    %p87 = scmp.ne.s32.totalorder %s70, %s86
    %p88 = scmp.eq.s32.totalorder %s20, 0
    %p89 = por %p87, %p88
    %s90 = ssub.s32 %s21, %s33
    %s91 = ssub.s32 %s22, %s29
    %s92 = sor.u32 %s90, %s91
    %p93 = scmp.eq.s32.totalorder %s92, 0
    %s95 = sadd.s32 %s94, 1
    %s96 = scalar_select %p93, %s94, %s95
    %p99 = pneg %p93
    %p100 = scmp.eq.s32.totalorder %s14, 7
    %p101 = por %p99, %p100
    %p102 = scmp.ne.s32.totalorder %s94, %s97
    %p103 = scmp.eq.s32.totalorder %s14, 0
    %p104 = por %p102, %p103
    %p105 = scmp.ne.s32.totalorder %s94, %s97
    %p106 = scmp.eq.s32.totalorder %s19, 7
    %p107 = por %p105, %p106
    %p108 = scmp.ne.s32.totalorder %s97, %s98
    %p109 = scmp.eq.s32.totalorder %s19, 0
    %p110 = por %p108, %p109
    %p111 = scmp.ne.s32.totalorder %s97, %s98
    %p112 = scmp.eq.s32.totalorder %s20, 7
    %p113 = por %p111, %p112
    %p115 = scmp.ne.s32.totalorder %s98, %s114
    %p116 = scmp.eq.s32.totalorder %s20, 0
    %p117 = por %p115, %p116
    %s118 = ssub.s32 %s21, %s33
    %s119 = ssub.s32 %s22, %s29
    %s120 = sor.u32 %s118, %s119
    %p121 = scmp.eq.s32.totalorder %s120, 0
    %s123 = sadd.s32 %s122, 1
    %s124 = scalar_select %p121, %s122, %s123
    %p127 = pneg %p121
    %p128 = scmp.eq.s32.totalorder %s14, 7
    %p129 = por %p127, %p128
    %p130 = scmp.ne.s32.totalorder %s122, %s125
    %p131 = scmp.eq.s32.totalorder %s14, 0
    %p132 = por %p130, %p131
    %p133 = scmp.ne.s32.totalorder %s122, %s125
    %p134 = scmp.eq.s32.totalorder %s19, 7
    %p135 = por %p133, %p134
    %p136 = scmp.ne.s32.totalorder %s125, %s126
    %p137 = scmp.eq.s32.totalorder %s19, 0
    %p138 = por %p136, %p137
    %p139 = scmp.ne.s32.totalorder %s125, %s126
    %p140 = scmp.eq.s32.totalorder %s20, 7
    %p141 = por %p139, %p140
    %p143 = scmp.ne.s32.totalorder %s126, %s142
    %p144 = scmp.eq.s32.totalorder %s20, 0
    %p145 = por %p143, %p144
    %s147 = sadd.s32 %s146, 1
    %p150 = scmp.eq.s32.totalorder %s14, 7
    %p151 = scmp.ne.s32.totalorder %s146, %s148
    %p152 = scmp.eq.s32.totalorder %s14, 0
    %p153 = por %p151, %p152
    %p154 = scmp.ne.s32.totalorder %s146, %s148
    %p155 = scmp.eq.s32.totalorder %s19, 7
    %p156 = por %p154, %p155
    %p157 = scmp.ne.s32.totalorder %s148, %s149
    %p158 = scmp.eq.s32.totalorder %s19, 0
    %p159 = por %p157, %p158
    %p160 = scmp.ne.s32.totalorder %s148, %s149
    %p161 = scmp.eq.s32.totalorder %s20, 7
    %p162 = por %p160, %p161
    %p164 = scmp.ne.s32.totalorder %s149, %s163
    %p165 = scmp.eq.s32.totalorder %s20, 0
    %p166 = por %p164, %p165
    %s168 = sadd.s32 %s167, 1
    %p171 = scmp.eq.s32.totalorder %s14, 7
    %p172 = scmp.ne.s32.totalorder %s167, %s169
    %p173 = scmp.eq.s32.totalorder %s14, 0
    %p174 = por %p172, %p173
    %p175 = scmp.ne.s32.totalorder %s167, %s169
    %p176 = scmp.eq.s32.totalorder %s19, 7
    %p177 = por %p175, %p176
    %p178 = scmp.ne.s32.totalorder %s169, %s170
    %p179 = scmp.eq.s32.totalorder %s19, 0
    %p180 = por %p178, %p179
    %p181 = scmp.ne.s32.totalorder %s169, %s170
    %p182 = scmp.eq.s32.totalorder %s20, 7
    %p183 = por %p181, %p182
    %p185 = scmp.ne.s32.totalorder %s170, %s184
    %p186 = scmp.eq.s32.totalorder %s20, 0
    %p187 = por %p185, %p186
    %s189 = sadd.s32 %s188, 1
    %p192 = scmp.eq.s32.totalorder %s14, 7
    %p193 = scmp.ne.s32.totalorder %s188, %s190
    %p194 = scmp.eq.s32.totalorder %s14, 0
    %p195 = por %p193, %p194
    %p196 = scmp.ne.s32.totalorder %s188, %s190
    %p197 = scmp.eq.s32.totalorder %s19, 7
    %p198 = por %p196, %p197
    %p199 = scmp.ne.s32.totalorder %s190, %s191
    %p200 = scmp.eq.s32.totalorder %s19, 0
    %p201 = por %p199, %p200
    %p202 = scmp.ne.s32.totalorder %s190, %s191
    %p203 = scmp.eq.s32.totalorder %s20, 7
    %p204 = por %p202, %p203
    %p206 = scmp.ne.s32.totalorder %s191, %s205
    %p207 = scmp.eq.s32.totalorder %s20, 0
    %p208 = por %p206, %p207
    %s210 = sadd.s32 %s209, 1
    %p213 = scmp.eq.s32.totalorder %s14, 7
    %p214 = scmp.ne.s32.totalorder %s209, %s211
    %p215 = scmp.eq.s32.totalorder %s14, 0
    %p216 = por %p214, %p215
    %p217 = scmp.ne.s32.totalorder %s209, %s211
    %p218 = scmp.eq.s32.totalorder %s19, 7
    %p219 = por %p217, %p218
    %p220 = scmp.ne.s32.totalorder %s211, %s212
    %p221 = scmp.eq.s32.totalorder %s19, 0
    %p222 = por %p220, %p221
    %p223 = scmp.ne.s32.totalorder %s211, %s212
    %p224 = scmp.eq.s32.totalorder %s20, 7
    %p225 = por %p223, %p224
    %p227 = scmp.ne.s32.totalorder %s212, %s226
    %p228 = scmp.eq.s32.totalorder %s20, 0
    %p229 = por %p227, %p228
    %s230 = ssub.s32 %s21, %s33
    %s231 = ssub.s32 %s22, %s29
    %s232 = sor.u32 %s230, %s231
    %p233 = scmp.eq.s32.totalorder %s232, 0
    %s235 = sadd.s32 %s234, 1
    %s236 = scalar_select %p233, %s234, %s235
    %p239 = pneg %p233
    %p240 = scmp.eq.s32.totalorder %s14, 7
    %p241 = por %p239, %p240
    %p242 = scmp.ne.s32.totalorder %s234, %s237
    %p243 = scmp.eq.s32.totalorder %s14, 0
    %p244 = por %p242, %p243
    %p245 = scmp.ne.s32.totalorder %s234, %s237
    %p246 = scmp.eq.s32.totalorder %s19, 7
    %p247 = por %p245, %p246
    %p248 = scmp.ne.s32.totalorder %s237, %s238
    %p249 = scmp.eq.s32.totalorder %s19, 0
    %p250 = por %p248, %p249
    %p251 = scmp.ne.s32.totalorder %s237, %s238
    %p252 = scmp.eq.s32.totalorder %s20, 7
    %p253 = por %p251, %p252
    %p255 = scmp.ne.s32.totalorder %s238, %s254
    %p256 = scmp.eq.s32.totalorder %s20, 0
    %p257 = por %p255, %p256
    %p258 = scmp.le.s32.totalorder 1, %s14
    %p259 = scmp.lt.s32.totalorder %s14, 9
    %p260 = pnand %p258, %p259
    %p261 = pneg %p260
    // Predicated region
    $region9: #{flav_block.11} parent=5 // pred_check
      _
    $region10: #{flav_block.11} parent=5 // pred_check_branch
      %263 = sbr.rel (%p260) target = $region12
    $region11: #{flav_block.11} parent=5 // pred_region
      %s264 = ssub.s32 %s14, 1
      // Predicated region
      $region13: #{flav_block.11} parent=11 // pred_check
        %p265 = pneg %p159
      $region14: #{flav_block.11} parent=11 // pred_check_branch
        %267 = sbr.rel (%p265) target = $region16
      $region15: #{flav_block.11} parent=11 // pred_region
        _
      $region16: #{flav_block.11} parent=11 // pred_fallthru
        _
      // Predicated region
      $region17: #{flav_block.11} parent=11 // pred_check
        %p268 = pneg %p180
      $region18: #{flav_block.11} parent=11 // pred_check_branch
        %270 = sbr.rel (%p268) target = $region20
      $region19: #{flav_block.11} parent=11 // pred_region
        _
      $region20: #{flav_block.11} parent=11 // pred_fallthru
        _
      // Predicated region
      $region21: #{flav_block.11} parent=11 // pred_check
        %p271 = pneg %p201
      $region22: #{flav_block.11} parent=11 // pred_check_branch
        %273 = sbr.rel (%p271) target = $region24
      $region23: #{flav_block.11} parent=11 // pred_region
        _
      $region24: #{flav_block.11} parent=11 // pred_fallthru
        _
      // Predicated region
      $region25: #{flav_block.11} parent=11 // pred_check
        %p274 = pneg %p222
      $region26: #{flav_block.11} parent=11 // pred_check_branch
        %276 = sbr.rel (%p274) target = $region28
      $region27: #{flav_block.11} parent=11 // pred_region
        _
      $region28: #{flav_block.11} parent=11 // pred_fallthru
        _
    $region12: #{flav_block.11} parent=5 // pred_fallthru
      _
    %p277 = scmp.lt.s32.totalorder %s14, 8
    // Predicated region
    $region29: #{flav_block.11} parent=5 // pred_check
      %p278 = pneg %p277
    $region30: #{flav_block.11} parent=5 // pred_check_branch
      %280 = sbr.rel (%p278) target = $region32
    $region31: #{flav_block.11} parent=5 // pred_region
      // Predicated region
      $region33: #{flav_block.11} parent=31 // pred_check
        %p281 = pneg %p48
      $region34: #{flav_block.11} parent=31 // pred_check_branch
        %283 = sbr.rel (%p281) target = $region36
      $region35: #{flav_block.11} parent=31 // pred_region
        %p284 = scmp.lt.s32.totalorder %s21, 1
        %s285 = scalar_select %p284, %s21, 1
        %p286 = scmp.lt.s32.totalorder %s22, 3
        %s287 = scalar_select %p286, %s22, 3
        %s288 = smul.addr %s285, 4
        %s289 = sadd.s32 %s287, %s288
        %s290 = smul.addr %s289, 8
        %s291 = scalar_lea.vmem %s0, %s290
      $region36: #{flav_block.11} parent=31 // pred_fallthru
        _
      // Predicated region
      $region37: #{flav_block.11} parent=31 // pred_check
        %p292 = pneg %p76
      $region38: #{flav_block.11} parent=31 // pred_check_branch
        %294 = sbr.rel (%p292) target = $region40
      $region39: #{flav_block.11} parent=31 // pred_region
        %p295 = scmp.lt.s32.totalorder %s21, 1
        %s296 = scalar_select %p295, %s21, 1
        %p297 = scmp.lt.s32.totalorder %s22, 3
        %s298 = scalar_select %p297, %s22, 3
        %s299 = smul.addr %s296, 4
        %s300 = sadd.s32 %s298, %s299
        %s301 = scalar_lea.vmem %s1, %s300
      $region40: #{flav_block.11} parent=31 // pred_fallthru
        _
      // Predicated region
      $region41: #{flav_block.11} parent=31 // pred_check
        %p302 = pneg %p104
      $region42: #{flav_block.11} parent=31 // pred_check_branch
        %304 = sbr.rel (%p302) target = $region44
      $region43: #{flav_block.11} parent=31 // pred_region
        %p305 = scmp.lt.s32.totalorder %s21, 1
        %s306 = scalar_select %p305, %s21, 1
        %p307 = scmp.lt.s32.totalorder %s22, 3
        %s308 = scalar_select %p307, %s22, 3
        %s309 = smul.addr %s306, 4
        %s310 = sadd.s32 %s308, %s309
        %s311 = scalar_lea.vmem %s2, %s310
      $region44: #{flav_block.11} parent=31 // pred_fallthru
        _
      // Predicated region
      $region45: #{flav_block.11} parent=31 // pred_check
        %p312 = pneg %p132
      $region46: #{flav_block.11} parent=31 // pred_check_branch
        %314 = sbr.rel (%p312) target = $region48
      $region47: #{flav_block.11} parent=31 // pred_region
        %p315 = scmp.lt.s32.totalorder %s21, 1
        %s316 = scalar_select %p315, %s21, 1
        %p317 = scmp.lt.s32.totalorder %s22, 3
        %s318 = scalar_select %p317, %s22, 3
        %s319 = smul.addr %s316, 4
        %s320 = sadd.s32 %s318, %s319
        %s321 = scalar_lea.vmem %s3, %s320
      $region48: #{flav_block.11} parent=31 // pred_fallthru
        _
    $region32: #{flav_block.11} parent=5 // pred_fallthru
      _
    %p322 = scmp.le.s32.totalorder 1, %s14
    %p323 = scmp.lt.s32.totalorder %s14, 9
    %p324 = pnand %p322, %p323
    %p325 = pneg %p324
    // Predicated region
    $region49: #{flav_block.11} parent=5 // pred_check
      _
    $region50: #{flav_block.11} parent=5 // pred_check_branch
      %327 = sbr.rel (%p324) target = $region52
    $region51: #{flav_block.11} parent=5 // pred_region
      %s328 = ssub.s32 %s14, 1
      %p329 = scmp.lt.s32.totalorder %s23, 1
      %s330 = scalar_select %p329, %s23, 1
      %p331 = scmp.lt.s32.totalorder %s24, 3
      %s332 = scalar_select %p331, %s24, 3
      %s333 = smul.addr %s330, 4
      %s334 = sadd.s32 %s332, %s333
      %s335 = smul.addr %s334, 8
      %s336 = scalar_lea.vmem %s0, %s335
      %p337 = pneg %p54
      %p338 = pneg %p51
      %p339 = scmp.lt.s32.totalorder %s23, 1
      %s340 = scalar_select %p339, %s23, 1
      %p341 = scmp.lt.s32.totalorder %s24, 3
      %s342 = scalar_select %p341, %s24, 3
      %s343 = smul.addr %s340, 4
      %s344 = sadd.s32 %s342, %s343
      %s345 = scalar_lea.vmem %s1, %s344
      %p346 = pneg %p82
      %p347 = pneg %p79
      %p348 = scmp.lt.s32.totalorder %s23, 1
      %s349 = scalar_select %p348, %s23, 1
      %p350 = scmp.lt.s32.totalorder %s24, 3
      %s351 = scalar_select %p350, %s24, 3
      %s352 = smul.addr %s349, 4
      %s353 = sadd.s32 %s351, %s352
      %s354 = scalar_lea.vmem %s2, %s353
      %p355 = pneg %p110
      %p356 = pneg %p107
      %p357 = scmp.lt.s32.totalorder %s23, 1
      %s358 = scalar_select %p357, %s23, 1
      %p359 = scmp.lt.s32.totalorder %s24, 3
      %s360 = scalar_select %p359, %s24, 3
      %s361 = smul.addr %s358, 4
      %s362 = sadd.s32 %s360, %s361
      %s363 = scalar_lea.vmem %s3, %s362
      %p364 = pneg %p138
      %p365 = pneg %p135
      %p366 = pneg %p159
      %p367 = pneg %p156
      %p368 = pneg %p180
      %p369 = pneg %p177
      %p370 = pneg %p201
      %p371 = pneg %p198
      %p372 = pneg %p222
      %p373 = pneg %p219
      %p374 = pneg %p250
      %p375 = pneg %p247
      %p376 = scmp.lt.s32.totalorder %s23, 1
      %s377 = scalar_select %p376, %s23, 1
      %p378 = scmp.lt.s32.totalorder %s24, 3
      %s379 = scalar_select %p378, %s24, 3
      %s380 = smul.addr %s377, 4
      %s381 = sadd.s32 %s379, %s380
      %s382 = smul.addr %s381, 8
      %s383 = scalar_lea.vmem %s8, %s382
      %p384 = scmp.lt.s32.totalorder %s23, 1
      %s385 = scalar_select %p384, %s23, 1
      %p386 = scmp.lt.s32.totalorder %s24, 3
      %s387 = scalar_select %p386, %s24, 3
      %s388 = smul.addr %s385, 4
      %s389 = sadd.s32 %s387, %s388
      %s390 = smul.addr %s389, 8
      %s391 = scalar_lea.vmem %s0, %s390
      %p392 = scmp.lt.s32.totalorder %s23, 1
      %s393 = scalar_select %p392, %s23, 1
      %p394 = scmp.lt.s32.totalorder %s24, 3
      %s395 = scalar_select %p394, %s24, 3
      %s396 = smul.addr %s393, 4
      %s397 = sadd.s32 %s395, %s396
      %s398 = scalar_lea.vmem %s1, %s397
      %p399 = scmp.lt.s32.totalorder %s23, 1
      %s400 = scalar_select %p399, %s23, 1
      %p401 = scmp.lt.s32.totalorder %s24, 3
      %s402 = scalar_select %p401, %s24, 3
      %s403 = smul.addr %s400, 4
      %s404 = sadd.s32 %s402, %s403
      %s405 = scalar_lea.vmem %s2, %s404
      %p406 = scmp.lt.s32.totalorder %s23, 1
      %s407 = scalar_select %p406, %s23, 1
      %p408 = scmp.lt.s32.totalorder %s24, 3
      %s409 = scalar_select %p408, %s24, 3
      %s410 = smul.addr %s407, 4
      %s411 = sadd.s32 %s409, %s410
      %s412 = scalar_lea.vmem %s3, %s411
      %p413 = scmp.lt.s32.totalorder %s23, 1
      %s414 = scalar_select %p413, %s23, 1
      %p415 = scmp.lt.s32.totalorder %s24, 3
      %s416 = scalar_select %p415, %s24, 3
      %s417 = smul.addr %s414, 4
      %s418 = sadd.s32 %s416, %s417
      %s419 = smul.addr %s418, 8
      %s420 = scalar_lea.vmem %s8, %s419
      %v422 = vld [vmem:[%s391] sm:$0xff]
      %v423 = vld [vmem:[%s398] sm:$0x1]
      %v424 = vld [vmem:[%s405] sm:$0x1]
      %v425 = vld [vmem:[%s412] sm:$0x1]
      %vm426 = vcmask 261120
      %v427 = vsel %vm426, %v422, 0.0
      %428 = vadd.xlane.f32.xlu0 %v427
      %v429 = vpop.xlane.xlu0 %428
      %v430 = vrcp.pop 32.0
      %v431 = vmul.f32 32.0, %v430
      %v432 = vsub.f32 1.0, %v431
      %v433 = vmul.f32 %v430, %v432
      %v434 = vadd.f32 %v430, %v433
      %vm435 = vweird.f32 %v430
      %v436 = vsel %vm435, %v430, %v434
      %v437 = vmul.f32 %v429, %v436
      %v438 = vsub.f32 %v422, %v437
      %v439 = vmul.f32 %v438, %v438
      %v440 = vsel %vm426, %v439, 0.0
      %441 = vadd.xlane.f32.xlu0 %v440
      %v442 = vpop.xlane.xlu0 %441
      %v443 = vmul.f32 %v442, %v436
      %v444 = vadd.f32 %v443, 1e-06
      %v445 = vrsqrt.pop %v444
      %v446 = vmul.f32 %v445, %v444
      %v447 = vmul.f32 %v446, %v445
      %v448 = vmul.f32 0.5, %v447
      %v449 = vsub.f32 1.5, %v448
      %v450 = vmul.f32 %v445, %v449
      %vm451 = vweird.f32 %v444
      %vm452 = vweird.f32 %v445
      %vm453 = vmor %vm451, %vm452
      %v454 = vsel %vm453, %v445, %v450
      %v455 = vmul.f32 %v438, %v454
      %v456 = vadd.f32 %v424, 1.0
      %v458 = vperm.slane %v456, 0
      %v460 = vmul.f32 %v455, %v458
      %v462 = vperm.slane %v423, 0
      %v464 = vadd.f32 %v460, %v462
      %v465 = vld [vmem:[%s4] sm:$0xf]
      %v466 = vld [vmem:[%s4 + $0x4] sm:$0xf]
      %v467 = vld [vmem:[%s4 + $0x8] sm:$0xf]
      %v468 = vld [vmem:[%s4 + $0xc] sm:$0xf]
      %v469 = vld [vmem:[%s5] sm:$0x1]
      %v470 = vpack.c.bf16 %v464, %v464
      %v472 = vperm.slane %v469, 0
      %v478 = vunpack.c.l.b16 %v465
      %v479 = vunpack.c.l.b16 %v466
      %v480 = vunpack.c.l.b16 %v467
      %v481 = vunpack.c.l.b16 %v468
      %v482 = vpack.c.b16 %v479, %v478
      %v483 = vpack.c.b16 %v481, %v480
      %v487 = vsel %vm426, %v470, 0
      %489 = vmatpush.bf16.msra.mxu0 0
      %490 = vmatpush.bf16.msra.mxu0 0
      %491 = vmatpush.bf16.msra.mxu0 0
      %492 = vmatpush.bf16.msra.mxu0 0
      %493 = vmatpush.bf16.msra.mxu0 0
      %494 = vmatpush.bf16.msra.mxu0 0
      %495 = vmatpush.bf16.msra.mxu0 %v483
      %496 = vmatpush.bf16.msra.mxu0 %v482
      %497 = vmatmul.bf16.gmra.mxu0 %v487
      %v498 = vpop.f32.mrf.mxu0
      %v499 = vadd.f32 %v472, %v498
      %v500 = vpop.f32.mrf.mxu0
      %501 = vdwg.mxu0
      %v502 = vpack.c.bf16 %v499, %v499
      %v504 = vunpack.c.l.b16 %v502
      %v505 = vpack.c.b16 %v504, %v504
      %506 = vrot.lane.b32.xlu0 %v505, 96
      %v507 = vpop.permute.xlu0 %506
      %vm508 = vcmask 64512
      %v510 = vsel %vm508, %v502, 0
      %v513 = vsel %vm508, %v507, 0
      %515 = vmatpush.bf16.xpose.msra.mxu0 0
      %516 = vmatpush.bf16.xpose.msra.mxu0 0
      %517 = vmatpush.bf16.xpose.msra.mxu0 0
      %518 = vmatpush.bf16.xpose.msra.mxu0 0
      %519 = vmatpush.bf16.xpose.msra.mxu0 0
      %520 = vmatpush.bf16.xpose.msra.mxu0 0
      %521 = vmatpush.bf16.xpose.msra.mxu0 0
      %522 = vmatpush.bf16.xpose.msra.mxu0 %v513
      %523 = vmatmul.bf16.gmra.mxu0 %v510
      %v524 = vpop.f32.mrf.mxu0
      %v525 = vadd.f32 0.0, %v524
      %v526 = vpop.f32.mrf.mxu0
      %527 = vdwg.mxu0
      %v528 = vmul.f32 %v525, 0.35355338
      %v529 = vsel %vm508, %v528, -inf
      %530 = vmax.xlane.f32.xlu0 %v529
      %v531 = vpop.xlane.xlu0 %530
      %v532 = vsub.f32 %v528, %v531
      %v533 = vmul.f32 %v532, 1.442695
      %v534 = vpow.pop %v533
      %v535 = vsel %vm508, %v534, 0.0
      %536 = vadd.xlane.f32.xlu0 %v535
      %v537 = vpop.xlane.xlu0 %536
      %v538 = vpack.c.bf16 %v534, %v534
      %539 = vrot.lane.b32.xlu0 %v505, 64
      %v540 = vpop.permute.xlu0 %539
      %v542 = vsel %vm508, %v538, 0
      %vm544 = vcmask 1043456
      %v546 = vsel %vm544, %v540, 0
      %548 = vmatpush.bf16.msra.mxu0 0
      %549 = vmatpush.bf16.msra.mxu0 0
      %550 = vmatpush.bf16.msra.mxu0 0
      %551 = vmatpush.bf16.msra.mxu0 0
      %552 = vmatpush.bf16.msra.mxu0 0
      %553 = vmatpush.bf16.msra.mxu0 0
      %554 = vmatpush.bf16.msra.mxu0 0
      %555 = vmatpush.bf16.msra.mxu0 %v546
      %556 = vmatmul.bf16.gmra.mxu0 %v542
      %v557 = vpop.f32.mrf.mxu0
      %v558 = vadd.f32 0.0, %v557
      %v559 = vpop.f32.mrf.mxu0
      %560 = vdwg.mxu0
      %v561 = vrcp.pop %v537
      %v562 = vmul.f32 %v558, %v561
      %563 = vrot.lane.b32.xlu0 %v505, 120
      %v564 = vpop.permute.xlu0 %563
      %565 = vrot.lane.b32.xlu0 %v505, 88
      %v566 = vpop.permute.xlu0 %565
      %v568 = vsel %vm508, %v564, 0
      %v571 = vsel %vm508, %v566, 0
      %573 = vmatpush.bf16.xpose.msra.mxu0 0
      %574 = vmatpush.bf16.xpose.msra.mxu0 0
      %575 = vmatpush.bf16.xpose.msra.mxu0 0
      %576 = vmatpush.bf16.xpose.msra.mxu0 0
      %577 = vmatpush.bf16.xpose.msra.mxu0 0
      %578 = vmatpush.bf16.xpose.msra.mxu0 0
      %579 = vmatpush.bf16.xpose.msra.mxu0 0
      %580 = vmatpush.bf16.xpose.msra.mxu0 %v571
      %581 = vmatmul.bf16.gmra.mxu0 %v568
      %v582 = vpop.f32.mrf.mxu0
      %v583 = vadd.f32 0.0, %v582
      %v584 = vpop.f32.mrf.mxu0
      %585 = vdwg.mxu0
      %v586 = vmul.f32 %v583, 0.35355338
      %v587 = vsel %vm508, %v586, -inf
      %588 = vmax.xlane.f32.xlu0 %v587
      %v589 = vpop.xlane.xlu0 %588
      %v590 = vsub.f32 %v586, %v589
      %v591 = vmul.f32 %v590, 1.442695
      %v592 = vpow.pop %v591
      %v593 = vsel %vm508, %v592, 0.0
      %594 = vadd.xlane.f32.xlu0 %v593
      %v595 = vpop.xlane.xlu0 %594
      %v596 = vpack.c.bf16 %v592, %v592
      %597 = vrot.lane.b32.xlu0 %v505, 56
      %v598 = vpop.permute.xlu0 %597
      %v600 = vsel %vm508, %v596, 0
      %v603 = vsel %vm544, %v598, 0
      %605 = vmatpush.bf16.msra.mxu0 0
      %606 = vmatpush.bf16.msra.mxu0 0
      %607 = vmatpush.bf16.msra.mxu0 0
      %608 = vmatpush.bf16.msra.mxu0 0
      %609 = vmatpush.bf16.msra.mxu0 0
      %610 = vmatpush.bf16.msra.mxu0 0
      %611 = vmatpush.bf16.msra.mxu0 0
      %612 = vmatpush.bf16.msra.mxu0 %v603
      %613 = vmatmul.bf16.gmra.mxu0 %v600
      %v614 = vpop.f32.mrf.mxu0
      %v615 = vadd.f32 0.0, %v614
      %v616 = vpop.f32.mrf.mxu0
      %617 = vdwg.mxu0
      %v618 = vrcp.pop %v595
      %v619 = vmul.f32 %v615, %v618
      %620 = vrot.lane.b32.xlu0 %v505, 112
      %v621 = vpop.permute.xlu0 %620
      %622 = vrot.lane.b32.xlu0 %v505, 80
      %v623 = vpop.permute.xlu0 %622
      %v625 = vsel %vm508, %v621, 0
      %v628 = vsel %vm508, %v623, 0
      %630 = vmatpush.bf16.xpose.msra.mxu0 0
      %631 = vmatpush.bf16.xpose.msra.mxu0 0
      %632 = vmatpush.bf16.xpose.msra.mxu0 0
      %633 = vmatpush.bf16.xpose.msra.mxu0 0
      %634 = vmatpush.bf16.xpose.msra.mxu0 0
      %635 = vmatpush.bf16.xpose.msra.mxu0 0
      %636 = vmatpush.bf16.xpose.msra.mxu0 0
      %637 = vmatpush.bf16.xpose.msra.mxu0 %v628
      %638 = vmatmul.bf16.gmra.mxu0 %v625
      %v639 = vpop.f32.mrf.mxu0
      %v640 = vadd.f32 0.0, %v639
      %v641 = vpop.f32.mrf.mxu0
      %642 = vdwg.mxu0
      %v643 = vmul.f32 %v640, 0.35355338
      %v644 = vsel %vm508, %v643, -inf
      %645 = vmax.xlane.f32.xlu0 %v644
      %v646 = vpop.xlane.xlu0 %645
      %v647 = vsub.f32 %v643, %v646
      %v648 = vmul.f32 %v647, 1.442695
      %v649 = vpow.pop %v648
      %v650 = vsel %vm508, %v649, 0.0
      %651 = vadd.xlane.f32.xlu0 %v650
      %v652 = vpop.xlane.xlu0 %651
      %v653 = vpack.c.bf16 %v649, %v649
      %654 = vrot.lane.b32.xlu0 %v505, 48
      %v655 = vpop.permute.xlu0 %654
      %v657 = vsel %vm508, %v653, 0
      %v660 = vsel %vm544, %v655, 0
      %662 = vmatpush.bf16.msra.mxu0 0
      %663 = vmatpush.bf16.msra.mxu0 0
      %664 = vmatpush.bf16.msra.mxu0 0
      %665 = vmatpush.bf16.msra.mxu0 0
      %666 = vmatpush.bf16.msra.mxu0 0
      %667 = vmatpush.bf16.msra.mxu0 0
      %668 = vmatpush.bf16.msra.mxu0 0
      %669 = vmatpush.bf16.msra.mxu0 %v660
      %670 = vmatmul.bf16.gmra.mxu0 %v657
      %v671 = vpop.f32.mrf.mxu0
      %v672 = vadd.f32 0.0, %v671
      %v673 = vpop.f32.mrf.mxu0
      %674 = vdwg.mxu0
      %v675 = vrcp.pop %v652
      %v676 = vmul.f32 %v672, %v675
      %677 = vrot.lane.b32.xlu0 %v505, 104
      %v678 = vpop.permute.xlu0 %677
      %679 = vrot.lane.b32.xlu0 %v505, 72
      %v680 = vpop.permute.xlu0 %679
      %v682 = vsel %vm508, %v678, 0
      %v685 = vsel %vm508, %v680, 0
      %687 = vmatpush.bf16.xpose.msra.mxu0 0
      %688 = vmatpush.bf16.xpose.msra.mxu0 0
      %689 = vmatpush.bf16.xpose.msra.mxu0 0
      %690 = vmatpush.bf16.xpose.msra.mxu0 0
      %691 = vmatpush.bf16.xpose.msra.mxu0 0
      %692 = vmatpush.bf16.xpose.msra.mxu0 0
      %693 = vmatpush.bf16.xpose.msra.mxu0 0
      %694 = vmatpush.bf16.xpose.msra.mxu0 %v685
      %695 = vmatmul.bf16.gmra.mxu0 %v682
      %v696 = vpop.f32.mrf.mxu0
      %v697 = vadd.f32 0.0, %v696
      %v698 = vpop.f32.mrf.mxu0
      %699 = vdwg.mxu0
      %v700 = vmul.f32 %v697, 0.35355338
      %v701 = vsel %vm508, %v700, -inf
      %702 = vmax.xlane.f32.xlu0 %v701
      %v703 = vpop.xlane.xlu0 %702
      %v704 = vsub.f32 %v700, %v703
      %v705 = vmul.f32 %v704, 1.442695
      %v706 = vpow.pop %v705
      %v707 = vsel %vm508, %v706, 0.0
      %708 = vadd.xlane.f32.xlu0 %v707
      %v709 = vpop.xlane.xlu0 %708
      %v710 = vpack.c.bf16 %v706, %v706
      %711 = vrot.lane.b32.xlu0 %v505, 40
      %v712 = vpop.permute.xlu0 %711
      %v714 = vsel %vm508, %v710, 0
      %v717 = vsel %vm544, %v712, 0
      %719 = vmatpush.bf16.msra.mxu0 0
      %720 = vmatpush.bf16.msra.mxu0 0
      %721 = vmatpush.bf16.msra.mxu0 0
      %722 = vmatpush.bf16.msra.mxu0 0
      %723 = vmatpush.bf16.msra.mxu0 0
      %724 = vmatpush.bf16.msra.mxu0 0
      %725 = vmatpush.bf16.msra.mxu0 0
      %726 = vmatpush.bf16.msra.mxu0 %v717
      %727 = vmatmul.bf16.gmra.mxu0 %v714
      %v728 = vpop.f32.mrf.mxu0
      %v729 = vadd.f32 0.0, %v728
      %v730 = vpop.f32.mrf.mxu0
      %731 = vdwg.mxu0
      %v732 = vrcp.pop %v709
      %v733 = vmul.f32 %v729, %v732
      %735 = vrot.lane.b32.xlu0 %v619, 8
      %v736 = vpop.permute.xlu0 %735
      %739 = vrot.lane.b32.xlu0 %v676, 16
      %v740 = vpop.permute.xlu0 %739
      %743 = vrot.lane.b32.xlu0 %v733, 24
      %v744 = vpop.permute.xlu0 %743
      %v746 = vsel %vm508, %v562, %v736
      %vm747 = vcmask 130048
      %v748 = vsel %vm747, %v746, %v740
      %vm749 = vcmask 195584
      %v750 = vsel %vm749, %v748, %v744
      %v751 = vld [vmem:[%s6] sm:$0xf]
      %v752 = vld [vmem:[%s6 + $0x4] sm:$0xf]
      %v753 = vld [vmem:[%s6 + $0x8] sm:$0xf]
      %v754 = vld [vmem:[%s6 + $0xc] sm:$0xf]
      %v755 = vld [vmem:[%s7] sm:$0x1]
      %v756 = vpack.c.bf16 %v750, %v750
      %v758 = vperm.slane %v755, 0
      %v764 = vunpack.c.l.b16 %v751
      %v765 = vunpack.c.l.b16 %v752
      %v766 = vunpack.c.l.b16 %v753
      %v767 = vunpack.c.l.b16 %v754
      %v768 = vpack.c.b16 %v765, %v764
      %v769 = vpack.c.b16 %v767, %v766
      %v773 = vsel %vm426, %v756, 0
      %775 = vmatpush.bf16.msra.mxu0 0
      %776 = vmatpush.bf16.msra.mxu0 0
      %777 = vmatpush.bf16.msra.mxu0 0
      %778 = vmatpush.bf16.msra.mxu0 0
      %779 = vmatpush.bf16.msra.mxu0 0
      %780 = vmatpush.bf16.msra.mxu0 0
      %781 = vmatpush.bf16.msra.mxu0 %v769
      %782 = vmatpush.bf16.msra.mxu0 %v768
      %783 = vmatmul.bf16.gmra.mxu0 %v773
      %v784 = vpop.f32.mrf.mxu0
      %v785 = vadd.f32 %v758, %v784
      %v786 = vpop.f32.mrf.mxu0
      %787 = vdwg.mxu0
      %v789 = vperm.slane %v425, 0
      %v791 = vmul.f32 %v789, %v785
      %v792 = vadd.f32 %v422, %v791
      %793 = vst.msk [vmem:[%s420] sm:$0xff] %vm426, %v792
      %p794 = scmp.lt.s32.totalorder %s23, 1
      %s795 = scalar_select %p794, %s23, 1
      %p796 = scmp.lt.s32.totalorder %s24, 3
      %s797 = scalar_select %p796, %s24, 3
      %s798 = smul.addr %s795, 4
      %s799 = sadd.s32 %s797, %s798
      %s800 = smul.addr %s799, 8
      %s801 = scalar_lea.vmem %s8, %s800
      // Predicated region
      $region53: #{flav_block.11} parent=51 // pred_check
        %p802 = pneg %p247
      $region54: #{flav_block.11} parent=51 // pred_check_branch
        %804 = sbr.rel (%p802) target = $region56
      $region55: #{flav_block.11} parent=51 // pred_region
        _
      $region56: #{flav_block.11} parent=51 // pred_fallthru
        _
    $region52: #{flav_block.11} parent=5 // pred_fallthru
      _
    %p805 = scmp.le.s32.totalorder 2, %s14
    // Predicated region
    $region57: #{flav_block.11} parent=5 // pred_check
      %p806 = pneg %p805
    $region58: #{flav_block.11} parent=5 // pred_check_branch
      %808 = sbr.rel (%p806) target = $region60
    $region59: #{flav_block.11} parent=5 // pred_region
      %s809 = ssub.s32 %s14, 2
      // Predicated region
      $region61: #{flav_block.11} parent=59 // pred_check
        %p810 = pneg %p253
      $region62: #{flav_block.11} parent=59 // pred_check_branch
        %812 = sbr.rel (%p810) target = $region64
      $region63: #{flav_block.11} parent=59 // pred_region
        %p813 = scmp.lt.s32.totalorder %s25, 1
        %s814 = scalar_select %p813, %s25, 1
        %p815 = scmp.lt.s32.totalorder %s26, 3
        %s816 = scalar_select %p815, %s26, 3
        %s817 = smul.addr %s814, 4
        %s818 = sadd.s32 %s816, %s817
        %s819 = smul.addr %s818, 8
        %s820 = scalar_lea.vmem %s8, %s819
      $region64: #{flav_block.11} parent=59 // pred_fallthru
        _
    $region60: #{flav_block.11} parent=5 // pred_fallthru
      _
  $region6: #{flav_block.11} parent=0 // loop_footer
    %s18 = sadd.s32 1, %s14
  $region7: #{flav_block.11} parent=0 // loop_footer_branch
    %13 = sbr.rel target = $region3
  $region8: #{flav_block.11} parent=0 // loop_exit
    _

// kernel: flav_block.15
$region0: #{flav_block.15}
  #allocation0 [shape = 'u32[]', space=smem, size = 0x4, offset = 0x4, fixed_abs, tag = 'smem constant byte address 0x4 - core index']
  #allocation1 [shape = 'u32[72,128]{1,0:T(1,128)}', space=vmem, size = 0x9000, scoped, tag = 'internal scratch']
  %s0 = inlined_call_operand.vmem [shape: f32[8,32], index: 0, kind: input, shape index: {}]
  %s1 = inlined_call_operand.vmem [shape: f32[8,32], index: 1, kind: input, shape index: {}]
  %s2 = inlined_call_operand.vmem [shape: bf16[32,32], index: 2, kind: input, shape index: {}]
  %s3 = inlined_call_operand.vmem [shape: f32[1,32], index: 3, kind: input, shape index: {}]
  %s4 = inlined_call_operand.vmem [shape: bf16[32,96], index: 4, kind: input, shape index: {}]
  %s5 = inlined_call_operand.vmem [shape: f32[1,96], index: 5, kind: input, shape index: {}]
  %s6 = inlined_call_operand.vmem [shape: f32[8,96], index: 6, kind: output, shape index: {}]
  %s7 = sld [smem:[#allocation0]]
  $region34: #{flav_block.15} parent=0
    _
  %s9 = ssub.s32 1, %s7
  %s10 = scalar_select 0, %s9, %s7
  // Predicated region
  $region2: #{flav_block.15} parent=0 // pred_check
    _
  $region3: #{flav_block.15} parent=0 // pred_check_branch
    %12 = sbr.rel (0) target = $region5
  $region4: #{flav_block.15} parent=0 // pred_region
    _
  $region5: #{flav_block.15} parent=0 // pred_fallthru
    _
  // Predicated region
  $region6: #{flav_block.15} parent=0 // pred_check
    _
  $region7: #{flav_block.15} parent=0 // pred_check_branch
    %14 = sbr.rel (0) target = $region9
  $region8: #{flav_block.15} parent=0 // pred_region
    _
  $region9: #{flav_block.15} parent=0 // pred_fallthru
    _
  // Predicated region
  $region10: #{flav_block.15} parent=0 // pred_check
    _
  $region11: #{flav_block.15} parent=0 // pred_check_branch
    %16 = sbr.rel (0) target = $region13
  $region12: #{flav_block.15} parent=0 // pred_region
    _
  $region13: #{flav_block.15} parent=0 // pred_fallthru
    _
  // Predicated region
  $region14: #{flav_block.15} parent=0 // pred_check
    _
  $region15: #{flav_block.15} parent=0 // pred_check_branch
    %18 = sbr.rel (0) target = $region17
  $region16: #{flav_block.15} parent=0 // pred_region
    _
  $region17: #{flav_block.15} parent=0 // pred_fallthru
    _
  // Predicated region
  $region18: #{flav_block.15} parent=0 // pred_check
    _
  $region19: #{flav_block.15} parent=0 // pred_check_branch
    %20 = sbr.rel (0) target = $region21
  $region20: #{flav_block.15} parent=0 // pred_region
    _
  $region21: #{flav_block.15} parent=0 // pred_fallthru
    _
  // Predicated region
  $region22: #{flav_block.15} parent=0 // pred_check
    _
  $region23: #{flav_block.15} parent=0 // pred_check_branch
    %22 = sbr.rel (0) target = $region25
  $region24: #{flav_block.15} parent=0 // pred_region
    _
  $region25: #{flav_block.15} parent=0 // pred_fallthru
    _
  %v24 = vld [vmem:[%s0] sm:$0xff]
  %v25 = vld [vmem:[%s2] sm:$0xf]
  %v26 = vld [vmem:[%s2 + $0x4] sm:$0xf]
  %v27 = vld [vmem:[%s2 + $0x8] sm:$0xf]
  %v28 = vld [vmem:[%s2 + $0xc] sm:$0xf]
  %v29 = vld [vmem:[%s3] sm:$0x1]
  %v30 = vpack.c.bf16 %v24, %v24
  %v32 = vperm.slane %v29, 0
  %v38 = vunpack.c.l.b16 %v25
  %v39 = vunpack.c.l.b16 %v26
  %v40 = vunpack.c.l.b16 %v27
  %v41 = vunpack.c.l.b16 %v28
  %v42 = vpack.c.b16 %v39, %v38
  %v43 = vpack.c.b16 %v41, %v40
  %vm46 = vcmask 261120
  %v48 = vsel %vm46, %v30, 0
  %50 = vmatpush.bf16.msra.mxu0 0
  %51 = vmatpush.bf16.msra.mxu0 0
  %52 = vmatpush.bf16.msra.mxu0 0
  %53 = vmatpush.bf16.msra.mxu0 0
  %54 = vmatpush.bf16.msra.mxu0 0
  %55 = vmatpush.bf16.msra.mxu0 0
  %56 = vmatpush.bf16.msra.mxu0 %v43
  %57 = vmatpush.bf16.msra.mxu0 %v42
  %58 = vmatmul.bf16.gmra.mxu0 %v48
  %v59 = vpop.f32.mrf.mxu0
  %v60 = vadd.f32 %v32, %v59
  %v61 = vpop.f32.mrf.mxu0
  %62 = vdwg.mxu0
  %v63 = vld [vmem:[%s1] sm:$0xff]
  %v64 = vadd.f32 %v60, %v63
  %v65 = vxor.u32 %v64, 2147483648
  %v66 = vmul.f32 %v65, 1.442695
  %v67 = vpow.pop %v66
  %v68 = vadd.f32 %v67, 1.0
  %v69 = vrcp.pop %v68
  %v70 = vmul.f32 %v68, %v69
  %v71 = vsub.f32 1.0, %v70
  %v72 = vmul.f32 %v69, %v71
  %v73 = vadd.f32 %v69, %v72
  %vm74 = vweird.f32 %v68
  %vm75 = vweird.f32 %v69
  %vm76 = vmor %vm74, %vm75
  %v77 = vsel %vm76, %v69, %v73
  %v78 = vand.u32 2147483647, %v68
  %vm79 = vcmp.eq.f32.partialorder %v78, 8.507059e+37
  %v80 = vand.u32 %v68, 2147483648
  %v81 = vor.u32 1.1754944e-38, %v80
  %v82 = vsel %vm79, %v81, %v77
  %v83 = vmul.f32 1.0, %v82
  %v84 = vmul.f32 %v64, %v83
  %v85 = vld [vmem:[%s4] sm:$0xf]
  %v86 = vld [vmem:[%s4 + $0x4] sm:$0xf]
  %v87 = vld [vmem:[%s4 + $0x8] sm:$0xf]
  %v88 = vld [vmem:[%s4 + $0xc] sm:$0xf]
  %v89 = vld [vmem:[%s5] sm:$0x1]
  %v90 = vpack.c.bf16 %v84, %v84
  %v92 = vperm.slane %v89, 0
  %v98 = vunpack.c.l.b16 %v85
  %v99 = vunpack.c.l.b16 %v86
  %v100 = vunpack.c.l.b16 %v87
  %v101 = vunpack.c.l.b16 %v88
  %v102 = vpack.c.b16 %v99, %v98
  %v103 = vpack.c.b16 %v101, %v100
  %v107 = vsel %vm46, %v90, 0
  %109 = vmatpush.bf16.msra.mxu0 0
  %110 = vmatpush.bf16.msra.mxu0 0
  %111 = vmatpush.bf16.msra.mxu0 0
  %112 = vmatpush.bf16.msra.mxu0 0
  %113 = vmatpush.bf16.msra.mxu0 0
  %114 = vmatpush.bf16.msra.mxu0 0
  %115 = vmatpush.bf16.msra.mxu0 %v103
  %116 = vmatpush.bf16.msra.mxu0 %v102
  %117 = vmatmul.bf16.gmra.mxu0 %v107
  %v118 = vpop.f32.mrf.mxu0
  %v119 = vadd.f32 %v92, %v118
  %v120 = vpop.f32.mrf.mxu0
  %121 = vdwg.mxu0
  %vm122 = vcmask 785408
  %123 = vst.msk [vmem:[%s6] sm:$0xff] %vm122, %v119
  // Predicated region
  $region26: #{flav_block.15} parent=0 // pred_check
    _
  $region27: #{flav_block.15} parent=0 // pred_check_branch
    %125 = sbr.rel (0) target = $region29
  $region28: #{flav_block.15} parent=0 // pred_region
    _
  $region29: #{flav_block.15} parent=0 // pred_fallthru
    _
  // Predicated region
  $region30: #{flav_block.15} parent=0 // pred_check
    _
  $region31: #{flav_block.15} parent=0 // pred_check_branch
    %127 = sbr.rel (0) target = $region33
  $region32: #{flav_block.15} parent=0 // pred_region
    _
  $region33: #{flav_block.15} parent=0 // pred_fallthru
    _

// kernel: flav_block.12
$region0: #{flav_block.12}
  #allocation0 [shape = 'u32[]', space=smem, size = 0x4, offset = 0x4, fixed_abs, tag = 'smem constant byte address 0x4 - core index']
  #allocation1 [shape = 'u32[72,128]{1,0:T(1,128)}', space=vmem, size = 0x9000, scoped, tag = 'internal scratch']
  %s0 = inlined_call_operand.vmem [shape: f32[2,8,4,32], index: 0, kind: input, shape index: {}]
  %s1 = inlined_call_operand.vmem [shape: f32[2,1,4,32], index: 1, kind: input, shape index: {}]
  %s2 = inlined_call_operand.vmem [shape: f32[2,1,4,32], index: 2, kind: input, shape index: {}]
  %s3 = inlined_call_operand.vmem [shape: f32[2,1,4,32], index: 3, kind: input, shape index: {}]
  %s4 = inlined_call_operand.vmem [shape: bf16[32,96], index: 4, kind: input, shape index: {}]
  %s5 = inlined_call_operand.vmem [shape: f32[1,96], index: 5, kind: input, shape index: {}]
  %s6 = inlined_call_operand.vmem [shape: bf16[32,32], index: 6, kind: input, shape index: {}]
  %s7 = inlined_call_operand.vmem [shape: f32[1,32], index: 7, kind: input, shape index: {}]
  %s8 = inlined_call_operand.vmem [shape: f32[2,8,4,32], index: 8, kind: output, shape index: {}]
  %s9 = sld [smem:[#allocation0]]
  $region65: #{flav_block.12} parent=0
    _
  %s11 = ssub.s32 1, %s9
  %s12 = scalar_select 0, %s11, %s9
  loop: start=0, step=1, limit=10
  $region2: #{flav_block.12} parent=0 // loop_pre_header
    _
  $region3: #{flav_block.12} parent=0 // loop_header
    %s14 = sphi 0, %s18
    %p15 = scmp.ge.s32.totalorder %s14, 10
    %s21 = sphi 0, %s33
    %s22 = sphi 0, %s29
    %s23 = sphi 0, %s21
    %s24 = sphi 0, %s22
    %s25 = sphi 0, %s23
    %s26 = sphi 0, %s24
    %s38 = sphi 0, %s40
    %s41 = sphi 0, %s38
    %s42 = sphi 0, %s41
    %s58 = sphi 0, %s42
    %s64 = sphi 0, %s66
    %s67 = sphi 0, %s64
    %s68 = sphi 0, %s67
    %s84 = sphi 0, %s68
    %s90 = sphi 0, %s92
    %s93 = sphi 0, %s90
    %s94 = sphi 0, %s93
    %s110 = sphi 0, %s94
    %s116 = sphi 0, %s118
    %s119 = sphi 0, %s116
    %s120 = sphi 0, %s119
    %s136 = sphi 0, %s120
    %s140 = sphi 0, %s140
    %s142 = sphi 0, %s140
    %s143 = sphi 0, %s142
    %s157 = sphi 0, %s143
    %s161 = sphi 0, %s161
    %s163 = sphi 0, %s161
    %s164 = sphi 0, %s163
    %s178 = sphi 0, %s164
    %s182 = sphi 0, %s182
    %s184 = sphi 0, %s182
    %s185 = sphi 0, %s184
    %s199 = sphi 0, %s185
    %s203 = sphi 0, %s203
    %s205 = sphi 0, %s203
    %s206 = sphi 0, %s205
    %s220 = sphi 0, %s206
    %s228 = sphi 0, %s230
    %s231 = sphi 0, %s228
    %s232 = sphi 0, %s231
    %s248 = sphi 0, %s232
  $region4: #{flav_block.12} parent=0 // loop_header_branch
    %17 = sbr.rel (%p15) target = $region8
  $region5: #{flav_block.12} parent=0 // loop_body
    %s19 = ssub.s32 %s14, 1
    %s20 = ssub.s32 %s14, 2
    %s27 = sadd.s32 1, %s22
    %p28 = scmp.ge.s32.totalorder %s27, 4
    %s29 = scalar_select %p28, 0, %s27
    %s30 = sadd.s32 1, %s21
    %s31 = scalar_select %p28, %s30, %s21
    %p32 = scmp.ge.s32.totalorder %s31, 2
    %s33 = scalar_select %p32, 0, %s31
    %s34 = ssub.s32 %s21, %s33
    %s35 = ssub.s32 %s22, %s29
    %s36 = sor.u32 %s34, %s35
    %p37 = scmp.eq.s32.totalorder %s36, 0
    %s39 = sadd.s32 %s38, 1
    %s40 = scalar_select %p37, %s38, %s39
    %p43 = pneg %p37
    %p44 = scmp.eq.s32.totalorder %s14, 7
    %p45 = por %p43, %p44
    %p46 = scmp.ne.s32.totalorder %s38, %s41
    %p47 = scmp.eq.s32.totalorder %s14, 0
    %p48 = por %p46, %p47
    %p49 = scmp.ne.s32.totalorder %s38, %s41
    %p50 = scmp.eq.s32.totalorder %s19, 7
    %p51 = por %p49, %p50
    %p52 = scmp.ne.s32.totalorder %s41, %s42
    %p53 = scmp.eq.s32.totalorder %s19, 0
    %p54 = por %p52, %p53
    %p55 = scmp.ne.s32.totalorder %s41, %s42
    %p56 = scmp.eq.s32.totalorder %s20, 7
    %p57 = por %p55, %p56
    %p59 = scmp.ne.s32.totalorder %s42, %s58
    %p60 = scmp.eq.s32.totalorder %s20, 0
    %p61 = por %p59, %p60
    %s62 = ssub.s32 %s21, %s33
    %p63 = scmp.eq.s32.totalorder %s62, 0
    %s65 = sadd.s32 %s64, 1
    %s66 = scalar_select %p63, %s64, %s65
    %p69 = pneg %p63
    %p70 = scmp.eq.s32.totalorder %s14, 7
    %p71 = por %p69, %p70
    %p72 = scmp.ne.s32.totalorder %s64, %s67
    %p73 = scmp.eq.s32.totalorder %s14, 0
    %p74 = por %p72, %p73
    %p75 = scmp.ne.s32.totalorder %s64, %s67
    %p76 = scmp.eq.s32.totalorder %s19, 7
    %p77 = por %p75, %p76
    %p78 = scmp.ne.s32.totalorder %s67, %s68
    %p79 = scmp.eq.s32.totalorder %s19, 0
    %p80 = por %p78, %p79
    %p81 = scmp.ne.s32.totalorder %s67, %s68
    %p82 = scmp.eq.s32.totalorder %s20, 7
    %p83 = por %p81, %p82
    %p85 = scmp.ne.s32.totalorder %s68, %s84
    %p86 = scmp.eq.s32.totalorder %s20, 0
    %p87 = por %p85, %p86
    %s88 = ssub.s32 %s21, %s33
    %p89 = scmp.eq.s32.totalorder %s88, 0
    %s91 = sadd.s32 %s90, 1
    %s92 = scalar_select %p89, %s90, %s91
    %p95 = pneg %p89
    %p96 = scmp.eq.s32.totalorder %s14, 7
    %p97 = por %p95, %p96
    %p98 = scmp.ne.s32.totalorder %s90, %s93
    %p99 = scmp.eq.s32.totalorder %s14, 0
    %p100 = por %p98, %p99
    %p101 = scmp.ne.s32.totalorder %s90, %s93
    %p102 = scmp.eq.s32.totalorder %s19, 7
    %p103 = por %p101, %p102
    %p104 = scmp.ne.s32.totalorder %s93, %s94
    %p105 = scmp.eq.s32.totalorder %s19, 0
    %p106 = por %p104, %p105
    %p107 = scmp.ne.s32.totalorder %s93, %s94
    %p108 = scmp.eq.s32.totalorder %s20, 7
    %p109 = por %p107, %p108
    %p111 = scmp.ne.s32.totalorder %s94, %s110
    %p112 = scmp.eq.s32.totalorder %s20, 0
    %p113 = por %p111, %p112
    %s114 = ssub.s32 %s21, %s33
    %p115 = scmp.eq.s32.totalorder %s114, 0
    %s117 = sadd.s32 %s116, 1
    %s118 = scalar_select %p115, %s116, %s117
    %p121 = pneg %p115
    %p122 = scmp.eq.s32.totalorder %s14, 7
    %p123 = por %p121, %p122
    %p124 = scmp.ne.s32.totalorder %s116, %s119
    %p125 = scmp.eq.s32.totalorder %s14, 0
    %p126 = por %p124, %p125
    %p127 = scmp.ne.s32.totalorder %s116, %s119
    %p128 = scmp.eq.s32.totalorder %s19, 7
    %p129 = por %p127, %p128
    %p130 = scmp.ne.s32.totalorder %s119, %s120
    %p131 = scmp.eq.s32.totalorder %s19, 0
    %p132 = por %p130, %p131
    %p133 = scmp.ne.s32.totalorder %s119, %s120
    %p134 = scmp.eq.s32.totalorder %s20, 7
    %p135 = por %p133, %p134
    %p137 = scmp.ne.s32.totalorder %s120, %s136
    %p138 = scmp.eq.s32.totalorder %s20, 0
    %p139 = por %p137, %p138
    %s141 = sadd.s32 %s140, 1
    %p144 = scmp.eq.s32.totalorder %s14, 7
    %p145 = scmp.ne.s32.totalorder %s140, %s142
    %p146 = scmp.eq.s32.totalorder %s14, 0
    %p147 = por %p145, %p146
    %p148 = scmp.ne.s32.totalorder %s140, %s142
    %p149 = scmp.eq.s32.totalorder %s19, 7
    %p150 = por %p148, %p149
    %p151 = scmp.ne.s32.totalorder %s142, %s143
    %p152 = scmp.eq.s32.totalorder %s19, 0
    %p153 = por %p151, %p152
    %p154 = scmp.ne.s32.totalorder %s142, %s143
    %p155 = scmp.eq.s32.totalorder %s20, 7
    %p156 = por %p154, %p155
    %p158 = scmp.ne.s32.totalorder %s143, %s157
    %p159 = scmp.eq.s32.totalorder %s20, 0
    %p160 = por %p158, %p159
    %s162 = sadd.s32 %s161, 1
    %p165 = scmp.eq.s32.totalorder %s14, 7
    %p166 = scmp.ne.s32.totalorder %s161, %s163
    %p167 = scmp.eq.s32.totalorder %s14, 0
    %p168 = por %p166, %p167
    %p169 = scmp.ne.s32.totalorder %s161, %s163
    %p170 = scmp.eq.s32.totalorder %s19, 7
    %p171 = por %p169, %p170
    %p172 = scmp.ne.s32.totalorder %s163, %s164
    %p173 = scmp.eq.s32.totalorder %s19, 0
    %p174 = por %p172, %p173
    %p175 = scmp.ne.s32.totalorder %s163, %s164
    %p176 = scmp.eq.s32.totalorder %s20, 7
    %p177 = por %p175, %p176
    %p179 = scmp.ne.s32.totalorder %s164, %s178
    %p180 = scmp.eq.s32.totalorder %s20, 0
    %p181 = por %p179, %p180
    %s183 = sadd.s32 %s182, 1
    %p186 = scmp.eq.s32.totalorder %s14, 7
    %p187 = scmp.ne.s32.totalorder %s182, %s184
    %p188 = scmp.eq.s32.totalorder %s14, 0
    %p189 = por %p187, %p188
    %p190 = scmp.ne.s32.totalorder %s182, %s184
    %p191 = scmp.eq.s32.totalorder %s19, 7
    %p192 = por %p190, %p191
    %p193 = scmp.ne.s32.totalorder %s184, %s185
    %p194 = scmp.eq.s32.totalorder %s19, 0
    %p195 = por %p193, %p194
    %p196 = scmp.ne.s32.totalorder %s184, %s185
    %p197 = scmp.eq.s32.totalorder %s20, 7
    %p198 = por %p196, %p197
    %p200 = scmp.ne.s32.totalorder %s185, %s199
    %p201 = scmp.eq.s32.totalorder %s20, 0
    %p202 = por %p200, %p201
    %s204 = sadd.s32 %s203, 1
    %p207 = scmp.eq.s32.totalorder %s14, 7
    %p208 = scmp.ne.s32.totalorder %s203, %s205
    %p209 = scmp.eq.s32.totalorder %s14, 0
    %p210 = por %p208, %p209
    %p211 = scmp.ne.s32.totalorder %s203, %s205
    %p212 = scmp.eq.s32.totalorder %s19, 7
    %p213 = por %p211, %p212
    %p214 = scmp.ne.s32.totalorder %s205, %s206
    %p215 = scmp.eq.s32.totalorder %s19, 0
    %p216 = por %p214, %p215
    %p217 = scmp.ne.s32.totalorder %s205, %s206
    %p218 = scmp.eq.s32.totalorder %s20, 7
    %p219 = por %p217, %p218
    %p221 = scmp.ne.s32.totalorder %s206, %s220
    %p222 = scmp.eq.s32.totalorder %s20, 0
    %p223 = por %p221, %p222
    %s224 = ssub.s32 %s21, %s33
    %s225 = ssub.s32 %s22, %s29
    %s226 = sor.u32 %s224, %s225
    %p227 = scmp.eq.s32.totalorder %s226, 0
    %s229 = sadd.s32 %s228, 1
    %s230 = scalar_select %p227, %s228, %s229
    %p233 = pneg %p227
    %p234 = scmp.eq.s32.totalorder %s14, 7
    %p235 = por %p233, %p234
    %p236 = scmp.ne.s32.totalorder %s228, %s231
    %p237 = scmp.eq.s32.totalorder %s14, 0
    %p238 = por %p236, %p237
    %p239 = scmp.ne.s32.totalorder %s228, %s231
    %p240 = scmp.eq.s32.totalorder %s19, 7
    %p241 = por %p239, %p240
    %p242 = scmp.ne.s32.totalorder %s231, %s232
    %p243 = scmp.eq.s32.totalorder %s19, 0
    %p244 = por %p242, %p243
    %p245 = scmp.ne.s32.totalorder %s231, %s232
    %p246 = scmp.eq.s32.totalorder %s20, 7
    %p247 = por %p245, %p246
    %p249 = scmp.ne.s32.totalorder %s232, %s248
    %p250 = scmp.eq.s32.totalorder %s20, 0
    %p251 = por %p249, %p250
    %p252 = scmp.le.s32.totalorder 1, %s14
    %p253 = scmp.lt.s32.totalorder %s14, 9
    %p254 = pnand %p252, %p253
    %p255 = pneg %p254
    // Predicated region
    $region9: #{flav_block.12} parent=5 // pred_check
      _
    $region10: #{flav_block.12} parent=5 // pred_check_branch
      %257 = sbr.rel (%p254) target = $region12
    $region11: #{flav_block.12} parent=5 // pred_region
      %s258 = ssub.s32 %s14, 1
      // Predicated region
      $region13: #{flav_block.12} parent=11 // pred_check
        %p259 = pneg %p153
      $region14: #{flav_block.12} parent=11 // pred_check_branch
        %261 = sbr.rel (%p259) target = $region16
      $region15: #{flav_block.12} parent=11 // pred_region
        _
      $region16: #{flav_block.12} parent=11 // pred_fallthru
        _
      // Predicated region
      $region17: #{flav_block.12} parent=11 // pred_check
        %p262 = pneg %p174
      $region18: #{flav_block.12} parent=11 // pred_check_branch
        %264 = sbr.rel (%p262) target = $region20
      $region19: #{flav_block.12} parent=11 // pred_region
        _
      $region20: #{flav_block.12} parent=11 // pred_fallthru
        _
      // Predicated region
      $region21: #{flav_block.12} parent=11 // pred_check
        %p265 = pneg %p195
      $region22: #{flav_block.12} parent=11 // pred_check_branch
        %267 = sbr.rel (%p265) target = $region24
      $region23: #{flav_block.12} parent=11 // pred_region
        _
      $region24: #{flav_block.12} parent=11 // pred_fallthru
        _
      // Predicated region
      $region25: #{flav_block.12} parent=11 // pred_check
        %p268 = pneg %p216
      $region26: #{flav_block.12} parent=11 // pred_check_branch
        %270 = sbr.rel (%p268) target = $region28
      $region27: #{flav_block.12} parent=11 // pred_region
        _
      $region28: #{flav_block.12} parent=11 // pred_fallthru
        _
    $region12: #{flav_block.12} parent=5 // pred_fallthru
      _
    %p271 = scmp.lt.s32.totalorder %s14, 8
    // Predicated region
    $region29: #{flav_block.12} parent=5 // pred_check
      %p272 = pneg %p271
    $region30: #{flav_block.12} parent=5 // pred_check_branch
      %274 = sbr.rel (%p272) target = $region32
    $region31: #{flav_block.12} parent=5 // pred_region
      // Predicated region
      $region33: #{flav_block.12} parent=31 // pred_check
        %p275 = pneg %p48
      $region34: #{flav_block.12} parent=31 // pred_check_branch
        %277 = sbr.rel (%p275) target = $region36
      $region35: #{flav_block.12} parent=31 // pred_region
        %s278 = smul.u32 2, %s22
        %p279 = scmp.lt.s32.totalorder %s21, 1
        %s280 = scalar_select %p279, %s21, 1
        %p281 = scmp.lt.s32.totalorder %s278, 7
        %s282 = scalar_select %p281, %s278, 7
        %s283 = smul.addr %s280, 8
        %s284 = sadd.s32 %s282, %s283
        %s285 = smul.addr %s284, 4
        %s286 = scalar_lea.vmem %s0, %s285
        %s287 = smul.u32 2, %s22
      $region36: #{flav_block.12} parent=31 // pred_fallthru
        _
      // Predicated region
      $region37: #{flav_block.12} parent=31 // pred_check
        %p288 = pneg %p74
      $region38: #{flav_block.12} parent=31 // pred_check_branch
        %290 = sbr.rel (%p288) target = $region40
      $region39: #{flav_block.12} parent=31 // pred_region
        %p291 = scmp.lt.s32.totalorder %s21, 1
        %s292 = scalar_select %p291, %s21, 1
        %s293 = smul.addr %s292, 4
        %s294 = scalar_lea.vmem %s1, %s293
      $region40: #{flav_block.12} parent=31 // pred_fallthru
        _
      // Predicated region
      $region41: #{flav_block.12} parent=31 // pred_check
        %p295 = pneg %p100
      $region42: #{flav_block.12} parent=31 // pred_check_branch
        %297 = sbr.rel (%p295) target = $region44
      $region43: #{flav_block.12} parent=31 // pred_region
        %p298 = scmp.lt.s32.totalorder %s21, 1
        %s299 = scalar_select %p298, %s21, 1
        %s300 = smul.addr %s299, 4
        %s301 = scalar_lea.vmem %s2, %s300
      $region44: #{flav_block.12} parent=31 // pred_fallthru
        _
      // Predicated region
      $region45: #{flav_block.12} parent=31 // pred_check
        %p302 = pneg %p126
      $region46: #{flav_block.12} parent=31 // pred_check_branch
        %304 = sbr.rel (%p302) target = $region48
      $region47: #{flav_block.12} parent=31 // pred_region
        %p305 = scmp.lt.s32.totalorder %s21, 1
        %s306 = scalar_select %p305, %s21, 1
        %s307 = smul.addr %s306, 4
        %s308 = scalar_lea.vmem %s3, %s307
      $region48: #{flav_block.12} parent=31 // pred_fallthru
        _
    $region32: #{flav_block.12} parent=5 // pred_fallthru
      _
    %p309 = scmp.le.s32.totalorder 1, %s14
    %p310 = scmp.lt.s32.totalorder %s14, 9
    %p311 = pnand %p309, %p310
    %p312 = pneg %p311
    // Predicated region
    $region49: #{flav_block.12} parent=5 // pred_check
      _
    $region50: #{flav_block.12} parent=5 // pred_check_branch
      %314 = sbr.rel (%p311) target = $region52
    $region51: #{flav_block.12} parent=5 // pred_region
      %s315 = ssub.s32 %s14, 1
      %s316 = smul.u32 2, %s24
      %p317 = scmp.lt.s32.totalorder %s23, 1
      %s318 = scalar_select %p317, %s23, 1
      %p319 = scmp.lt.s32.totalorder %s316, 7
      %s320 = scalar_select %p319, %s316, 7
      %s321 = smul.addr %s318, 8
      %s322 = sadd.s32 %s320, %s321
      %s323 = smul.addr %s322, 4
      %s324 = scalar_lea.vmem %s0, %s323
      %p325 = pneg %p54
      %p326 = pneg %p51
      %p327 = scmp.lt.s32.totalorder %s23, 1
      %s328 = scalar_select %p327, %s23, 1
      %s329 = smul.addr %s328, 4
      %s330 = scalar_lea.vmem %s1, %s329
      %p331 = pneg %p80
      %p332 = pneg %p77
      %p333 = scmp.lt.s32.totalorder %s23, 1
      %s334 = scalar_select %p333, %s23, 1
      %s335 = smul.addr %s334, 4
      %s336 = scalar_lea.vmem %s2, %s335
      %p337 = pneg %p106
      %p338 = pneg %p103
      %p339 = scmp.lt.s32.totalorder %s23, 1
      %s340 = scalar_select %p339, %s23, 1
      %s341 = smul.addr %s340, 4
      %s342 = scalar_lea.vmem %s3, %s341
      %p343 = pneg %p132
      %p344 = pneg %p129
      %p345 = pneg %p153
      %p346 = pneg %p150
      %p347 = pneg %p174
      %p348 = pneg %p171
      %p349 = pneg %p195
      %p350 = pneg %p192
      %p351 = pneg %p216
      %p352 = pneg %p213
      %p353 = pneg %p244
      %p354 = pneg %p241
      %s355 = smul.u32 2, %s24
      %p356 = scmp.lt.s32.totalorder %s23, 1
      %s357 = scalar_select %p356, %s23, 1
      %p358 = scmp.lt.s32.totalorder %s355, 7
      %s359 = scalar_select %p358, %s355, 7
      %s360 = smul.addr %s357, 8
      %s361 = sadd.s32 %s359, %s360
      %s362 = smul.addr %s361, 4
      %s363 = scalar_lea.vmem %s8, %s362
      %s364 = smul.u32 2, %s24
      %p365 = scmp.lt.s32.totalorder %s23, 1
      %s366 = scalar_select %p365, %s23, 1
      %p367 = scmp.lt.s32.totalorder %s364, 7
      %s368 = scalar_select %p367, %s364, 7
      %s369 = smul.addr %s366, 8
      %s370 = sadd.s32 %s368, %s369
      %s371 = smul.addr %s370, 4
      %s372 = scalar_lea.vmem %s0, %s371
      %s373 = smul.u32 2, %s24
      %p374 = scmp.lt.s32.totalorder %s23, 1
      %s375 = scalar_select %p374, %s23, 1
      %s376 = smul.addr %s375, 4
      %s377 = scalar_lea.vmem %s1, %s376
      %p378 = scmp.lt.s32.totalorder %s23, 1
      %s379 = scalar_select %p378, %s23, 1
      %s380 = smul.addr %s379, 4
      %s381 = scalar_lea.vmem %s2, %s380
      %p382 = scmp.lt.s32.totalorder %s23, 1
      %s383 = scalar_select %p382, %s23, 1
      %s384 = smul.addr %s383, 4
      %s385 = scalar_lea.vmem %s3, %s384
      %s386 = smul.u32 2, %s24
      %p387 = scmp.lt.s32.totalorder %s23, 1
      %s388 = scalar_select %p387, %s23, 1
      %p389 = scmp.lt.s32.totalorder %s386, 7
      %s390 = scalar_select %p389, %s386, 7
      %s391 = smul.addr %s388, 8
      %s392 = sadd.s32 %s390, %s391
      %s393 = smul.addr %s392, 4
      %s394 = scalar_lea.vmem %s8, %s393
      %s395 = smul.u32 2, %s24
      %v397 = vld [vmem:[%s372] sm:$0xf]
      %v398 = vld [vmem:[%s372 + $0x4] sm:$0xf]
      %v399 = vld [vmem:[%s377] sm:$0xf]
      %v400 = vld [vmem:[%s381] sm:$0xf]
      %v401 = vld [vmem:[%s385] sm:$0xf]
      %vm402 = vcmask 257024
      %v403 = vsel %vm402, %v397, 0.0
      %404 = vadd.xlane.f32.xlu0 %v403
      %v405 = vpop.xlane.xlu0 %404
      %v406 = vsel %vm402, %v398, 0.0
      %407 = vadd.xlane.f32.xlu0 %v406
      %v408 = vpop.xlane.xlu0 %407
      %v409 = vrcp.pop 32.0
      %v410 = vmul.f32 32.0, %v409
      %v411 = vsub.f32 1.0, %v410
      %v412 = vmul.f32 %v409, %v411
      %v413 = vadd.f32 %v409, %v412
      %vm414 = vweird.f32 %v409
      %v415 = vsel %vm414, %v409, %v413
      %v416 = vmul.f32 %v405, %v415
      %v417 = vmul.f32 %v408, %v415
      %v418 = vsub.f32 %v397, %v416
      %v419 = vsub.f32 %v398, %v417
      %v420 = vmul.f32 %v418, %v418
      %v421 = vmul.f32 %v419, %v419
      %v422 = vsel %vm402, %v420, 0.0
      %423 = vadd.xlane.f32.xlu0 %v422
      %v424 = vpop.xlane.xlu0 %423
      %v425 = vsel %vm402, %v421, 0.0
      %426 = vadd.xlane.f32.xlu0 %v425
      %v427 = vpop.xlane.xlu0 %426
      %v428 = vmul.f32 %v424, %v415
      %v429 = vmul.f32 %v427, %v415
      %v430 = vadd.f32 %v428, 1e-06
      %v431 = vadd.f32 %v429, 1e-06
      %v432 = vrsqrt.pop %v430
      %v433 = vmul.f32 %v432, %v430
      %v434 = vmul.f32 %v433, %v432
      %v435 = vmul.f32 0.5, %v434
      %v436 = vsub.f32 1.5, %v435
      %v437 = vmul.f32 %v432, %v436
      %vm438 = vweird.f32 %v430
      %vm439 = vweird.f32 %v432
      %vm440 = vmor %vm438, %vm439
      %v441 = vsel %vm440, %v432, %v437
      %v442 = vrsqrt.pop %v431
      %v443 = vmul.f32 %v442, %v431
      %v444 = vmul.f32 %v443, %v442
      %v445 = vmul.f32 0.5, %v444
      %v446 = vsub.f32 1.5, %v445
      %v447 = vmul.f32 %v442, %v446
      %vm448 = vweird.f32 %v431
      %vm449 = vweird.f32 %v442
      %vm450 = vmor %vm448, %vm449
      %v451 = vsel %vm450, %v442, %v447
      %v452 = vmul.f32 %v418, %v441
      %v453 = vmul.f32 %v419, %v451
      %v454 = vadd.f32 %v400, 1.0
      %v455 = vmul.f32 %v452, %v454
      %v456 = vmul.f32 %v453, %v454
      %v457 = vadd.f32 %v455, %v399
      %v458 = vadd.f32 %v456, %v399
      %v459 = vld [vmem:[%s4] sm:$0xf]
      %v460 = vld [vmem:[%s4 + $0x4] sm:$0xf]
      %v461 = vld [vmem:[%s4 + $0x8] sm:$0xf]
      %v462 = vld [vmem:[%s4 + $0xc] sm:$0xf]
      %v463 = vld [vmem:[%s5] sm:$0x1]
      %466 = vst [vmem:[#allocation1] ss:$2 sm:$0xff] %v457
      %s467 = scalar_lea.vmem [#allocation1], 1
      %468 = vst [vmem:[%s467] ss:$2 sm:$0xff] %v458
      %v469 = vld.sshfl [vmem:[#allocation1] sm:$0xff pattern:$0x75316420]
      %v471 = vpack.c.bf16 %v469, %v469
      %v473 = vperm.slane %v463, 0
      %v479 = vunpack.c.l.b16 %v459
      %v480 = vunpack.c.l.b16 %v460
      %v481 = vunpack.c.l.b16 %v461
      %v482 = vunpack.c.l.b16 %v462
      %v483 = vpack.c.b16 %v480, %v479
      %v484 = vpack.c.b16 %v482, %v481
      %vm487 = vcmask 261120
      %v489 = vsel %vm487, %v471, 0
      %491 = vmatpush.bf16.msra.mxu0 0
      %492 = vmatpush.bf16.msra.mxu0 0
      %493 = vmatpush.bf16.msra.mxu0 0
      %494 = vmatpush.bf16.msra.mxu0 0
      %495 = vmatpush.bf16.msra.mxu0 0
      %496 = vmatpush.bf16.msra.mxu0 0
      %497 = vmatpush.bf16.msra.mxu0 %v484
      %498 = vmatpush.bf16.msra.mxu0 %v483
      %499 = vmatmul.bf16.gmra.mxu0 %v489
      %v500 = vpop.f32.mrf.mxu0
      %v501 = vadd.f32 %v473, %v500
      %v502 = vpop.f32.mrf.mxu0
      %503 = vdwg.mxu0
      %v505 = vrot.slane %v501, 4
      %v507 = vpack.c.bf16 %v501, %v501
      %v508 = vpack.c.bf16 %v505, %v505
      %v510 = vunpack.c.l.b16 %v507
      %v511 = vpack.c.b16 %v510, %v510
      %512 = vrot.lane.b32.xlu0 %v511, 96
      %v513 = vpop.permute.xlu0 %512
      %vm514 = vcmask 64512
      %v516 = vsel %vm514, %v507, 0
      %v519 = vsel %vm514, %v513, 0
      %521 = vmatpush.bf16.xpose.msra.mxu0 0
      %522 = vmatpush.bf16.xpose.msra.mxu0 0
      %523 = vmatpush.bf16.xpose.msra.mxu0 0
      %524 = vmatpush.bf16.xpose.msra.mxu0 0
      %525 = vmatpush.bf16.xpose.msra.mxu0 0
      %526 = vmatpush.bf16.xpose.msra.mxu0 0
      %527 = vmatpush.bf16.xpose.msra.mxu0 0
      %528 = vmatpush.bf16.xpose.msra.mxu0 %v519
      %529 = vmatmul.bf16.gmra.mxu0 %v516
      %v530 = vpop.f32.mrf.mxu0
      %v531 = vadd.f32 0.0, %v530
      %v532 = vpop.f32.mrf.mxu0
      %533 = vdwg.mxu0
      %v535 = vunpack.c.l.b16 %v508
      %v536 = vpack.c.b16 %v535, %v535
      %537 = vrot.lane.b32.xlu0 %v536, 96
      %v538 = vpop.permute.xlu0 %537
      %v540 = vsel %vm514, %v508, 0
      %v543 = vsel %vm514, %v538, 0
      %545 = vmatpush.bf16.xpose.msra.mxu0 0
      %546 = vmatpush.bf16.xpose.msra.mxu0 0
      %547 = vmatpush.bf16.xpose.msra.mxu0 0
      %548 = vmatpush.bf16.xpose.msra.mxu0 0
      %549 = vmatpush.bf16.xpose.msra.mxu0 0
      %550 = vmatpush.bf16.xpose.msra.mxu0 0
      %551 = vmatpush.bf16.xpose.msra.mxu0 0
      %552 = vmatpush.bf16.xpose.msra.mxu0 %v543
      %553 = vmatmul.bf16.gmra.mxu0 %v540
      %v554 = vpop.f32.mrf.mxu0
      %v555 = vadd.f32 0.0, %v554
      %v556 = vpop.f32.mrf.mxu0
      %557 = vdwg.mxu0
      %v558 = vmul.f32 %v531, 0.35355338
      %v559 = vmul.f32 %v555, 0.35355338
      %vm560 = vcmask 27648
      %v561 = vsel %vm560, %v558, -inf
      %562 = vmax.xlane.f32.xlu0 %v561
      %v563 = vpop.xlane.xlu0 %562
      %v564 = vsel %vm560, %v559, -inf
      %565 = vmax.xlane.f32.xlu0 %v564
      %v566 = vpop.xlane.xlu0 %565
      %v567 = vsub.f32 %v558, %v563
      %v568 = vsub.f32 %v559, %v566
      %v569 = vmul.f32 %v567, 1.442695
      %v570 = vpow.pop %v569
      %v571 = vmul.f32 %v568, 1.442695
      %v572 = vpow.pop %v571
      %v573 = vsel %vm560, %v570, 0.0
      %574 = vadd.xlane.f32.xlu0 %v573
      %v575 = vpop.xlane.xlu0 %574
      %v576 = vsel %vm560, %v572, 0.0
      %577 = vadd.xlane.f32.xlu0 %v576
      %v578 = vpop.xlane.xlu0 %577
      %v579 = vpack.c.bf16 %v570, %v570
      %v580 = vpack.c.bf16 %v572, %v572
      %581 = vrot.lane.b32.xlu0 %v511, 64
      %v582 = vpop.permute.xlu0 %581
      %vm583 = vcmask 31744
      %v585 = vsel %vm583, %v579, 0
      %vm587 = vcmask 1041408
      %v589 = vsel %vm587, %v582, 0
      %591 = vmatpush.bf16.msra.mxu0 0
      %592 = vmatpush.bf16.msra.mxu0 0
      %593 = vmatpush.bf16.msra.mxu0 0
      %594 = vmatpush.bf16.msra.mxu0 0
      %595 = vmatpush.bf16.msra.mxu0 0
      %596 = vmatpush.bf16.msra.mxu0 0
      %597 = vmatpush.bf16.msra.mxu0 0
      %598 = vmatpush.bf16.msra.mxu0 %v589
      %599 = vmatmul.bf16.gmra.mxu0 %v585
      %v600 = vpop.f32.mrf.mxu0
      %v601 = vadd.f32 0.0, %v600
      %v602 = vpop.f32.mrf.mxu0
      %603 = vdwg.mxu0
      %604 = vrot.lane.b32.xlu0 %v536, 64
      %v605 = vpop.permute.xlu0 %604
      %v607 = vsel %vm583, %v580, 0
      %v610 = vsel %vm587, %v605, 0
      %612 = vmatpush.bf16.msra.mxu0 0
      %613 = vmatpush.bf16.msra.mxu0 0
      %614 = vmatpush.bf16.msra.mxu0 0
      %615 = vmatpush.bf16.msra.mxu0 0
      %616 = vmatpush.bf16.msra.mxu0 0
      %617 = vmatpush.bf16.msra.mxu0 0
      %618 = vmatpush.bf16.msra.mxu0 0
      %619 = vmatpush.bf16.msra.mxu0 %v610
      %620 = vmatmul.bf16.gmra.mxu0 %v607
      %v621 = vpop.f32.mrf.mxu0
      %v622 = vadd.f32 0.0, %v621
      %v623 = vpop.f32.mrf.mxu0
      %624 = vdwg.mxu0
      %v625 = vrcp.pop %v575
      %v626 = vrcp.pop %v578
      %v627 = vmul.f32 %v601, %v625
      %v628 = vmul.f32 %v622, %v626
      %629 = vrot.lane.b32.xlu0 %v511, 120
      %v630 = vpop.permute.xlu0 %629
      %631 = vrot.lane.b32.xlu0 %v511, 88
      %v632 = vpop.permute.xlu0 %631
      %v634 = vsel %vm514, %v630, 0
      %v637 = vsel %vm514, %v632, 0
      %639 = vmatpush.bf16.xpose.msra.mxu0 0
      %640 = vmatpush.bf16.xpose.msra.mxu0 0
      %641 = vmatpush.bf16.xpose.msra.mxu0 0
      %642 = vmatpush.bf16.xpose.msra.mxu0 0
      %643 = vmatpush.bf16.xpose.msra.mxu0 0
      %644 = vmatpush.bf16.xpose.msra.mxu0 0
      %645 = vmatpush.bf16.xpose.msra.mxu0 0
      %646 = vmatpush.bf16.xpose.msra.mxu0 %v637
      %647 = vmatmul.bf16.gmra.mxu0 %v634
      %v648 = vpop.f32.mrf.mxu0
      %v649 = vadd.f32 0.0, %v648
      %v650 = vpop.f32.mrf.mxu0
      %651 = vdwg.mxu0
      %652 = vrot.lane.b32.xlu0 %v536, 120
      %v653 = vpop.permute.xlu0 %652
      %654 = vrot.lane.b32.xlu0 %v536, 88
      %v655 = vpop.permute.xlu0 %654
      %v657 = vsel %vm514, %v653, 0
      %v660 = vsel %vm514, %v655, 0
      %662 = vmatpush.bf16.xpose.msra.mxu0 0
      %663 = vmatpush.bf16.xpose.msra.mxu0 0
      %664 = vmatpush.bf16.xpose.msra.mxu0 0
      %665 = vmatpush.bf16.xpose.msra.mxu0 0
      %666 = vmatpush.bf16.xpose.msra.mxu0 0
      %667 = vmatpush.bf16.xpose.msra.mxu0 0
      %668 = vmatpush.bf16.xpose.msra.mxu0 0
      %669 = vmatpush.bf16.xpose.msra.mxu0 %v660
      %670 = vmatmul.bf16.gmra.mxu0 %v657
      %v671 = vpop.f32.mrf.mxu0
      %v672 = vadd.f32 0.0, %v671
      %v673 = vpop.f32.mrf.mxu0
      %674 = vdwg.mxu0
      %v675 = vmul.f32 %v649, 0.35355338
      %v676 = vmul.f32 %v672, 0.35355338
      %v677 = vsel %vm560, %v675, -inf
      %678 = vmax.xlane.f32.xlu0 %v677
      %v679 = vpop.xlane.xlu0 %678
      %v680 = vsel %vm560, %v676, -inf
      %681 = vmax.xlane.f32.xlu0 %v680
      %v682 = vpop.xlane.xlu0 %681
      %v683 = vsub.f32 %v675, %v679
      %v684 = vsub.f32 %v676, %v682
      %v685 = vmul.f32 %v683, 1.442695
      %v686 = vpow.pop %v685
      %v687 = vmul.f32 %v684, 1.442695
      %v688 = vpow.pop %v687
      %v689 = vsel %vm560, %v686, 0.0
      %690 = vadd.xlane.f32.xlu0 %v689
      %v691 = vpop.xlane.xlu0 %690
      %v692 = vsel %vm560, %v688, 0.0
      %693 = vadd.xlane.f32.xlu0 %v692
      %v694 = vpop.xlane.xlu0 %693
      %v695 = vpack.c.bf16 %v686, %v686
      %v696 = vpack.c.bf16 %v688, %v688
      %697 = vrot.lane.b32.xlu0 %v511, 56
      %v698 = vpop.permute.xlu0 %697
      %v700 = vsel %vm583, %v695, 0
      %v703 = vsel %vm587, %v698, 0
      %705 = vmatpush.bf16.msra.mxu0 0
      %706 = vmatpush.bf16.msra.mxu0 0
      %707 = vmatpush.bf16.msra.mxu0 0
      %708 = vmatpush.bf16.msra.mxu0 0
      %709 = vmatpush.bf16.msra.mxu0 0
      %710 = vmatpush.bf16.msra.mxu0 0
      %711 = vmatpush.bf16.msra.mxu0 0
      %712 = vmatpush.bf16.msra.mxu0 %v703
      %713 = vmatmul.bf16.gmra.mxu0 %v700
      %v714 = vpop.f32.mrf.mxu0
      %v715 = vadd.f32 0.0, %v714
      %v716 = vpop.f32.mrf.mxu0
      %717 = vdwg.mxu0
      %718 = vrot.lane.b32.xlu0 %v536, 56
      %v719 = vpop.permute.xlu0 %718
      %v721 = vsel %vm583, %v696, 0
      %v724 = vsel %vm587, %v719, 0
      %726 = vmatpush.bf16.msra.mxu0 0
      %727 = vmatpush.bf16.msra.mxu0 0
      %728 = vmatpush.bf16.msra.mxu0 0
      %729 = vmatpush.bf16.msra.mxu0 0
      %730 = vmatpush.bf16.msra.mxu0 0
      %731 = vmatpush.bf16.msra.mxu0 0
      %732 = vmatpush.bf16.msra.mxu0 0
      %733 = vmatpush.bf16.msra.mxu0 %v724
      %734 = vmatmul.bf16.gmra.mxu0 %v721
      %v735 = vpop.f32.mrf.mxu0
      %v736 = vadd.f32 0.0, %v735
      %v737 = vpop.f32.mrf.mxu0
      %738 = vdwg.mxu0
      %v739 = vrcp.pop %v691
      %v740 = vrcp.pop %v694
      %v741 = vmul.f32 %v715, %v739
      %v742 = vmul.f32 %v736, %v740
      %743 = vrot.lane.b32.xlu0 %v511, 112
      %v744 = vpop.permute.xlu0 %743
      %745 = vrot.lane.b32.xlu0 %v511, 80
      %v746 = vpop.permute.xlu0 %745
      %v748 = vsel %vm514, %v744, 0
      %v751 = vsel %vm514, %v746, 0
      %753 = vmatpush.bf16.xpose.msra.mxu0 0
      %754 = vmatpush.bf16.xpose.msra.mxu0 0
      %755 = vmatpush.bf16.xpose.msra.mxu0 0
      %756 = vmatpush.bf16.xpose.msra.mxu0 0
      %757 = vmatpush.bf16.xpose.msra.mxu0 0
      %758 = vmatpush.bf16.xpose.msra.mxu0 0
      %759 = vmatpush.bf16.xpose.msra.mxu0 0
      %760 = vmatpush.bf16.xpose.msra.mxu0 %v751
      %761 = vmatmul.bf16.gmra.mxu0 %v748
      %v762 = vpop.f32.mrf.mxu0
      %v763 = vadd.f32 0.0, %v762
      %v764 = vpop.f32.mrf.mxu0
      %765 = vdwg.mxu0
      %766 = vrot.lane.b32.xlu0 %v536, 112
      %v767 = vpop.permute.xlu0 %766
      %768 = vrot.lane.b32.xlu0 %v536, 80
      %v769 = vpop.permute.xlu0 %768
      %v771 = vsel %vm514, %v767, 0
      %v774 = vsel %vm514, %v769, 0
      %776 = vmatpush.bf16.xpose.msra.mxu0 0
      %777 = vmatpush.bf16.xpose.msra.mxu0 0
      %778 = vmatpush.bf16.xpose.msra.mxu0 0
      %779 = vmatpush.bf16.xpose.msra.mxu0 0
      %780 = vmatpush.bf16.xpose.msra.mxu0 0
      %781 = vmatpush.bf16.xpose.msra.mxu0 0
      %782 = vmatpush.bf16.xpose.msra.mxu0 0
      %783 = vmatpush.bf16.xpose.msra.mxu0 %v774
      %784 = vmatmul.bf16.gmra.mxu0 %v771
      %v785 = vpop.f32.mrf.mxu0
      %v786 = vadd.f32 0.0, %v785
      %v787 = vpop.f32.mrf.mxu0
      %788 = vdwg.mxu0
      %v789 = vmul.f32 %v763, 0.35355338
      %v790 = vmul.f32 %v786, 0.35355338
      %v791 = vsel %vm560, %v789, -inf
      %792 = vmax.xlane.f32.xlu0 %v791
      %v793 = vpop.xlane.xlu0 %792
      %v794 = vsel %vm560, %v790, -inf
      %795 = vmax.xlane.f32.xlu0 %v794
      %v796 = vpop.xlane.xlu0 %795
      %v797 = vsub.f32 %v789, %v793
      %v798 = vsub.f32 %v790, %v796
      %v799 = vmul.f32 %v797, 1.442695
      %v800 = vpow.pop %v799
      %v801 = vmul.f32 %v798, 1.442695
      %v802 = vpow.pop %v801
      %v803 = vsel %vm560, %v800, 0.0
      %804 = vadd.xlane.f32.xlu0 %v803
      %v805 = vpop.xlane.xlu0 %804
      %v806 = vsel %vm560, %v802, 0.0
      %807 = vadd.xlane.f32.xlu0 %v806
      %v808 = vpop.xlane.xlu0 %807
      %v809 = vpack.c.bf16 %v800, %v800
      %v810 = vpack.c.bf16 %v802, %v802
      %811 = vrot.lane.b32.xlu0 %v511, 48
      %v812 = vpop.permute.xlu0 %811
      %v814 = vsel %vm583, %v809, 0
      %v817 = vsel %vm587, %v812, 0
      %819 = vmatpush.bf16.msra.mxu0 0
      %820 = vmatpush.bf16.msra.mxu0 0
      %821 = vmatpush.bf16.msra.mxu0 0
      %822 = vmatpush.bf16.msra.mxu0 0
      %823 = vmatpush.bf16.msra.mxu0 0
      %824 = vmatpush.bf16.msra.mxu0 0
      %825 = vmatpush.bf16.msra.mxu0 0
      %826 = vmatpush.bf16.msra.mxu0 %v817
      %827 = vmatmul.bf16.gmra.mxu0 %v814
      %v828 = vpop.f32.mrf.mxu0
      %v829 = vadd.f32 0.0, %v828
      %v830 = vpop.f32.mrf.mxu0
      %831 = vdwg.mxu0
      %832 = vrot.lane.b32.xlu0 %v536, 48
      %v833 = vpop.permute.xlu0 %832
      %v835 = vsel %vm583, %v810, 0
      %v838 = vsel %vm587, %v833, 0
      %840 = vmatpush.bf16.msra.mxu0 0
      %841 = vmatpush.bf16.msra.mxu0 0
      %842 = vmatpush.bf16.msra.mxu0 0
      %843 = vmatpush.bf16.msra.mxu0 0
      %844 = vmatpush.bf16.msra.mxu0 0
      %845 = vmatpush.bf16.msra.mxu0 0
      %846 = vmatpush.bf16.msra.mxu0 0
      %847 = vmatpush.bf16.msra.mxu0 %v838
      %848 = vmatmul.bf16.gmra.mxu0 %v835
      %v849 = vpop.f32.mrf.mxu0
      %v850 = vadd.f32 0.0, %v849
      %v851 = vpop.f32.mrf.mxu0
      %852 = vdwg.mxu0
      %v853 = vrcp.pop %v805
      %v854 = vrcp.pop %v808
      %v855 = vmul.f32 %v829, %v853
      %v856 = vmul.f32 %v850, %v854
      %857 = vrot.lane.b32.xlu0 %v511, 104
      %v858 = vpop.permute.xlu0 %857
      %859 = vrot.lane.b32.xlu0 %v511, 72
      %v860 = vpop.permute.xlu0 %859
      %v862 = vsel %vm514, %v858, 0
      %v865 = vsel %vm514, %v860, 0
      %867 = vmatpush.bf16.xpose.msra.mxu0 0
      %868 = vmatpush.bf16.xpose.msra.mxu0 0
      %869 = vmatpush.bf16.xpose.msra.mxu0 0
      %870 = vmatpush.bf16.xpose.msra.mxu0 0
      %871 = vmatpush.bf16.xpose.msra.mxu0 0
      %872 = vmatpush.bf16.xpose.msra.mxu0 0
      %873 = vmatpush.bf16.xpose.msra.mxu0 0
      %874 = vmatpush.bf16.xpose.msra.mxu0 %v865
      %875 = vmatmul.bf16.gmra.mxu0 %v862
      %v876 = vpop.f32.mrf.mxu0
      %v877 = vadd.f32 0.0, %v876
      %v878 = vpop.f32.mrf.mxu0
      %879 = vdwg.mxu0
      %880 = vrot.lane.b32.xlu0 %v536, 104
      %v881 = vpop.permute.xlu0 %880
      %882 = vrot.lane.b32.xlu0 %v536, 72
      %v883 = vpop.permute.xlu0 %882
      %v885 = vsel %vm514, %v881, 0
      %v888 = vsel %vm514, %v883, 0
      %890 = vmatpush.bf16.xpose.msra.mxu0 0
      %891 = vmatpush.bf16.xpose.msra.mxu0 0
      %892 = vmatpush.bf16.xpose.msra.mxu0 0
      %893 = vmatpush.bf16.xpose.msra.mxu0 0
      %894 = vmatpush.bf16.xpose.msra.mxu0 0
      %895 = vmatpush.bf16.xpose.msra.mxu0 0
      %896 = vmatpush.bf16.xpose.msra.mxu0 0
      %897 = vmatpush.bf16.xpose.msra.mxu0 %v888
      %898 = vmatmul.bf16.gmra.mxu0 %v885
      %v899 = vpop.f32.mrf.mxu0
      %v900 = vadd.f32 0.0, %v899
      %v901 = vpop.f32.mrf.mxu0
      %902 = vdwg.mxu0
      %v903 = vmul.f32 %v877, 0.35355338
      %v904 = vmul.f32 %v900, 0.35355338
      %v905 = vsel %vm560, %v903, -inf
      %906 = vmax.xlane.f32.xlu0 %v905
      %v907 = vpop.xlane.xlu0 %906
      %v908 = vsel %vm560, %v904, -inf
      %909 = vmax.xlane.f32.xlu0 %v908
      %v910 = vpop.xlane.xlu0 %909
      %v911 = vsub.f32 %v903, %v907
      %v912 = vsub.f32 %v904, %v910
      %v913 = vmul.f32 %v911, 1.442695
      %v914 = vpow.pop %v913
      %v915 = vmul.f32 %v912, 1.442695
      %v916 = vpow.pop %v915
      %v917 = vsel %vm560, %v914, 0.0
      %918 = vadd.xlane.f32.xlu0 %v917
      %v919 = vpop.xlane.xlu0 %918
      %v920 = vsel %vm560, %v916, 0.0
      %921 = vadd.xlane.f32.xlu0 %v920
      %v922 = vpop.xlane.xlu0 %921
      %v923 = vpack.c.bf16 %v914, %v914
      %v924 = vpack.c.bf16 %v916, %v916
      %925 = vrot.lane.b32.xlu0 %v511, 40
      %v926 = vpop.permute.xlu0 %925
      %v928 = vsel %vm583, %v923, 0
      %v931 = vsel %vm587, %v926, 0
      %933 = vmatpush.bf16.msra.mxu0 0
      %934 = vmatpush.bf16.msra.mxu0 0
      %935 = vmatpush.bf16.msra.mxu0 0
      %936 = vmatpush.bf16.msra.mxu0 0
      %937 = vmatpush.bf16.msra.mxu0 0
      %938 = vmatpush.bf16.msra.mxu0 0
      %939 = vmatpush.bf16.msra.mxu0 0
      %940 = vmatpush.bf16.msra.mxu0 %v931
      %941 = vmatmul.bf16.gmra.mxu0 %v928
      %v942 = vpop.f32.mrf.mxu0
      %v943 = vadd.f32 0.0, %v942
      %v944 = vpop.f32.mrf.mxu0
      %945 = vdwg.mxu0
      %946 = vrot.lane.b32.xlu0 %v536, 40
      %v947 = vpop.permute.xlu0 %946
      %v949 = vsel %vm583, %v924, 0
      %v952 = vsel %vm587, %v947, 0
      %954 = vmatpush.bf16.msra.mxu0 0
      %955 = vmatpush.bf16.msra.mxu0 0
      %956 = vmatpush.bf16.msra.mxu0 0
      %957 = vmatpush.bf16.msra.mxu0 0
      %958 = vmatpush.bf16.msra.mxu0 0
      %959 = vmatpush.bf16.msra.mxu0 0
      %960 = vmatpush.bf16.msra.mxu0 0
      %961 = vmatpush.bf16.msra.mxu0 %v952
      %962 = vmatmul.bf16.gmra.mxu0 %v949
      %v963 = vpop.f32.mrf.mxu0
      %v964 = vadd.f32 0.0, %v963
      %v965 = vpop.f32.mrf.mxu0
      %966 = vdwg.mxu0
      %v967 = vrcp.pop %v919
      %v968 = vrcp.pop %v922
      %v969 = vmul.f32 %v943, %v967
      %v970 = vmul.f32 %v964, %v968
      %973 = vrot.lane.b32.xlu0 %v741, 8
      %v974 = vpop.permute.xlu0 %973
      %975 = vrot.lane.b32.xlu0 %v742, 8
      %v976 = vpop.permute.xlu0 %975
      %981 = vrot.lane.b32.xlu0 %v855, 16
      %v982 = vpop.permute.xlu0 %981
      %983 = vrot.lane.b32.xlu0 %v856, 16
      %v984 = vpop.permute.xlu0 %983
      %989 = vrot.lane.b32.xlu0 %v969, 24
      %v990 = vpop.permute.xlu0 %989
      %991 = vrot.lane.b32.xlu0 %v970, 24
      %v992 = vpop.permute.xlu0 %991
      %v995 = vsel %vm514, %v627, %v974
      %v996 = vsel %vm514, %v628, %v976
      %vm997 = vcmask 130048
      %v998 = vsel %vm997, %v995, %v982
      %v999 = vsel %vm997, %v996, %v984
      %vm1000 = vcmask 195584
      %v1001 = vsel %vm1000, %v998, %v990
      %v1002 = vsel %vm1000, %v999, %v992
      %v1003 = vld [vmem:[%s6] sm:$0xf]
      %v1004 = vld [vmem:[%s6 + $0x4] sm:$0xf]
      %v1005 = vld [vmem:[%s6 + $0x8] sm:$0xf]
      %v1006 = vld [vmem:[%s6 + $0xc] sm:$0xf]
      %v1007 = vld [vmem:[%s7] sm:$0x1]
      %1010 = vst [vmem:[#allocation1] ss:$2 sm:$0xff] %v1001
      %s1011 = scalar_lea.vmem [#allocation1], 1
      %1012 = vst [vmem:[%s1011] ss:$2 sm:$0xff] %v1002
      %v1013 = vld.sshfl [vmem:[#allocation1] sm:$0xff pattern:$0x75316420]
      %v1015 = vpack.c.bf16 %v1013, %v1013
      %v1017 = vperm.slane %v1007, 0
      %v1023 = vunpack.c.l.b16 %v1003
      %v1024 = vunpack.c.l.b16 %v1004
      %v1025 = vunpack.c.l.b16 %v1005
      %v1026 = vunpack.c.l.b16 %v1006
      %v1027 = vpack.c.b16 %v1024, %v1023
      %v1028 = vpack.c.b16 %v1026, %v1025
      %v1032 = vsel %vm487, %v1015, 0
      %1034 = vmatpush.bf16.msra.mxu0 0
      %1035 = vmatpush.bf16.msra.mxu0 0
      %1036 = vmatpush.bf16.msra.mxu0 0
      %1037 = vmatpush.bf16.msra.mxu0 0
      %1038 = vmatpush.bf16.msra.mxu0 0
      %1039 = vmatpush.bf16.msra.mxu0 0
      %1040 = vmatpush.bf16.msra.mxu0 %v1028
      %1041 = vmatpush.bf16.msra.mxu0 %v1027
      %1042 = vmatmul.bf16.gmra.mxu0 %v1032
      %v1043 = vpop.f32.mrf.mxu0
      %v1044 = vadd.f32 %v1017, %v1043
      %v1045 = vpop.f32.mrf.mxu0
      %1046 = vdwg.mxu0
      %v1048 = vrot.slane %v1044, 4
      %v1050 = vmul.f32 %v401, %v1044
      %v1051 = vmul.f32 %v401, %v1048
      %v1052 = vadd.f32 %v397, %v1050
      %v1053 = vadd.f32 %v398, %v1051
      %1054 = vst.msk [vmem:[%s394] sm:$0xf] %vm402, %v1052
      %1055 = vst.msk [vmem:[%s394 + $0x4] sm:$0xf] %vm402, %v1053
      %s1056 = smul.u32 2, %s24
      %p1057 = scmp.lt.s32.totalorder %s23, 1
      %s1058 = scalar_select %p1057, %s23, 1
      %p1059 = scmp.lt.s32.totalorder %s1056, 7
      %s1060 = scalar_select %p1059, %s1056, 7
      %s1061 = smul.addr %s1058, 8
      %s1062 = sadd.s32 %s1060, %s1061
      %s1063 = smul.addr %s1062, 4
      %s1064 = scalar_lea.vmem %s8, %s1063
      // Predicated region
      $region53: #{flav_block.12} parent=51 // pred_check
        %p1065 = pneg %p241
      $region54: #{flav_block.12} parent=51 // pred_check_branch
        %1067 = sbr.rel (%p1065) target = $region56
      $region55: #{flav_block.12} parent=51 // pred_region
        %s1068 = smul.u32 2, %s24
      $region56: #{flav_block.12} parent=51 // pred_fallthru
        _
    $region52: #{flav_block.12} parent=5 // pred_fallthru
      _
    %p1069 = scmp.le.s32.totalorder 2, %s14
    // Predicated region
    $region57: #{flav_block.12} parent=5 // pred_check
      %p1070 = pneg %p1069
    $region58: #{flav_block.12} parent=5 // pred_check_branch
      %1072 = sbr.rel (%p1070) target = $region60
    $region59: #{flav_block.12} parent=5 // pred_region
      %s1073 = ssub.s32 %s14, 2
      // Predicated region
      $region61: #{flav_block.12} parent=59 // pred_check
        %p1074 = pneg %p247
      $region62: #{flav_block.12} parent=59 // pred_check_branch
        %1076 = sbr.rel (%p1074) target = $region64
      $region63: #{flav_block.12} parent=59 // pred_region
        %s1077 = smul.u32 2, %s26
        %p1078 = scmp.lt.s32.totalorder %s25, 1
        %s1079 = scalar_select %p1078, %s25, 1
        %p1080 = scmp.lt.s32.totalorder %s1077, 7
        %s1081 = scalar_select %p1080, %s1077, 7
        %s1082 = smul.addr %s1079, 8
        %s1083 = sadd.s32 %s1081, %s1082
        %s1084 = smul.addr %s1083, 4
        %s1085 = scalar_lea.vmem %s8, %s1084
      $region64: #{flav_block.12} parent=59 // pred_fallthru
        _
    $region60: #{flav_block.12} parent=5 // pred_fallthru
      _
  $region6: #{flav_block.12} parent=0 // loop_footer
    %s18 = sadd.s32 1, %s14
  $region7: #{flav_block.12} parent=0 // loop_footer_branch
    %13 = sbr.rel target = $region3
  $region8: #{flav_block.12} parent=0 // loop_exit
    _

// kernel: flav_block.17
$region0: #{flav_block.17}
  #allocation0 [shape = 'u32[]', space=smem, size = 0x4, offset = 0x4, fixed_abs, tag = 'smem constant byte address 0x4 - core index']
  #allocation1 [shape = 'u32[72,128]{1,0:T(1,128)}', space=vmem, size = 0x9000, scoped, tag = 'internal scratch']
  %s0 = inlined_call_operand.vmem [shape: f32[8,4,32], index: 0, kind: input, shape index: {}]
  %s1 = inlined_call_operand.vmem [shape: f32[8,32], index: 1, kind: input, shape index: {}]
  %s2 = inlined_call_operand.vmem [shape: f32[8,32], index: 2, kind: input, shape index: {}]
  %s3 = inlined_call_operand.vmem [shape: f32[8,32], index: 3, kind: input, shape index: {}]
  %s4 = inlined_call_operand.vmem [shape: bf16[32,128], index: 4, kind: input, shape index: {}]
  %s5 = inlined_call_operand.vmem [shape: f32[1,128], index: 5, kind: input, shape index: {}]
  %s6 = inlined_call_operand.vmem [shape: bf16[128,32], index: 6, kind: input, shape index: {}]
  %s7 = inlined_call_operand.vmem [shape: f32[1,32], index: 7, kind: input, shape index: {}]
  %s8 = inlined_call_operand.hbm [shape: f32[8,4,32], index: 8, kind: output, shape index: {}]
  %s9 = sld [smem:[#allocation0]]
  $region42: #{flav_block.17} parent=0
    _
  %s11 = ssub.s32 1, %s9
  %s12 = scalar_select 0, %s11, %s9
  $region1: #{flav_block.17} parent=0
    #allocation2 [shape = 'u8[16384]{0}', space=vmem, size = 0x4000, scoped, tag = 'output window, operand 0, single buffered']
    #allocation3 [shape = 's32[1]{0}', space=sflag, size = 0x4, scoped, tag = 'scoped memory for flav_block.17']
    %13 = vsyncpa [#allocation3], 0
    // Predicated region
    $region2: #{flav_block.17} parent=1 // pred_check
      _
    $region3: #{flav_block.17} parent=1 // pred_check_branch
      %15 = sbr.rel (0) target = $region5
    $region4: #{flav_block.17} parent=1 // pred_region
      _
    $region5: #{flav_block.17} parent=1 // pred_fallthru
      _
    // Predicated region
    $region6: #{flav_block.17} parent=1 // pred_check
      _
    $region7: #{flav_block.17} parent=1 // pred_check_branch
      %17 = sbr.rel (0) target = $region9
    $region8: #{flav_block.17} parent=1 // pred_region
      _
    $region9: #{flav_block.17} parent=1 // pred_fallthru
      _
    // Predicated region
    $region10: #{flav_block.17} parent=1 // pred_check
      _
    $region11: #{flav_block.17} parent=1 // pred_check_branch
      %19 = sbr.rel (0) target = $region13
    $region12: #{flav_block.17} parent=1 // pred_region
      _
    $region13: #{flav_block.17} parent=1 // pred_fallthru
      _
    // Predicated region
    $region14: #{flav_block.17} parent=1 // pred_check
      _
    $region15: #{flav_block.17} parent=1 // pred_check_branch
      %21 = sbr.rel (0) target = $region17
    $region16: #{flav_block.17} parent=1 // pred_region
      _
    $region17: #{flav_block.17} parent=1 // pred_fallthru
      _
    // Predicated region
    $region18: #{flav_block.17} parent=1 // pred_check
      _
    $region19: #{flav_block.17} parent=1 // pred_check_branch
      %23 = sbr.rel (0) target = $region21
    $region20: #{flav_block.17} parent=1 // pred_region
      _
    $region21: #{flav_block.17} parent=1 // pred_fallthru
      _
    // Predicated region
    $region22: #{flav_block.17} parent=1 // pred_check
      _
    $region23: #{flav_block.17} parent=1 // pred_check_branch
      %25 = sbr.rel (0) target = $region25
    $region24: #{flav_block.17} parent=1 // pred_region
      _
    $region25: #{flav_block.17} parent=1 // pred_fallthru
      _
    // Predicated region
    $region26: #{flav_block.17} parent=1 // pred_check
      _
    $region27: #{flav_block.17} parent=1 // pred_check_branch
      %27 = sbr.rel (0) target = $region29
    $region28: #{flav_block.17} parent=1 // pred_region
      _
    $region29: #{flav_block.17} parent=1 // pred_fallthru
      _
    // Predicated region
    $region30: #{flav_block.17} parent=1 // pred_check
      _
    $region31: #{flav_block.17} parent=1 // pred_check_branch
      %29 = sbr.rel (0) target = $region33
    $region32: #{flav_block.17} parent=1 // pred_region
      _
    $region33: #{flav_block.17} parent=1 // pred_fallthru
      _
    %v31 = vld [vmem:[%s0] sm:$0xf]
    %v32 = vld [vmem:[%s0 + $0x4] sm:$0xf]
    %v33 = vld [vmem:[%s0 + $0x8] sm:$0xf]
    %v34 = vld [vmem:[%s0 + $0xc] sm:$0xf]
    %v35 = vld [vmem:[%s0 + $0x10] sm:$0xf]
    %v36 = vld [vmem:[%s0 + $0x14] sm:$0xf]
    %v37 = vld [vmem:[%s0 + $0x18] sm:$0xf]
    %v38 = vld [vmem:[%s0 + $0x1c] sm:$0xf]
    %v39 = vld [vmem:[%s1] sm:$0xff]
    %v41 = vrot.slane %v39, 1
    %v42 = vrot.slane %v39, 2
    %v43 = vrot.slane %v39, 3
    %v44 = vrot.slane %v39, 4
    %v45 = vrot.slane %v39, 5
    %v46 = vrot.slane %v39, 6
    %v47 = vrot.slane %v39, 7
    %v48 = vld [vmem:[%s2] sm:$0xff]
    %v50 = vrot.slane %v48, 1
    %v51 = vrot.slane %v48, 2
    %v52 = vrot.slane %v48, 3
    %v53 = vrot.slane %v48, 4
    %v54 = vrot.slane %v48, 5
    %v55 = vrot.slane %v48, 6
    %v56 = vrot.slane %v48, 7
    %v64 = vld [vmem:[%s3] sm:$0xff]
    %v66 = vrot.slane %v64, 1
    %v67 = vrot.slane %v64, 2
    %v68 = vrot.slane %v64, 3
    %v69 = vrot.slane %v64, 4
    %v70 = vrot.slane %v64, 5
    %v71 = vrot.slane %v64, 6
    %v72 = vrot.slane %v64, 7
    %vm73 = vcmask 257024
    %v74 = vsel %vm73, %v31, 0.0
    %75 = vadd.xlane.f32.xlu0 %v74
    %v76 = vpop.xlane.xlu0 %75
    %v77 = vsel %vm73, %v32, 0.0
    %78 = vadd.xlane.f32.xlu0 %v77
    %v79 = vpop.xlane.xlu0 %78
    %v80 = vsel %vm73, %v33, 0.0
    %81 = vadd.xlane.f32.xlu0 %v80
    %v82 = vpop.xlane.xlu0 %81
    %v83 = vsel %vm73, %v34, 0.0
    %84 = vadd.xlane.f32.xlu0 %v83
    %v85 = vpop.xlane.xlu0 %84
    %v86 = vsel %vm73, %v35, 0.0
    %87 = vadd.xlane.f32.xlu0 %v86
    %v88 = vpop.xlane.xlu0 %87
    %v89 = vsel %vm73, %v36, 0.0
    %90 = vadd.xlane.f32.xlu0 %v89
    %v91 = vpop.xlane.xlu0 %90
    %v92 = vsel %vm73, %v37, 0.0
    %93 = vadd.xlane.f32.xlu0 %v92
    %v94 = vpop.xlane.xlu0 %93
    %v95 = vsel %vm73, %v38, 0.0
    %96 = vadd.xlane.f32.xlu0 %v95
    %v97 = vpop.xlane.xlu0 %96
    %v98 = vrcp.pop 32.0
    %v99 = vmul.f32 32.0, %v98
    %v100 = vsub.f32 1.0, %v99
    %v101 = vmul.f32 %v98, %v100
    %v102 = vadd.f32 %v98, %v101
    %vm103 = vweird.f32 %v98
    %v104 = vsel %vm103, %v98, %v102
    %v105 = vmul.f32 %v76, %v104
    %v106 = vmul.f32 %v79, %v104
    %v107 = vmul.f32 %v82, %v104
    %v108 = vmul.f32 %v85, %v104
    %v109 = vmul.f32 %v88, %v104
    %v110 = vmul.f32 %v91, %v104
    %v111 = vmul.f32 %v94, %v104
    %v112 = vmul.f32 %v97, %v104
    %v113 = vsub.f32 %v31, %v105
    %v114 = vsub.f32 %v32, %v106
    %v115 = vsub.f32 %v33, %v107
    %v116 = vsub.f32 %v34, %v108
    %v117 = vsub.f32 %v35, %v109
    %v118 = vsub.f32 %v36, %v110
    %v119 = vsub.f32 %v37, %v111
    %v120 = vsub.f32 %v38, %v112
    %v121 = vmul.f32 %v113, %v113
    %v122 = vmul.f32 %v114, %v114
    %v123 = vmul.f32 %v115, %v115
    %v124 = vmul.f32 %v116, %v116
    %v125 = vmul.f32 %v117, %v117
    %v126 = vmul.f32 %v118, %v118
    %v127 = vmul.f32 %v119, %v119
    %v128 = vmul.f32 %v120, %v120
    %v129 = vsel %vm73, %v121, 0.0
    %130 = vadd.xlane.f32.xlu0 %v129
    %v131 = vpop.xlane.xlu0 %130
    %v132 = vsel %vm73, %v122, 0.0
    %133 = vadd.xlane.f32.xlu0 %v132
    %v134 = vpop.xlane.xlu0 %133
    %v135 = vsel %vm73, %v123, 0.0
    %136 = vadd.xlane.f32.xlu0 %v135
    %v137 = vpop.xlane.xlu0 %136
    %v138 = vsel %vm73, %v124, 0.0
    %139 = vadd.xlane.f32.xlu0 %v138
    %v140 = vpop.xlane.xlu0 %139
    %v141 = vsel %vm73, %v125, 0.0
    %142 = vadd.xlane.f32.xlu0 %v141
    %v143 = vpop.xlane.xlu0 %142
    %v144 = vsel %vm73, %v126, 0.0
    %145 = vadd.xlane.f32.xlu0 %v144
    %v146 = vpop.xlane.xlu0 %145
    %v147 = vsel %vm73, %v127, 0.0
    %148 = vadd.xlane.f32.xlu0 %v147
    %v149 = vpop.xlane.xlu0 %148
    %v150 = vsel %vm73, %v128, 0.0
    %151 = vadd.xlane.f32.xlu0 %v150
    %v152 = vpop.xlane.xlu0 %151
    %v153 = vmul.f32 %v131, %v104
    %v154 = vmul.f32 %v134, %v104
    %v155 = vmul.f32 %v137, %v104
    %v156 = vmul.f32 %v140, %v104
    %v157 = vmul.f32 %v143, %v104
    %v158 = vmul.f32 %v146, %v104
    %v159 = vmul.f32 %v149, %v104
    %v160 = vmul.f32 %v152, %v104
    %v161 = vadd.f32 %v153, 1e-06
    %v162 = vadd.f32 %v154, 1e-06
    %v163 = vadd.f32 %v155, 1e-06
    %v164 = vadd.f32 %v156, 1e-06
    %v165 = vadd.f32 %v157, 1e-06
    %v166 = vadd.f32 %v158, 1e-06
    %v167 = vadd.f32 %v159, 1e-06
    %v168 = vadd.f32 %v160, 1e-06
    %v169 = vrsqrt.pop %v161
    %v170 = vmul.f32 %v169, %v161
    %v171 = vmul.f32 %v170, %v169
    %v172 = vmul.f32 0.5, %v171
    %v173 = vsub.f32 1.5, %v172
    %v174 = vmul.f32 %v169, %v173
    %vm175 = vweird.f32 %v161
    %vm176 = vweird.f32 %v169
    %vm177 = vmor %vm175, %vm176
    %v178 = vsel %vm177, %v169, %v174
    %v179 = vrsqrt.pop %v162
    %v180 = vmul.f32 %v179, %v162
    %v181 = vmul.f32 %v180, %v179
    %v182 = vmul.f32 0.5, %v181
    %v183 = vsub.f32 1.5, %v182
    %v184 = vmul.f32 %v179, %v183
    %vm185 = vweird.f32 %v162
    %vm186 = vweird.f32 %v179
    %vm187 = vmor %vm185, %vm186
    %v188 = vsel %vm187, %v179, %v184
    %v189 = vrsqrt.pop %v163
    %v190 = vmul.f32 %v189, %v163
    %v191 = vmul.f32 %v190, %v189
    %v192 = vmul.f32 0.5, %v191
    %v193 = vsub.f32 1.5, %v192
    %v194 = vmul.f32 %v189, %v193
    %vm195 = vweird.f32 %v163
    %vm196 = vweird.f32 %v189
    %vm197 = vmor %vm195, %vm196
    %v198 = vsel %vm197, %v189, %v194
    %v199 = vrsqrt.pop %v164
    %v200 = vmul.f32 %v199, %v164
    %v201 = vmul.f32 %v200, %v199
    %v202 = vmul.f32 0.5, %v201
    %v203 = vsub.f32 1.5, %v202
    %v204 = vmul.f32 %v199, %v203
    %vm205 = vweird.f32 %v164
    %vm206 = vweird.f32 %v199
    %vm207 = vmor %vm205, %vm206
    %v208 = vsel %vm207, %v199, %v204
    %v209 = vrsqrt.pop %v165
    %v210 = vmul.f32 %v209, %v165
    %v211 = vmul.f32 %v210, %v209
    %v212 = vmul.f32 0.5, %v211
    %v213 = vsub.f32 1.5, %v212
    %v214 = vmul.f32 %v209, %v213
    %vm215 = vweird.f32 %v165
    %vm216 = vweird.f32 %v209
    %vm217 = vmor %vm215, %vm216
    %v218 = vsel %vm217, %v209, %v214
    %v219 = vrsqrt.pop %v166
    %v220 = vmul.f32 %v219, %v166
    %v221 = vmul.f32 %v220, %v219
    %v222 = vmul.f32 0.5, %v221
    %v223 = vsub.f32 1.5, %v222
    %v224 = vmul.f32 %v219, %v223
    %vm225 = vweird.f32 %v166
    %vm226 = vweird.f32 %v219
    %vm227 = vmor %vm225, %vm226
    %v228 = vsel %vm227, %v219, %v224
    %v229 = vrsqrt.pop %v167
    %v230 = vmul.f32 %v229, %v167
    %v231 = vmul.f32 %v230, %v229
    %v232 = vmul.f32 0.5, %v231
    %v233 = vsub.f32 1.5, %v232
    %v234 = vmul.f32 %v229, %v233
    %vm235 = vweird.f32 %v167
    %vm236 = vweird.f32 %v229
    %vm237 = vmor %vm235, %vm236
    %v238 = vsel %vm237, %v229, %v234
    %v239 = vrsqrt.pop %v168
    %v240 = vmul.f32 %v239, %v168
    %v241 = vmul.f32 %v240, %v239
    %v242 = vmul.f32 0.5, %v241
    %v243 = vsub.f32 1.5, %v242
    %v244 = vmul.f32 %v239, %v243
    %vm245 = vweird.f32 %v168
    %vm246 = vweird.f32 %v239
    %vm247 = vmor %vm245, %vm246
    %v248 = vsel %vm247, %v239, %v244
    %v249 = vmul.f32 %v113, %v178
    %v250 = vmul.f32 %v114, %v188
    %v251 = vmul.f32 %v115, %v198
    %v252 = vmul.f32 %v116, %v208
    %v253 = vmul.f32 %v117, %v218
    %v254 = vmul.f32 %v118, %v228
    %v255 = vmul.f32 %v119, %v238
    %v256 = vmul.f32 %v120, %v248
    %v257 = vadd.f32 %v48, 1.0
    %v258 = vadd.f32 %v50, 1.0
    %v259 = vadd.f32 %v51, 1.0
    %v260 = vadd.f32 %v52, 1.0
    %v261 = vadd.f32 %v53, 1.0
    %v262 = vadd.f32 %v54, 1.0
    %v263 = vadd.f32 %v55, 1.0
    %v264 = vadd.f32 %v56, 1.0
    %v273 = vperm.slane %v257, 0
    %v274 = vperm.slane %v258, 0
    %v275 = vperm.slane %v259, 0
    %v276 = vperm.slane %v260, 0
    %v277 = vperm.slane %v261, 0
    %v278 = vperm.slane %v262, 0
    %v279 = vperm.slane %v263, 0
    %v280 = vperm.slane %v264, 0
    %v289 = vmul.f32 %v249, %v273
    %v290 = vmul.f32 %v250, %v274
    %v291 = vmul.f32 %v251, %v275
    %v292 = vmul.f32 %v252, %v276
    %v293 = vmul.f32 %v253, %v277
    %v294 = vmul.f32 %v254, %v278
    %v295 = vmul.f32 %v255, %v279
    %v296 = vmul.f32 %v256, %v280
    %v297 = vperm.slane %v39, 0
    %v298 = vperm.slane %v41, 0
    %v299 = vperm.slane %v42, 0
    %v300 = vperm.slane %v43, 0
    %v301 = vperm.slane %v44, 0
    %v302 = vperm.slane %v45, 0
    %v303 = vperm.slane %v46, 0
    %v304 = vperm.slane %v47, 0
    %v313 = vadd.f32 %v289, %v297
    %v314 = vadd.f32 %v290, %v298
    %v315 = vadd.f32 %v291, %v299
    %v316 = vadd.f32 %v292, %v300
    %v317 = vadd.f32 %v293, %v301
    %v318 = vadd.f32 %v294, %v302
    %v319 = vadd.f32 %v295, %v303
    %v320 = vadd.f32 %v296, %v304
    %v321 = vld [vmem:[%s4] sm:$0xf]
    %v322 = vld [vmem:[%s4 + $0x4] sm:$0xf]
    %v323 = vld [vmem:[%s4 + $0x8] sm:$0xf]
    %v324 = vld [vmem:[%s4 + $0xc] sm:$0xf]
    %v325 = vld [vmem:[%s5] sm:$0x1]
    %334 = vst [vmem:[#allocation1] ss:$2 sm:$0xff] %v313
    %s335 = scalar_lea.vmem [#allocation1], 1
    %336 = vst [vmem:[%s335] ss:$2 sm:$0xff] %v314
    %s337 = scalar_lea.vmem [#allocation1], 16
    %338 = vst [vmem:[%s337] ss:$2 sm:$0xff] %v315
    %s339 = scalar_lea.vmem [#allocation1], 17
    %340 = vst [vmem:[%s339] ss:$2 sm:$0xff] %v316
    %s341 = scalar_lea.vmem [#allocation1], 32
    %342 = vst [vmem:[%s341] ss:$2 sm:$0xff] %v317
    %s343 = scalar_lea.vmem [#allocation1], 33
    %344 = vst [vmem:[%s343] ss:$2 sm:$0xff] %v318
    %s345 = scalar_lea.vmem [#allocation1], 48
    %346 = vst [vmem:[%s345] ss:$2 sm:$0xff] %v319
    %s347 = scalar_lea.vmem [#allocation1], 49
    %348 = vst [vmem:[%s347] ss:$2 sm:$0xff] %v320
    %v349 = vld.sshfl [vmem:[#allocation1] sm:$0xff pattern:$0x75316420]
    %v350 = vld.sshfl [vmem:[#allocation1 + $0x10] sm:$0xff pattern:$0x75316420]
    %v351 = vld.sshfl [vmem:[#allocation1 + $0x20] sm:$0xff pattern:$0x75316420]
    %v352 = vld.sshfl [vmem:[#allocation1 + $0x30] sm:$0xff pattern:$0x75316420]
    %v357 = vpack.c.bf16 %v350, %v349
    %v358 = vpack.c.bf16 %v352, %v351
    %v360 = vperm.slane %v325, 0
    %v366 = vunpack.c.l.b16 %v321
    %v367 = vunpack.c.l.b16 %v322
    %v368 = vunpack.c.l.b16 %v323
    %v369 = vunpack.c.l.b16 %v324
    %v370 = vpack.c.b16 %v367, %v366
    %v371 = vpack.c.b16 %v369, %v368
    %vm374 = vcmask 261120
    %v376 = vsel %vm374, %v357, 0
    %v379 = vsel %vm374, %v358, 0
    %381 = vmatpush.bf16.msra.mxu0 0
    %382 = vmatpush.bf16.msra.mxu0 0
    %383 = vmatpush.bf16.msra.mxu0 0
    %384 = vmatpush.bf16.msra.mxu0 0
    %385 = vmatpush.bf16.msra.mxu0 0
    %386 = vmatpush.bf16.msra.mxu0 0
    %387 = vmatpush.bf16.msra.mxu0 %v371
    %388 = vmatpush.bf16.msra.mxu0 %v370
    %389 = vmatmul.bf16.gmra.mxu0 %v376
    %v390 = vpop.f32.mrf.mxu0
    %v391 = vadd.f32 %v360, %v390
    %v392 = vpop.f32.mrf.mxu0
    %v393 = vadd.f32 %v360, %v392
    %394 = vmatmul.bf16.gmra.mxu0 %v379
    %v395 = vpop.f32.mrf.mxu0
    %v396 = vadd.f32 %v360, %v395
    %v397 = vpop.f32.mrf.mxu0
    %v398 = vadd.f32 %v360, %v397
    %399 = vdwg.mxu0
    %v400 = vmul.f32 %v391, 0.5
    %v401 = vmul.f32 %v393, 0.5
    %v402 = vmul.f32 %v396, 0.5
    %v403 = vmul.f32 %v398, 0.5
    %v404 = vmul.f32 %v391, 0.044715
    %v405 = vmul.f32 %v393, 0.044715
    %v406 = vmul.f32 %v396, 0.044715
    %v407 = vmul.f32 %v398, 0.044715
    %v408 = vmul.f32 %v404, %v391
    %v409 = vmul.f32 %v405, %v393
    %v410 = vmul.f32 %v406, %v396
    %v411 = vmul.f32 %v407, %v398
    %v412 = vmul.f32 %v408, %v391
    %v413 = vmul.f32 %v409, %v393
    %v414 = vmul.f32 %v410, %v396
    %v415 = vmul.f32 %v411, %v398
    %v416 = vadd.f32 %v391, %v412
    %v417 = vadd.f32 %v393, %v413
    %v418 = vadd.f32 %v396, %v414
    %v419 = vadd.f32 %v398, %v415
    %v420 = vmul.f32 %v416, 0.7978846
    %v421 = vmul.f32 %v417, 0.7978846
    %v422 = vmul.f32 %v418, 0.7978846
    %v423 = vmul.f32 %v419, 0.7978846
    %v424 = vtanh.pop %v420
    %v425 = vtanh.pop %v421
    %v426 = vtanh.pop %v422
    %v427 = vtanh.pop %v423
    %v428 = vadd.f32 %v424, 1.0
    %v429 = vadd.f32 %v425, 1.0
    %v430 = vadd.f32 %v426, 1.0
    %v431 = vadd.f32 %v427, 1.0
    %v432 = vmul.f32 %v400, %v428
    %v433 = vmul.f32 %v401, %v429
    %v434 = vmul.f32 %v402, %v430
    %v435 = vmul.f32 %v403, %v431
    %v436 = vld [vmem:[%s6] sm:$0xf]
    %v437 = vld [vmem:[%s6 + $0x4] sm:$0xf]
    %v438 = vld [vmem:[%s6 + $0x8] sm:$0xf]
    %v439 = vld [vmem:[%s6 + $0xc] sm:$0xf]
    %v440 = vld [vmem:[%s6 + $0x10] sm:$0xf]
    %v441 = vld [vmem:[%s6 + $0x14] sm:$0xf]
    %v442 = vld [vmem:[%s6 + $0x18] sm:$0xf]
    %v443 = vld [vmem:[%s6 + $0x1c] sm:$0xf]
    %v444 = vld [vmem:[%s6 + $0x20] sm:$0xf]
    %v445 = vld [vmem:[%s6 + $0x24] sm:$0xf]
    %v446 = vld [vmem:[%s6 + $0x28] sm:$0xf]
    %v447 = vld [vmem:[%s6 + $0x2c] sm:$0xf]
    %v448 = vld [vmem:[%s6 + $0x30] sm:$0xf]
    %v449 = vld [vmem:[%s6 + $0x34] sm:$0xf]
    %v450 = vld [vmem:[%s6 + $0x38] sm:$0xf]
    %v451 = vld [vmem:[%s6 + $0x3c] sm:$0xf]
    %v452 = vld [vmem:[%s7] sm:$0x1]
    %v453 = vpack.c.bf16 %v433, %v432
    %v454 = vpack.c.bf16 %v435, %v434
    %v456 = vperm.slane %v452, 0
    %v474 = vunpack.c.l.b16 %v436
    %v475 = vunpack.c.l.b16 %v437
    %v476 = vunpack.c.l.b16 %v438
    %v477 = vunpack.c.l.b16 %v439
    %v478 = vunpack.c.l.b16 %v440
    %v479 = vunpack.c.l.b16 %v441
    %v480 = vunpack.c.l.b16 %v442
    %v481 = vunpack.c.l.b16 %v443
    %v482 = vunpack.c.l.b16 %v444
    %v483 = vunpack.c.l.b16 %v445
    %v484 = vunpack.c.l.b16 %v446
    %v485 = vunpack.c.l.b16 %v447
    %v486 = vunpack.c.l.b16 %v448
    %v487 = vunpack.c.l.b16 %v449
    %v488 = vunpack.c.l.b16 %v450
    %v489 = vunpack.c.l.b16 %v451
    %v490 = vpack.c.b16 %v475, %v474
    %v491 = vpack.c.b16 %v477, %v476
    %v492 = vpack.c.b16 %v479, %v478
    %v493 = vpack.c.b16 %v481, %v480
    %v494 = vpack.c.b16 %v483, %v482
    %v495 = vpack.c.b16 %v485, %v484
    %v496 = vpack.c.b16 %v487, %v486
    %v497 = vpack.c.b16 %v489, %v488
    %506 = vmatpush.bf16.msra.mxu0 %v497
    %507 = vmatpush.bf16.msra.mxu0 %v496
    %508 = vmatpush.bf16.msra.mxu0 %v495
    %509 = vmatpush.bf16.msra.mxu0 %v494
    %510 = vmatpush.bf16.msra.mxu0 %v493
    %511 = vmatpush.bf16.msra.mxu0 %v492
    %512 = vmatpush.bf16.msra.mxu0 %v491
    %513 = vmatpush.bf16.msra.mxu0 %v490
    %514 = vmatmul.bf16.gmra.mxu0 %v453
    %v515 = vpop.f32.mrf.mxu0
    %v516 = vadd.f32 %v456, %v515
    %v517 = vpop.f32.mrf.mxu0
    %v518 = vadd.f32 %v456, %v517
    %519 = vmatmul.bf16.gmra.mxu0 %v454
    %v520 = vpop.f32.mrf.mxu0
    %v521 = vadd.f32 %v456, %v520
    %v522 = vpop.f32.mrf.mxu0
    %v523 = vadd.f32 %v456, %v522
    %524 = vdwg.mxu0
    %v529 = vrot.slane %v516, 4
    %v530 = vrot.slane %v518, 4
    %v531 = vrot.slane %v521, 4
    %v532 = vrot.slane %v523, 4
    %v537 = vperm.slane %v64, 0
    %v538 = vperm.slane %v66, 0
    %v539 = vperm.slane %v67, 0
    %v540 = vperm.slane %v68, 0
    %v541 = vperm.slane %v69, 0
    %v542 = vperm.slane %v70, 0
    %v543 = vperm.slane %v71, 0
    %v544 = vperm.slane %v72, 0
    %v553 = vmul.f32 %v537, %v516
    %v554 = vmul.f32 %v538, %v529
    %v555 = vmul.f32 %v539, %v518
    %v556 = vmul.f32 %v540, %v530
    %v557 = vmul.f32 %v541, %v521
    %v558 = vmul.f32 %v542, %v531
    %v559 = vmul.f32 %v543, %v523
    %v560 = vmul.f32 %v544, %v532
    %v561 = vadd.f32 %v31, %v553
    %v562 = vadd.f32 %v32, %v554
    %v563 = vadd.f32 %v33, %v555
    %v564 = vadd.f32 %v34, %v556
    %v565 = vadd.f32 %v35, %v557
    %v566 = vadd.f32 %v36, %v558
    %v567 = vadd.f32 %v37, %v559
    %v568 = vadd.f32 %v38, %v560
    %569 = vst.msk [vmem:[#allocation2] sm:$0xf] %vm73, %v561
    %570 = vst.msk [vmem:[#allocation2 + $0x4] sm:$0xf] %vm73, %v562
    %571 = vst.msk [vmem:[#allocation2 + $0x8] sm:$0xf] %vm73, %v563
    %572 = vst.msk [vmem:[#allocation2 + $0xc] sm:$0xf] %vm73, %v564
    %573 = vst.msk [vmem:[#allocation2 + $0x10] sm:$0xf] %vm73, %v565
    %574 = vst.msk [vmem:[#allocation2 + $0x14] sm:$0xf] %vm73, %v566
    %575 = vst.msk [vmem:[#allocation2 + $0x18] sm:$0xf] %vm73, %v567
    %576 = vst.msk [vmem:[#allocation2 + $0x1c] sm:$0xf] %vm73, %v568
    // Predicated region
    $region34: #{flav_block.17} parent=1 // pred_check
      _
    $region35: #{flav_block.17} parent=1 // pred_check_branch
      %578 = sbr.rel (0) target = $region37
    $region36: #{flav_block.17} parent=1 // pred_region
      %580 = vsyncadd [#allocation3], 0
      %s581 = sshll.u32 [#allocation2], 4
      %s582 = int_to_ptr.vmem [resolvable:$true] %s581
      %s583 = sshll.u32 %s8, 4
      %s584 = int_to_ptr.hbm [resolvable:$true] %s583
      %589 = dma.vmem_to_hbm [thread:$0]  %s582, 512, %s584, [#allocation3], 64, 64, 4
    $region37: #{flav_block.17} parent=1 // pred_fallthru
      _
    // Predicated region
    $region38: #{flav_block.17} parent=1 // pred_check
      _
    $region39: #{flav_block.17} parent=1 // pred_check_branch
      %591 = sbr.rel (0) target = $region41
    $region40: #{flav_block.17} parent=1 // pred_region
      %593 = dma.done [#allocation3], 512
    $region41: #{flav_block.17} parent=1 // pred_fallthru
      _
    %594 = vsyncpa [#allocation3], 1

// kernel: flav_block.16
$region0: #{flav_block.16}
  #allocation0 [shape = 'u32[]', space=smem, size = 0x4, offset = 0x4, fixed_abs, tag = 'smem constant byte address 0x4 - core index']
  #allocation1 [shape = 'u32[72,128]{1,0:T(1,128)}', space=vmem, size = 0x9000, scoped, tag = 'internal scratch']
  %s0 = inlined_call_operand.vmem [shape: f32[8,8,32], index: 0, kind: input, shape index: {}]
  %s1 = inlined_call_operand.vmem [shape: f32[8,32], index: 1, kind: input, shape index: {}]
  %s2 = inlined_call_operand.vmem [shape: f32[8,32], index: 2, kind: input, shape index: {}]
  %s3 = inlined_call_operand.vmem [shape: f32[8,32], index: 3, kind: input, shape index: {}]
  %s4 = inlined_call_operand.vmem [shape: bf16[32,128], index: 4, kind: input, shape index: {}]
  %s5 = inlined_call_operand.vmem [shape: f32[1,128], index: 5, kind: input, shape index: {}]
  %s6 = inlined_call_operand.vmem [shape: bf16[128,32], index: 6, kind: input, shape index: {}]
  %s7 = inlined_call_operand.vmem [shape: f32[1,32], index: 7, kind: input, shape index: {}]
  %s8 = inlined_call_operand.hbm [shape: f32[8,8,32], index: 8, kind: output, shape index: {}]
  %s9 = sld [smem:[#allocation0]]
  $region42: #{flav_block.16} parent=0
    _
  %s11 = ssub.s32 1, %s9
  %s12 = scalar_select 0, %s11, %s9
  $region1: #{flav_block.16} parent=0
    #allocation2 [shape = 'u8[32768]{0}', space=vmem, size = 0x8000, scoped, tag = 'output window, operand 0, single buffered']
    #allocation3 [shape = 's32[1]{0}', space=sflag, size = 0x4, scoped, tag = 'scoped memory for flav_block.16']
    %13 = vsyncpa [#allocation3], 0
    // Predicated region
    $region2: #{flav_block.16} parent=1 // pred_check
      _
    $region3: #{flav_block.16} parent=1 // pred_check_branch
      %15 = sbr.rel (0) target = $region5
    $region4: #{flav_block.16} parent=1 // pred_region
      _
    $region5: #{flav_block.16} parent=1 // pred_fallthru
      _
    // Predicated region
    $region6: #{flav_block.16} parent=1 // pred_check
      _
    $region7: #{flav_block.16} parent=1 // pred_check_branch
      %17 = sbr.rel (0) target = $region9
    $region8: #{flav_block.16} parent=1 // pred_region
      _
    $region9: #{flav_block.16} parent=1 // pred_fallthru
      _
    // Predicated region
    $region10: #{flav_block.16} parent=1 // pred_check
      _
    $region11: #{flav_block.16} parent=1 // pred_check_branch
      %19 = sbr.rel (0) target = $region13
    $region12: #{flav_block.16} parent=1 // pred_region
      _
    $region13: #{flav_block.16} parent=1 // pred_fallthru
      _
    // Predicated region
    $region14: #{flav_block.16} parent=1 // pred_check
      _
    $region15: #{flav_block.16} parent=1 // pred_check_branch
      %21 = sbr.rel (0) target = $region17
    $region16: #{flav_block.16} parent=1 // pred_region
      _
    $region17: #{flav_block.16} parent=1 // pred_fallthru
      _
    // Predicated region
    $region18: #{flav_block.16} parent=1 // pred_check
      _
    $region19: #{flav_block.16} parent=1 // pred_check_branch
      %23 = sbr.rel (0) target = $region21
    $region20: #{flav_block.16} parent=1 // pred_region
      _
    $region21: #{flav_block.16} parent=1 // pred_fallthru
      _
    // Predicated region
    $region22: #{flav_block.16} parent=1 // pred_check
      _
    $region23: #{flav_block.16} parent=1 // pred_check_branch
      %25 = sbr.rel (0) target = $region25
    $region24: #{flav_block.16} parent=1 // pred_region
      _
    $region25: #{flav_block.16} parent=1 // pred_fallthru
      _
    // Predicated region
    $region26: #{flav_block.16} parent=1 // pred_check
      _
    $region27: #{flav_block.16} parent=1 // pred_check_branch
      %27 = sbr.rel (0) target = $region29
    $region28: #{flav_block.16} parent=1 // pred_region
      _
    $region29: #{flav_block.16} parent=1 // pred_fallthru
      _
    // Predicated region
    $region30: #{flav_block.16} parent=1 // pred_check
      _
    $region31: #{flav_block.16} parent=1 // pred_check_branch
      %29 = sbr.rel (0) target = $region33
    $region32: #{flav_block.16} parent=1 // pred_region
      _
    $region33: #{flav_block.16} parent=1 // pred_fallthru
      _
    %v31 = vld [vmem:[%s0] sm:$0xff]
    %v32 = vld [vmem:[%s0 + $0x8] sm:$0xff]
    %v33 = vld [vmem:[%s0 + $0x10] sm:$0xff]
    %v34 = vld [vmem:[%s0 + $0x18] sm:$0xff]
    %v35 = vld [vmem:[%s0 + $0x20] sm:$0xff]
    %v36 = vld [vmem:[%s0 + $0x28] sm:$0xff]
    %v37 = vld [vmem:[%s0 + $0x30] sm:$0xff]
    %v38 = vld [vmem:[%s0 + $0x38] sm:$0xff]
    %v39 = vld [vmem:[%s1] sm:$0xff]
    %v41 = vrot.slane %v39, 1
    %v42 = vrot.slane %v39, 2
    %v43 = vrot.slane %v39, 3
    %v44 = vrot.slane %v39, 4
    %v45 = vrot.slane %v39, 5
    %v46 = vrot.slane %v39, 6
    %v47 = vrot.slane %v39, 7
    %v48 = vld [vmem:[%s2] sm:$0xff]
    %v50 = vrot.slane %v48, 1
    %v51 = vrot.slane %v48, 2
    %v52 = vrot.slane %v48, 3
    %v53 = vrot.slane %v48, 4
    %v54 = vrot.slane %v48, 5
    %v55 = vrot.slane %v48, 6
    %v56 = vrot.slane %v48, 7
    %v64 = vld [vmem:[%s3] sm:$0xff]
    %v66 = vrot.slane %v64, 1
    %v67 = vrot.slane %v64, 2
    %v68 = vrot.slane %v64, 3
    %v69 = vrot.slane %v64, 4
    %v70 = vrot.slane %v64, 5
    %v71 = vrot.slane %v64, 6
    %v72 = vrot.slane %v64, 7
    %vm73 = vcmask 261120
    %v74 = vsel %vm73, %v31, 0.0
    %75 = vadd.xlane.f32.xlu0 %v74
    %v76 = vpop.xlane.xlu0 %75
    %v77 = vsel %vm73, %v32, 0.0
    %78 = vadd.xlane.f32.xlu0 %v77
    %v79 = vpop.xlane.xlu0 %78
    %v80 = vsel %vm73, %v33, 0.0
    %81 = vadd.xlane.f32.xlu0 %v80
    %v82 = vpop.xlane.xlu0 %81
    %v83 = vsel %vm73, %v34, 0.0
    %84 = vadd.xlane.f32.xlu0 %v83
    %v85 = vpop.xlane.xlu0 %84
    %v86 = vsel %vm73, %v35, 0.0
    %87 = vadd.xlane.f32.xlu0 %v86
    %v88 = vpop.xlane.xlu0 %87
    %v89 = vsel %vm73, %v36, 0.0
    %90 = vadd.xlane.f32.xlu0 %v89
    %v91 = vpop.xlane.xlu0 %90
    %v92 = vsel %vm73, %v37, 0.0
    %93 = vadd.xlane.f32.xlu0 %v92
    %v94 = vpop.xlane.xlu0 %93
    %v95 = vsel %vm73, %v38, 0.0
    %96 = vadd.xlane.f32.xlu0 %v95
    %v97 = vpop.xlane.xlu0 %96
    %v98 = vrcp.pop 32.0
    %v99 = vmul.f32 32.0, %v98
    %v100 = vsub.f32 1.0, %v99
    %v101 = vmul.f32 %v98, %v100
    %v102 = vadd.f32 %v98, %v101
    %vm103 = vweird.f32 %v98
    %v104 = vsel %vm103, %v98, %v102
    %v105 = vmul.f32 %v76, %v104
    %v106 = vmul.f32 %v79, %v104
    %v107 = vmul.f32 %v82, %v104
    %v108 = vmul.f32 %v85, %v104
    %v109 = vmul.f32 %v88, %v104
    %v110 = vmul.f32 %v91, %v104
    %v111 = vmul.f32 %v94, %v104
    %v112 = vmul.f32 %v97, %v104
    %v113 = vsub.f32 %v31, %v105
    %v114 = vsub.f32 %v32, %v106
    %v115 = vsub.f32 %v33, %v107
    %v116 = vsub.f32 %v34, %v108
    %v117 = vsub.f32 %v35, %v109
    %v118 = vsub.f32 %v36, %v110
    %v119 = vsub.f32 %v37, %v111
    %v120 = vsub.f32 %v38, %v112
    %v121 = vmul.f32 %v113, %v113
    %v122 = vmul.f32 %v114, %v114
    %v123 = vmul.f32 %v115, %v115
    %v124 = vmul.f32 %v116, %v116
    %v125 = vmul.f32 %v117, %v117
    %v126 = vmul.f32 %v118, %v118
    %v127 = vmul.f32 %v119, %v119
    %v128 = vmul.f32 %v120, %v120
    %v129 = vsel %vm73, %v121, 0.0
    %130 = vadd.xlane.f32.xlu0 %v129
    %v131 = vpop.xlane.xlu0 %130
    %v132 = vsel %vm73, %v122, 0.0
    %133 = vadd.xlane.f32.xlu0 %v132
    %v134 = vpop.xlane.xlu0 %133
    %v135 = vsel %vm73, %v123, 0.0
    %136 = vadd.xlane.f32.xlu0 %v135
    %v137 = vpop.xlane.xlu0 %136
    %v138 = vsel %vm73, %v124, 0.0
    %139 = vadd.xlane.f32.xlu0 %v138
    %v140 = vpop.xlane.xlu0 %139
    %v141 = vsel %vm73, %v125, 0.0
    %142 = vadd.xlane.f32.xlu0 %v141
    %v143 = vpop.xlane.xlu0 %142
    %v144 = vsel %vm73, %v126, 0.0
    %145 = vadd.xlane.f32.xlu0 %v144
    %v146 = vpop.xlane.xlu0 %145
    %v147 = vsel %vm73, %v127, 0.0
    %148 = vadd.xlane.f32.xlu0 %v147
    %v149 = vpop.xlane.xlu0 %148
    %v150 = vsel %vm73, %v128, 0.0
    %151 = vadd.xlane.f32.xlu0 %v150
    %v152 = vpop.xlane.xlu0 %151
    %v153 = vmul.f32 %v131, %v104
    %v154 = vmul.f32 %v134, %v104
    %v155 = vmul.f32 %v137, %v104
    %v156 = vmul.f32 %v140, %v104
    %v157 = vmul.f32 %v143, %v104
    %v158 = vmul.f32 %v146, %v104
    %v159 = vmul.f32 %v149, %v104
    %v160 = vmul.f32 %v152, %v104
    %v161 = vadd.f32 %v153, 1e-06
    %v162 = vadd.f32 %v154, 1e-06
    %v163 = vadd.f32 %v155, 1e-06
    %v164 = vadd.f32 %v156, 1e-06
    %v165 = vadd.f32 %v157, 1e-06
    %v166 = vadd.f32 %v158, 1e-06
    %v167 = vadd.f32 %v159, 1e-06
    %v168 = vadd.f32 %v160, 1e-06
    %v169 = vrsqrt.pop %v161
    %v170 = vmul.f32 %v169, %v161
    %v171 = vmul.f32 %v170, %v169
    %v172 = vmul.f32 0.5, %v171
    %v173 = vsub.f32 1.5, %v172
    %v174 = vmul.f32 %v169, %v173
    %vm175 = vweird.f32 %v161
    %vm176 = vweird.f32 %v169
    %vm177 = vmor %vm175, %vm176
    %v178 = vsel %vm177, %v169, %v174
    %v179 = vrsqrt.pop %v162
    %v180 = vmul.f32 %v179, %v162
    %v181 = vmul.f32 %v180, %v179
    %v182 = vmul.f32 0.5, %v181
    %v183 = vsub.f32 1.5, %v182
    %v184 = vmul.f32 %v179, %v183
    %vm185 = vweird.f32 %v162
    %vm186 = vweird.f32 %v179
    %vm187 = vmor %vm185, %vm186
    %v188 = vsel %vm187, %v179, %v184
    %v189 = vrsqrt.pop %v163
    %v190 = vmul.f32 %v189, %v163
    %v191 = vmul.f32 %v190, %v189
    %v192 = vmul.f32 0.5, %v191
    %v193 = vsub.f32 1.5, %v192
    %v194 = vmul.f32 %v189, %v193
    %vm195 = vweird.f32 %v163
    %vm196 = vweird.f32 %v189
    %vm197 = vmor %vm195, %vm196
    %v198 = vsel %vm197, %v189, %v194
    %v199 = vrsqrt.pop %v164
    %v200 = vmul.f32 %v199, %v164
    %v201 = vmul.f32 %v200, %v199
    %v202 = vmul.f32 0.5, %v201
    %v203 = vsub.f32 1.5, %v202
    %v204 = vmul.f32 %v199, %v203
    %vm205 = vweird.f32 %v164
    %vm206 = vweird.f32 %v199
    %vm207 = vmor %vm205, %vm206
    %v208 = vsel %vm207, %v199, %v204
    %v209 = vrsqrt.pop %v165
    %v210 = vmul.f32 %v209, %v165
    %v211 = vmul.f32 %v210, %v209
    %v212 = vmul.f32 0.5, %v211
    %v213 = vsub.f32 1.5, %v212
    %v214 = vmul.f32 %v209, %v213
    %vm215 = vweird.f32 %v165
    %vm216 = vweird.f32 %v209
    %vm217 = vmor %vm215, %vm216
    %v218 = vsel %vm217, %v209, %v214
    %v219 = vrsqrt.pop %v166
    %v220 = vmul.f32 %v219, %v166
    %v221 = vmul.f32 %v220, %v219
    %v222 = vmul.f32 0.5, %v221
    %v223 = vsub.f32 1.5, %v222
    %v224 = vmul.f32 %v219, %v223
    %vm225 = vweird.f32 %v166
    %vm226 = vweird.f32 %v219
    %vm227 = vmor %vm225, %vm226
    %v228 = vsel %vm227, %v219, %v224
    %v229 = vrsqrt.pop %v167
    %v230 = vmul.f32 %v229, %v167
    %v231 = vmul.f32 %v230, %v229
    %v232 = vmul.f32 0.5, %v231
    %v233 = vsub.f32 1.5, %v232
    %v234 = vmul.f32 %v229, %v233
    %vm235 = vweird.f32 %v167
    %vm236 = vweird.f32 %v229
    %vm237 = vmor %vm235, %vm236
    %v238 = vsel %vm237, %v229, %v234
    %v239 = vrsqrt.pop %v168
    %v240 = vmul.f32 %v239, %v168
    %v241 = vmul.f32 %v240, %v239
    %v242 = vmul.f32 0.5, %v241
    %v243 = vsub.f32 1.5, %v242
    %v244 = vmul.f32 %v239, %v243
    %vm245 = vweird.f32 %v168
    %vm246 = vweird.f32 %v239
    %vm247 = vmor %vm245, %vm246
    %v248 = vsel %vm247, %v239, %v244
    %v249 = vmul.f32 %v113, %v178
    %v250 = vmul.f32 %v114, %v188
    %v251 = vmul.f32 %v115, %v198
    %v252 = vmul.f32 %v116, %v208
    %v253 = vmul.f32 %v117, %v218
    %v254 = vmul.f32 %v118, %v228
    %v255 = vmul.f32 %v119, %v238
    %v256 = vmul.f32 %v120, %v248
    %v257 = vadd.f32 %v48, 1.0
    %v258 = vadd.f32 %v50, 1.0
    %v259 = vadd.f32 %v51, 1.0
    %v260 = vadd.f32 %v52, 1.0
    %v261 = vadd.f32 %v53, 1.0
    %v262 = vadd.f32 %v54, 1.0
    %v263 = vadd.f32 %v55, 1.0
    %v264 = vadd.f32 %v56, 1.0
    %v273 = vperm.slane %v257, 0
    %v274 = vperm.slane %v258, 0
    %v275 = vperm.slane %v259, 0
    %v276 = vperm.slane %v260, 0
    %v277 = vperm.slane %v261, 0
    %v278 = vperm.slane %v262, 0
    %v279 = vperm.slane %v263, 0
    %v280 = vperm.slane %v264, 0
    %v289 = vmul.f32 %v249, %v273
    %v290 = vmul.f32 %v250, %v274
    %v291 = vmul.f32 %v251, %v275
    %v292 = vmul.f32 %v252, %v276
    %v293 = vmul.f32 %v253, %v277
    %v294 = vmul.f32 %v254, %v278
    %v295 = vmul.f32 %v255, %v279
    %v296 = vmul.f32 %v256, %v280
    %v297 = vperm.slane %v39, 0
    %v298 = vperm.slane %v41, 0
    %v299 = vperm.slane %v42, 0
    %v300 = vperm.slane %v43, 0
    %v301 = vperm.slane %v44, 0
    %v302 = vperm.slane %v45, 0
    %v303 = vperm.slane %v46, 0
    %v304 = vperm.slane %v47, 0
    %v313 = vadd.f32 %v289, %v297
    %v314 = vadd.f32 %v290, %v298
    %v315 = vadd.f32 %v291, %v299
    %v316 = vadd.f32 %v292, %v300
    %v317 = vadd.f32 %v293, %v301
    %v318 = vadd.f32 %v294, %v302
    %v319 = vadd.f32 %v295, %v303
    %v320 = vadd.f32 %v296, %v304
    %v321 = vld [vmem:[%s4] sm:$0xf]
    %v322 = vld [vmem:[%s4 + $0x4] sm:$0xf]
    %v323 = vld [vmem:[%s4 + $0x8] sm:$0xf]
    %v324 = vld [vmem:[%s4 + $0xc] sm:$0xf]
    %v325 = vld [vmem:[%s5] sm:$0x1]
    %v326 = vpack.c.bf16 %v314, %v313
    %v327 = vpack.c.bf16 %v316, %v315
    %v328 = vpack.c.bf16 %v318, %v317
    %v329 = vpack.c.bf16 %v320, %v319
    %v331 = vperm.slane %v325, 0
    %v337 = vunpack.c.l.b16 %v321
    %v338 = vunpack.c.l.b16 %v322
    %v339 = vunpack.c.l.b16 %v323
    %v340 = vunpack.c.l.b16 %v324
    %v341 = vpack.c.b16 %v338, %v337
    %v342 = vpack.c.b16 %v340, %v339
    %v346 = vsel %vm73, %v326, 0
    %v349 = vsel %vm73, %v327, 0
    %v352 = vsel %vm73, %v328, 0
    %v355 = vsel %vm73, %v329, 0
    %357 = vmatpush.bf16.msra.mxu0 0
    %358 = vmatpush.bf16.msra.mxu0 0
    %359 = vmatpush.bf16.msra.mxu0 0
    %360 = vmatpush.bf16.msra.mxu0 0
    %361 = vmatpush.bf16.msra.mxu0 0
    %362 = vmatpush.bf16.msra.mxu0 0
    %363 = vmatpush.bf16.msra.mxu0 %v342
    %364 = vmatpush.bf16.msra.mxu0 %v341
    %365 = vmatmul.bf16.gmra.mxu0 %v346
    %v366 = vpop.f32.mrf.mxu0
    %v367 = vadd.f32 %v331, %v366
    %v368 = vpop.f32.mrf.mxu0
    %v369 = vadd.f32 %v331, %v368
    %370 = vmatmul.bf16.gmra.mxu0 %v349
    %v371 = vpop.f32.mrf.mxu0
    %v372 = vadd.f32 %v331, %v371
    %v373 = vpop.f32.mrf.mxu0
    %v374 = vadd.f32 %v331, %v373
    %375 = vmatmul.bf16.gmra.mxu0 %v352
    %v376 = vpop.f32.mrf.mxu0
    %v377 = vadd.f32 %v331, %v376
    %v378 = vpop.f32.mrf.mxu0
    %v379 = vadd.f32 %v331, %v378
    %380 = vmatmul.bf16.gmra.mxu0 %v355
    %v381 = vpop.f32.mrf.mxu0
    %v382 = vadd.f32 %v331, %v381
    %v383 = vpop.f32.mrf.mxu0
    %v384 = vadd.f32 %v331, %v383
    %385 = vdwg.mxu0
    %v386 = vmul.f32 %v367, 0.5
    %v387 = vmul.f32 %v369, 0.5
    %v388 = vmul.f32 %v372, 0.5
    %v389 = vmul.f32 %v374, 0.5
    %v390 = vmul.f32 %v377, 0.5
    %v391 = vmul.f32 %v379, 0.5
    %v392 = vmul.f32 %v382, 0.5
    %v393 = vmul.f32 %v384, 0.5
    %v394 = vmul.f32 %v367, 0.044715
    %v395 = vmul.f32 %v369, 0.044715
    %v396 = vmul.f32 %v372, 0.044715
    %v397 = vmul.f32 %v374, 0.044715
    %v398 = vmul.f32 %v377, 0.044715
    %v399 = vmul.f32 %v379, 0.044715
    %v400 = vmul.f32 %v382, 0.044715
    %v401 = vmul.f32 %v384, 0.044715
    %v402 = vmul.f32 %v394, %v367
    %v403 = vmul.f32 %v395, %v369
    %v404 = vmul.f32 %v396, %v372
    %v405 = vmul.f32 %v397, %v374
    %v406 = vmul.f32 %v398, %v377
    %v407 = vmul.f32 %v399, %v379
    %v408 = vmul.f32 %v400, %v382
    %v409 = vmul.f32 %v401, %v384
    %v410 = vmul.f32 %v402, %v367
    %v411 = vmul.f32 %v403, %v369
    %v412 = vmul.f32 %v404, %v372
    %v413 = vmul.f32 %v405, %v374
    %v414 = vmul.f32 %v406, %v377
    %v415 = vmul.f32 %v407, %v379
    %v416 = vmul.f32 %v408, %v382
    %v417 = vmul.f32 %v409, %v384
    %v418 = vadd.f32 %v367, %v410
    %v419 = vadd.f32 %v369, %v411
    %v420 = vadd.f32 %v372, %v412
    %v421 = vadd.f32 %v374, %v413
    %v422 = vadd.f32 %v377, %v414
    %v423 = vadd.f32 %v379, %v415
    %v424 = vadd.f32 %v382, %v416
    %v425 = vadd.f32 %v384, %v417
    %v426 = vmul.f32 %v418, 0.7978846
    %v427 = vmul.f32 %v419, 0.7978846
    %v428 = vmul.f32 %v420, 0.7978846
    %v429 = vmul.f32 %v421, 0.7978846
    %v430 = vmul.f32 %v422, 0.7978846
    %v431 = vmul.f32 %v423, 0.7978846
    %v432 = vmul.f32 %v424, 0.7978846
    %v433 = vmul.f32 %v425, 0.7978846
    %v434 = vtanh.pop %v426
    %v435 = vtanh.pop %v427
    %v436 = vtanh.pop %v428
    %v437 = vtanh.pop %v429
    %v438 = vtanh.pop %v430
    %v439 = vtanh.pop %v431
    %v440 = vtanh.pop %v432
    %v441 = vtanh.pop %v433
    %v442 = vadd.f32 %v434, 1.0
    %v443 = vadd.f32 %v435, 1.0
    %v444 = vadd.f32 %v436, 1.0
    %v445 = vadd.f32 %v437, 1.0
    %v446 = vadd.f32 %v438, 1.0
    %v447 = vadd.f32 %v439, 1.0
    %v448 = vadd.f32 %v440, 1.0
    %v449 = vadd.f32 %v441, 1.0
    %v450 = vmul.f32 %v386, %v442
    %v451 = vmul.f32 %v387, %v443
    %v452 = vmul.f32 %v388, %v444
    %v453 = vmul.f32 %v389, %v445
    %v454 = vmul.f32 %v390, %v446
    %v455 = vmul.f32 %v391, %v447
    %v456 = vmul.f32 %v392, %v448
    %v457 = vmul.f32 %v393, %v449
    %v458 = vld [vmem:[%s6] sm:$0xf]
    %v459 = vld [vmem:[%s6 + $0x4] sm:$0xf]
    %v460 = vld [vmem:[%s6 + $0x8] sm:$0xf]
    %v461 = vld [vmem:[%s6 + $0xc] sm:$0xf]
    %v462 = vld [vmem:[%s6 + $0x10] sm:$0xf]
    %v463 = vld [vmem:[%s6 + $0x14] sm:$0xf]
    %v464 = vld [vmem:[%s6 + $0x18] sm:$0xf]
    %v465 = vld [vmem:[%s6 + $0x1c] sm:$0xf]
    %v466 = vld [vmem:[%s6 + $0x20] sm:$0xf]
    %v467 = vld [vmem:[%s6 + $0x24] sm:$0xf]
    %v468 = vld [vmem:[%s6 + $0x28] sm:$0xf]
    %v469 = vld [vmem:[%s6 + $0x2c] sm:$0xf]
    %v470 = vld [vmem:[%s6 + $0x30] sm:$0xf]
    %v471 = vld [vmem:[%s6 + $0x34] sm:$0xf]
    %v472 = vld [vmem:[%s6 + $0x38] sm:$0xf]
    %v473 = vld [vmem:[%s6 + $0x3c] sm:$0xf]
    %v474 = vld [vmem:[%s7] sm:$0x1]
    %v475 = vpack.c.bf16 %v451, %v450
    %v476 = vpack.c.bf16 %v453, %v452
    %v477 = vpack.c.bf16 %v455, %v454
    %v478 = vpack.c.bf16 %v457, %v456
    %v480 = vperm.slane %v474, 0
    %v498 = vunpack.c.l.b16 %v458
    %v499 = vunpack.c.l.b16 %v459
    %v500 = vunpack.c.l.b16 %v460
    %v501 = vunpack.c.l.b16 %v461
    %v502 = vunpack.c.l.b16 %v462
    %v503 = vunpack.c.l.b16 %v463
    %v504 = vunpack.c.l.b16 %v464
    %v505 = vunpack.c.l.b16 %v465
    %v506 = vunpack.c.l.b16 %v466
    %v507 = vunpack.c.l.b16 %v467
    %v508 = vunpack.c.l.b16 %v468
    %v509 = vunpack.c.l.b16 %v469
    %v510 = vunpack.c.l.b16 %v470
    %v511 = vunpack.c.l.b16 %v471
    %v512 = vunpack.c.l.b16 %v472
    %v513 = vunpack.c.l.b16 %v473
    %v514 = vpack.c.b16 %v499, %v498
    %v515 = vpack.c.b16 %v501, %v500
    %v516 = vpack.c.b16 %v503, %v502
    %v517 = vpack.c.b16 %v505, %v504
    %v518 = vpack.c.b16 %v507, %v506
    %v519 = vpack.c.b16 %v509, %v508
    %v520 = vpack.c.b16 %v511, %v510
    %v521 = vpack.c.b16 %v513, %v512
    %530 = vmatpush.bf16.msra.mxu0 %v521
    %531 = vmatpush.bf16.msra.mxu0 %v520
    %532 = vmatpush.bf16.msra.mxu0 %v519
    %533 = vmatpush.bf16.msra.mxu0 %v518
    %534 = vmatpush.bf16.msra.mxu0 %v517
    %535 = vmatpush.bf16.msra.mxu0 %v516
    %536 = vmatpush.bf16.msra.mxu0 %v515
    %537 = vmatpush.bf16.msra.mxu0 %v514
    %538 = vmatmul.bf16.gmra.mxu0 %v475
    %v539 = vpop.f32.mrf.mxu0
    %v540 = vadd.f32 %v480, %v539
    %v541 = vpop.f32.mrf.mxu0
    %v542 = vadd.f32 %v480, %v541
    %543 = vmatmul.bf16.gmra.mxu0 %v476
    %v544 = vpop.f32.mrf.mxu0
    %v545 = vadd.f32 %v480, %v544
    %v546 = vpop.f32.mrf.mxu0
    %v547 = vadd.f32 %v480, %v546
    %548 = vmatmul.bf16.gmra.mxu0 %v477
    %v549 = vpop.f32.mrf.mxu0
    %v550 = vadd.f32 %v480, %v549
    %v551 = vpop.f32.mrf.mxu0
    %v552 = vadd.f32 %v480, %v551
    %553 = vmatmul.bf16.gmra.mxu0 %v478
    %v554 = vpop.f32.mrf.mxu0
    %v555 = vadd.f32 %v480, %v554
    %v556 = vpop.f32.mrf.mxu0
    %v557 = vadd.f32 %v480, %v556
    %558 = vdwg.mxu0
    %v559 = vperm.slane %v64, 0
    %v560 = vperm.slane %v66, 0
    %v561 = vperm.slane %v67, 0
    %v562 = vperm.slane %v68, 0
    %v563 = vperm.slane %v69, 0
    %v564 = vperm.slane %v70, 0
    %v565 = vperm.slane %v71, 0
    %v566 = vperm.slane %v72, 0
    %v575 = vmul.f32 %v559, %v540
    %v576 = vmul.f32 %v560, %v542
    %v577 = vmul.f32 %v561, %v545
    %v578 = vmul.f32 %v562, %v547
    %v579 = vmul.f32 %v563, %v550
    %v580 = vmul.f32 %v564, %v552
    %v581 = vmul.f32 %v565, %v555
    %v582 = vmul.f32 %v566, %v557
    %v583 = vadd.f32 %v31, %v575
    %v584 = vadd.f32 %v32, %v576
    %v585 = vadd.f32 %v33, %v577
    %v586 = vadd.f32 %v34, %v578
    %v587 = vadd.f32 %v35, %v579
    %v588 = vadd.f32 %v36, %v580
    %v589 = vadd.f32 %v37, %v581
    %v590 = vadd.f32 %v38, %v582
    %591 = vst.msk [vmem:[#allocation2] sm:$0xff] %vm73, %v583
    %592 = vst.msk [vmem:[#allocation2 + $0x8] sm:$0xff] %vm73, %v584
    %593 = vst.msk [vmem:[#allocation2 + $0x10] sm:$0xff] %vm73, %v585
    %594 = vst.msk [vmem:[#allocation2 + $0x18] sm:$0xff] %vm73, %v586
    %595 = vst.msk [vmem:[#allocation2 + $0x20] sm:$0xff] %vm73, %v587
    %596 = vst.msk [vmem:[#allocation2 + $0x28] sm:$0xff] %vm73, %v588
    %597 = vst.msk [vmem:[#allocation2 + $0x30] sm:$0xff] %vm73, %v589
    %598 = vst.msk [vmem:[#allocation2 + $0x38] sm:$0xff] %vm73, %v590
    // Predicated region
    $region34: #{flav_block.16} parent=1 // pred_check
      _
    $region35: #{flav_block.16} parent=1 // pred_check_branch
      %600 = sbr.rel (0) target = $region37
    $region36: #{flav_block.16} parent=1 // pred_region
      %602 = vsyncadd [#allocation3], 0
      %s603 = sshll.u32 [#allocation2], 4
      %s604 = int_to_ptr.vmem [resolvable:$true] %s603
      %s605 = sshll.u32 %s8, 4
      %s606 = int_to_ptr.hbm [resolvable:$true] %s605
      %611 = dma.vmem_to_hbm [thread:$0]  %s604, 1024, %s606, [#allocation3], 128, 128, 8
    $region37: #{flav_block.16} parent=1 // pred_fallthru
      _
    // Predicated region
    $region38: #{flav_block.16} parent=1 // pred_check
      _
    $region39: #{flav_block.16} parent=1 // pred_check_branch
      %613 = sbr.rel (0) target = $region41
    $region40: #{flav_block.16} parent=1 // pred_region
      %615 = dma.done [#allocation3], 1024
    $region41: #{flav_block.16} parent=1 // pred_fallthru
      _
    %616 = vsyncpa [#allocation3], 1

</llo_original>
